<compile_context>
chip_gen: v7x
topology: tpu7x:2x2x1
jax: 0.10.0
libtpu: 0.0.40
codegen_flags: <defaults>
</compile_context>

<pallas_src>
import functools
import math

import jax
import jax.numpy as jnp
from jax import lax
from jax.experimental import pallas as pl
from jax.experimental.pallas import tpu as pltpu


# ----------------------------------------------------------------------------
# Fused Pallas convolution kernel
#   y = conv2d(x, w)           (stride 1, groups 1, no bias)
#   y = y + partner            (optional fused octave-branch add, in f32)
# ----------------------------------------------------------------------------
def _octconv_kernel(x_ref, w_ref, *args, kh, kw, dil, oh, ow, has_partner):
    # x_ref : (Hp, Wp, Cin)        bf16, batch dim squeezed
    # w_ref : (kh*kw, Cin, TCO)    bf16
    # part  : (OH*OW, TCO)         (optional, any float dtype)
    # o_ref : (OH*OW, TCO)
    if has_partner:
        part_ref, o_ref = args
    else:
        (o_ref,) = args
        part_ref = None

    cin = x_ref.shape[-1]
    tco = o_ref.shape[-1]

    acc = jnp.zeros((oh * ow, tco), jnp.float32)
    for t in range(kh * kw):                      # static unrolled tap loop
        i = (t // kw) * dil
        j = (t % kw) * dil
        # shifted window of the padded input; no im2col materialization in HBM
        win = x_ref[pl.ds(i, oh), pl.ds(j, ow), :]            # (oh, ow, cin) bf16
        lhs = win.reshape(oh * ow, cin)                       # leading-dim merge only
        acc = acc + jnp.dot(lhs, w_ref[t],                    # MXU, f32 accumulation
                            preferred_element_type=jnp.float32)

    if part_ref is not None:                      # fused octave-branch add (f32 epilogue)
        acc = acc + part_ref[...].astype(jnp.float32)

    o_ref[...] = acc.astype(o_ref.dtype)


def octconv2d(x_nhwc, w_oihw, *, padding, dilation=1, partner=None,
              out_dtype=jnp.float32, cout_tile=128,
              vmem_limit_bytes=32 * 1024 * 1024):
    """2-D convolution (stride 1, groups 1, bias=False) with optional fused add.

    x_nhwc  : (N, H, W, Cin)  any float dtype (cast to bf16 for the MXU)
    w_oihw  : (Cout, Cin, kh, kw)  PyTorch layout
    partner : optional (N, OH, OW, Cout) tensor added in the kernel epilogue
    returns : (N, OH, OW, Cout) in `out_dtype`
    """
    N, H, W, Cin = x_nhwc.shape
    Cout, Cin_w, kh, kw = w_oihw.shape
    assert Cin == Cin_w, (Cin, Cin_w)
    OH = H + 2 * padding - dilation * (kh - 1)
    OW = W + 2 * padding - dilation * (kw - 1)
    assert OH > 0 and OW > 0
    Hp, Wp = H + 2 * padding, W + 2 * padding
    M = OH * OW

    # bf16 once (halves HBM traffic); only the spatial halo is padded.
    xp = x_nhwc.astype(jnp.bfloat16)
    if padding:
        xp = jnp.pad(xp, ((0, 0), (padding, padding), (padding, padding), (0, 0)))
    # (Cout, Cin, kh, kw) -> (kh*kw, Cin, Cout), bf16, repacked once per call.
    wk = jnp.transpose(w_oihw, (2, 3, 1, 0)).reshape(kh * kw, Cin, Cout)
    wk = wk.astype(jnp.bfloat16)

    # Output-channel tiling (bounds per-step VMEM, keeps lanes dense for big Cout).
    if Cout > cout_tile and Cout % cout_tile == 0:
        TCO = cout_tile
    else:
        TCO = Cout
    nco = Cout // TCO

    in_specs = [
        pl.BlockSpec((None, Hp, Wp, Cin), lambda n, co: (n, 0, 0, 0)),
        pl.BlockSpec((kh * kw, Cin, TCO), lambda n, co: (0, 0, co)),
    ]
    args = [xp, wk]
    if partner is not None:
        assert partner.shape == (N, OH, OW, Cout), (partner.shape, (N, OH, OW, Cout))
        in_specs.append(pl.BlockSpec((None, M, TCO), lambda n, co: (n, 0, co)))
        args.append(partner.reshape(N, M, Cout))      # free metadata reshape

    kernel = functools.partial(
        _octconv_kernel, kh=kh, kw=kw, dil=dilation, oh=OH, ow=OW,
        has_partner=partner is not None)

    out = pl.pallas_call(
        kernel,
        out_shape=jax.ShapeDtypeStruct((N, M, Cout), out_dtype),
        grid_spec=pltpu.PrefetchScalarGridSpec(
            num_scalar_prefetch=0,
            grid=(N, nco),
            in_specs=in_specs,
            out_specs=pl.BlockSpec((None, M, TCO), lambda n, co: (n, 0, co)),
        ),
        compiler_params=pltpu.CompilerParams(
            dimension_semantics=("parallel", "parallel"),   # megacore-shardable (v7x)
            vmem_limit_bytes=vmem_limit_bytes,              # <= 32 MiB: safe on v7x 64 MiB/TC
        ),
    )(*args)
    return out.reshape(N, OH, OW, Cout)


# ----------------------------------------------------------------------------
# Plain-JAX glue (pool / upsample); convs + adds all go through the Pallas kernel.
# ----------------------------------------------------------------------------
def avg_pool2(x):
    """nn.AvgPool2d(kernel_size=(2,2), stride=2) on NHWC (odd trailing row/col dropped)."""
    N, H, W, C = x.shape
    H2, W2 = H // 2, W // 2
    x = x[:, :H2 * 2, :W2 * 2, :]
    return x.reshape(N, H2, 2, W2, 2, C).mean(axis=(2, 4))


def upsample2_nearest(x):
    """nn.Upsample(scale_factor=2, mode='nearest') on NHWC."""
    return jnp.repeat(jnp.repeat(x, 2, axis=1), 2, axis=2)


# ----------------------------------------------------------------------------
# OctaveConv.forward (groups=1, bias=False)
# ----------------------------------------------------------------------------
def octave_conv_forward(params, x, *, alpha_out, stride, padding, dilation=1):
    x_h, x_l = x if isinstance(x, tuple) else (x, None)
    assert stride in (1, 2), 'Stride should be 1 or 2.'
    if stride == 2:
        x_h = avg_pool2(x_h)

    # Intermediate branch partials (only feed a fused add) are kept in bf16.
    inter_dtype = jnp.bfloat16 if x_l is not None else jnp.float32

    x_h2l = None
    if alpha_out > 0 and 'w_h2l' in params:
        x_h2l = octconv2d(avg_pool2(x_h), params['w_h2l'], padding=padding,
                          dilation=dilation, out_dtype=inter_dtype)

    if x_l is not None:
        # low -> high partial (low resolution), nearest-upsampled when stride == 1
        x_l2h = octconv2d(x_l, params['w_l2h'], padding=padding, dilation=dilation,
                          out_dtype=jnp.bfloat16)
        if stride == 1:
            x_l2h = upsample2_nearest(x_l2h)
        # high -> high conv with the l2h partial fused into its epilogue
        y_h = octconv2d(x_h, params['w_h2h'], padding=padding, dilation=dilation,
                        partner=x_l2h, out_dtype=jnp.float32)

        y_l = None
        if alpha_out > 0 and 'w_l2l' in params:
            x_l2l_in = avg_pool2(x_l) if stride == 2 else x_l
            # low -> low conv with the h2l partial fused into its epilogue
            y_l = octconv2d(x_l2l_in, params['w_l2l'], padding=padding,
                            dilation=dilation, partner=x_h2l, out_dtype=jnp.float32)
        return y_h, y_l
    else:
        y_h = octconv2d(x_h, params['w_h2h'], padding=padding, dilation=dilation,
                        out_dtype=jnp.float32)
        return y_h, x_h2l


# ----------------------------------------------------------------------------
# Deterministic parameter construction (matches module __init__ weight shapes)
# ----------------------------------------------------------------------------
def make_octave_conv_params(key, in_channels, out_channels, kernel_size,
                            alpha_in, alpha_out):
    c_in_l = int(alpha_in * in_channels)
    c_in_h = in_channels - c_in_l
    c_out_l = int(alpha_out * out_channels)
    c_out_h = out_channels - c_out_l

    def conv_w(k, cin, cout):
        fan_in = cin * kernel_size * kernel_size
        bound = 1.0 / math.sqrt(fan_in)
        return jax.random.uniform(k, (cout, cin, kernel_size, kernel_size),
                                  jnp.float32, -bound, bound)

    ks = jax.random.split(key, 4)
    p = {}
    if alpha_in > 0 and alpha_out > 0:
        p['w_l2l'] = conv_w(ks[0], c_in_l, c_out_l)
    if alpha_in > 0 and alpha_out < 1:
        p['w_l2h'] = conv_w(ks[1], c_in_l, c_out_h)
    if alpha_in < 1 and alpha_out > 0:
        p['w_h2l'] = conv_w(ks[2], c_in_h, c_out_l)
    if alpha_in < 1 and alpha_out < 1:
        p['w_h2h'] = conv_w(ks[3], c_in_h, c_out_h)
    return p


# ----------------------------------------------------------------------------
# Pure-JAX reference (f32) for a correctness check
# ----------------------------------------------------------------------------
def _conv_ref(x, w, padding, dilation):
    return lax.conv_general_dilated(
        x.astype(jnp.float32), jnp.transpose(w, (2, 3, 1, 0)).astype(jnp.float32),
        window_strides=(1, 1),
        padding=((padding, padding), (padding, padding)),
        rhs_dilation=(dilation, dilation),
        dimension_numbers=('NHWC', 'HWIO', 'NHWC'),
        precision=lax.Precision.HIGHEST)


def octave_conv_reference(params, x, *, alpha_out, stride, padding, dilation=1):
    x_h, x_l = x if isinstance(x, tuple) else (x, None)
    if stride == 2:
        x_h = avg_pool2(x_h)
    x_h2h = _conv_ref(x_h, params['w_h2h'], padding, dilation)
    x_h2l = (_conv_ref(avg_pool2(x_h), params['w_h2l'], padding, dilation)
             if alpha_out > 0 and 'w_h2l' in params else None)
    if x_l is not None:
        x_l2l_in = avg_pool2(x_l) if stride == 2 else x_l
        x_l2l = (_conv_ref(x_l2l_in, params['w_l2l'], padding, dilation)
                 if alpha_out > 0 and 'w_l2l' in params else None)
        x_l2h = _conv_ref(x_l, params['w_l2h'], padding, dilation)
        if stride == 1:
            x_l2h = upsample2_nearest(x_l2h)
        y_h = x_l2h + x_h2h
        y_l = (x_h2l + x_l2l) if (x_h2l is not None and x_l2l is not None) else None
        return y_h, y_l
    return x_h2h, x_h2l


# ----------------------------------------------------------------------------
if __name__ == "__main__":
    # OctaveConv(in_channels=32, out_channels=32, kernel_size=3,
    #            alpha_in=0.5, alpha_out=0.5, stride=1, padding=1, bias=False)
    in_channels, out_channels, ksize = 32, 32, 3
    alpha_in = alpha_out = 0.5
    stride, padding = 1, 1
    N, H, W = 2, 16, 16

    c_in_l = int(alpha_in * in_channels)
    c_in_h = in_channels - c_in_l
    c_out_l = int(alpha_out * out_channels)
    c_out_h = out_channels - c_out_l

    key = jax.random.PRNGKey(0)
    k_p, k_h, k_l = jax.random.split(key, 3)
    params = make_octave_conv_params(k_p, in_channels, out_channels, ksize,
                                     alpha_in, alpha_out)
    # NCHW inputs, as the PyTorch module expects: x = (x_h, x_l)
    x_h_nchw = jax.random.normal(k_h, (N, c_in_h, H, W), dtype=jnp.float32)
    x_l_nchw = jax.random.normal(k_l, (N, c_in_l, H // 2, W // 2), dtype=jnp.float32)

    @jax.jit
    def fwd(xh, xl):
        x_h = jnp.transpose(xh, (0, 2, 3, 1))          # NCHW -> NHWC
        x_l = jnp.transpose(xl, (0, 2, 3, 1))
        y_h, y_l = octave_conv_forward(params, (x_h, x_l), alpha_out=alpha_out,
                                       stride=stride, padding=padding)
        return (jnp.transpose(y_h, (0, 3, 1, 2)),      # NHWC -> NCHW
                jnp.transpose(y_l, (0, 3, 1, 2)))

    y_h, y_l = jax.block_until_ready(fwd(x_h_nchw, x_l_nchw))

    assert y_h.shape == (N, c_out_h, H, W), y_h.shape
    assert y_l.shape == (N, c_out_l, H // 2, W // 2), y_l.shape
    assert bool(jnp.all(jnp.isfinite(y_h))) and bool(jnp.all(jnp.isfinite(y_l)))

    # Correctness check vs pure-JAX f32 reference (loose tolerance: bf16 MXU inputs).
    x_h_ref = jnp.transpose(x_h_nchw, (0, 2, 3, 1))
    x_l_ref = jnp.transpose(x_l_nchw, (0, 2, 3, 1))
    r_h, r_l = octave_conv_reference(params, (x_h_ref, x_l_ref), alpha_out=alpha_out,
                                     stride=stride, padding=padding)
    r_h = jnp.transpose(r_h, (0, 3, 1, 2))
    r_l = jnp.transpose(r_l, (0, 3, 1, 2))
    assert bool(jnp.allclose(y_h, r_h, atol=5e-2, rtol=5e-2)), \
        float(jnp.max(jnp.abs(y_h - r_h)))
    assert bool(jnp.allclose(y_l, r_l, atol=5e-2, rtol=5e-2)), \
        float(jnp.max(jnp.abs(y_l - r_l)))

    print("KERNEL_OK")
</pallas_src>

<mosaic_0001>
module attributes {stable_mosaic.version = 11 : i64} {
  func.func @_octconv_kernel(%arg0: i32, %arg1: i32, %arg2: memref<1x10x10x16xbf16, #tpu.memory_space<vmem>>, %arg3: memref<9x16x16xbf16, #tpu.memory_space<vmem>>, %arg4: memref<1x64x16xbf16, #tpu.memory_space<vmem>>) attributes {dimension_semantics = [#tpu.dimension_semantics<parallel>, #tpu.dimension_semantics<parallel>], iteration_bounds = array<i64: 2, 1>, scalar_prefetch = 0 : i64, scratch_operands = 0 : i64, tpu.core_type = #tpu.core_type<tc>, window_params = [{transform_indices = @transform_0, window_bounds = array<i64: 1, 10, 10, 16>}, {transform_indices = @transform_1, window_bounds = array<i64: 9, 16, 16>}, {transform_indices = @transform_2, window_bounds = array<i64: 1, 64, 16>}]} {
    %cst = arith.constant 0.000000e+00 : f32
    %0 = vector.broadcast %cst : f32 to vector<64x16xf32>
    %c0 = arith.constant 0 : index
    %c0_0 = arith.constant 0 : index
    %c0_1 = arith.constant 0 : index
    %c0_2 = arith.constant 0 : index
    %1 = vector.load %arg2[%c0, %c0_0, %c0_1, %c0_2] : memref<1x10x10x16xbf16, #tpu.memory_space<vmem>>, vector<1x8x8x16xbf16>
    %2 = vector.shape_cast %1 : vector<1x8x8x16xbf16> to vector<8x8x16xbf16>
    %3 = vector.shape_cast %2 : vector<8x8x16xbf16> to vector<64x16xbf16>
    %c0_3 = arith.constant 0 : index
    %c0_4 = arith.constant 0 : index
    %c0_5 = arith.constant 0 : index
    %4 = vector.load %arg3[%c0_3, %c0_4, %c0_5] : memref<9x16x16xbf16, #tpu.memory_space<vmem>>, vector<1x16x16xbf16>
    %5 = vector.shape_cast %4 : vector<1x16x16xbf16> to vector<16x16xbf16>
    %cst_6 = arith.constant dense<0.000000e+00> : vector<64x16xf32>
    %6 = tpu.matmul %3, %5, %cst_6 {dimension_numbers = #tpu.dot_dimension_numbers<[1], [0], [0], [1], [0, 0, 1, 1], [], []>} : vector<64x16xbf16>, vector<16x16xbf16>, vector<64x16xf32> -> vector<64x16xf32>
    %7 = arith.addf %0, %6 : vector<64x16xf32>
    %c0_7 = arith.constant 0 : index
    %c0_8 = arith.constant 0 : index
    %c1 = arith.constant 1 : index
    %c0_9 = arith.constant 0 : index
    %8 = vector.load %arg2[%c0_7, %c0_8, %c1, %c0_9] : memref<1x10x10x16xbf16, #tpu.memory_space<vmem>>, vector<1x8x8x16xbf16>
    %9 = vector.shape_cast %8 : vector<1x8x8x16xbf16> to vector<8x8x16xbf16>
    %10 = vector.shape_cast %9 : vector<8x8x16xbf16> to vector<64x16xbf16>
    %c1_10 = arith.constant 1 : index
    %c0_11 = arith.constant 0 : index
    %c0_12 = arith.constant 0 : index
    %11 = vector.load %arg3[%c1_10, %c0_11, %c0_12] : memref<9x16x16xbf16, #tpu.memory_space<vmem>>, vector<1x16x16xbf16>
    %12 = vector.shape_cast %11 : vector<1x16x16xbf16> to vector<16x16xbf16>
    %cst_13 = arith.constant dense<0.000000e+00> : vector<64x16xf32>
    %13 = tpu.matmul %10, %12, %cst_13 {dimension_numbers = #tpu.dot_dimension_numbers<[1], [0], [0], [1], [0, 0, 1, 1], [], []>} : vector<64x16xbf16>, vector<16x16xbf16>, vector<64x16xf32> -> vector<64x16xf32>
    %14 = arith.addf %7, %13 : vector<64x16xf32>
    %c0_14 = arith.constant 0 : index
    %c0_15 = arith.constant 0 : index
    %c2 = arith.constant 2 : index
    %c0_16 = arith.constant 0 : index
    %15 = vector.load %arg2[%c0_14, %c0_15, %c2, %c0_16] : memref<1x10x10x16xbf16, #tpu.memory_space<vmem>>, vector<1x8x8x16xbf16>
    %16 = vector.shape_cast %15 : vector<1x8x8x16xbf16> to vector<8x8x16xbf16>
    %17 = vector.shape_cast %16 : vector<8x8x16xbf16> to vector<64x16xbf16>
    %c2_17 = arith.constant 2 : index
    %c0_18 = arith.constant 0 : index
    %c0_19 = arith.constant 0 : index
    %18 = vector.load %arg3[%c2_17, %c0_18, %c0_19] : memref<9x16x16xbf16, #tpu.memory_space<vmem>>, vector<1x16x16xbf16>
    %19 = vector.shape_cast %18 : vector<1x16x16xbf16> to vector<16x16xbf16>
    %cst_20 = arith.constant dense<0.000000e+00> : vector<64x16xf32>
    %20 = tpu.matmul %17, %19, %cst_20 {dimension_numbers = #tpu.dot_dimension_numbers<[1], [0], [0], [1], [0, 0, 1, 1], [], []>} : vector<64x16xbf16>, vector<16x16xbf16>, vector<64x16xf32> -> vector<64x16xf32>
    %21 = arith.addf %14, %20 : vector<64x16xf32>
    %c0_21 = arith.constant 0 : index
    %c1_22 = arith.constant 1 : index
    %c0_23 = arith.constant 0 : index
    %c0_24 = arith.constant 0 : index
    %22 = vector.load %arg2[%c0_21, %c1_22, %c0_23, %c0_24] : memref<1x10x10x16xbf16, #tpu.memory_space<vmem>>, vector<1x8x8x16xbf16>
    %23 = vector.shape_cast %22 : vector<1x8x8x16xbf16> to vector<8x8x16xbf16>
    %24 = vector.shape_cast %23 : vector<8x8x16xbf16> to vector<64x16xbf16>
    %c3 = arith.constant 3 : index
    %c0_25 = arith.constant 0 : index
    %c0_26 = arith.constant 0 : index
    %25 = vector.load %arg3[%c3, %c0_25, %c0_26] : memref<9x16x16xbf16, #tpu.memory_space<vmem>>, vector<1x16x16xbf16>
    %26 = vector.shape_cast %25 : vector<1x16x16xbf16> to vector<16x16xbf16>
    %cst_27 = arith.constant dense<0.000000e+00> : vector<64x16xf32>
    %27 = tpu.matmul %24, %26, %cst_27 {dimension_numbers = #tpu.dot_dimension_numbers<[1], [0], [0], [1], [0, 0, 1, 1], [], []>} : vector<64x16xbf16>, vector<16x16xbf16>, vector<64x16xf32> -> vector<64x16xf32>
    %28 = arith.addf %21, %27 : vector<64x16xf32>
    %c0_28 = arith.constant 0 : index
    %c1_29 = arith.constant 1 : index
    %c1_30 = arith.constant 1 : index
    %c0_31 = arith.constant 0 : index
    %29 = vector.load %arg2[%c0_28, %c1_29, %c1_30, %c0_31] : memref<1x10x10x16xbf16, #tpu.memory_space<vmem>>, vector<1x8x8x16xbf16>
    %30 = vector.shape_cast %29 : vector<1x8x8x16xbf16> to vector<8x8x16xbf16>
    %31 = vector.shape_cast %30 : vector<8x8x16xbf16> to vector<64x16xbf16>
    %c4 = arith.constant 4 : index
    %c0_32 = arith.constant 0 : index
    %c0_33 = arith.constant 0 : index
    %32 = vector.load %arg3[%c4, %c0_32, %c0_33] : memref<9x16x16xbf16, #tpu.memory_space<vmem>>, vector<1x16x16xbf16>
    %33 = vector.shape_cast %32 : vector<1x16x16xbf16> to vector<16x16xbf16>
    %cst_34 = arith.constant dense<0.000000e+00> : vector<64x16xf32>
    %34 = tpu.matmul %31, %33, %cst_34 {dimension_numbers = #tpu.dot_dimension_numbers<[1], [0], [0], [1], [0, 0, 1, 1], [], []>} : vector<64x16xbf16>, vector<16x16xbf16>, vector<64x16xf32> -> vector<64x16xf32>
    %35 = arith.addf %28, %34 : vector<64x16xf32>
    %c0_35 = arith.constant 0 : index
    %c1_36 = arith.constant 1 : index
    %c2_37 = arith.constant 2 : index
    %c0_38 = arith.constant 0 : index
    %36 = vector.load %arg2[%c0_35, %c1_36, %c2_37, %c0_38] : memref<1x10x10x16xbf16, #tpu.memory_space<vmem>>, vector<1x8x8x16xbf16>
    %37 = vector.shape_cast %36 : vector<1x8x8x16xbf16> to vector<8x8x16xbf16>
    %38 = vector.shape_cast %37 : vector<8x8x16xbf16> to vector<64x16xbf16>
    %c5 = arith.constant 5 : index
    %c0_39 = arith.constant 0 : index
    %c0_40 = arith.constant 0 : index
    %39 = vector.load %arg3[%c5, %c0_39, %c0_40] : memref<9x16x16xbf16, #tpu.memory_space<vmem>>, vector<1x16x16xbf16>
    %40 = vector.shape_cast %39 : vector<1x16x16xbf16> to vector<16x16xbf16>
    %cst_41 = arith.constant dense<0.000000e+00> : vector<64x16xf32>
    %41 = tpu.matmul %38, %40, %cst_41 {dimension_numbers = #tpu.dot_dimension_numbers<[1], [0], [0], [1], [0, 0, 1, 1], [], []>} : vector<64x16xbf16>, vector<16x16xbf16>, vector<64x16xf32> -> vector<64x16xf32>
    %42 = arith.addf %35, %41 : vector<64x16xf32>
    %c0_42 = arith.constant 0 : index
    %c2_43 = arith.constant 2 : index
    %c0_44 = arith.constant 0 : index
    %c0_45 = arith.constant 0 : index
    %43 = vector.load %arg2[%c0_42, %c2_43, %c0_44, %c0_45] : memref<1x10x10x16xbf16, #tpu.memory_space<vmem>>, vector<1x8x8x16xbf16>
    %44 = vector.shape_cast %43 : vector<1x8x8x16xbf16> to vector<8x8x16xbf16>
    %45 = vector.shape_cast %44 : vector<8x8x16xbf16> to vector<64x16xbf16>
    %c6 = arith.constant 6 : index
    %c0_46 = arith.constant 0 : index
    %c0_47 = arith.constant 0 : index
    %46 = vector.load %arg3[%c6, %c0_46, %c0_47] : memref<9x16x16xbf16, #tpu.memory_space<vmem>>, vector<1x16x16xbf16>
    %47 = vector.shape_cast %46 : vector<1x16x16xbf16> to vector<16x16xbf16>
    %cst_48 = arith.constant dense<0.000000e+00> : vector<64x16xf32>
    %48 = tpu.matmul %45, %47, %cst_48 {dimension_numbers = #tpu.dot_dimension_numbers<[1], [0], [0], [1], [0, 0, 1, 1], [], []>} : vector<64x16xbf16>, vector<16x16xbf16>, vector<64x16xf32> -> vector<64x16xf32>
    %49 = arith.addf %42, %48 : vector<64x16xf32>
    %c0_49 = arith.constant 0 : index
    %c2_50 = arith.constant 2 : index
    %c1_51 = arith.constant 1 : index
    %c0_52 = arith.constant 0 : index
    %50 = vector.load %arg2[%c0_49, %c2_50, %c1_51, %c0_52] : memref<1x10x10x16xbf16, #tpu.memory_space<vmem>>, vector<1x8x8x16xbf16>
    %51 = vector.shape_cast %50 : vector<1x8x8x16xbf16> to vector<8x8x16xbf16>
    %52 = vector.shape_cast %51 : vector<8x8x16xbf16> to vector<64x16xbf16>
    %c7 = arith.constant 7 : index
    %c0_53 = arith.constant 0 : index
    %c0_54 = arith.constant 0 : index
    %53 = vector.load %arg3[%c7, %c0_53, %c0_54] : memref<9x16x16xbf16, #tpu.memory_space<vmem>>, vector<1x16x16xbf16>
    %54 = vector.shape_cast %53 : vector<1x16x16xbf16> to vector<16x16xbf16>
    %cst_55 = arith.constant dense<0.000000e+00> : vector<64x16xf32>
    %55 = tpu.matmul %52, %54, %cst_55 {dimension_numbers = #tpu.dot_dimension_numbers<[1], [0], [0], [1], [0, 0, 1, 1], [], []>} : vector<64x16xbf16>, vector<16x16xbf16>, vector<64x16xf32> -> vector<64x16xf32>
    %56 = arith.addf %49, %55 : vector<64x16xf32>
    %c0_56 = arith.constant 0 : index
    %c2_57 = arith.constant 2 : index
    %c2_58 = arith.constant 2 : index
    %c0_59 = arith.constant 0 : index
    %57 = vector.load %arg2[%c0_56, %c2_57, %c2_58, %c0_59] : memref<1x10x10x16xbf16, #tpu.memory_space<vmem>>, vector<1x8x8x16xbf16>
    %58 = vector.shape_cast %57 : vector<1x8x8x16xbf16> to vector<8x8x16xbf16>
    %59 = vector.shape_cast %58 : vector<8x8x16xbf16> to vector<64x16xbf16>
    %c8 = arith.constant 8 : index
    %c0_60 = arith.constant 0 : index
    %c0_61 = arith.constant 0 : index
    %60 = vector.load %arg3[%c8, %c0_60, %c0_61] : memref<9x16x16xbf16, #tpu.memory_space<vmem>>, vector<1x16x16xbf16>
    %61 = vector.shape_cast %60 : vector<1x16x16xbf16> to vector<16x16xbf16>
    %cst_62 = arith.constant dense<0.000000e+00> : vector<64x16xf32>
    %62 = tpu.matmul %59, %61, %cst_62 {dimension_numbers = #tpu.dot_dimension_numbers<[1], [0], [0], [1], [0, 0, 1, 1], [], []>} : vector<64x16xbf16>, vector<16x16xbf16>, vector<64x16xf32> -> vector<64x16xf32>
    %63 = arith.addf %56, %62 : vector<64x16xf32>
    %64 = arith.truncf %63 : vector<64x16xf32> to vector<64x16xbf16>
    %c0_63 = arith.constant 0 : index
    %c0_64 = arith.constant 0 : index
    %c0_65 = arith.constant 0 : index
    %65 = vector.load %arg4[%c0_63, %c0_64, %c0_65] : memref<1x64x16xbf16, #tpu.memory_space<vmem>>, vector<1x64x16xbf16>
    %66 = vector.shape_cast %65 : vector<1x64x16xbf16> to vector<64x16xbf16>
    %67 = vector.shape_cast %64 : vector<64x16xbf16> to vector<1x64x16xbf16>
    tpu.vector_store %arg4[%c0_63, %c0_64, %c0_65], %67 {strides = array<i32>} : memref<1x64x16xbf16, #tpu.memory_space<vmem>>, vector<1x64x16xbf16>,
    return
  }
  func.func @transform_0(%arg0: i32, %arg1: i32) -> (i32, i32, i32, i32) {
    %c0_i32 = arith.constant 0 : i32
    %c0_i32_0 = arith.constant 0 : i32
    %c0_i32_1 = arith.constant 0 : i32
    %c0_i32_2 = arith.constant 0 : i32
    return %arg0, %c0_i32, %c0_i32_0, %c0_i32_1 : i32, i32, i32, i32
  }
  func.func @transform_1(%arg0: i32, %arg1: i32) -> (i32, i32, i32) {
    %c0_i32 = arith.constant 0 : i32
    %c0_i32_0 = arith.constant 0 : i32
    %c0_i32_1 = arith.constant 0 : i32
    return %c0_i32, %c0_i32_0, %arg1 : i32, i32, i32
  }
  func.func @transform_2(%arg0: i32, %arg1: i32) -> (i32, i32, i32) {
    %c0_i32 = arith.constant 0 : i32
    %c0_i32_0 = arith.constant 0 : i32
    return %arg0, %c0_i32, %arg1 : i32, i32, i32
  }
}

module attributes {stable_mosaic.version = 11 : i64} {
  func.func @_octconv_kernel(%arg0: i32, %arg1: i32, %arg2: memref<1x10x10x16xbf16, #tpu.memory_space<vmem>>, %arg3: memref<9x16x16xbf16, #tpu.memory_space<vmem>>, %arg4: memref<1x64x16xbf16, #tpu.memory_space<vmem>>, %arg5: memref<1x64x16xf32, #tpu.memory_space<vmem>>) attributes {dimension_semantics = [#tpu.dimension_semantics<parallel>, #tpu.dimension_semantics<parallel>], iteration_bounds = array<i64: 2, 1>, scalar_prefetch = 0 : i64, scratch_operands = 0 : i64, tpu.core_type = #tpu.core_type<tc>, window_params = [{transform_indices = @transform_0, window_bounds = array<i64: 1, 10, 10, 16>}, {transform_indices = @transform_1, window_bounds = array<i64: 9, 16, 16>}, {transform_indices = @transform_2, window_bounds = array<i64: 1, 64, 16>}, {transform_indices = @transform_3, window_bounds = array<i64: 1, 64, 16>}]} {
    %cst = arith.constant 0.000000e+00 : f32
    %0 = vector.broadcast %cst : f32 to vector<64x16xf32>
    %c0 = arith.constant 0 : index
    %c0_0 = arith.constant 0 : index
    %c0_1 = arith.constant 0 : index
    %c0_2 = arith.constant 0 : index
    %1 = vector.load %arg2[%c0, %c0_0, %c0_1, %c0_2] : memref<1x10x10x16xbf16, #tpu.memory_space<vmem>>, vector<1x8x8x16xbf16>
    %2 = vector.shape_cast %1 : vector<1x8x8x16xbf16> to vector<8x8x16xbf16>
    %3 = vector.shape_cast %2 : vector<8x8x16xbf16> to vector<64x16xbf16>
    %c0_3 = arith.constant 0 : index
    %c0_4 = arith.constant 0 : index
    %c0_5 = arith.constant 0 : index
    %4 = vector.load %arg3[%c0_3, %c0_4, %c0_5] : memref<9x16x16xbf16, #tpu.memory_space<vmem>>, vector<1x16x16xbf16>
    %5 = vector.shape_cast %4 : vector<1x16x16xbf16> to vector<16x16xbf16>
    %cst_6 = arith.constant dense<0.000000e+00> : vector<64x16xf32>
    %6 = tpu.matmul %3, %5, %cst_6 {dimension_numbers = #tpu.dot_dimension_numbers<[1], [0], [0], [1], [0, 0, 1, 1], [], []>} : vector<64x16xbf16>, vector<16x16xbf16>, vector<64x16xf32> -> vector<64x16xf32>
    %7 = arith.addf %0, %6 : vector<64x16xf32>
    %c0_7 = arith.constant 0 : index
    %c0_8 = arith.constant 0 : index
    %c1 = arith.constant 1 : index
    %c0_9 = arith.constant 0 : index
    %8 = vector.load %arg2[%c0_7, %c0_8, %c1, %c0_9] : memref<1x10x10x16xbf16, #tpu.memory_space<vmem>>, vector<1x8x8x16xbf16>
    %9 = vector.shape_cast %8 : vector<1x8x8x16xbf16> to vector<8x8x16xbf16>
    %10 = vector.shape_cast %9 : vector<8x8x16xbf16> to vector<64x16xbf16>
    %c1_10 = arith.constant 1 : index
    %c0_11 = arith.constant 0 : index
    %c0_12 = arith.constant 0 : index
    %11 = vector.load %arg3[%c1_10, %c0_11, %c0_12] : memref<9x16x16xbf16, #tpu.memory_space<vmem>>, vector<1x16x16xbf16>
    %12 = vector.shape_cast %11 : vector<1x16x16xbf16> to vector<16x16xbf16>
    %cst_13 = arith.constant dense<0.000000e+00> : vector<64x16xf32>
    %13 = tpu.matmul %10, %12, %cst_13 {dimension_numbers = #tpu.dot_dimension_numbers<[1], [0], [0], [1], [0, 0, 1, 1], [], []>} : vector<64x16xbf16>, vector<16x16xbf16>, vector<64x16xf32> -> vector<64x16xf32>
    %14 = arith.addf %7, %13 : vector<64x16xf32>
    %c0_14 = arith.constant 0 : index
    %c0_15 = arith.constant 0 : index
    %c2 = arith.constant 2 : index
    %c0_16 = arith.constant 0 : index
    %15 = vector.load %arg2[%c0_14, %c0_15, %c2, %c0_16] : memref<1x10x10x16xbf16, #tpu.memory_space<vmem>>, vector<1x8x8x16xbf16>
    %16 = vector.shape_cast %15 : vector<1x8x8x16xbf16> to vector<8x8x16xbf16>
    %17 = vector.shape_cast %16 : vector<8x8x16xbf16> to vector<64x16xbf16>
    %c2_17 = arith.constant 2 : index
    %c0_18 = arith.constant 0 : index
    %c0_19 = arith.constant 0 : index
    %18 = vector.load %arg3[%c2_17, %c0_18, %c0_19] : memref<9x16x16xbf16, #tpu.memory_space<vmem>>, vector<1x16x16xbf16>
    %19 = vector.shape_cast %18 : vector<1x16x16xbf16> to vector<16x16xbf16>
    %cst_20 = arith.constant dense<0.000000e+00> : vector<64x16xf32>
    %20 = tpu.matmul %17, %19, %cst_20 {dimension_numbers = #tpu.dot_dimension_numbers<[1], [0], [0], [1], [0, 0, 1, 1], [], []>} : vector<64x16xbf16>, vector<16x16xbf16>, vector<64x16xf32> -> vector<64x16xf32>
    %21 = arith.addf %14, %20 : vector<64x16xf32>
    %c0_21 = arith.constant 0 : index
    %c1_22 = arith.constant 1 : index
    %c0_23 = arith.constant 0 : index
    %c0_24 = arith.constant 0 : index
    %22 = vector.load %arg2[%c0_21, %c1_22, %c0_23, %c0_24] : memref<1x10x10x16xbf16, #tpu.memory_space<vmem>>, vector<1x8x8x16xbf16>
    %23 = vector.shape_cast %22 : vector<1x8x8x16xbf16> to vector<8x8x16xbf16>
    %24 = vector.shape_cast %23 : vector<8x8x16xbf16> to vector<64x16xbf16>
    %c3 = arith.constant 3 : index
    %c0_25 = arith.constant 0 : index
    %c0_26 = arith.constant 0 : index
    %25 = vector.load %arg3[%c3, %c0_25, %c0_26] : memref<9x16x16xbf16, #tpu.memory_space<vmem>>, vector<1x16x16xbf16>
    %26 = vector.shape_cast %25 : vector<1x16x16xbf16> to vector<16x16xbf16>
    %cst_27 = arith.constant dense<0.000000e+00> : vector<64x16xf32>
    %27 = tpu.matmul %24, %26, %cst_27 {dimension_numbers = #tpu.dot_dimension_numbers<[1], [0], [0], [1], [0, 0, 1, 1], [], []>} : vector<64x16xbf16>, vector<16x16xbf16>, vector<64x16xf32> -> vector<64x16xf32>
    %28 = arith.addf %21, %27 : vector<64x16xf32>
    %c0_28 = arith.constant 0 : index
    %c1_29 = arith.constant 1 : index
    %c1_30 = arith.constant 1 : index
    %c0_31 = arith.constant 0 : index
    %29 = vector.load %arg2[%c0_28, %c1_29, %c1_30, %c0_31] : memref<1x10x10x16xbf16, #tpu.memory_space<vmem>>, vector<1x8x8x16xbf16>
    %30 = vector.shape_cast %29 : vector<1x8x8x16xbf16> to vector<8x8x16xbf16>
    %31 = vector.shape_cast %30 : vector<8x8x16xbf16> to vector<64x16xbf16>
    %c4 = arith.constant 4 : index
    %c0_32 = arith.constant 0 : index
    %c0_33 = arith.constant 0 : index
    %32 = vector.load %arg3[%c4, %c0_32, %c0_33] : memref<9x16x16xbf16, #tpu.memory_space<vmem>>, vector<1x16x16xbf16>
    %33 = vector.shape_cast %32 : vector<1x16x16xbf16> to vector<16x16xbf16>
    %cst_34 = arith.constant dense<0.000000e+00> : vector<64x16xf32>
    %34 = tpu.matmul %31, %33, %cst_34 {dimension_numbers = #tpu.dot_dimension_numbers<[1], [0], [0], [1], [0, 0, 1, 1], [], []>} : vector<64x16xbf16>, vector<16x16xbf16>, vector<64x16xf32> -> vector<64x16xf32>
    %35 = arith.addf %28, %34 : vector<64x16xf32>
    %c0_35 = arith.constant 0 : index
    %c1_36 = arith.constant 1 : index
    %c2_37 = arith.constant 2 : index
    %c0_38 = arith.constant 0 : index
    %36 = vector.load %arg2[%c0_35, %c1_36, %c2_37, %c0_38] : memref<1x10x10x16xbf16, #tpu.memory_space<vmem>>, vector<1x8x8x16xbf16>
    %37 = vector.shape_cast %36 : vector<1x8x8x16xbf16> to vector<8x8x16xbf16>
    %38 = vector.shape_cast %37 : vector<8x8x16xbf16> to vector<64x16xbf16>
    %c5 = arith.constant 5 : index
    %c0_39 = arith.constant 0 : index
    %c0_40 = arith.constant 0 : index
    %39 = vector.load %arg3[%c5, %c0_39, %c0_40] : memref<9x16x16xbf16, #tpu.memory_space<vmem>>, vector<1x16x16xbf16>
    %40 = vector.shape_cast %39 : vector<1x16x16xbf16> to vector<16x16xbf16>
    %cst_41 = arith.constant dense<0.000000e+00> : vector<64x16xf32>
    %41 = tpu.matmul %38, %40, %cst_41 {dimension_numbers = #tpu.dot_dimension_numbers<[1], [0], [0], [1], [0, 0, 1, 1], [], []>} : vector<64x16xbf16>, vector<16x16xbf16>, vector<64x16xf32> -> vector<64x16xf32>
    %42 = arith.addf %35, %41 : vector<64x16xf32>
    %c0_42 = arith.constant 0 : index
    %c2_43 = arith.constant 2 : index
    %c0_44 = arith.constant 0 : index
    %c0_45 = arith.constant 0 : index
    %43 = vector.load %arg2[%c0_42, %c2_43, %c0_44, %c0_45] : memref<1x10x10x16xbf16, #tpu.memory_space<vmem>>, vector<1x8x8x16xbf16>
    %44 = vector.shape_cast %43 : vector<1x8x8x16xbf16> to vector<8x8x16xbf16>
    %45 = vector.shape_cast %44 : vector<8x8x16xbf16> to vector<64x16xbf16>
    %c6 = arith.constant 6 : index
    %c0_46 = arith.constant 0 : index
    %c0_47 = arith.constant 0 : index
    %46 = vector.load %arg3[%c6, %c0_46, %c0_47] : memref<9x16x16xbf16, #tpu.memory_space<vmem>>, vector<1x16x16xbf16>
    %47 = vector.shape_cast %46 : vector<1x16x16xbf16> to vector<16x16xbf16>
    %cst_48 = arith.constant dense<0.000000e+00> : vector<64x16xf32>
    %48 = tpu.matmul %45, %47, %cst_48 {dimension_numbers = #tpu.dot_dimension_numbers<[1], [0], [0], [1], [0, 0, 1, 1], [], []>} : vector<64x16xbf16>, vector<16x16xbf16>, vector<64x16xf32> -> vector<64x16xf32>
    %49 = arith.addf %42, %48 : vector<64x16xf32>
    %c0_49 = arith.constant 0 : index
    %c2_50 = arith.constant 2 : index
    %c1_51 = arith.constant 1 : index
    %c0_52 = arith.constant 0 : index
    %50 = vector.load %arg2[%c0_49, %c2_50, %c1_51, %c0_52] : memref<1x10x10x16xbf16, #tpu.memory_space<vmem>>, vector<1x8x8x16xbf16>
    %51 = vector.shape_cast %50 : vector<1x8x8x16xbf16> to vector<8x8x16xbf16>
    %52 = vector.shape_cast %51 : vector<8x8x16xbf16> to vector<64x16xbf16>
    %c7 = arith.constant 7 : index
    %c0_53 = arith.constant 0 : index
    %c0_54 = arith.constant 0 : index
    %53 = vector.load %arg3[%c7, %c0_53, %c0_54] : memref<9x16x16xbf16, #tpu.memory_space<vmem>>, vector<1x16x16xbf16>
    %54 = vector.shape_cast %53 : vector<1x16x16xbf16> to vector<16x16xbf16>
    %cst_55 = arith.constant dense<0.000000e+00> : vector<64x16xf32>
    %55 = tpu.matmul %52, %54, %cst_55 {dimension_numbers = #tpu.dot_dimension_numbers<[1], [0], [0], [1], [0, 0, 1, 1], [], []>} : vector<64x16xbf16>, vector<16x16xbf16>, vector<64x16xf32> -> vector<64x16xf32>
    %56 = arith.addf %49, %55 : vector<64x16xf32>
    %c0_56 = arith.constant 0 : index
    %c2_57 = arith.constant 2 : index
    %c2_58 = arith.constant 2 : index
    %c0_59 = arith.constant 0 : index
    %57 = vector.load %arg2[%c0_56, %c2_57, %c2_58, %c0_59] : memref<1x10x10x16xbf16, #tpu.memory_space<vmem>>, vector<1x8x8x16xbf16>
    %58 = vector.shape_cast %57 : vector<1x8x8x16xbf16> to vector<8x8x16xbf16>
    %59 = vector.shape_cast %58 : vector<8x8x16xbf16> to vector<64x16xbf16>
    %c8 = arith.constant 8 : index
    %c0_60 = arith.constant 0 : index
    %c0_61 = arith.constant 0 : index
    %60 = vector.load %arg3[%c8, %c0_60, %c0_61] : memref<9x16x16xbf16, #tpu.memory_space<vmem>>, vector<1x16x16xbf16>
    %61 = vector.shape_cast %60 : vector<1x16x16xbf16> to vector<16x16xbf16>
    %cst_62 = arith.constant dense<0.000000e+00> : vector<64x16xf32>
    %62 = tpu.matmul %59, %61, %cst_62 {dimension_numbers = #tpu.dot_dimension_numbers<[1], [0], [0], [1], [0, 0, 1, 1], [], []>} : vector<64x16xbf16>, vector<16x16xbf16>, vector<64x16xf32> -> vector<64x16xf32>
    %63 = arith.addf %56, %62 : vector<64x16xf32>
    %c0_63 = arith.constant 0 : index
    %c0_64 = arith.constant 0 : index
    %c0_65 = arith.constant 0 : index
    %64 = vector.load %arg4[%c0_63, %c0_64, %c0_65] : memref<1x64x16xbf16, #tpu.memory_space<vmem>>, vector<1x64x16xbf16>
    %65 = vector.shape_cast %64 : vector<1x64x16xbf16> to vector<64x16xbf16>
    %66 = arith.extf %65 : vector<64x16xbf16> to vector<64x16xf32>
    %67 = arith.addf %63, %66 : vector<64x16xf32>
    %c0_66 = arith.constant 0 : index
    %c0_67 = arith.constant 0 : index
    %c0_68 = arith.constant 0 : index
    %68 = vector.load %arg5[%c0_66, %c0_67, %c0_68] : memref<1x64x16xf32, #tpu.memory_space<vmem>>, vector<1x64x16xf32>
    %69 = vector.shape_cast %68 : vector<1x64x16xf32> to vector<64x16xf32>
    %70 = vector.shape_cast %67 : vector<64x16xf32> to vector<1x64x16xf32>
    tpu.vector_store %arg5[%c0_66, %c0_67, %c0_68], %70 {strides = array<i32>} : memref<1x64x16xf32, #tpu.memory_space<vmem>>, vector<1x64x16xf32>,
    return
  }
  func.func @transform_0(%arg0: i32, %arg1: i32) -> (i32, i32, i32, i32) {
    %c0_i32 = arith.constant 0 : i32
    %c0_i32_0 = arith.constant 0 : i32
    %c0_i32_1 = arith.constant 0 : i32
    %c0_i32_2 = arith.constant 0 : i32
    return %arg0, %c0_i32, %c0_i32_0, %c0_i32_1 : i32, i32, i32, i32
  }
  func.func @transform_1(%arg0: i32, %arg1: i32) -> (i32, i32, i32) {
    %c0_i32 = arith.constant 0 : i32
    %c0_i32_0 = arith.constant 0 : i32
    %c0_i32_1 = arith.constant 0 : i32
    return %c0_i32, %c0_i32_0, %arg1 : i32, i32, i32
  }
  func.func @transform_2(%arg0: i32, %arg1: i32) -> (i32, i32, i32) {
    %c0_i32 = arith.constant 0 : i32
    %c0_i32_0 = arith.constant 0 : i32
    return %arg0, %c0_i32, %arg1 : i32, i32, i32
  }
  func.func @transform_3(%arg0: i32, %arg1: i32) -> (i32, i32, i32) {
    %c0_i32 = arith.constant 0 : i32
    %c0_i32_0 = arith.constant 0 : i32
    return %arg0, %c0_i32, %arg1 : i32, i32, i32
  }
}

module attributes {stable_mosaic.version = 11 : i64} {
  func.func @_octconv_kernel(%arg0: i32, %arg1: i32, %arg2: memref<1x18x18x16xbf16, #tpu.memory_space<vmem>>, %arg3: memref<9x16x16xbf16, #tpu.memory_space<vmem>>, %arg4: memref<1x256x16xbf16, #tpu.memory_space<vmem>>, %arg5: memref<1x256x16xf32, #tpu.memory_space<vmem>>) attributes {dimension_semantics = [#tpu.dimension_semantics<parallel>, #tpu.dimension_semantics<parallel>], iteration_bounds = array<i64: 2, 1>, scalar_prefetch = 0 : i64, scratch_operands = 0 : i64, tpu.core_type = #tpu.core_type<tc>, window_params = [{transform_indices = @transform_0, window_bounds = array<i64: 1, 18, 18, 16>}, {transform_indices = @transform_1, window_bounds = array<i64: 9, 16, 16>}, {transform_indices = @transform_2, window_bounds = array<i64: 1, 256, 16>}, {transform_indices = @transform_3, window_bounds = array<i64: 1, 256, 16>}]} {
    %cst = arith.constant 0.000000e+00 : f32
    %0 = vector.broadcast %cst : f32 to vector<256x16xf32>
    %c0 = arith.constant 0 : index
    %c0_0 = arith.constant 0 : index
    %c0_1 = arith.constant 0 : index
    %c0_2 = arith.constant 0 : index
    %1 = vector.load %arg2[%c0, %c0_0, %c0_1, %c0_2] : memref<1x18x18x16xbf16, #tpu.memory_space<vmem>>, vector<1x16x16x16xbf16>
    %2 = vector.shape_cast %1 : vector<1x16x16x16xbf16> to vector<16x16x16xbf16>
    %3 = vector.shape_cast %2 : vector<16x16x16xbf16> to vector<256x16xbf16>
    %c0_3 = arith.constant 0 : index
    %c0_4 = arith.constant 0 : index
    %c0_5 = arith.constant 0 : index
    %4 = vector.load %arg3[%c0_3, %c0_4, %c0_5] : memref<9x16x16xbf16, #tpu.memory_space<vmem>>, vector<1x16x16xbf16>
    %5 = vector.shape_cast %4 : vector<1x16x16xbf16> to vector<16x16xbf16>
    %cst_6 = arith.constant dense<0.000000e+00> : vector<256x16xf32>
    %6 = tpu.matmul %3, %5, %cst_6 {dimension_numbers = #tpu.dot_dimension_numbers<[1], [0], [0], [1], [0, 0, 1, 1], [], []>} : vector<256x16xbf16>, vector<16x16xbf16>, vector<256x16xf32> -> vector<256x16xf32>
    %7 = arith.addf %0, %6 : vector<256x16xf32>
    %c0_7 = arith.constant 0 : index
    %c0_8 = arith.constant 0 : index
    %c1 = arith.constant 1 : index
    %c0_9 = arith.constant 0 : index
    %8 = vector.load %arg2[%c0_7, %c0_8, %c1, %c0_9] : memref<1x18x18x16xbf16, #tpu.memory_space<vmem>>, vector<1x16x16x16xbf16>
    %9 = vector.shape_cast %8 : vector<1x16x16x16xbf16> to vector<16x16x16xbf16>
    %10 = vector.shape_cast %9 : vector<16x16x16xbf16> to vector<256x16xbf16>
    %c1_10 = arith.constant 1 : index
    %c0_11 = arith.constant 0 : index
    %c0_12 = arith.constant 0 : index
    %11 = vector.load %arg3[%c1_10, %c0_11, %c0_12] : memref<9x16x16xbf16, #tpu.memory_space<vmem>>, vector<1x16x16xbf16>
    %12 = vector.shape_cast %11 : vector<1x16x16xbf16> to vector<16x16xbf16>
    %cst_13 = arith.constant dense<0.000000e+00> : vector<256x16xf32>
    %13 = tpu.matmul %10, %12, %cst_13 {dimension_numbers = #tpu.dot_dimension_numbers<[1], [0], [0], [1], [0, 0, 1, 1], [], []>} : vector<256x16xbf16>, vector<16x16xbf16>, vector<256x16xf32> -> vector<256x16xf32>
    %14 = arith.addf %7, %13 : vector<256x16xf32>
    %c0_14 = arith.constant 0 : index
    %c0_15 = arith.constant 0 : index
    %c2 = arith.constant 2 : index
    %c0_16 = arith.constant 0 : index
    %15 = vector.load %arg2[%c0_14, %c0_15, %c2, %c0_16] : memref<1x18x18x16xbf16, #tpu.memory_space<vmem>>, vector<1x16x16x16xbf16>
    %16 = vector.shape_cast %15 : vector<1x16x16x16xbf16> to vector<16x16x16xbf16>
    %17 = vector.shape_cast %16 : vector<16x16x16xbf16> to vector<256x16xbf16>
    %c2_17 = arith.constant 2 : index
    %c0_18 = arith.constant 0 : index
    %c0_19 = arith.constant 0 : index
    %18 = vector.load %arg3[%c2_17, %c0_18, %c0_19] : memref<9x16x16xbf16, #tpu.memory_space<vmem>>, vector<1x16x16xbf16>
    %19 = vector.shape_cast %18 : vector<1x16x16xbf16> to vector<16x16xbf16>
    %cst_20 = arith.constant dense<0.000000e+00> : vector<256x16xf32>
    %20 = tpu.matmul %17, %19, %cst_20 {dimension_numbers = #tpu.dot_dimension_numbers<[1], [0], [0], [1], [0, 0, 1, 1], [], []>} : vector<256x16xbf16>, vector<16x16xbf16>, vector<256x16xf32> -> vector<256x16xf32>
    %21 = arith.addf %14, %20 : vector<256x16xf32>
    %c0_21 = arith.constant 0 : index
    %c1_22 = arith.constant 1 : index
    %c0_23 = arith.constant 0 : index
    %c0_24 = arith.constant 0 : index
    %22 = vector.load %arg2[%c0_21, %c1_22, %c0_23, %c0_24] : memref<1x18x18x16xbf16, #tpu.memory_space<vmem>>, vector<1x16x16x16xbf16>
    %23 = vector.shape_cast %22 : vector<1x16x16x16xbf16> to vector<16x16x16xbf16>
    %24 = vector.shape_cast %23 : vector<16x16x16xbf16> to vector<256x16xbf16>
    %c3 = arith.constant 3 : index
    %c0_25 = arith.constant 0 : index
    %c0_26 = arith.constant 0 : index
    %25 = vector.load %arg3[%c3, %c0_25, %c0_26] : memref<9x16x16xbf16, #tpu.memory_space<vmem>>, vector<1x16x16xbf16>
    %26 = vector.shape_cast %25 : vector<1x16x16xbf16> to vector<16x16xbf16>
    %cst_27 = arith.constant dense<0.000000e+00> : vector<256x16xf32>
    %27 = tpu.matmul %24, %26, %cst_27 {dimension_numbers = #tpu.dot_dimension_numbers<[1], [0], [0], [1], [0, 0, 1, 1], [], []>} : vector<256x16xbf16>, vector<16x16xbf16>, vector<256x16xf32> -> vector<256x16xf32>
    %28 = arith.addf %21, %27 : vector<256x16xf32>
    %c0_28 = arith.constant 0 : index
    %c1_29 = arith.constant 1 : index
    %c1_30 = arith.constant 1 : index
    %c0_31 = arith.constant 0 : index
    %29 = vector.load %arg2[%c0_28, %c1_29, %c1_30, %c0_31] : memref<1x18x18x16xbf16, #tpu.memory_space<vmem>>, vector<1x16x16x16xbf16>
    %30 = vector.shape_cast %29 : vector<1x16x16x16xbf16> to vector<16x16x16xbf16>
    %31 = vector.shape_cast %30 : vector<16x16x16xbf16> to vector<256x16xbf16>
    %c4 = arith.constant 4 : index
    %c0_32 = arith.constant 0 : index
    %c0_33 = arith.constant 0 : index
    %32 = vector.load %arg3[%c4, %c0_32, %c0_33] : memref<9x16x16xbf16, #tpu.memory_space<vmem>>, vector<1x16x16xbf16>
    %33 = vector.shape_cast %32 : vector<1x16x16xbf16> to vector<16x16xbf16>
    %cst_34 = arith.constant dense<0.000000e+00> : vector<256x16xf32>
    %34 = tpu.matmul %31, %33, %cst_34 {dimension_numbers = #tpu.dot_dimension_numbers<[1], [0], [0], [1], [0, 0, 1, 1], [], []>} : vector<256x16xbf16>, vector<16x16xbf16>, vector<256x16xf32> -> vector<256x16xf32>
    %35 = arith.addf %28, %34 : vector<256x16xf32>
    %c0_35 = arith.constant 0 : index
    %c1_36 = arith.constant 1 : index
    %c2_37 = arith.constant 2 : index
    %c0_38 = arith.constant 0 : index
    %36 = vector.load %arg2[%c0_35, %c1_36, %c2_37, %c0_38] : memref<1x18x18x16xbf16, #tpu.memory_space<vmem>>, vector<1x16x16x16xbf16>
    %37 = vector.shape_cast %36 : vector<1x16x16x16xbf16> to vector<16x16x16xbf16>
    %38 = vector.shape_cast %37 : vector<16x16x16xbf16> to vector<256x16xbf16>
    %c5 = arith.constant 5 : index
    %c0_39 = arith.constant 0 : index
    %c0_40 = arith.constant 0 : index
    %39 = vector.load %arg3[%c5, %c0_39, %c0_40] : memref<9x16x16xbf16, #tpu.memory_space<vmem>>, vector<1x16x16xbf16>
    %40 = vector.shape_cast %39 : vector<1x16x16xbf16> to vector<16x16xbf16>
    %cst_41 = arith.constant dense<0.000000e+00> : vector<256x16xf32>
    %41 = tpu.matmul %38, %40, %cst_41 {dimension_numbers = #tpu.dot_dimension_numbers<[1], [0], [0], [1], [0, 0, 1, 1], [], []>} : vector<256x16xbf16>, vector<16x16xbf16>, vector<256x16xf32> -> vector<256x16xf32>
    %42 = arith.addf %35, %41 : vector<256x16xf32>
    %c0_42 = arith.constant 0 : index
    %c2_43 = arith.constant 2 : index
    %c0_44 = arith.constant 0 : index
    %c0_45 = arith.constant 0 : index
    %43 = vector.load %arg2[%c0_42, %c2_43, %c0_44, %c0_45] : memref<1x18x18x16xbf16, #tpu.memory_space<vmem>>, vector<1x16x16x16xbf16>
    %44 = vector.shape_cast %43 : vector<1x16x16x16xbf16> to vector<16x16x16xbf16>
    %45 = vector.shape_cast %44 : vector<16x16x16xbf16> to vector<256x16xbf16>
    %c6 = arith.constant 6 : index
    %c0_46 = arith.constant 0 : index
    %c0_47 = arith.constant 0 : index
    %46 = vector.load %arg3[%c6, %c0_46, %c0_47] : memref<9x16x16xbf16, #tpu.memory_space<vmem>>, vector<1x16x16xbf16>
    %47 = vector.shape_cast %46 : vector<1x16x16xbf16> to vector<16x16xbf16>
    %cst_48 = arith.constant dense<0.000000e+00> : vector<256x16xf32>
    %48 = tpu.matmul %45, %47, %cst_48 {dimension_numbers = #tpu.dot_dimension_numbers<[1], [0], [0], [1], [0, 0, 1, 1], [], []>} : vector<256x16xbf16>, vector<16x16xbf16>, vector<256x16xf32> -> vector<256x16xf32>
    %49 = arith.addf %42, %48 : vector<256x16xf32>
    %c0_49 = arith.constant 0 : index
    %c2_50 = arith.constant 2 : index
    %c1_51 = arith.constant 1 : index
    %c0_52 = arith.constant 0 : index
    %50 = vector.load %arg2[%c0_49, %c2_50, %c1_51, %c0_52] : memref<1x18x18x16xbf16, #tpu.memory_space<vmem>>, vector<1x16x16x16xbf16>
    %51 = vector.shape_cast %50 : vector<1x16x16x16xbf16> to vector<16x16x16xbf16>
    %52 = vector.shape_cast %51 : vector<16x16x16xbf16> to vector<256x16xbf16>
    %c7 = arith.constant 7 : index
    %c0_53 = arith.constant 0 : index
    %c0_54 = arith.constant 0 : index
    %53 = vector.load %arg3[%c7, %c0_53, %c0_54] : memref<9x16x16xbf16, #tpu.memory_space<vmem>>, vector<1x16x16xbf16>
    %54 = vector.shape_cast %53 : vector<1x16x16xbf16> to vector<16x16xbf16>
    %cst_55 = arith.constant dense<0.000000e+00> : vector<256x16xf32>
    %55 = tpu.matmul %52, %54, %cst_55 {dimension_numbers = #tpu.dot_dimension_numbers<[1], [0], [0], [1], [0, 0, 1, 1], [], []>} : vector<256x16xbf16>, vector<16x16xbf16>, vector<256x16xf32> -> vector<256x16xf32>
    %56 = arith.addf %49, %55 : vector<256x16xf32>
    %c0_56 = arith.constant 0 : index
    %c2_57 = arith.constant 2 : index
    %c2_58 = arith.constant 2 : index
    %c0_59 = arith.constant 0 : index
    %57 = vector.load %arg2[%c0_56, %c2_57, %c2_58, %c0_59] : memref<1x18x18x16xbf16, #tpu.memory_space<vmem>>, vector<1x16x16x16xbf16>
    %58 = vector.shape_cast %57 : vector<1x16x16x16xbf16> to vector<16x16x16xbf16>
    %59 = vector.shape_cast %58 : vector<16x16x16xbf16> to vector<256x16xbf16>
    %c8 = arith.constant 8 : index
    %c0_60 = arith.constant 0 : index
    %c0_61 = arith.constant 0 : index
    %60 = vector.load %arg3[%c8, %c0_60, %c0_61] : memref<9x16x16xbf16, #tpu.memory_space<vmem>>, vector<1x16x16xbf16>
    %61 = vector.shape_cast %60 : vector<1x16x16xbf16> to vector<16x16xbf16>
    %cst_62 = arith.constant dense<0.000000e+00> : vector<256x16xf32>
    %62 = tpu.matmul %59, %61, %cst_62 {dimension_numbers = #tpu.dot_dimension_numbers<[1], [0], [0], [1], [0, 0, 1, 1], [], []>} : vector<256x16xbf16>, vector<16x16xbf16>, vector<256x16xf32> -> vector<256x16xf32>
    %63 = arith.addf %56, %62 : vector<256x16xf32>
    %c0_63 = arith.constant 0 : index
    %c0_64 = arith.constant 0 : index
    %c0_65 = arith.constant 0 : index
    %64 = vector.load %arg4[%c0_63, %c0_64, %c0_65] : memref<1x256x16xbf16, #tpu.memory_space<vmem>>, vector<1x256x16xbf16>
    %65 = vector.shape_cast %64 : vector<1x256x16xbf16> to vector<256x16xbf16>
    %66 = arith.extf %65 : vector<256x16xbf16> to vector<256x16xf32>
    %67 = arith.addf %63, %66 : vector<256x16xf32>
    %c0_66 = arith.constant 0 : index
    %c0_67 = arith.constant 0 : index
    %c0_68 = arith.constant 0 : index
    %68 = vector.load %arg5[%c0_66, %c0_67, %c0_68] : memref<1x256x16xf32, #tpu.memory_space<vmem>>, vector<1x256x16xf32>
    %69 = vector.shape_cast %68 : vector<1x256x16xf32> to vector<256x16xf32>
    %70 = vector.shape_cast %67 : vector<256x16xf32> to vector<1x256x16xf32>
    tpu.vector_store %arg5[%c0_66, %c0_67, %c0_68], %70 {strides = array<i32>} : memref<1x256x16xf32, #tpu.memory_space<vmem>>, vector<1x256x16xf32>,
    return
  }
  func.func @transform_0(%arg0: i32, %arg1: i32) -> (i32, i32, i32, i32) {
    %c0_i32 = arith.constant 0 : i32
    %c0_i32_0 = arith.constant 0 : i32
    %c0_i32_1 = arith.constant 0 : i32
    %c0_i32_2 = arith.constant 0 : i32
    return %arg0, %c0_i32, %c0_i32_0, %c0_i32_1 : i32, i32, i32, i32
  }
  func.func @transform_1(%arg0: i32, %arg1: i32) -> (i32, i32, i32) {
    %c0_i32 = arith.constant 0 : i32
    %c0_i32_0 = arith.constant 0 : i32
    %c0_i32_1 = arith.constant 0 : i32
    return %c0_i32, %c0_i32_0, %arg1 : i32, i32, i32
  }
  func.func @transform_2(%arg0: i32, %arg1: i32) -> (i32, i32, i32) {
    %c0_i32 = arith.constant 0 : i32
    %c0_i32_0 = arith.constant 0 : i32
    return %arg0, %c0_i32, %arg1 : i32, i32, i32
  }
  func.func @transform_3(%arg0: i32, %arg1: i32) -> (i32, i32, i32) {
    %c0_i32 = arith.constant 0 : i32
    %c0_i32_0 = arith.constant 0 : i32
    return %arg0, %c0_i32, %arg1 : i32, i32, i32
  }
}

</mosaic_0001>

<llo_original>
// kernel: fwd.5
$region0: #{fwd.5}
  #allocation0 [shape = 'u32[]', space=smem, size = 0x4, offset = 0x4, fixed_abs, tag = 'smem constant byte address 0x4 - core index']
  #allocation1 [shape = 'u32[144,128]{1,0:T(1,128)}', space=vmem, size = 0x12000, scoped, tag = 'internal scratch']
  %s0 = inlined_call_operand.vmem [shape: bf16[2,10,10,16], index: 0, kind: input, shape index: {}]
  %s1 = inlined_call_operand.vmem [shape: bf16[9,16,16], index: 1, kind: input, shape index: {}]
  %s2 = inlined_call_operand.vmem [shape: bf16[2,64,16], index: 2, kind: output, shape index: {}]
  %s3 = sld [smem:[#allocation0]]
  $region41: #{fwd.5} parent=0
    _
  %s5 = ssub.s32 1, %s3
  %s6 = scalar_select 0, %s5, %s3
  loop: start=0, step=1, limit=4
  $region2: #{fwd.5} parent=0 // loop_pre_header
    _
  $region3: #{fwd.5} parent=0 // loop_header
    %s8 = sphi 0, %s12
    %p9 = scmp.ge.s32.totalorder %s8, 4
    %s15 = sphi 0, %s27
    %s16 = sphi 0, %s23
    %s17 = sphi 0, %s15
    %s18 = sphi 0, %s16
    %s19 = sphi 0, %s17
    %s20 = sphi 0, %s18
    %s30 = sphi 0, %s32
    %s33 = sphi 0, %s30
    %s34 = sphi 0, %s33
    %s50 = sphi 0, %s34
    %s56 = sphi 0, %s58
    %s59 = sphi 0, %s56
    %s60 = sphi 0, %s59
    %s76 = sphi 0, %s60
    %s84 = sphi 0, %s86
    %s87 = sphi 0, %s84
    %s88 = sphi 0, %s87
    %s104 = sphi 0, %s88
  $region4: #{fwd.5} parent=0 // loop_header_branch
    %11 = sbr.rel (%p9) target = $region8
  $region5: #{fwd.5} parent=0 // loop_body
    %s13 = ssub.s32 %s8, 1
    %s14 = ssub.s32 %s8, 2
    %s21 = sadd.s32 1, %s16
    %p22 = scmp.ge.s32.totalorder %s21, 1
    %s23 = scalar_select %p22, 0, %s21
    %s24 = sadd.s32 1, %s15
    %s25 = scalar_select %p22, %s24, %s15
    %p26 = scmp.ge.s32.totalorder %s25, 2
    %s27 = scalar_select %p26, 0, %s25
    %s28 = ssub.s32 %s15, %s27
    %p29 = scmp.eq.s32.totalorder %s28, 0
    %s31 = sadd.s32 %s30, 1
    %s32 = scalar_select %p29, %s30, %s31
    %p35 = pneg %p29
    %p36 = scmp.eq.s32.totalorder %s8, 1
    %p37 = por %p35, %p36
    %p38 = scmp.ne.s32.totalorder %s30, %s33
    %p39 = scmp.eq.s32.totalorder %s8, 0
    %p40 = por %p38, %p39
    %p41 = scmp.ne.s32.totalorder %s30, %s33
    %p42 = scmp.eq.s32.totalorder %s13, 1
    %p43 = por %p41, %p42
    %p44 = scmp.ne.s32.totalorder %s33, %s34
    %p45 = scmp.eq.s32.totalorder %s13, 0
    %p46 = por %p44, %p45
    %p47 = scmp.ne.s32.totalorder %s33, %s34
    %p48 = scmp.eq.s32.totalorder %s14, 1
    %p49 = por %p47, %p48
    %p51 = scmp.ne.s32.totalorder %s34, %s50
    %p52 = scmp.eq.s32.totalorder %s14, 0
    %p53 = por %p51, %p52
    %s54 = ssub.s32 %s16, %s23
    %p55 = scmp.eq.s32.totalorder %s54, 0
    %s57 = sadd.s32 %s56, 1
    %s58 = scalar_select %p55, %s56, %s57
    %p61 = pneg %p55
    %p62 = scmp.eq.s32.totalorder %s8, 1
    %p63 = por %p61, %p62
    %p64 = scmp.ne.s32.totalorder %s56, %s59
    %p65 = scmp.eq.s32.totalorder %s8, 0
    %p66 = por %p64, %p65
    %p67 = scmp.ne.s32.totalorder %s56, %s59
    %p68 = scmp.eq.s32.totalorder %s13, 1
    %p69 = por %p67, %p68
    %p70 = scmp.ne.s32.totalorder %s59, %s60
    %p71 = scmp.eq.s32.totalorder %s13, 0
    %p72 = por %p70, %p71
    %p73 = scmp.ne.s32.totalorder %s59, %s60
    %p74 = scmp.eq.s32.totalorder %s14, 1
    %p75 = por %p73, %p74
    %p77 = scmp.ne.s32.totalorder %s60, %s76
    %p78 = scmp.eq.s32.totalorder %s14, 0
    %p79 = por %p77, %p78
    %s80 = ssub.s32 %s15, %s27
    %s81 = ssub.s32 %s16, %s23
    %s82 = sor.u32 %s80, %s81
    %p83 = scmp.eq.s32.totalorder %s82, 0
    %s85 = sadd.s32 %s84, 1
    %s86 = scalar_select %p83, %s84, %s85
    %p89 = pneg %p83
    %p90 = scmp.eq.s32.totalorder %s8, 1
    %p91 = por %p89, %p90
    %p92 = scmp.ne.s32.totalorder %s84, %s87
    %p93 = scmp.eq.s32.totalorder %s8, 0
    %p94 = por %p92, %p93
    %p95 = scmp.ne.s32.totalorder %s84, %s87
    %p96 = scmp.eq.s32.totalorder %s13, 1
    %p97 = por %p95, %p96
    %p98 = scmp.ne.s32.totalorder %s87, %s88
    %p99 = scmp.eq.s32.totalorder %s13, 0
    %p100 = por %p98, %p99
    %p101 = scmp.ne.s32.totalorder %s87, %s88
    %p102 = scmp.eq.s32.totalorder %s14, 1
    %p103 = por %p101, %p102
    %p105 = scmp.ne.s32.totalorder %s88, %s104
    %p106 = scmp.eq.s32.totalorder %s14, 0
    %p107 = por %p105, %p106
    %p108 = scmp.le.s32.totalorder 1, %s8
    %p109 = scmp.lt.s32.totalorder %s8, 3
    %p110 = pnand %p108, %p109
    %p111 = pneg %p110
    // Predicated region
    $region9: #{fwd.5} parent=5 // pred_check
      _
    $region10: #{fwd.5} parent=5 // pred_check_branch
      %113 = sbr.rel (%p110) target = $region12
    $region11: #{fwd.5} parent=5 // pred_region
      %s114 = ssub.s32 %s8, 1
      // Predicated region
      $region13: #{fwd.5} parent=11 // pred_check
        %p115 = pneg %p72
      $region14: #{fwd.5} parent=11 // pred_check_branch
        %117 = sbr.rel (%p115) target = $region16
      $region15: #{fwd.5} parent=11 // pred_region
        %p118 = scmp.lt.s32.totalorder %s18, 0
        %s119 = scalar_select %p118, %s18, 0
        %s120 = smul.addr %s119, 4
        %s121 = scalar_lea.vmem %s1, %s120
      $region16: #{fwd.5} parent=11 // pred_fallthru
        _
    $region12: #{fwd.5} parent=5 // pred_fallthru
      _
    %p122 = scmp.lt.s32.totalorder %s8, 2
    // Predicated region
    $region17: #{fwd.5} parent=5 // pred_check
      %p123 = pneg %p122
    $region18: #{fwd.5} parent=5 // pred_check_branch
      %125 = sbr.rel (%p123) target = $region20
    $region19: #{fwd.5} parent=5 // pred_region
      // Predicated region
      $region21: #{fwd.5} parent=19 // pred_check
        %p126 = pneg %p40
      $region22: #{fwd.5} parent=19 // pred_check_branch
        %128 = sbr.rel (%p126) target = $region24
      $region23: #{fwd.5} parent=19 // pred_region
        %p129 = scmp.lt.s32.totalorder %s15, 1
        %s130 = scalar_select %p129, %s15, 1
        %s131 = smul.addr %s130, 20
        %s132 = smul.addr %s131, 4
        %s133 = scalar_lea.vmem %s0, %s132
      $region24: #{fwd.5} parent=19 // pred_fallthru
        _
    $region20: #{fwd.5} parent=5 // pred_fallthru
      _
    %p134 = scmp.le.s32.totalorder 1, %s8
    %p135 = scmp.lt.s32.totalorder %s8, 3
    %p136 = pnand %p134, %p135
    %p137 = pneg %p136
    // Predicated region
    $region25: #{fwd.5} parent=5 // pred_check
      _
    $region26: #{fwd.5} parent=5 // pred_check_branch
      %139 = sbr.rel (%p136) target = $region28
    $region27: #{fwd.5} parent=5 // pred_region
      %s140 = ssub.s32 %s8, 1
      %p141 = scmp.lt.s32.totalorder %s17, 1
      %s142 = scalar_select %p141, %s17, 1
      %s143 = smul.addr %s142, 20
      %s144 = smul.addr %s143, 4
      %s145 = scalar_lea.vmem %s0, %s144
      %p146 = pneg %p46
      %p147 = pneg %p43
      %p148 = scmp.lt.s32.totalorder %s18, 0
      %s149 = scalar_select %p148, %s18, 0
      %s150 = smul.addr %s149, 4
      %s151 = scalar_lea.vmem %s1, %s150
      %p152 = pneg %p72
      %p153 = pneg %p69
      %p154 = pneg %p100
      %p155 = pneg %p97
      %p156 = scmp.lt.s32.totalorder %s17, 1
      %s157 = scalar_select %p156, %s17, 1
      %p158 = scmp.lt.s32.totalorder %s18, 0
      %s159 = scalar_select %p158, %s18, 0
      %s160 = smul.addr %s157, 8
      %s161 = sadd.s32 %s159, %s160
      %s162 = smul.addr %s161, 4
      %s163 = scalar_lea.vmem %s2, %s162
      %p164 = scmp.lt.s32.totalorder %s17, 1
      %s165 = scalar_select %p164, %s17, 1
      %s166 = smul.addr %s165, 20
      %s167 = smul.addr %s166, 4
      %s168 = scalar_lea.vmem %s0, %s167
      %p169 = scmp.lt.s32.totalorder %s18, 0
      %s170 = scalar_select %p169, %s18, 0
      %s171 = smul.addr %s170, 4
      %s172 = scalar_lea.vmem %s1, %s171
      %p173 = scmp.lt.s32.totalorder %s17, 1
      %s174 = scalar_select %p173, %s17, 1
      %p175 = scmp.lt.s32.totalorder %s18, 0
      %s176 = scalar_select %p175, %s18, 0
      %s177 = smul.addr %s174, 8
      %s178 = sadd.s32 %s176, %s177
      %s179 = smul.addr %s178, 4
      %s180 = scalar_lea.vmem %s2, %s179
      %v182 = vld [vmem:[%s168] sm:$0xf]
      %v183 = vld [vmem:[%s168 + $0x8] sm:$0xf]
      %v184 = vld [vmem:[%s168 + $0x10] sm:$0xf]
      %v185 = vld [vmem:[%s168 + $0x18] sm:$0xf]
      %v186 = vld [vmem:[%s168 + $0x20] sm:$0xf]
      %v187 = vld [vmem:[%s168 + $0x28] sm:$0xf]
      %v188 = vld [vmem:[%s168 + $0x30] sm:$0xf]
      %v189 = vld [vmem:[%s168 + $0x38] sm:$0xf]
      %v190 = vld [vmem:[%s172] sm:$0xf]
      %v191 = vld [vmem:[%s172 + $0x4] sm:$0xf]
      %v192 = vld [vmem:[%s168 + $0x4] sm:$0x1]
      %v193 = vld [vmem:[%s168 + $0xc] sm:$0x1]
      %v194 = vld [vmem:[%s168 + $0x14] sm:$0x1]
      %v195 = vld [vmem:[%s168 + $0x1c] sm:$0x1]
      %v196 = vld [vmem:[%s168 + $0x24] sm:$0x1]
      %v197 = vld [vmem:[%s168 + $0x2c] sm:$0x1]
      %v198 = vld [vmem:[%s168 + $0x34] sm:$0x1]
      %v199 = vld [vmem:[%s168 + $0x3c] sm:$0x1]
      %vm200 = vsmask.f32 3328
      %vm201 = vsmask.f32 7440
      %vm202 = vmor %vm200, %vm201
      %v204 = vshrl.u32 %v182, 16
      %v206 = vrot.slane %v204, 4
      %v207 = vshll.u32 %v182, 16
      %v209 = vrot.slane %v207, 5
      %v210 = vor.u32 %v206, %v209
      %v211 = vrot.slane %v210, 4
      %v213 = vshll.u32 %v192, 16
      %v215 = vrot.slane %v213, 5
      %v216 = vsel %vm202, %v211, %v215
      %v218 = vshrl.u32 %v183, 16
      %v220 = vrot.slane %v218, 4
      %v221 = vshll.u32 %v183, 16
      %v223 = vrot.slane %v221, 5
      %v224 = vor.u32 %v220, %v223
      %v225 = vrot.slane %v224, 4
      %v227 = vshll.u32 %v193, 16
      %v229 = vrot.slane %v227, 5
      %v230 = vsel %vm202, %v225, %v229
      %v232 = vshrl.u32 %v184, 16
      %v234 = vrot.slane %v232, 4
      %v235 = vshll.u32 %v184, 16
      %v237 = vrot.slane %v235, 5
      %v238 = vor.u32 %v234, %v237
      %v239 = vrot.slane %v238, 4
      %v241 = vshll.u32 %v194, 16
      %v243 = vrot.slane %v241, 5
      %v244 = vsel %vm202, %v239, %v243
      %v246 = vshrl.u32 %v185, 16
      %v248 = vrot.slane %v246, 4
      %v249 = vshll.u32 %v185, 16
      %v251 = vrot.slane %v249, 5
      %v252 = vor.u32 %v248, %v251
      %v253 = vrot.slane %v252, 4
      %v255 = vshll.u32 %v195, 16
      %v257 = vrot.slane %v255, 5
      %v258 = vsel %vm202, %v253, %v257
      %v260 = vshrl.u32 %v186, 16
      %v262 = vrot.slane %v260, 4
      %v263 = vshll.u32 %v186, 16
      %v265 = vrot.slane %v263, 5
      %v266 = vor.u32 %v262, %v265
      %v267 = vrot.slane %v266, 4
      %v269 = vshll.u32 %v196, 16
      %v271 = vrot.slane %v269, 5
      %v272 = vsel %vm202, %v267, %v271
      %v274 = vshrl.u32 %v187, 16
      %v276 = vrot.slane %v274, 4
      %v277 = vshll.u32 %v187, 16
      %v279 = vrot.slane %v277, 5
      %v280 = vor.u32 %v276, %v279
      %v281 = vrot.slane %v280, 4
      %v283 = vshll.u32 %v197, 16
      %v285 = vrot.slane %v283, 5
      %v286 = vsel %vm202, %v281, %v285
      %v288 = vshrl.u32 %v188, 16
      %v290 = vrot.slane %v288, 4
      %v291 = vshll.u32 %v188, 16
      %v293 = vrot.slane %v291, 5
      %v294 = vor.u32 %v290, %v293
      %v295 = vrot.slane %v294, 4
      %v297 = vshll.u32 %v198, 16
      %v299 = vrot.slane %v297, 5
      %v300 = vsel %vm202, %v295, %v299
      %v302 = vshrl.u32 %v189, 16
      %v304 = vrot.slane %v302, 4
      %v305 = vshll.u32 %v189, 16
      %v307 = vrot.slane %v305, 5
      %v308 = vor.u32 %v304, %v307
      %v309 = vrot.slane %v308, 4
      %v311 = vshll.u32 %v199, 16
      %v313 = vrot.slane %v311, 5
      %v314 = vsel %vm202, %v309, %v313
      %s315 = scalar_lea.vmem %s172, 8
      %v316 = vld [vmem:[%s315] sm:$0xf]
      %v317 = vld [vmem:[%s315 + $0x4] sm:$0xf]
      %v318 = vunpack.c.l.b16 %v216
      %v319 = vunpack.c.l.b16 %v230
      %v320 = vunpack.c.l.b16 %v244
      %v321 = vunpack.c.l.b16 %v258
      %v322 = vunpack.c.l.b16 %v272
      %v323 = vunpack.c.l.b16 %v286
      %v324 = vunpack.c.l.b16 %v300
      %v325 = vunpack.c.l.b16 %v314
      %v326 = vpack.c.b16 %v319, %v318
      %v327 = vpack.c.b16 %v321, %v320
      %v328 = vpack.c.b16 %v323, %v322
      %v329 = vpack.c.b16 %v325, %v324
      %v332 = vunpack.c.l.b16 %v316
      %v333 = vunpack.c.l.b16 %v317
      %v334 = vpack.c.b16 %v333, %v332
      %vm336 = vcmask 130048
      %v338 = vsel %vm336, %v326, 0
      %v341 = vsel %vm336, %v327, 0
      %v344 = vsel %vm336, %v328, 0
      %v347 = vsel %vm336, %v329, 0
      %349 = vmatprep.subr.bf16.mxu0 0
      %350 = vmatpush1.bf16.msra.mxu0 %v334
      %351 = vmatprep.subr.bf16.mxu0 0
      %352 = vmatpush1.bf16.msra.mxu0 0
      %353 = vmatprep.subr.bf16.mxu0 0
      %354 = vmatpush1.bf16.msra.mxu0 0
      %355 = vmatprep.subr.bf16.mxu0 0
      %356 = vmatpush1.bf16.msra.mxu0 0
      %357 = vmatprep.subr.bf16.mxu0 0
      %358 = vmatpush1.bf16.msra.mxu0 0
      %359 = vmatprep.subr.bf16.mxu0 0
      %360 = vmatpush1.bf16.msra.mxu0 0
      %361 = vmatprep.subr.bf16.mxu0 0
      %362 = vmatpush1.bf16.msra.mxu0 0
      %363 = vmatprep.subr.bf16.mxu0 0
      %364 = vmatpush1.bf16.msra.mxu0 0
      %365 = vmatprep.subr.bf16.mxu0 0
      %366 = vmatpush1.bf16.msra.mxu0 0
      %367 = vmatprep.subr.bf16.mxu0 0
      %368 = vmatpush1.bf16.msra.mxu0 0
      %369 = vmatprep.subr.bf16.mxu0 0
      %370 = vmatpush1.bf16.msra.mxu0 0
      %371 = vmatprep.subr.bf16.mxu0 0
      %372 = vmatpush1.bf16.msra.mxu0 0
      %373 = vmatprep.subr.bf16.mxu0 0
      %374 = vmatpush1.bf16.msra.mxu0 0
      %375 = vmatprep.subr.bf16.mxu0 0
      %376 = vmatpush1.bf16.msra.mxu0 0
      %377 = vmatprep.subr.bf16.mxu0 0
      %378 = vmatpush1.bf16.msra.mxu0 0
      %379 = vmatprep.subr.bf16.mxu0 0
      %380 = vmatpush1.bf16.msra.mxu0 0
      %381 = vmatprep.mubr.bf16.mxu0 0
      %382 = vmatmul.mubr.bf16.gmra.mrb[0].mxu0 %v338
      %v383 = vpop.f32.mrb[0].mxu0
      %v384 = vadd.f32 0.0, %v383
      %v385 = vpop.f32.mrb[0].mxu0
      %v386 = vpop.f32.mrb[0].mxu0
      %v387 = vadd.f32 0.0, %v386
      %v388 = vpop.f32.mrb[0].mxu0
      %389 = vmatprep.mubr.bf16.mxu0 0
      %390 = vmatmul.mubr.bf16.gmra.mrb[0].mxu0 %v341
      %v391 = vpop.f32.mrb[0].mxu0
      %v392 = vadd.f32 0.0, %v391
      %v393 = vpop.f32.mrb[0].mxu0
      %v394 = vpop.f32.mrb[0].mxu0
      %v395 = vadd.f32 0.0, %v394
      %v396 = vpop.f32.mrb[0].mxu0
      %397 = vmatprep.mubr.bf16.mxu0 0
      %398 = vmatmul.mubr.bf16.gmra.mrb[0].mxu0 %v344
      %v399 = vpop.f32.mrb[0].mxu0
      %v400 = vadd.f32 0.0, %v399
      %v401 = vpop.f32.mrb[0].mxu0
      %v402 = vpop.f32.mrb[0].mxu0
      %v403 = vadd.f32 0.0, %v402
      %v404 = vpop.f32.mrb[0].mxu0
      %405 = vmatprep.mubr.bf16.mxu0 0
      %406 = vmatmul.mubr.bf16.gmra.mrb[0].mxu0 %v347
      %v407 = vpop.f32.mrb[0].mxu0
      %v408 = vadd.f32 0.0, %v407
      %v409 = vpop.f32.mrb[0].mxu0
      %v410 = vpop.f32.mrb[0].mxu0
      %v411 = vadd.f32 0.0, %v410
      %v412 = vpop.f32.mrb[0].mxu0
      %413 = vdwg.mxu0
      %v422 = vunpack.c.l.b16 %v182
      %v423 = vunpack.c.l.b16 %v183
      %v424 = vunpack.c.l.b16 %v184
      %v425 = vunpack.c.l.b16 %v185
      %v426 = vunpack.c.l.b16 %v186
      %v427 = vunpack.c.l.b16 %v187
      %v428 = vunpack.c.l.b16 %v188
      %v429 = vunpack.c.l.b16 %v189
      %v430 = vpack.c.b16 %v423, %v422
      %v431 = vpack.c.b16 %v425, %v424
      %v432 = vpack.c.b16 %v427, %v426
      %v433 = vpack.c.b16 %v429, %v428
      %v436 = vunpack.c.l.b16 %v190
      %v437 = vunpack.c.l.b16 %v191
      %v438 = vpack.c.b16 %v437, %v436
      %v441 = vsel %vm336, %v430, 0
      %v444 = vsel %vm336, %v431, 0
      %v447 = vsel %vm336, %v432, 0
      %v450 = vsel %vm336, %v433, 0
      %452 = vmatprep.subr.bf16.mxu0 0
      %453 = vmatpush1.bf16.msra.mxu0 %v438
      %454 = vmatprep.subr.bf16.mxu0 0
      %455 = vmatpush1.bf16.msra.mxu0 0
      %456 = vmatprep.subr.bf16.mxu0 0
      %457 = vmatpush1.bf16.msra.mxu0 0
      %458 = vmatprep.subr.bf16.mxu0 0
      %459 = vmatpush1.bf16.msra.mxu0 0
      %460 = vmatprep.subr.bf16.mxu0 0
      %461 = vmatpush1.bf16.msra.mxu0 0
      %462 = vmatprep.subr.bf16.mxu0 0
      %463 = vmatpush1.bf16.msra.mxu0 0
      %464 = vmatprep.subr.bf16.mxu0 0
      %465 = vmatpush1.bf16.msra.mxu0 0
      %466 = vmatprep.subr.bf16.mxu0 0
      %467 = vmatpush1.bf16.msra.mxu0 0
      %468 = vmatprep.subr.bf16.mxu0 0
      %469 = vmatpush1.bf16.msra.mxu0 0
      %470 = vmatprep.subr.bf16.mxu0 0
      %471 = vmatpush1.bf16.msra.mxu0 0
      %472 = vmatprep.subr.bf16.mxu0 0
      %473 = vmatpush1.bf16.msra.mxu0 0
      %474 = vmatprep.subr.bf16.mxu0 0
      %475 = vmatpush1.bf16.msra.mxu0 0
      %476 = vmatprep.subr.bf16.mxu0 0
      %477 = vmatpush1.bf16.msra.mxu0 0
      %478 = vmatprep.subr.bf16.mxu0 0
      %479 = vmatpush1.bf16.msra.mxu0 0
      %480 = vmatprep.subr.bf16.mxu0 0
      %481 = vmatpush1.bf16.msra.mxu0 0
      %482 = vmatprep.subr.bf16.mxu0 0
      %483 = vmatpush1.bf16.msra.mxu0 0
      %484 = vmatprep.mubr.bf16.mxu0 0
      %485 = vmatmul.mubr.bf16.gmra.mrb[0].mxu0 %v441
      %v486 = vpop.f32.mrb[0].mxu0
      %v487 = vadd.f32 %v384, %v486
      %v488 = vpop.f32.mrb[0].mxu0
      %v489 = vpop.f32.mrb[0].mxu0
      %v490 = vadd.f32 %v387, %v489
      %v491 = vpop.f32.mrb[0].mxu0
      %492 = vmatprep.mubr.bf16.mxu0 0
      %493 = vmatmul.mubr.bf16.gmra.mrb[0].mxu0 %v444
      %v494 = vpop.f32.mrb[0].mxu0
      %v495 = vadd.f32 %v392, %v494
      %v496 = vpop.f32.mrb[0].mxu0
      %v497 = vpop.f32.mrb[0].mxu0
      %v498 = vadd.f32 %v395, %v497
      %v499 = vpop.f32.mrb[0].mxu0
      %500 = vmatprep.mubr.bf16.mxu0 0
      %501 = vmatmul.mubr.bf16.gmra.mrb[0].mxu0 %v447
      %v502 = vpop.f32.mrb[0].mxu0
      %v503 = vadd.f32 %v400, %v502
      %v504 = vpop.f32.mrb[0].mxu0
      %v505 = vpop.f32.mrb[0].mxu0
      %v506 = vadd.f32 %v403, %v505
      %v507 = vpop.f32.mrb[0].mxu0
      %508 = vmatprep.mubr.bf16.mxu0 0
      %509 = vmatmul.mubr.bf16.gmra.mrb[0].mxu0 %v450
      %v510 = vpop.f32.mrb[0].mxu0
      %v511 = vadd.f32 %v408, %v510
      %v512 = vpop.f32.mrb[0].mxu0
      %v513 = vpop.f32.mrb[0].mxu0
      %v514 = vadd.f32 %v411, %v513
      %v515 = vpop.f32.mrb[0].mxu0
      %516 = vdwg.mxu0
      %v517 = vld [vmem:[%s168] sm:$0xe]
      %v518 = vld [vmem:[%s168 + $0x8] sm:$0xe]
      %v519 = vld [vmem:[%s168 + $0x10] sm:$0xe]
      %v520 = vld [vmem:[%s168 + $0x18] sm:$0xe]
      %v521 = vld [vmem:[%s168 + $0x20] sm:$0xe]
      %v522 = vld [vmem:[%s168 + $0x28] sm:$0xe]
      %v523 = vld [vmem:[%s168 + $0x30] sm:$0xe]
      %v524 = vld [vmem:[%s168 + $0x38] sm:$0xe]
      %vm541 = vcmask 1042432
      %vm542 = vcmask 1046532
      %vm543 = vmor %vm541, %vm542
      %v544 = vrot.slane %v517, 5
      %v545 = vrot.slane %v544, 4
      %v546 = vrot.slane %v192, 5
      %v547 = vsel %vm543, %v545, %v546
      %v548 = vrot.slane %v518, 5
      %v549 = vrot.slane %v548, 4
      %v550 = vrot.slane %v193, 5
      %v551 = vsel %vm543, %v549, %v550
      %v552 = vrot.slane %v519, 5
      %v553 = vrot.slane %v552, 4
      %v554 = vrot.slane %v194, 5
      %v555 = vsel %vm543, %v553, %v554
      %v556 = vrot.slane %v520, 5
      %v557 = vrot.slane %v556, 4
      %v558 = vrot.slane %v195, 5
      %v559 = vsel %vm543, %v557, %v558
      %v560 = vrot.slane %v521, 5
      %v561 = vrot.slane %v560, 4
      %v562 = vrot.slane %v196, 5
      %v563 = vsel %vm543, %v561, %v562
      %v564 = vrot.slane %v522, 5
      %v565 = vrot.slane %v564, 4
      %v566 = vrot.slane %v197, 5
      %v567 = vsel %vm543, %v565, %v566
      %v568 = vrot.slane %v523, 5
      %v569 = vrot.slane %v568, 4
      %v570 = vrot.slane %v198, 5
      %v571 = vsel %vm543, %v569, %v570
      %v572 = vrot.slane %v524, 5
      %v573 = vrot.slane %v572, 4
      %v574 = vrot.slane %v199, 5
      %v575 = vsel %vm543, %v573, %v574
      %s576 = scalar_lea.vmem %s172, 16
      %v577 = vld [vmem:[%s576] sm:$0xf]
      %v578 = vld [vmem:[%s576 + $0x4] sm:$0xf]
      %v579 = vunpack.c.l.b16 %v547
      %v580 = vunpack.c.l.b16 %v551
      %v581 = vunpack.c.l.b16 %v555
      %v582 = vunpack.c.l.b16 %v559
      %v583 = vunpack.c.l.b16 %v563
      %v584 = vunpack.c.l.b16 %v567
      %v585 = vunpack.c.l.b16 %v571
      %v586 = vunpack.c.l.b16 %v575
      %v587 = vpack.c.b16 %v580, %v579
      %v588 = vpack.c.b16 %v582, %v581
      %v589 = vpack.c.b16 %v584, %v583
      %v590 = vpack.c.b16 %v586, %v585
      %v593 = vunpack.c.l.b16 %v577
      %v594 = vunpack.c.l.b16 %v578
      %v595 = vpack.c.b16 %v594, %v593
      %v598 = vsel %vm336, %v587, 0
      %v601 = vsel %vm336, %v588, 0
      %v604 = vsel %vm336, %v589, 0
      %v607 = vsel %vm336, %v590, 0
      %609 = vmatprep.subr.bf16.mxu0 0
      %610 = vmatpush1.bf16.msra.mxu0 %v595
      %611 = vmatprep.subr.bf16.mxu0 0
      %612 = vmatpush1.bf16.msra.mxu0 0
      %613 = vmatprep.subr.bf16.mxu0 0
      %614 = vmatpush1.bf16.msra.mxu0 0
      %615 = vmatprep.subr.bf16.mxu0 0
      %616 = vmatpush1.bf16.msra.mxu0 0
      %617 = vmatprep.subr.bf16.mxu0 0
      %618 = vmatpush1.bf16.msra.mxu0 0
      %619 = vmatprep.subr.bf16.mxu0 0
      %620 = vmatpush1.bf16.msra.mxu0 0
      %621 = vmatprep.subr.bf16.mxu0 0
      %622 = vmatpush1.bf16.msra.mxu0 0
      %623 = vmatprep.subr.bf16.mxu0 0
      %624 = vmatpush1.bf16.msra.mxu0 0
      %625 = vmatprep.subr.bf16.mxu0 0
      %626 = vmatpush1.bf16.msra.mxu0 0
      %627 = vmatprep.subr.bf16.mxu0 0
      %628 = vmatpush1.bf16.msra.mxu0 0
      %629 = vmatprep.subr.bf16.mxu0 0
      %630 = vmatpush1.bf16.msra.mxu0 0
      %631 = vmatprep.subr.bf16.mxu0 0
      %632 = vmatpush1.bf16.msra.mxu0 0
      %633 = vmatprep.subr.bf16.mxu0 0
      %634 = vmatpush1.bf16.msra.mxu0 0
      %635 = vmatprep.subr.bf16.mxu0 0
      %636 = vmatpush1.bf16.msra.mxu0 0
      %637 = vmatprep.subr.bf16.mxu0 0
      %638 = vmatpush1.bf16.msra.mxu0 0
      %639 = vmatprep.subr.bf16.mxu0 0
      %640 = vmatpush1.bf16.msra.mxu0 0
      %641 = vmatprep.mubr.bf16.mxu0 0
      %642 = vmatmul.mubr.bf16.gmra.mrb[0].mxu0 %v598
      %v643 = vpop.f32.mrb[0].mxu0
      %v644 = vadd.f32 0.0, %v643
      %v645 = vpop.f32.mrb[0].mxu0
      %v646 = vpop.f32.mrb[0].mxu0
      %v647 = vadd.f32 0.0, %v646
      %v648 = vpop.f32.mrb[0].mxu0
      %649 = vmatprep.mubr.bf16.mxu0 0
      %650 = vmatmul.mubr.bf16.gmra.mrb[0].mxu0 %v601
      %v651 = vpop.f32.mrb[0].mxu0
      %v652 = vadd.f32 0.0, %v651
      %v653 = vpop.f32.mrb[0].mxu0
      %v654 = vpop.f32.mrb[0].mxu0
      %v655 = vadd.f32 0.0, %v654
      %v656 = vpop.f32.mrb[0].mxu0
      %657 = vmatprep.mubr.bf16.mxu0 0
      %658 = vmatmul.mubr.bf16.gmra.mrb[0].mxu0 %v604
      %v659 = vpop.f32.mrb[0].mxu0
      %v660 = vadd.f32 0.0, %v659
      %v661 = vpop.f32.mrb[0].mxu0
      %v662 = vpop.f32.mrb[0].mxu0
      %v663 = vadd.f32 0.0, %v662
      %v664 = vpop.f32.mrb[0].mxu0
      %665 = vmatprep.mubr.bf16.mxu0 0
      %666 = vmatmul.mubr.bf16.gmra.mrb[0].mxu0 %v607
      %v667 = vpop.f32.mrb[0].mxu0
      %v668 = vadd.f32 0.0, %v667
      %v669 = vpop.f32.mrb[0].mxu0
      %v670 = vpop.f32.mrb[0].mxu0
      %v671 = vadd.f32 0.0, %v670
      %v672 = vpop.f32.mrb[0].mxu0
      %673 = vdwg.mxu0
      %v674 = vadd.f32 %v487, %v644
      %v675 = vadd.f32 %v490, %v647
      %v676 = vadd.f32 %v495, %v652
      %v677 = vadd.f32 %v498, %v655
      %v678 = vadd.f32 %v503, %v660
      %v679 = vadd.f32 %v506, %v663
      %v680 = vadd.f32 %v511, %v668
      %v681 = vadd.f32 %v514, %v671
      %s682 = scalar_lea.vmem %s168, 8
      %v683 = vld [vmem:[%s682] sm:$0xf]
      %v684 = vld [vmem:[%s682 + $0x8] sm:$0xf]
      %v685 = vld [vmem:[%s682 + $0x10] sm:$0xf]
      %v686 = vld [vmem:[%s682 + $0x18] sm:$0xf]
      %v687 = vld [vmem:[%s682 + $0x20] sm:$0xf]
      %v688 = vld [vmem:[%s682 + $0x28] sm:$0xf]
      %v689 = vld [vmem:[%s682 + $0x30] sm:$0xf]
      %v690 = vld [vmem:[%s682 + $0x38] sm:$0xf]
      %s691 = scalar_lea.vmem %s172, 24
      %v692 = vld [vmem:[%s691] sm:$0xf]
      %v693 = vld [vmem:[%s691 + $0x4] sm:$0xf]
      %v702 = vunpack.c.l.b16 %v683
      %v703 = vunpack.c.l.b16 %v684
      %v704 = vunpack.c.l.b16 %v685
      %v705 = vunpack.c.l.b16 %v686
      %v706 = vunpack.c.l.b16 %v687
      %v707 = vunpack.c.l.b16 %v688
      %v708 = vunpack.c.l.b16 %v689
      %v709 = vunpack.c.l.b16 %v690
      %v710 = vpack.c.b16 %v703, %v702
      %v711 = vpack.c.b16 %v705, %v704
      %v712 = vpack.c.b16 %v707, %v706
      %v713 = vpack.c.b16 %v709, %v708
      %v716 = vunpack.c.l.b16 %v692
      %v717 = vunpack.c.l.b16 %v693
      %v718 = vpack.c.b16 %v717, %v716
      %v721 = vsel %vm336, %v710, 0
      %v724 = vsel %vm336, %v711, 0
      %v727 = vsel %vm336, %v712, 0
      %v730 = vsel %vm336, %v713, 0
      %732 = vmatprep.subr.bf16.mxu0 0
      %733 = vmatpush1.bf16.msra.mxu0 %v718
      %734 = vmatprep.subr.bf16.mxu0 0
      %735 = vmatpush1.bf16.msra.mxu0 0
      %736 = vmatprep.subr.bf16.mxu0 0
      %737 = vmatpush1.bf16.msra.mxu0 0
      %738 = vmatprep.subr.bf16.mxu0 0
      %739 = vmatpush1.bf16.msra.mxu0 0
      %740 = vmatprep.subr.bf16.mxu0 0
      %741 = vmatpush1.bf16.msra.mxu0 0
      %742 = vmatprep.subr.bf16.mxu0 0
      %743 = vmatpush1.bf16.msra.mxu0 0
      %744 = vmatprep.subr.bf16.mxu0 0
      %745 = vmatpush1.bf16.msra.mxu0 0
      %746 = vmatprep.subr.bf16.mxu0 0
      %747 = vmatpush1.bf16.msra.mxu0 0
      %748 = vmatprep.subr.bf16.mxu0 0
      %749 = vmatpush1.bf16.msra.mxu0 0
      %750 = vmatprep.subr.bf16.mxu0 0
      %751 = vmatpush1.bf16.msra.mxu0 0
      %752 = vmatprep.subr.bf16.mxu0 0
      %753 = vmatpush1.bf16.msra.mxu0 0
      %754 = vmatprep.subr.bf16.mxu0 0
      %755 = vmatpush1.bf16.msra.mxu0 0
      %756 = vmatprep.subr.bf16.mxu0 0
      %757 = vmatpush1.bf16.msra.mxu0 0
      %758 = vmatprep.subr.bf16.mxu0 0
      %759 = vmatpush1.bf16.msra.mxu0 0
      %760 = vmatprep.subr.bf16.mxu0 0
      %761 = vmatpush1.bf16.msra.mxu0 0
      %762 = vmatprep.subr.bf16.mxu0 0
      %763 = vmatpush1.bf16.msra.mxu0 0
      %764 = vmatprep.mubr.bf16.mxu0 0
      %765 = vmatmul.mubr.bf16.gmra.mrb[0].mxu0 %v721
      %v766 = vpop.f32.mrb[0].mxu0
      %v767 = vadd.f32 0.0, %v766
      %v768 = vpop.f32.mrb[0].mxu0
      %v769 = vpop.f32.mrb[0].mxu0
      %v770 = vadd.f32 0.0, %v769
      %v771 = vpop.f32.mrb[0].mxu0
      %772 = vmatprep.mubr.bf16.mxu0 0
      %773 = vmatmul.mubr.bf16.gmra.mrb[0].mxu0 %v724
      %v774 = vpop.f32.mrb[0].mxu0
      %v775 = vadd.f32 0.0, %v774
      %v776 = vpop.f32.mrb[0].mxu0
      %v777 = vpop.f32.mrb[0].mxu0
      %v778 = vadd.f32 0.0, %v777
      %v779 = vpop.f32.mrb[0].mxu0
      %780 = vmatprep.mubr.bf16.mxu0 0
      %781 = vmatmul.mubr.bf16.gmra.mrb[0].mxu0 %v727
      %v782 = vpop.f32.mrb[0].mxu0
      %v783 = vadd.f32 0.0, %v782
      %v784 = vpop.f32.mrb[0].mxu0
      %v785 = vpop.f32.mrb[0].mxu0
      %v786 = vadd.f32 0.0, %v785
      %v787 = vpop.f32.mrb[0].mxu0
      %788 = vmatprep.mubr.bf16.mxu0 0
      %789 = vmatmul.mubr.bf16.gmra.mrb[0].mxu0 %v730
      %v790 = vpop.f32.mrb[0].mxu0
      %v791 = vadd.f32 0.0, %v790
      %v792 = vpop.f32.mrb[0].mxu0
      %v793 = vpop.f32.mrb[0].mxu0
      %v794 = vadd.f32 0.0, %v793
      %v795 = vpop.f32.mrb[0].mxu0
      %796 = vdwg.mxu0
      %v797 = vadd.f32 %v674, %v767
      %v798 = vadd.f32 %v675, %v770
      %v799 = vadd.f32 %v676, %v775
      %v800 = vadd.f32 %v677, %v778
      %v801 = vadd.f32 %v678, %v783
      %v802 = vadd.f32 %v679, %v786
      %v803 = vadd.f32 %v680, %v791
      %v804 = vadd.f32 %v681, %v794
      %v805 = vld [vmem:[%s682] sm:$0xf]
      %v806 = vld [vmem:[%s682 + $0x4] sm:$0x1]
      %v807 = vld [vmem:[%s682 + $0x8] sm:$0xf]
      %v808 = vld [vmem:[%s682 + $0xc] sm:$0x1]
      %v809 = vld [vmem:[%s682 + $0x10] sm:$0xf]
      %v810 = vld [vmem:[%s682 + $0x14] sm:$0x1]
      %v811 = vld [vmem:[%s682 + $0x18] sm:$0xf]
      %v812 = vld [vmem:[%s682 + $0x1c] sm:$0x1]
      %v813 = vld [vmem:[%s682 + $0x20] sm:$0xf]
      %v814 = vld [vmem:[%s682 + $0x24] sm:$0x1]
      %v815 = vld [vmem:[%s682 + $0x28] sm:$0xf]
      %v816 = vld [vmem:[%s682 + $0x2c] sm:$0x1]
      %v817 = vld [vmem:[%s682 + $0x30] sm:$0xf]
      %v818 = vld [vmem:[%s682 + $0x34] sm:$0x1]
      %v819 = vld [vmem:[%s682 + $0x38] sm:$0xf]
      %v820 = vld [vmem:[%s682 + $0x3c] sm:$0x1]
      %v822 = vshrl.u32 %v805, 16
      %v824 = vrot.slane %v822, 4
      %v825 = vshll.u32 %v805, 16
      %v827 = vrot.slane %v825, 5
      %v828 = vor.u32 %v824, %v827
      %v829 = vrot.slane %v828, 4
      %v831 = vshll.u32 %v806, 16
      %v833 = vrot.slane %v831, 5
      %v834 = vsel %vm202, %v829, %v833
      %v836 = vshrl.u32 %v807, 16
      %v838 = vrot.slane %v836, 4
      %v839 = vshll.u32 %v807, 16
      %v841 = vrot.slane %v839, 5
      %v842 = vor.u32 %v838, %v841
      %v843 = vrot.slane %v842, 4
      %v845 = vshll.u32 %v808, 16
      %v847 = vrot.slane %v845, 5
      %v848 = vsel %vm202, %v843, %v847
      %v850 = vshrl.u32 %v809, 16
      %v852 = vrot.slane %v850, 4
      %v853 = vshll.u32 %v809, 16
      %v855 = vrot.slane %v853, 5
      %v856 = vor.u32 %v852, %v855
      %v857 = vrot.slane %v856, 4
      %v859 = vshll.u32 %v810, 16
      %v861 = vrot.slane %v859, 5
      %v862 = vsel %vm202, %v857, %v861
      %v864 = vshrl.u32 %v811, 16
      %v866 = vrot.slane %v864, 4
      %v867 = vshll.u32 %v811, 16
      %v869 = vrot.slane %v867, 5
      %v870 = vor.u32 %v866, %v869
      %v871 = vrot.slane %v870, 4
      %v873 = vshll.u32 %v812, 16
      %v875 = vrot.slane %v873, 5
      %v876 = vsel %vm202, %v871, %v875
      %v878 = vshrl.u32 %v813, 16
      %v880 = vrot.slane %v878, 4
      %v881 = vshll.u32 %v813, 16
      %v883 = vrot.slane %v881, 5
      %v884 = vor.u32 %v880, %v883
      %v885 = vrot.slane %v884, 4
      %v887 = vshll.u32 %v814, 16
      %v889 = vrot.slane %v887, 5
      %v890 = vsel %vm202, %v885, %v889
      %v892 = vshrl.u32 %v815, 16
      %v894 = vrot.slane %v892, 4
      %v895 = vshll.u32 %v815, 16
      %v897 = vrot.slane %v895, 5
      %v898 = vor.u32 %v894, %v897
      %v899 = vrot.slane %v898, 4
      %v901 = vshll.u32 %v816, 16
      %v903 = vrot.slane %v901, 5
      %v904 = vsel %vm202, %v899, %v903
      %v906 = vshrl.u32 %v817, 16
      %v908 = vrot.slane %v906, 4
      %v909 = vshll.u32 %v817, 16
      %v911 = vrot.slane %v909, 5
      %v912 = vor.u32 %v908, %v911
      %v913 = vrot.slane %v912, 4
      %v915 = vshll.u32 %v818, 16
      %v917 = vrot.slane %v915, 5
      %v918 = vsel %vm202, %v913, %v917
      %v920 = vshrl.u32 %v819, 16
      %v922 = vrot.slane %v920, 4
      %v923 = vshll.u32 %v819, 16
      %v925 = vrot.slane %v923, 5
      %v926 = vor.u32 %v922, %v925
      %v927 = vrot.slane %v926, 4
      %v929 = vshll.u32 %v820, 16
      %v931 = vrot.slane %v929, 5
      %v932 = vsel %vm202, %v927, %v931
      %s933 = scalar_lea.vmem %s172, 32
      %v934 = vld [vmem:[%s933] sm:$0xf]
      %v935 = vld [vmem:[%s933 + $0x4] sm:$0xf]
      %v936 = vunpack.c.l.b16 %v834
      %v937 = vunpack.c.l.b16 %v848
      %v938 = vunpack.c.l.b16 %v862
      %v939 = vunpack.c.l.b16 %v876
      %v940 = vunpack.c.l.b16 %v890
      %v941 = vunpack.c.l.b16 %v904
      %v942 = vunpack.c.l.b16 %v918
      %v943 = vunpack.c.l.b16 %v932
      %v944 = vpack.c.b16 %v937, %v936
      %v945 = vpack.c.b16 %v939, %v938
      %v946 = vpack.c.b16 %v941, %v940
      %v947 = vpack.c.b16 %v943, %v942
      %v950 = vunpack.c.l.b16 %v934
      %v951 = vunpack.c.l.b16 %v935
      %v952 = vpack.c.b16 %v951, %v950
      %v955 = vsel %vm336, %v944, 0
      %v958 = vsel %vm336, %v945, 0
      %v961 = vsel %vm336, %v946, 0
      %v964 = vsel %vm336, %v947, 0
      %966 = vmatprep.subr.bf16.mxu0 0
      %967 = vmatpush1.bf16.msra.mxu0 %v952
      %968 = vmatprep.subr.bf16.mxu0 0
      %969 = vmatpush1.bf16.msra.mxu0 0
      %970 = vmatprep.subr.bf16.mxu0 0
      %971 = vmatpush1.bf16.msra.mxu0 0
      %972 = vmatprep.subr.bf16.mxu0 0
      %973 = vmatpush1.bf16.msra.mxu0 0
      %974 = vmatprep.subr.bf16.mxu0 0
      %975 = vmatpush1.bf16.msra.mxu0 0
      %976 = vmatprep.subr.bf16.mxu0 0
      %977 = vmatpush1.bf16.msra.mxu0 0
      %978 = vmatprep.subr.bf16.mxu0 0
      %979 = vmatpush1.bf16.msra.mxu0 0
      %980 = vmatprep.subr.bf16.mxu0 0
      %981 = vmatpush1.bf16.msra.mxu0 0
      %982 = vmatprep.subr.bf16.mxu0 0
      %983 = vmatpush1.bf16.msra.mxu0 0
      %984 = vmatprep.subr.bf16.mxu0 0
      %985 = vmatpush1.bf16.msra.mxu0 0
      %986 = vmatprep.subr.bf16.mxu0 0
      %987 = vmatpush1.bf16.msra.mxu0 0
      %988 = vmatprep.subr.bf16.mxu0 0
      %989 = vmatpush1.bf16.msra.mxu0 0
      %990 = vmatprep.subr.bf16.mxu0 0
      %991 = vmatpush1.bf16.msra.mxu0 0
      %992 = vmatprep.subr.bf16.mxu0 0
      %993 = vmatpush1.bf16.msra.mxu0 0
      %994 = vmatprep.subr.bf16.mxu0 0
      %995 = vmatpush1.bf16.msra.mxu0 0
      %996 = vmatprep.subr.bf16.mxu0 0
      %997 = vmatpush1.bf16.msra.mxu0 0
      %998 = vmatprep.mubr.bf16.mxu0 0
      %999 = vmatmul.mubr.bf16.gmra.mrb[0].mxu0 %v955
      %v1000 = vpop.f32.mrb[0].mxu0
      %v1001 = vadd.f32 0.0, %v1000
      %v1002 = vpop.f32.mrb[0].mxu0
      %v1003 = vpop.f32.mrb[0].mxu0
      %v1004 = vadd.f32 0.0, %v1003
      %v1005 = vpop.f32.mrb[0].mxu0
      %1006 = vmatprep.mubr.bf16.mxu0 0
      %1007 = vmatmul.mubr.bf16.gmra.mrb[0].mxu0 %v958
      %v1008 = vpop.f32.mrb[0].mxu0
      %v1009 = vadd.f32 0.0, %v1008
      %v1010 = vpop.f32.mrb[0].mxu0
      %v1011 = vpop.f32.mrb[0].mxu0
      %v1012 = vadd.f32 0.0, %v1011
      %v1013 = vpop.f32.mrb[0].mxu0
      %1014 = vmatprep.mubr.bf16.mxu0 0
      %1015 = vmatmul.mubr.bf16.gmra.mrb[0].mxu0 %v961
      %v1016 = vpop.f32.mrb[0].mxu0
      %v1017 = vadd.f32 0.0, %v1016
      %v1018 = vpop.f32.mrb[0].mxu0
      %v1019 = vpop.f32.mrb[0].mxu0
      %v1020 = vadd.f32 0.0, %v1019
      %v1021 = vpop.f32.mrb[0].mxu0
      %1022 = vmatprep.mubr.bf16.mxu0 0
      %1023 = vmatmul.mubr.bf16.gmra.mrb[0].mxu0 %v964
      %v1024 = vpop.f32.mrb[0].mxu0
      %v1025 = vadd.f32 0.0, %v1024
      %v1026 = vpop.f32.mrb[0].mxu0
      %v1027 = vpop.f32.mrb[0].mxu0
      %v1028 = vadd.f32 0.0, %v1027
      %v1029 = vpop.f32.mrb[0].mxu0
      %1030 = vdwg.mxu0
      %v1031 = vadd.f32 %v797, %v1001
      %v1032 = vadd.f32 %v798, %v1004
      %v1033 = vadd.f32 %v799, %v1009
      %v1034 = vadd.f32 %v800, %v1012
      %v1035 = vadd.f32 %v801, %v1017
      %v1036 = vadd.f32 %v802, %v1020
      %v1037 = vadd.f32 %v803, %v1025
      %v1038 = vadd.f32 %v804, %v1028
      %v1039 = vld [vmem:[%s682] sm:$0xe]
      %v1040 = vld [vmem:[%s682 + $0x8] sm:$0xe]
      %v1041 = vld [vmem:[%s682 + $0x10] sm:$0xe]
      %v1042 = vld [vmem:[%s682 + $0x18] sm:$0xe]
      %v1043 = vld [vmem:[%s682 + $0x20] sm:$0xe]
      %v1044 = vld [vmem:[%s682 + $0x28] sm:$0xe]
      %v1045 = vld [vmem:[%s682 + $0x30] sm:$0xe]
      %v1046 = vld [vmem:[%s682 + $0x38] sm:$0xe]
      %v1063 = vrot.slane %v1039, 5
      %v1064 = vrot.slane %v1063, 4
      %v1065 = vrot.slane %v806, 5
      %v1066 = vsel %vm543, %v1064, %v1065
      %v1067 = vrot.slane %v1040, 5
      %v1068 = vrot.slane %v1067, 4
      %v1069 = vrot.slane %v808, 5
      %v1070 = vsel %vm543, %v1068, %v1069
      %v1071 = vrot.slane %v1041, 5
      %v1072 = vrot.slane %v1071, 4
      %v1073 = vrot.slane %v810, 5
      %v1074 = vsel %vm543, %v1072, %v1073
      %v1075 = vrot.slane %v1042, 5
      %v1076 = vrot.slane %v1075, 4
      %v1077 = vrot.slane %v812, 5
      %v1078 = vsel %vm543, %v1076, %v1077
      %v1079 = vrot.slane %v1043, 5
      %v1080 = vrot.slane %v1079, 4
      %v1081 = vrot.slane %v814, 5
      %v1082 = vsel %vm543, %v1080, %v1081
      %v1083 = vrot.slane %v1044, 5
      %v1084 = vrot.slane %v1083, 4
      %v1085 = vrot.slane %v816, 5
      %v1086 = vsel %vm543, %v1084, %v1085
      %v1087 = vrot.slane %v1045, 5
      %v1088 = vrot.slane %v1087, 4
      %v1089 = vrot.slane %v818, 5
      %v1090 = vsel %vm543, %v1088, %v1089
      %v1091 = vrot.slane %v1046, 5
      %v1092 = vrot.slane %v1091, 4
      %v1093 = vrot.slane %v820, 5
      %v1094 = vsel %vm543, %v1092, %v1093
      %s1095 = scalar_lea.vmem %s172, 40
      %v1096 = vld [vmem:[%s1095] sm:$0xf]
      %v1097 = vld [vmem:[%s1095 + $0x4] sm:$0xf]
      %v1098 = vunpack.c.l.b16 %v1066
      %v1099 = vunpack.c.l.b16 %v1070
      %v1100 = vunpack.c.l.b16 %v1074
      %v1101 = vunpack.c.l.b16 %v1078
      %v1102 = vunpack.c.l.b16 %v1082
      %v1103 = vunpack.c.l.b16 %v1086
      %v1104 = vunpack.c.l.b16 %v1090
      %v1105 = vunpack.c.l.b16 %v1094
      %v1106 = vpack.c.b16 %v1099, %v1098
      %v1107 = vpack.c.b16 %v1101, %v1100
      %v1108 = vpack.c.b16 %v1103, %v1102
      %v1109 = vpack.c.b16 %v1105, %v1104
      %v1112 = vunpack.c.l.b16 %v1096
      %v1113 = vunpack.c.l.b16 %v1097
      %v1114 = vpack.c.b16 %v1113, %v1112
      %v1117 = vsel %vm336, %v1106, 0
      %v1120 = vsel %vm336, %v1107, 0
      %v1123 = vsel %vm336, %v1108, 0
      %v1126 = vsel %vm336, %v1109, 0
      %1128 = vmatprep.subr.bf16.mxu0 0
      %1129 = vmatpush1.bf16.msra.mxu0 %v1114
      %1130 = vmatprep.subr.bf16.mxu0 0
      %1131 = vmatpush1.bf16.msra.mxu0 0
      %1132 = vmatprep.subr.bf16.mxu0 0
      %1133 = vmatpush1.bf16.msra.mxu0 0
      %1134 = vmatprep.subr.bf16.mxu0 0
      %1135 = vmatpush1.bf16.msra.mxu0 0
      %1136 = vmatprep.subr.bf16.mxu0 0
      %1137 = vmatpush1.bf16.msra.mxu0 0
      %1138 = vmatprep.subr.bf16.mxu0 0
      %1139 = vmatpush1.bf16.msra.mxu0 0
      %1140 = vmatprep.subr.bf16.mxu0 0
      %1141 = vmatpush1.bf16.msra.mxu0 0
      %1142 = vmatprep.subr.bf16.mxu0 0
      %1143 = vmatpush1.bf16.msra.mxu0 0
      %1144 = vmatprep.subr.bf16.mxu0 0
      %1145 = vmatpush1.bf16.msra.mxu0 0
      %1146 = vmatprep.subr.bf16.mxu0 0
      %1147 = vmatpush1.bf16.msra.mxu0 0
      %1148 = vmatprep.subr.bf16.mxu0 0
      %1149 = vmatpush1.bf16.msra.mxu0 0
      %1150 = vmatprep.subr.bf16.mxu0 0
      %1151 = vmatpush1.bf16.msra.mxu0 0
      %1152 = vmatprep.subr.bf16.mxu0 0
      %1153 = vmatpush1.bf16.msra.mxu0 0
      %1154 = vmatprep.subr.bf16.mxu0 0
      %1155 = vmatpush1.bf16.msra.mxu0 0
      %1156 = vmatprep.subr.bf16.mxu0 0
      %1157 = vmatpush1.bf16.msra.mxu0 0
      %1158 = vmatprep.subr.bf16.mxu0 0
      %1159 = vmatpush1.bf16.msra.mxu0 0
      %1160 = vmatprep.mubr.bf16.mxu0 0
      %1161 = vmatmul.mubr.bf16.gmra.mrb[0].mxu0 %v1117
      %v1162 = vpop.f32.mrb[0].mxu0
      %v1163 = vadd.f32 0.0, %v1162
      %v1164 = vpop.f32.mrb[0].mxu0
      %v1165 = vpop.f32.mrb[0].mxu0
      %v1166 = vadd.f32 0.0, %v1165
      %v1167 = vpop.f32.mrb[0].mxu0
      %1168 = vmatprep.mubr.bf16.mxu0 0
      %1169 = vmatmul.mubr.bf16.gmra.mrb[0].mxu0 %v1120
      %v1170 = vpop.f32.mrb[0].mxu0
      %v1171 = vadd.f32 0.0, %v1170
      %v1172 = vpop.f32.mrb[0].mxu0
      %v1173 = vpop.f32.mrb[0].mxu0
      %v1174 = vadd.f32 0.0, %v1173
      %v1175 = vpop.f32.mrb[0].mxu0
      %1176 = vmatprep.mubr.bf16.mxu0 0
      %1177 = vmatmul.mubr.bf16.gmra.mrb[0].mxu0 %v1123
      %v1178 = vpop.f32.mrb[0].mxu0
      %v1179 = vadd.f32 0.0, %v1178
      %v1180 = vpop.f32.mrb[0].mxu0
      %v1181 = vpop.f32.mrb[0].mxu0
      %v1182 = vadd.f32 0.0, %v1181
      %v1183 = vpop.f32.mrb[0].mxu0
      %1184 = vmatprep.mubr.bf16.mxu0 0
      %1185 = vmatmul.mubr.bf16.gmra.mrb[0].mxu0 %v1126
      %v1186 = vpop.f32.mrb[0].mxu0
      %v1187 = vadd.f32 0.0, %v1186
      %v1188 = vpop.f32.mrb[0].mxu0
      %v1189 = vpop.f32.mrb[0].mxu0
      %v1190 = vadd.f32 0.0, %v1189
      %v1191 = vpop.f32.mrb[0].mxu0
      %1192 = vdwg.mxu0
      %v1193 = vadd.f32 %v1031, %v1163
      %v1194 = vadd.f32 %v1032, %v1166
      %v1195 = vadd.f32 %v1033, %v1171
      %v1196 = vadd.f32 %v1034, %v1174
      %v1197 = vadd.f32 %v1035, %v1179
      %v1198 = vadd.f32 %v1036, %v1182
      %v1199 = vadd.f32 %v1037, %v1187
      %v1200 = vadd.f32 %v1038, %v1190
      %s1201 = scalar_lea.vmem %s168, 16
      %v1202 = vld [vmem:[%s1201] sm:$0xf]
      %v1203 = vld [vmem:[%s1201 + $0x8] sm:$0xf]
      %v1204 = vld [vmem:[%s1201 + $0x10] sm:$0xf]
      %v1205 = vld [vmem:[%s1201 + $0x18] sm:$0xf]
      %v1206 = vld [vmem:[%s1201 + $0x20] sm:$0xf]
      %v1207 = vld [vmem:[%s1201 + $0x28] sm:$0xf]
      %v1208 = vld [vmem:[%s1201 + $0x30] sm:$0xf]
      %v1209 = vld [vmem:[%s1201 + $0x38] sm:$0xf]
      %s1210 = scalar_lea.vmem %s172, 48
      %v1211 = vld [vmem:[%s1210] sm:$0xf]
      %v1212 = vld [vmem:[%s1210 + $0x4] sm:$0xf]
      %v1221 = vunpack.c.l.b16 %v1202
      %v1222 = vunpack.c.l.b16 %v1203
      %v1223 = vunpack.c.l.b16 %v1204
      %v1224 = vunpack.c.l.b16 %v1205
      %v1225 = vunpack.c.l.b16 %v1206
      %v1226 = vunpack.c.l.b16 %v1207
      %v1227 = vunpack.c.l.b16 %v1208
      %v1228 = vunpack.c.l.b16 %v1209
      %v1229 = vpack.c.b16 %v1222, %v1221
      %v1230 = vpack.c.b16 %v1224, %v1223
      %v1231 = vpack.c.b16 %v1226, %v1225
      %v1232 = vpack.c.b16 %v1228, %v1227
      %v1235 = vunpack.c.l.b16 %v1211
      %v1236 = vunpack.c.l.b16 %v1212
      %v1237 = vpack.c.b16 %v1236, %v1235
      %v1240 = vsel %vm336, %v1229, 0
      %v1243 = vsel %vm336, %v1230, 0
      %v1246 = vsel %vm336, %v1231, 0
      %v1249 = vsel %vm336, %v1232, 0
      %1251 = vmatprep.subr.bf16.mxu0 0
      %1252 = vmatpush1.bf16.msra.mxu0 %v1237
      %1253 = vmatprep.subr.bf16.mxu0 0
      %1254 = vmatpush1.bf16.msra.mxu0 0
      %1255 = vmatprep.subr.bf16.mxu0 0
      %1256 = vmatpush1.bf16.msra.mxu0 0
      %1257 = vmatprep.subr.bf16.mxu0 0
      %1258 = vmatpush1.bf16.msra.mxu0 0
      %1259 = vmatprep.subr.bf16.mxu0 0
      %1260 = vmatpush1.bf16.msra.mxu0 0
      %1261 = vmatprep.subr.bf16.mxu0 0
      %1262 = vmatpush1.bf16.msra.mxu0 0
      %1263 = vmatprep.subr.bf16.mxu0 0
      %1264 = vmatpush1.bf16.msra.mxu0 0
      %1265 = vmatprep.subr.bf16.mxu0 0
      %1266 = vmatpush1.bf16.msra.mxu0 0
      %1267 = vmatprep.subr.bf16.mxu0 0
      %1268 = vmatpush1.bf16.msra.mxu0 0
      %1269 = vmatprep.subr.bf16.mxu0 0
      %1270 = vmatpush1.bf16.msra.mxu0 0
      %1271 = vmatprep.subr.bf16.mxu0 0
      %1272 = vmatpush1.bf16.msra.mxu0 0
      %1273 = vmatprep.subr.bf16.mxu0 0
      %1274 = vmatpush1.bf16.msra.mxu0 0
      %1275 = vmatprep.subr.bf16.mxu0 0
      %1276 = vmatpush1.bf16.msra.mxu0 0
      %1277 = vmatprep.subr.bf16.mxu0 0
      %1278 = vmatpush1.bf16.msra.mxu0 0
      %1279 = vmatprep.subr.bf16.mxu0 0
      %1280 = vmatpush1.bf16.msra.mxu0 0
      %1281 = vmatprep.subr.bf16.mxu0 0
      %1282 = vmatpush1.bf16.msra.mxu0 0
      %1283 = vmatprep.mubr.bf16.mxu0 0
      %1284 = vmatmul.mubr.bf16.gmra.mrb[0].mxu0 %v1240
      %v1285 = vpop.f32.mrb[0].mxu0
      %v1286 = vadd.f32 0.0, %v1285
      %v1287 = vpop.f32.mrb[0].mxu0
      %v1288 = vpop.f32.mrb[0].mxu0
      %v1289 = vadd.f32 0.0, %v1288
      %v1290 = vpop.f32.mrb[0].mxu0
      %1291 = vmatprep.mubr.bf16.mxu0 0
      %1292 = vmatmul.mubr.bf16.gmra.mrb[0].mxu0 %v1243
      %v1293 = vpop.f32.mrb[0].mxu0
      %v1294 = vadd.f32 0.0, %v1293
      %v1295 = vpop.f32.mrb[0].mxu0
      %v1296 = vpop.f32.mrb[0].mxu0
      %v1297 = vadd.f32 0.0, %v1296
      %v1298 = vpop.f32.mrb[0].mxu0
      %1299 = vmatprep.mubr.bf16.mxu0 0
      %1300 = vmatmul.mubr.bf16.gmra.mrb[0].mxu0 %v1246
      %v1301 = vpop.f32.mrb[0].mxu0
      %v1302 = vadd.f32 0.0, %v1301
      %v1303 = vpop.f32.mrb[0].mxu0
      %v1304 = vpop.f32.mrb[0].mxu0
      %v1305 = vadd.f32 0.0, %v1304
      %v1306 = vpop.f32.mrb[0].mxu0
      %1307 = vmatprep.mubr.bf16.mxu0 0
      %1308 = vmatmul.mubr.bf16.gmra.mrb[0].mxu0 %v1249
      %v1309 = vpop.f32.mrb[0].mxu0
      %v1310 = vadd.f32 0.0, %v1309
      %v1311 = vpop.f32.mrb[0].mxu0
      %v1312 = vpop.f32.mrb[0].mxu0
      %v1313 = vadd.f32 0.0, %v1312
      %v1314 = vpop.f32.mrb[0].mxu0
      %1315 = vdwg.mxu0
      %v1316 = vadd.f32 %v1193, %v1286
      %v1317 = vadd.f32 %v1194, %v1289
      %v1318 = vadd.f32 %v1195, %v1294
      %v1319 = vadd.f32 %v1196, %v1297
      %v1320 = vadd.f32 %v1197, %v1302
      %v1321 = vadd.f32 %v1198, %v1305
      %v1322 = vadd.f32 %v1199, %v1310
      %v1323 = vadd.f32 %v1200, %v1313
      %v1324 = vld [vmem:[%s1201] sm:$0xf]
      %v1325 = vld [vmem:[%s1201 + $0x4] sm:$0x1]
      %v1326 = vld [vmem:[%s1201 + $0x8] sm:$0xf]
      %v1327 = vld [vmem:[%s1201 + $0xc] sm:$0x1]
      %v1328 = vld [vmem:[%s1201 + $0x10] sm:$0xf]
      %v1329 = vld [vmem:[%s1201 + $0x14] sm:$0x1]
      %v1330 = vld [vmem:[%s1201 + $0x18] sm:$0xf]
      %v1331 = vld [vmem:[%s1201 + $0x1c] sm:$0x1]
      %v1332 = vld [vmem:[%s1201 + $0x20] sm:$0xf]
      %v1333 = vld [vmem:[%s1201 + $0x24] sm:$0x1]
      %v1334 = vld [vmem:[%s1201 + $0x28] sm:$0xf]
      %v1335 = vld [vmem:[%s1201 + $0x2c] sm:$0x1]
      %v1336 = vld [vmem:[%s1201 + $0x30] sm:$0xf]
      %v1337 = vld [vmem:[%s1201 + $0x34] sm:$0x1]
      %v1338 = vld [vmem:[%s1201 + $0x38] sm:$0xf]
      %v1339 = vld [vmem:[%s1201 + $0x3c] sm:$0x1]
      %v1341 = vshrl.u32 %v1324, 16
      %v1343 = vrot.slane %v1341, 4
      %v1344 = vshll.u32 %v1324, 16
      %v1346 = vrot.slane %v1344, 5
      %v1347 = vor.u32 %v1343, %v1346
      %v1348 = vrot.slane %v1347, 4
      %v1350 = vshll.u32 %v1325, 16
      %v1352 = vrot.slane %v1350, 5
      %v1353 = vsel %vm202, %v1348, %v1352
      %v1355 = vshrl.u32 %v1326, 16
      %v1357 = vrot.slane %v1355, 4
      %v1358 = vshll.u32 %v1326, 16
      %v1360 = vrot.slane %v1358, 5
      %v1361 = vor.u32 %v1357, %v1360
      %v1362 = vrot.slane %v1361, 4
      %v1364 = vshll.u32 %v1327, 16
      %v1366 = vrot.slane %v1364, 5
      %v1367 = vsel %vm202, %v1362, %v1366
      %v1369 = vshrl.u32 %v1328, 16
      %v1371 = vrot.slane %v1369, 4
      %v1372 = vshll.u32 %v1328, 16
      %v1374 = vrot.slane %v1372, 5
      %v1375 = vor.u32 %v1371, %v1374
      %v1376 = vrot.slane %v1375, 4
      %v1378 = vshll.u32 %v1329, 16
      %v1380 = vrot.slane %v1378, 5
      %v1381 = vsel %vm202, %v1376, %v1380
      %v1383 = vshrl.u32 %v1330, 16
      %v1385 = vrot.slane %v1383, 4
      %v1386 = vshll.u32 %v1330, 16
      %v1388 = vrot.slane %v1386, 5
      %v1389 = vor.u32 %v1385, %v1388
      %v1390 = vrot.slane %v1389, 4
      %v1392 = vshll.u32 %v1331, 16
      %v1394 = vrot.slane %v1392, 5
      %v1395 = vsel %vm202, %v1390, %v1394
      %v1397 = vshrl.u32 %v1332, 16
      %v1399 = vrot.slane %v1397, 4
      %v1400 = vshll.u32 %v1332, 16
      %v1402 = vrot.slane %v1400, 5
      %v1403 = vor.u32 %v1399, %v1402
      %v1404 = vrot.slane %v1403, 4
      %v1406 = vshll.u32 %v1333, 16
      %v1408 = vrot.slane %v1406, 5
      %v1409 = vsel %vm202, %v1404, %v1408
      %v1411 = vshrl.u32 %v1334, 16
      %v1413 = vrot.slane %v1411, 4
      %v1414 = vshll.u32 %v1334, 16
      %v1416 = vrot.slane %v1414, 5
      %v1417 = vor.u32 %v1413, %v1416
      %v1418 = vrot.slane %v1417, 4
      %v1420 = vshll.u32 %v1335, 16
      %v1422 = vrot.slane %v1420, 5
      %v1423 = vsel %vm202, %v1418, %v1422
      %v1425 = vshrl.u32 %v1336, 16
      %v1427 = vrot.slane %v1425, 4
      %v1428 = vshll.u32 %v1336, 16
      %v1430 = vrot.slane %v1428, 5
      %v1431 = vor.u32 %v1427, %v1430
      %v1432 = vrot.slane %v1431, 4
      %v1434 = vshll.u32 %v1337, 16
      %v1436 = vrot.slane %v1434, 5
      %v1437 = vsel %vm202, %v1432, %v1436
      %v1439 = vshrl.u32 %v1338, 16
      %v1441 = vrot.slane %v1439, 4
      %v1442 = vshll.u32 %v1338, 16
      %v1444 = vrot.slane %v1442, 5
      %v1445 = vor.u32 %v1441, %v1444
      %v1446 = vrot.slane %v1445, 4
      %v1448 = vshll.u32 %v1339, 16
      %v1450 = vrot.slane %v1448, 5
      %v1451 = vsel %vm202, %v1446, %v1450
      %s1452 = scalar_lea.vmem %s172, 56
      %v1453 = vld [vmem:[%s1452] sm:$0xf]
      %v1454 = vld [vmem:[%s1452 + $0x4] sm:$0xf]
      %v1455 = vunpack.c.l.b16 %v1353
      %v1456 = vunpack.c.l.b16 %v1367
      %v1457 = vunpack.c.l.b16 %v1381
      %v1458 = vunpack.c.l.b16 %v1395
      %v1459 = vunpack.c.l.b16 %v1409
      %v1460 = vunpack.c.l.b16 %v1423
      %v1461 = vunpack.c.l.b16 %v1437
      %v1462 = vunpack.c.l.b16 %v1451
      %v1463 = vpack.c.b16 %v1456, %v1455
      %v1464 = vpack.c.b16 %v1458, %v1457
      %v1465 = vpack.c.b16 %v1460, %v1459
      %v1466 = vpack.c.b16 %v1462, %v1461
      %v1469 = vunpack.c.l.b16 %v1453
      %v1470 = vunpack.c.l.b16 %v1454
      %v1471 = vpack.c.b16 %v1470, %v1469
      %v1474 = vsel %vm336, %v1463, 0
      %v1477 = vsel %vm336, %v1464, 0
      %v1480 = vsel %vm336, %v1465, 0
      %v1483 = vsel %vm336, %v1466, 0
      %1485 = vmatprep.subr.bf16.mxu0 0
      %1486 = vmatpush1.bf16.msra.mxu0 %v1471
      %1487 = vmatprep.subr.bf16.mxu0 0
      %1488 = vmatpush1.bf16.msra.mxu0 0
      %1489 = vmatprep.subr.bf16.mxu0 0
      %1490 = vmatpush1.bf16.msra.mxu0 0
      %1491 = vmatprep.subr.bf16.mxu0 0
      %1492 = vmatpush1.bf16.msra.mxu0 0
      %1493 = vmatprep.subr.bf16.mxu0 0
      %1494 = vmatpush1.bf16.msra.mxu0 0
      %1495 = vmatprep.subr.bf16.mxu0 0
      %1496 = vmatpush1.bf16.msra.mxu0 0
      %1497 = vmatprep.subr.bf16.mxu0 0
      %1498 = vmatpush1.bf16.msra.mxu0 0
      %1499 = vmatprep.subr.bf16.mxu0 0
      %1500 = vmatpush1.bf16.msra.mxu0 0
      %1501 = vmatprep.subr.bf16.mxu0 0
      %1502 = vmatpush1.bf16.msra.mxu0 0
      %1503 = vmatprep.subr.bf16.mxu0 0
      %1504 = vmatpush1.bf16.msra.mxu0 0
      %1505 = vmatprep.subr.bf16.mxu0 0
      %1506 = vmatpush1.bf16.msra.mxu0 0
      %1507 = vmatprep.subr.bf16.mxu0 0
      %1508 = vmatpush1.bf16.msra.mxu0 0
      %1509 = vmatprep.subr.bf16.mxu0 0
      %1510 = vmatpush1.bf16.msra.mxu0 0
      %1511 = vmatprep.subr.bf16.mxu0 0
      %1512 = vmatpush1.bf16.msra.mxu0 0
      %1513 = vmatprep.subr.bf16.mxu0 0
      %1514 = vmatpush1.bf16.msra.mxu0 0
      %1515 = vmatprep.subr.bf16.mxu0 0
      %1516 = vmatpush1.bf16.msra.mxu0 0
      %1517 = vmatprep.mubr.bf16.mxu0 0
      %1518 = vmatmul.mubr.bf16.gmra.mrb[0].mxu0 %v1474
      %v1519 = vpop.f32.mrb[0].mxu0
      %v1520 = vadd.f32 0.0, %v1519
      %v1521 = vpop.f32.mrb[0].mxu0
      %v1522 = vpop.f32.mrb[0].mxu0
      %v1523 = vadd.f32 0.0, %v1522
      %v1524 = vpop.f32.mrb[0].mxu0
      %1525 = vmatprep.mubr.bf16.mxu0 0
      %1526 = vmatmul.mubr.bf16.gmra.mrb[0].mxu0 %v1477
      %v1527 = vpop.f32.mrb[0].mxu0
      %v1528 = vadd.f32 0.0, %v1527
      %v1529 = vpop.f32.mrb[0].mxu0
      %v1530 = vpop.f32.mrb[0].mxu0
      %v1531 = vadd.f32 0.0, %v1530
      %v1532 = vpop.f32.mrb[0].mxu0
      %1533 = vmatprep.mubr.bf16.mxu0 0
      %1534 = vmatmul.mubr.bf16.gmra.mrb[0].mxu0 %v1480
      %v1535 = vpop.f32.mrb[0].mxu0
      %v1536 = vadd.f32 0.0, %v1535
      %v1537 = vpop.f32.mrb[0].mxu0
      %v1538 = vpop.f32.mrb[0].mxu0
      %v1539 = vadd.f32 0.0, %v1538
      %v1540 = vpop.f32.mrb[0].mxu0
      %1541 = vmatprep.mubr.bf16.mxu0 0
      %1542 = vmatmul.mubr.bf16.gmra.mrb[0].mxu0 %v1483
      %v1543 = vpop.f32.mrb[0].mxu0
      %v1544 = vadd.f32 0.0, %v1543
      %v1545 = vpop.f32.mrb[0].mxu0
      %v1546 = vpop.f32.mrb[0].mxu0
      %v1547 = vadd.f32 0.0, %v1546
      %v1548 = vpop.f32.mrb[0].mxu0
      %1549 = vdwg.mxu0
      %v1550 = vadd.f32 %v1316, %v1520
      %v1551 = vadd.f32 %v1317, %v1523
      %v1552 = vadd.f32 %v1318, %v1528
      %v1553 = vadd.f32 %v1319, %v1531
      %v1554 = vadd.f32 %v1320, %v1536
      %v1555 = vadd.f32 %v1321, %v1539
      %v1556 = vadd.f32 %v1322, %v1544
      %v1557 = vadd.f32 %v1323, %v1547
      %v1558 = vld [vmem:[%s1201] sm:$0xe]
      %v1559 = vld [vmem:[%s1201 + $0x8] sm:$0xe]
      %v1560 = vld [vmem:[%s1201 + $0x10] sm:$0xe]
      %v1561 = vld [vmem:[%s1201 + $0x18] sm:$0xe]
      %v1562 = vld [vmem:[%s1201 + $0x20] sm:$0xe]
      %v1563 = vld [vmem:[%s1201 + $0x28] sm:$0xe]
      %v1564 = vld [vmem:[%s1201 + $0x30] sm:$0xe]
      %v1565 = vld [vmem:[%s1201 + $0x38] sm:$0xe]
      %v1582 = vrot.slane %v1558, 5
      %v1583 = vrot.slane %v1582, 4
      %v1584 = vrot.slane %v1325, 5
      %v1585 = vsel %vm543, %v1583, %v1584
      %v1586 = vrot.slane %v1559, 5
      %v1587 = vrot.slane %v1586, 4
      %v1588 = vrot.slane %v1327, 5
      %v1589 = vsel %vm543, %v1587, %v1588
      %v1590 = vrot.slane %v1560, 5
      %v1591 = vrot.slane %v1590, 4
      %v1592 = vrot.slane %v1329, 5
      %v1593 = vsel %vm543, %v1591, %v1592
      %v1594 = vrot.slane %v1561, 5
      %v1595 = vrot.slane %v1594, 4
      %v1596 = vrot.slane %v1331, 5
      %v1597 = vsel %vm543, %v1595, %v1596
      %v1598 = vrot.slane %v1562, 5
      %v1599 = vrot.slane %v1598, 4
      %v1600 = vrot.slane %v1333, 5
      %v1601 = vsel %vm543, %v1599, %v1600
      %v1602 = vrot.slane %v1563, 5
      %v1603 = vrot.slane %v1602, 4
      %v1604 = vrot.slane %v1335, 5
      %v1605 = vsel %vm543, %v1603, %v1604
      %v1606 = vrot.slane %v1564, 5
      %v1607 = vrot.slane %v1606, 4
      %v1608 = vrot.slane %v1337, 5
      %v1609 = vsel %vm543, %v1607, %v1608
      %v1610 = vrot.slane %v1565, 5
      %v1611 = vrot.slane %v1610, 4
      %v1612 = vrot.slane %v1339, 5
      %v1613 = vsel %vm543, %v1611, %v1612
      %s1614 = scalar_lea.vmem %s172, 64
      %v1615 = vld [vmem:[%s1614] sm:$0xf]
      %v1616 = vld [vmem:[%s1614 + $0x4] sm:$0xf]
      %v1617 = vunpack.c.l.b16 %v1585
      %v1618 = vunpack.c.l.b16 %v1589
      %v1619 = vunpack.c.l.b16 %v1593
      %v1620 = vunpack.c.l.b16 %v1597
      %v1621 = vunpack.c.l.b16 %v1601
      %v1622 = vunpack.c.l.b16 %v1605
      %v1623 = vunpack.c.l.b16 %v1609
      %v1624 = vunpack.c.l.b16 %v1613
      %v1625 = vpack.c.b16 %v1618, %v1617
      %v1626 = vpack.c.b16 %v1620, %v1619
      %v1627 = vpack.c.b16 %v1622, %v1621
      %v1628 = vpack.c.b16 %v1624, %v1623
      %v1631 = vunpack.c.l.b16 %v1615
      %v1632 = vunpack.c.l.b16 %v1616
      %v1633 = vpack.c.b16 %v1632, %v1631
      %v1636 = vsel %vm336, %v1625, 0
      %v1639 = vsel %vm336, %v1626, 0
      %v1642 = vsel %vm336, %v1627, 0
      %v1645 = vsel %vm336, %v1628, 0
      %1647 = vmatprep.subr.bf16.mxu0 0
      %1648 = vmatpush1.bf16.msra.mxu0 %v1633
      %1649 = vmatprep.subr.bf16.mxu0 0
      %1650 = vmatpush1.bf16.msra.mxu0 0
      %1651 = vmatprep.subr.bf16.mxu0 0
      %1652 = vmatpush1.bf16.msra.mxu0 0
      %1653 = vmatprep.subr.bf16.mxu0 0
      %1654 = vmatpush1.bf16.msra.mxu0 0
      %1655 = vmatprep.subr.bf16.mxu0 0
      %1656 = vmatpush1.bf16.msra.mxu0 0
      %1657 = vmatprep.subr.bf16.mxu0 0
      %1658 = vmatpush1.bf16.msra.mxu0 0
      %1659 = vmatprep.subr.bf16.mxu0 0
      %1660 = vmatpush1.bf16.msra.mxu0 0
      %1661 = vmatprep.subr.bf16.mxu0 0
      %1662 = vmatpush1.bf16.msra.mxu0 0
      %1663 = vmatprep.subr.bf16.mxu0 0
      %1664 = vmatpush1.bf16.msra.mxu0 0
      %1665 = vmatprep.subr.bf16.mxu0 0
      %1666 = vmatpush1.bf16.msra.mxu0 0
      %1667 = vmatprep.subr.bf16.mxu0 0
      %1668 = vmatpush1.bf16.msra.mxu0 0
      %1669 = vmatprep.subr.bf16.mxu0 0
      %1670 = vmatpush1.bf16.msra.mxu0 0
      %1671 = vmatprep.subr.bf16.mxu0 0
      %1672 = vmatpush1.bf16.msra.mxu0 0
      %1673 = vmatprep.subr.bf16.mxu0 0
      %1674 = vmatpush1.bf16.msra.mxu0 0
      %1675 = vmatprep.subr.bf16.mxu0 0
      %1676 = vmatpush1.bf16.msra.mxu0 0
      %1677 = vmatprep.subr.bf16.mxu0 0
      %1678 = vmatpush1.bf16.msra.mxu0 0
      %1679 = vmatprep.mubr.bf16.mxu0 0
      %1680 = vmatmul.mubr.bf16.gmra.mrb[0].mxu0 %v1636
      %v1681 = vpop.f32.mrb[0].mxu0
      %v1682 = vadd.f32 0.0, %v1681
      %v1683 = vpop.f32.mrb[0].mxu0
      %v1684 = vpop.f32.mrb[0].mxu0
      %v1685 = vadd.f32 0.0, %v1684
      %v1686 = vpop.f32.mrb[0].mxu0
      %1687 = vmatprep.mubr.bf16.mxu0 0
      %1688 = vmatmul.mubr.bf16.gmra.mrb[0].mxu0 %v1639
      %v1689 = vpop.f32.mrb[0].mxu0
      %v1690 = vadd.f32 0.0, %v1689
      %v1691 = vpop.f32.mrb[0].mxu0
      %v1692 = vpop.f32.mrb[0].mxu0
      %v1693 = vadd.f32 0.0, %v1692
      %v1694 = vpop.f32.mrb[0].mxu0
      %1695 = vmatprep.mubr.bf16.mxu0 0
      %1696 = vmatmul.mubr.bf16.gmra.mrb[0].mxu0 %v1642
      %v1697 = vpop.f32.mrb[0].mxu0
      %v1698 = vadd.f32 0.0, %v1697
      %v1699 = vpop.f32.mrb[0].mxu0
      %v1700 = vpop.f32.mrb[0].mxu0
      %v1701 = vadd.f32 0.0, %v1700
      %v1702 = vpop.f32.mrb[0].mxu0
      %1703 = vmatprep.mubr.bf16.mxu0 0
      %1704 = vmatmul.mubr.bf16.gmra.mrb[0].mxu0 %v1645
      %v1705 = vpop.f32.mrb[0].mxu0
      %v1706 = vadd.f32 0.0, %v1705
      %v1707 = vpop.f32.mrb[0].mxu0
      %v1708 = vpop.f32.mrb[0].mxu0
      %v1709 = vadd.f32 0.0, %v1708
      %v1710 = vpop.f32.mrb[0].mxu0
      %1711 = vdwg.mxu0
      %v1712 = vadd.f32 %v1550, %v1682
      %v1713 = vadd.f32 %v1551, %v1685
      %v1714 = vadd.f32 %v1552, %v1690
      %v1715 = vadd.f32 %v1553, %v1693
      %v1716 = vadd.f32 %v1554, %v1698
      %v1717 = vadd.f32 %v1555, %v1701
      %v1718 = vadd.f32 %v1556, %v1706
      %v1719 = vadd.f32 %v1557, %v1709
      %v1720 = vpack.c.bf16 %v1713, %v1712
      %v1721 = vpack.c.bf16 %v1715, %v1714
      %v1722 = vpack.c.bf16 %v1717, %v1716
      %v1723 = vpack.c.bf16 %v1719, %v1718
      %v1728 = vunpack.c.l.b16 %v1720
      %v1729 = vunpack.c.h.b16 %v1720
      %v1730 = vunpack.c.l.b16 %v1721
      %v1731 = vunpack.c.h.b16 %v1721
      %v1732 = vunpack.c.l.b16 %v1722
      %v1733 = vunpack.c.h.b16 %v1722
      %v1734 = vunpack.c.l.b16 %v1723
      %v1735 = vunpack.c.h.b16 %v1723
      %v1736 = vpack.c.b16 %v1728, %v1728
      %v1737 = vpack.c.b16 %v1729, %v1729
      %v1738 = vpack.c.b16 %v1730, %v1730
      %v1739 = vpack.c.b16 %v1731, %v1731
      %v1740 = vpack.c.b16 %v1732, %v1732
      %v1741 = vpack.c.b16 %v1733, %v1733
      %v1742 = vpack.c.b16 %v1734, %v1734
      %v1743 = vpack.c.b16 %v1735, %v1735
      %vm1752 = vcmask 125952
      %1753 = vst.msk [vmem:[%s180] sm:$0xf] %vm1752, %v1736
      %1754 = vst.msk [vmem:[%s180 + $0x4] sm:$0xf] %vm1752, %v1737
      %1755 = vst.msk [vmem:[%s180 + $0x8] sm:$0xf] %vm1752, %v1738
      %1756 = vst.msk [vmem:[%s180 + $0xc] sm:$0xf] %vm1752, %v1739
      %1757 = vst.msk [vmem:[%s180 + $0x10] sm:$0xf] %vm1752, %v1740
      %1758 = vst.msk [vmem:[%s180 + $0x14] sm:$0xf] %vm1752, %v1741
      %1759 = vst.msk [vmem:[%s180 + $0x18] sm:$0xf] %vm1752, %v1742
      %1760 = vst.msk [vmem:[%s180 + $0x1c] sm:$0xf] %vm1752, %v1743
      %p1761 = scmp.lt.s32.totalorder %s17, 1
      %s1762 = scalar_select %p1761, %s17, 1
      %p1763 = scmp.lt.s32.totalorder %s18, 0
      %s1764 = scalar_select %p1763, %s18, 0
      %s1765 = smul.addr %s1762, 8
      %s1766 = sadd.s32 %s1764, %s1765
      %s1767 = smul.addr %s1766, 4
      %s1768 = scalar_lea.vmem %s2, %s1767
      // Predicated region
      $region29: #{fwd.5} parent=27 // pred_check
        %p1769 = pneg %p97
      $region30: #{fwd.5} parent=27 // pred_check_branch
        %1771 = sbr.rel (%p1769) target = $region32
      $region31: #{fwd.5} parent=27 // pred_region
        _
      $region32: #{fwd.5} parent=27 // pred_fallthru
        _
    $region28: #{fwd.5} parent=5 // pred_fallthru
      _
    %p1772 = scmp.le.s32.totalorder 2, %s8
    // Predicated region
    $region33: #{fwd.5} parent=5 // pred_check
      %p1773 = pneg %p1772
    $region34: #{fwd.5} parent=5 // pred_check_branch
      %1775 = sbr.rel (%p1773) target = $region36
    $region35: #{fwd.5} parent=5 // pred_region
      %s1776 = ssub.s32 %s8, 2
      // Predicated region
      $region37: #{fwd.5} parent=35 // pred_check
        %p1777 = pneg %p103
      $region38: #{fwd.5} parent=35 // pred_check_branch
        %1779 = sbr.rel (%p1777) target = $region40
      $region39: #{fwd.5} parent=35 // pred_region
        %p1780 = scmp.lt.s32.totalorder %s19, 1
        %s1781 = scalar_select %p1780, %s19, 1
        %p1782 = scmp.lt.s32.totalorder %s20, 0
        %s1783 = scalar_select %p1782, %s20, 0
        %s1784 = smul.addr %s1781, 8
        %s1785 = sadd.s32 %s1783, %s1784
        %s1786 = smul.addr %s1785, 4
        %s1787 = scalar_lea.vmem %s2, %s1786
      $region40: #{fwd.5} parent=35 // pred_fallthru
        _
    $region36: #{fwd.5} parent=5 // pred_fallthru
      _
  $region6: #{fwd.5} parent=0 // loop_footer
    %s12 = sadd.s32 1, %s8
  $region7: #{fwd.5} parent=0 // loop_footer_branch
    %7 = sbr.rel target = $region3
  $region8: #{fwd.5} parent=0 // loop_exit
    _

// kernel: fwd.7
$region0: #{fwd.7}
  #allocation0 [shape = 'u32[]', space=smem, size = 0x4, offset = 0x4, fixed_abs, tag = 'smem constant byte address 0x4 - core index']
  #allocation1 [shape = 'u32[144,128]{1,0:T(1,128)}', space=vmem, size = 0x12000, scoped, tag = 'internal scratch']
  %s0 = inlined_call_operand.vmem [shape: bf16[2,10,10,16], index: 0, kind: input, shape index: {}]
  %s1 = inlined_call_operand.vmem [shape: bf16[9,16,16], index: 1, kind: input, shape index: {}]
  %s2 = inlined_call_operand.vmem [shape: bf16[2,64,16], index: 2, kind: input, shape index: {}]
  %s3 = inlined_call_operand.hbm [shape: f32[2,64,16], index: 3, kind: output, shape index: {}]
  %s4 = sld [smem:[#allocation0]]
  $region45: #{fwd.7} parent=0
    _
  %s6 = ssub.s32 1, %s4
  %s7 = scalar_select 0, %s6, %s4
  $region1: #{fwd.7} parent=0
    #allocation2 [shape = 'u8[65536]{0}', space=vmem, size = 0x10000, scoped, tag = 'output window, operand 0']
    #allocation3 [shape = 's32[2]{0}', space=sflag, size = 0x8, scoped, tag = 'scoped memory for fwd.7']
    %8 = vsyncpa [#allocation3], 0
    %s9 = scalar_lea.sflag [#allocation3], 1
    %10 = vsyncpa %s9, 0
    loop: start=0, step=1, limit=4
    $region2: #{fwd.7} parent=1 // loop_pre_header
      _
    $region3: #{fwd.7} parent=1 // loop_header
      %s12 = sphi 0, %s16
      %p13 = scmp.ge.s32.totalorder %s12, 4
      %s19 = sphi 0, %s31
      %s20 = sphi 0, %s27
      %s21 = sphi 0, %s19
      %s22 = sphi 0, %s20
      %s23 = sphi 0, %s21
      %s24 = sphi 0, %s22
      %s34 = sphi 0, %s36
      %s37 = sphi 0, %s34
      %s38 = sphi 0, %s37
      %s54 = sphi 0, %s38
      %s60 = sphi 0, %s62
      %s63 = sphi 0, %s60
      %s64 = sphi 0, %s63
      %s80 = sphi 0, %s64
      %s88 = sphi 0, %s90
      %s91 = sphi 0, %s88
      %s92 = sphi 0, %s91
      %s108 = sphi 0, %s92
      %s116 = sphi 0, %s118
      %s119 = sphi 0, %s116
      %s120 = sphi 0, %s119
      %s136 = sphi 0, %s120
    $region4: #{fwd.7} parent=1 // loop_header_branch
      %15 = sbr.rel (%p13) target = $region8
    $region5: #{fwd.7} parent=1 // loop_body
      %s17 = ssub.s32 %s12, 1
      %s18 = ssub.s32 %s12, 2
      %s25 = sadd.s32 1, %s20
      %p26 = scmp.ge.s32.totalorder %s25, 1
      %s27 = scalar_select %p26, 0, %s25
      %s28 = sadd.s32 1, %s19
      %s29 = scalar_select %p26, %s28, %s19
      %p30 = scmp.ge.s32.totalorder %s29, 2
      %s31 = scalar_select %p30, 0, %s29
      %s32 = ssub.s32 %s19, %s31
      %p33 = scmp.eq.s32.totalorder %s32, 0
      %s35 = sadd.s32 %s34, 1
      %s36 = scalar_select %p33, %s34, %s35
      %p39 = pneg %p33
      %p40 = scmp.eq.s32.totalorder %s12, 1
      %p41 = por %p39, %p40
      %p42 = scmp.ne.s32.totalorder %s34, %s37
      %p43 = scmp.eq.s32.totalorder %s12, 0
      %p44 = por %p42, %p43
      %p45 = scmp.ne.s32.totalorder %s34, %s37
      %p46 = scmp.eq.s32.totalorder %s17, 1
      %p47 = por %p45, %p46
      %p48 = scmp.ne.s32.totalorder %s37, %s38
      %p49 = scmp.eq.s32.totalorder %s17, 0
      %p50 = por %p48, %p49
      %p51 = scmp.ne.s32.totalorder %s37, %s38
      %p52 = scmp.eq.s32.totalorder %s18, 1
      %p53 = por %p51, %p52
      %p55 = scmp.ne.s32.totalorder %s38, %s54
      %p56 = scmp.eq.s32.totalorder %s18, 0
      %p57 = por %p55, %p56
      %s58 = ssub.s32 %s20, %s27
      %p59 = scmp.eq.s32.totalorder %s58, 0
      %s61 = sadd.s32 %s60, 1
      %s62 = scalar_select %p59, %s60, %s61
      %p65 = pneg %p59
      %p66 = scmp.eq.s32.totalorder %s12, 1
      %p67 = por %p65, %p66
      %p68 = scmp.ne.s32.totalorder %s60, %s63
      %p69 = scmp.eq.s32.totalorder %s12, 0
      %p70 = por %p68, %p69
      %p71 = scmp.ne.s32.totalorder %s60, %s63
      %p72 = scmp.eq.s32.totalorder %s17, 1
      %p73 = por %p71, %p72
      %p74 = scmp.ne.s32.totalorder %s63, %s64
      %p75 = scmp.eq.s32.totalorder %s17, 0
      %p76 = por %p74, %p75
      %p77 = scmp.ne.s32.totalorder %s63, %s64
      %p78 = scmp.eq.s32.totalorder %s18, 1
      %p79 = por %p77, %p78
      %p81 = scmp.ne.s32.totalorder %s64, %s80
      %p82 = scmp.eq.s32.totalorder %s18, 0
      %p83 = por %p81, %p82
      %s84 = ssub.s32 %s19, %s31
      %s85 = ssub.s32 %s20, %s27
      %s86 = sor.u32 %s84, %s85
      %p87 = scmp.eq.s32.totalorder %s86, 0
      %s89 = sadd.s32 %s88, 1
      %s90 = scalar_select %p87, %s88, %s89
      %p93 = pneg %p87
      %p94 = scmp.eq.s32.totalorder %s12, 1
      %p95 = por %p93, %p94
      %p96 = scmp.ne.s32.totalorder %s88, %s91
      %p97 = scmp.eq.s32.totalorder %s12, 0
      %p98 = por %p96, %p97
      %p99 = scmp.ne.s32.totalorder %s88, %s91
      %p100 = scmp.eq.s32.totalorder %s17, 1
      %p101 = por %p99, %p100
      %p102 = scmp.ne.s32.totalorder %s91, %s92
      %p103 = scmp.eq.s32.totalorder %s17, 0
      %p104 = por %p102, %p103
      %p105 = scmp.ne.s32.totalorder %s91, %s92
      %p106 = scmp.eq.s32.totalorder %s18, 1
      %p107 = por %p105, %p106
      %p109 = scmp.ne.s32.totalorder %s92, %s108
      %p110 = scmp.eq.s32.totalorder %s18, 0
      %p111 = por %p109, %p110
      %s112 = ssub.s32 %s19, %s31
      %s113 = ssub.s32 %s20, %s27
      %s114 = sor.u32 %s112, %s113
      %p115 = scmp.eq.s32.totalorder %s114, 0
      %s117 = sadd.s32 %s116, 1
      %s118 = scalar_select %p115, %s116, %s117
      %p121 = pneg %p115
      %p122 = scmp.eq.s32.totalorder %s12, 1
      %p123 = por %p121, %p122
      %p124 = scmp.ne.s32.totalorder %s116, %s119
      %p125 = scmp.eq.s32.totalorder %s12, 0
      %p126 = por %p124, %p125
      %p127 = scmp.ne.s32.totalorder %s116, %s119
      %p128 = scmp.eq.s32.totalorder %s17, 1
      %p129 = por %p127, %p128
      %p130 = scmp.ne.s32.totalorder %s119, %s120
      %p131 = scmp.eq.s32.totalorder %s17, 0
      %p132 = por %p130, %p131
      %p133 = scmp.ne.s32.totalorder %s119, %s120
      %p134 = scmp.eq.s32.totalorder %s18, 1
      %p135 = por %p133, %p134
      %p137 = scmp.ne.s32.totalorder %s120, %s136
      %p138 = scmp.eq.s32.totalorder %s18, 0
      %p139 = por %p137, %p138
      %p140 = scmp.le.s32.totalorder 1, %s12
      %p141 = scmp.lt.s32.totalorder %s12, 3
      %p142 = pnand %p140, %p141
      %p143 = pneg %p142
      // Predicated region
      $region9: #{fwd.7} parent=5 // pred_check
        _
      $region10: #{fwd.7} parent=5 // pred_check_branch
        %145 = sbr.rel (%p142) target = $region12
      $region11: #{fwd.7} parent=5 // pred_region
        %s146 = ssub.s32 %s12, 1
        // Predicated region
        $region13: #{fwd.7} parent=11 // pred_check
          %p147 = pneg %p76
        $region14: #{fwd.7} parent=11 // pred_check_branch
          %149 = sbr.rel (%p147) target = $region16
        $region15: #{fwd.7} parent=11 // pred_region
          %p150 = scmp.lt.s32.totalorder %s22, 0
          %s151 = scalar_select %p150, %s22, 0
          %s152 = smul.addr %s151, 4
          %s153 = scalar_lea.vmem %s1, %s152
        $region16: #{fwd.7} parent=11 // pred_fallthru
          _
      $region12: #{fwd.7} parent=5 // pred_fallthru
        _
      %p154 = scmp.lt.s32.totalorder %s12, 2
      // Predicated region
      $region17: #{fwd.7} parent=5 // pred_check
        %p155 = pneg %p154
      $region18: #{fwd.7} parent=5 // pred_check_branch
        %157 = sbr.rel (%p155) target = $region20
      $region19: #{fwd.7} parent=5 // pred_region
        // Predicated region
        $region21: #{fwd.7} parent=19 // pred_check
          %p158 = pneg %p44
        $region22: #{fwd.7} parent=19 // pred_check_branch
          %160 = sbr.rel (%p158) target = $region24
        $region23: #{fwd.7} parent=19 // pred_region
          %p161 = scmp.lt.s32.totalorder %s19, 1
          %s162 = scalar_select %p161, %s19, 1
          %s163 = smul.addr %s162, 20
          %s164 = smul.addr %s163, 4
          %s165 = scalar_lea.vmem %s0, %s164
        $region24: #{fwd.7} parent=19 // pred_fallthru
          _
        // Predicated region
        $region25: #{fwd.7} parent=19 // pred_check
          %p166 = pneg %p98
        $region26: #{fwd.7} parent=19 // pred_check_branch
          %168 = sbr.rel (%p166) target = $region28
        $region27: #{fwd.7} parent=19 // pred_region
          %p169 = scmp.lt.s32.totalorder %s19, 1
          %s170 = scalar_select %p169, %s19, 1
          %p171 = scmp.lt.s32.totalorder %s20, 0
          %s172 = scalar_select %p171, %s20, 0
          %s173 = smul.addr %s170, 8
          %s174 = sadd.s32 %s172, %s173
          %s175 = smul.addr %s174, 4
          %s176 = scalar_lea.vmem %s2, %s175
        $region28: #{fwd.7} parent=19 // pred_fallthru
          _
      $region20: #{fwd.7} parent=5 // pred_fallthru
        _
      %p177 = scmp.le.s32.totalorder 1, %s12
      %p178 = scmp.lt.s32.totalorder %s12, 3
      %p179 = pnand %p177, %p178
      %p180 = pneg %p179
      // Predicated region
      $region29: #{fwd.7} parent=5 // pred_check
        _
      $region30: #{fwd.7} parent=5 // pred_check_branch
        %182 = sbr.rel (%p179) target = $region32
      $region31: #{fwd.7} parent=5 // pred_region
        %s183 = ssub.s32 %s12, 1
        %p184 = scmp.lt.s32.totalorder %s21, 1
        %s185 = scalar_select %p184, %s21, 1
        %s186 = smul.addr %s185, 20
        %s187 = smul.addr %s186, 4
        %s188 = scalar_lea.vmem %s0, %s187
        %p189 = pneg %p50
        %p190 = pneg %p47
        %p191 = scmp.lt.s32.totalorder %s22, 0
        %s192 = scalar_select %p191, %s22, 0
        %s193 = smul.addr %s192, 4
        %s194 = scalar_lea.vmem %s1, %s193
        %p195 = pneg %p76
        %p196 = pneg %p73
        %p197 = scmp.lt.s32.totalorder %s21, 1
        %s198 = scalar_select %p197, %s21, 1
        %p199 = scmp.lt.s32.totalorder %s22, 0
        %s200 = scalar_select %p199, %s22, 0
        %s201 = smul.addr %s198, 8
        %s202 = sadd.s32 %s200, %s201
        %s203 = smul.addr %s202, 4
        %s204 = scalar_lea.vmem %s2, %s203
        %p205 = pneg %p104
        %p206 = pneg %p101
        %p207 = pneg %p132
        %p208 = pneg %p129
        %s209 = sand.u32 %s119, 1
        %s210 = scalar_lea.sflag [#allocation3], %s209
        %s211 = sand.u32 %s119, 1
        %s212 = smul.addr %s211, 64
        %s213 = scalar_lea.vmem [#allocation2], %s212
        %p214 = scmp.lt.s32.totalorder %s21, 1
        %s215 = scalar_select %p214, %s21, 1
        %s216 = smul.addr %s215, 20
        %s217 = smul.addr %s216, 4
        %s218 = scalar_lea.vmem %s0, %s217
        %p219 = scmp.lt.s32.totalorder %s22, 0
        %s220 = scalar_select %p219, %s22, 0
        %s221 = smul.addr %s220, 4
        %s222 = scalar_lea.vmem %s1, %s221
        %p223 = scmp.lt.s32.totalorder %s21, 1
        %s224 = scalar_select %p223, %s21, 1
        %p225 = scmp.lt.s32.totalorder %s22, 0
        %s226 = scalar_select %p225, %s22, 0
        %s227 = smul.addr %s224, 8
        %s228 = sadd.s32 %s226, %s227
        %s229 = smul.addr %s228, 4
        %s230 = scalar_lea.vmem %s2, %s229
        %v232 = vld [vmem:[%s218] sm:$0xf]
        %v233 = vld [vmem:[%s218 + $0x8] sm:$0xf]
        %v234 = vld [vmem:[%s218 + $0x10] sm:$0xf]
        %v235 = vld [vmem:[%s218 + $0x18] sm:$0xf]
        %v236 = vld [vmem:[%s218 + $0x20] sm:$0xf]
        %v237 = vld [vmem:[%s218 + $0x28] sm:$0xf]
        %v238 = vld [vmem:[%s218 + $0x30] sm:$0xf]
        %v239 = vld [vmem:[%s218 + $0x38] sm:$0xf]
        %v240 = vld [vmem:[%s222] sm:$0xf]
        %v241 = vld [vmem:[%s222 + $0x4] sm:$0xf]
        %v242 = vld [vmem:[%s218 + $0x4] sm:$0x1]
        %v243 = vld [vmem:[%s218 + $0xc] sm:$0x1]
        %v244 = vld [vmem:[%s218 + $0x14] sm:$0x1]
        %v245 = vld [vmem:[%s218 + $0x1c] sm:$0x1]
        %v246 = vld [vmem:[%s218 + $0x24] sm:$0x1]
        %v247 = vld [vmem:[%s218 + $0x2c] sm:$0x1]
        %v248 = vld [vmem:[%s218 + $0x34] sm:$0x1]
        %v249 = vld [vmem:[%s218 + $0x3c] sm:$0x1]
        %vm250 = vsmask.f32 3328
        %vm251 = vsmask.f32 7440
        %vm252 = vmor %vm250, %vm251
        %v254 = vshrl.u32 %v232, 16
        %v256 = vrot.slane %v254, 4
        %v257 = vshll.u32 %v232, 16
        %v259 = vrot.slane %v257, 5
        %v260 = vor.u32 %v256, %v259
        %v261 = vrot.slane %v260, 4
        %v263 = vshll.u32 %v242, 16
        %v265 = vrot.slane %v263, 5
        %v266 = vsel %vm252, %v261, %v265
        %v268 = vshrl.u32 %v233, 16
        %v270 = vrot.slane %v268, 4
        %v271 = vshll.u32 %v233, 16
        %v273 = vrot.slane %v271, 5
        %v274 = vor.u32 %v270, %v273
        %v275 = vrot.slane %v274, 4
        %v277 = vshll.u32 %v243, 16
        %v279 = vrot.slane %v277, 5
        %v280 = vsel %vm252, %v275, %v279
        %v282 = vshrl.u32 %v234, 16
        %v284 = vrot.slane %v282, 4
        %v285 = vshll.u32 %v234, 16
        %v287 = vrot.slane %v285, 5
        %v288 = vor.u32 %v284, %v287
        %v289 = vrot.slane %v288, 4
        %v291 = vshll.u32 %v244, 16
        %v293 = vrot.slane %v291, 5
        %v294 = vsel %vm252, %v289, %v293
        %v296 = vshrl.u32 %v235, 16
        %v298 = vrot.slane %v296, 4
        %v299 = vshll.u32 %v235, 16
        %v301 = vrot.slane %v299, 5
        %v302 = vor.u32 %v298, %v301
        %v303 = vrot.slane %v302, 4
        %v305 = vshll.u32 %v245, 16
        %v307 = vrot.slane %v305, 5
        %v308 = vsel %vm252, %v303, %v307
        %v310 = vshrl.u32 %v236, 16
        %v312 = vrot.slane %v310, 4
        %v313 = vshll.u32 %v236, 16
        %v315 = vrot.slane %v313, 5
        %v316 = vor.u32 %v312, %v315
        %v317 = vrot.slane %v316, 4
        %v319 = vshll.u32 %v246, 16
        %v321 = vrot.slane %v319, 5
        %v322 = vsel %vm252, %v317, %v321
        %v324 = vshrl.u32 %v237, 16
        %v326 = vrot.slane %v324, 4
        %v327 = vshll.u32 %v237, 16
        %v329 = vrot.slane %v327, 5
        %v330 = vor.u32 %v326, %v329
        %v331 = vrot.slane %v330, 4
        %v333 = vshll.u32 %v247, 16
        %v335 = vrot.slane %v333, 5
        %v336 = vsel %vm252, %v331, %v335
        %v338 = vshrl.u32 %v238, 16
        %v340 = vrot.slane %v338, 4
        %v341 = vshll.u32 %v238, 16
        %v343 = vrot.slane %v341, 5
        %v344 = vor.u32 %v340, %v343
        %v345 = vrot.slane %v344, 4
        %v347 = vshll.u32 %v248, 16
        %v349 = vrot.slane %v347, 5
        %v350 = vsel %vm252, %v345, %v349
        %v352 = vshrl.u32 %v239, 16
        %v354 = vrot.slane %v352, 4
        %v355 = vshll.u32 %v239, 16
        %v357 = vrot.slane %v355, 5
        %v358 = vor.u32 %v354, %v357
        %v359 = vrot.slane %v358, 4
        %v361 = vshll.u32 %v249, 16
        %v363 = vrot.slane %v361, 5
        %v364 = vsel %vm252, %v359, %v363
        %s365 = scalar_lea.vmem %s222, 8
        %v366 = vld [vmem:[%s365] sm:$0xf]
        %v367 = vld [vmem:[%s365 + $0x4] sm:$0xf]
        %v368 = vunpack.c.l.b16 %v266
        %v369 = vunpack.c.l.b16 %v280
        %v370 = vunpack.c.l.b16 %v294
        %v371 = vunpack.c.l.b16 %v308
        %v372 = vunpack.c.l.b16 %v322
        %v373 = vunpack.c.l.b16 %v336
        %v374 = vunpack.c.l.b16 %v350
        %v375 = vunpack.c.l.b16 %v364
        %v376 = vpack.c.b16 %v369, %v368
        %v377 = vpack.c.b16 %v371, %v370
        %v378 = vpack.c.b16 %v373, %v372
        %v379 = vpack.c.b16 %v375, %v374
        %v382 = vunpack.c.l.b16 %v366
        %v383 = vunpack.c.l.b16 %v367
        %v384 = vpack.c.b16 %v383, %v382
        %vm386 = vcmask 130048
        %v388 = vsel %vm386, %v376, 0
        %v391 = vsel %vm386, %v377, 0
        %v394 = vsel %vm386, %v378, 0
        %v397 = vsel %vm386, %v379, 0
        %399 = vmatprep.subr.bf16.mxu0 0
        %400 = vmatpush1.bf16.msra.mxu0 %v384
        %401 = vmatprep.subr.bf16.mxu0 0
        %402 = vmatpush1.bf16.msra.mxu0 0
        %403 = vmatprep.subr.bf16.mxu0 0
        %404 = vmatpush1.bf16.msra.mxu0 0
        %405 = vmatprep.subr.bf16.mxu0 0
        %406 = vmatpush1.bf16.msra.mxu0 0
        %407 = vmatprep.subr.bf16.mxu0 0
        %408 = vmatpush1.bf16.msra.mxu0 0
        %409 = vmatprep.subr.bf16.mxu0 0
        %410 = vmatpush1.bf16.msra.mxu0 0
        %411 = vmatprep.subr.bf16.mxu0 0
        %412 = vmatpush1.bf16.msra.mxu0 0
        %413 = vmatprep.subr.bf16.mxu0 0
        %414 = vmatpush1.bf16.msra.mxu0 0
        %415 = vmatprep.subr.bf16.mxu0 0
        %416 = vmatpush1.bf16.msra.mxu0 0
        %417 = vmatprep.subr.bf16.mxu0 0
        %418 = vmatpush1.bf16.msra.mxu0 0
        %419 = vmatprep.subr.bf16.mxu0 0
        %420 = vmatpush1.bf16.msra.mxu0 0
        %421 = vmatprep.subr.bf16.mxu0 0
        %422 = vmatpush1.bf16.msra.mxu0 0
        %423 = vmatprep.subr.bf16.mxu0 0
        %424 = vmatpush1.bf16.msra.mxu0 0
        %425 = vmatprep.subr.bf16.mxu0 0
        %426 = vmatpush1.bf16.msra.mxu0 0
        %427 = vmatprep.subr.bf16.mxu0 0
        %428 = vmatpush1.bf16.msra.mxu0 0
        %429 = vmatprep.subr.bf16.mxu0 0
        %430 = vmatpush1.bf16.msra.mxu0 0
        %431 = vmatprep.mubr.bf16.mxu0 0
        %432 = vmatmul.mubr.bf16.gmra.mrb[0].mxu0 %v388
        %v433 = vpop.f32.mrb[0].mxu0
        %v434 = vadd.f32 0.0, %v433
        %v435 = vpop.f32.mrb[0].mxu0
        %v436 = vpop.f32.mrb[0].mxu0
        %v437 = vadd.f32 0.0, %v436
        %v438 = vpop.f32.mrb[0].mxu0
        %439 = vmatprep.mubr.bf16.mxu0 0
        %440 = vmatmul.mubr.bf16.gmra.mrb[0].mxu0 %v391
        %v441 = vpop.f32.mrb[0].mxu0
        %v442 = vadd.f32 0.0, %v441
        %v443 = vpop.f32.mrb[0].mxu0
        %v444 = vpop.f32.mrb[0].mxu0
        %v445 = vadd.f32 0.0, %v444
        %v446 = vpop.f32.mrb[0].mxu0
        %447 = vmatprep.mubr.bf16.mxu0 0
        %448 = vmatmul.mubr.bf16.gmra.mrb[0].mxu0 %v394
        %v449 = vpop.f32.mrb[0].mxu0
        %v450 = vadd.f32 0.0, %v449
        %v451 = vpop.f32.mrb[0].mxu0
        %v452 = vpop.f32.mrb[0].mxu0
        %v453 = vadd.f32 0.0, %v452
        %v454 = vpop.f32.mrb[0].mxu0
        %455 = vmatprep.mubr.bf16.mxu0 0
        %456 = vmatmul.mubr.bf16.gmra.mrb[0].mxu0 %v397
        %v457 = vpop.f32.mrb[0].mxu0
        %v458 = vadd.f32 0.0, %v457
        %v459 = vpop.f32.mrb[0].mxu0
        %v460 = vpop.f32.mrb[0].mxu0
        %v461 = vadd.f32 0.0, %v460
        %v462 = vpop.f32.mrb[0].mxu0
        %463 = vdwg.mxu0
        %v472 = vunpack.c.l.b16 %v232
        %v473 = vunpack.c.l.b16 %v233
        %v474 = vunpack.c.l.b16 %v234
        %v475 = vunpack.c.l.b16 %v235
        %v476 = vunpack.c.l.b16 %v236
        %v477 = vunpack.c.l.b16 %v237
        %v478 = vunpack.c.l.b16 %v238
        %v479 = vunpack.c.l.b16 %v239
        %v480 = vpack.c.b16 %v473, %v472
        %v481 = vpack.c.b16 %v475, %v474
        %v482 = vpack.c.b16 %v477, %v476
        %v483 = vpack.c.b16 %v479, %v478
        %v486 = vunpack.c.l.b16 %v240
        %v487 = vunpack.c.l.b16 %v241
        %v488 = vpack.c.b16 %v487, %v486
        %v491 = vsel %vm386, %v480, 0
        %v494 = vsel %vm386, %v481, 0
        %v497 = vsel %vm386, %v482, 0
        %v500 = vsel %vm386, %v483, 0
        %502 = vmatprep.subr.bf16.mxu0 0
        %503 = vmatpush1.bf16.msra.mxu0 %v488
        %504 = vmatprep.subr.bf16.mxu0 0
        %505 = vmatpush1.bf16.msra.mxu0 0
        %506 = vmatprep.subr.bf16.mxu0 0
        %507 = vmatpush1.bf16.msra.mxu0 0
        %508 = vmatprep.subr.bf16.mxu0 0
        %509 = vmatpush1.bf16.msra.mxu0 0
        %510 = vmatprep.subr.bf16.mxu0 0
        %511 = vmatpush1.bf16.msra.mxu0 0
        %512 = vmatprep.subr.bf16.mxu0 0
        %513 = vmatpush1.bf16.msra.mxu0 0
        %514 = vmatprep.subr.bf16.mxu0 0
        %515 = vmatpush1.bf16.msra.mxu0 0
        %516 = vmatprep.subr.bf16.mxu0 0
        %517 = vmatpush1.bf16.msra.mxu0 0
        %518 = vmatprep.subr.bf16.mxu0 0
        %519 = vmatpush1.bf16.msra.mxu0 0
        %520 = vmatprep.subr.bf16.mxu0 0
        %521 = vmatpush1.bf16.msra.mxu0 0
        %522 = vmatprep.subr.bf16.mxu0 0
        %523 = vmatpush1.bf16.msra.mxu0 0
        %524 = vmatprep.subr.bf16.mxu0 0
        %525 = vmatpush1.bf16.msra.mxu0 0
        %526 = vmatprep.subr.bf16.mxu0 0
        %527 = vmatpush1.bf16.msra.mxu0 0
        %528 = vmatprep.subr.bf16.mxu0 0
        %529 = vmatpush1.bf16.msra.mxu0 0
        %530 = vmatprep.subr.bf16.mxu0 0
        %531 = vmatpush1.bf16.msra.mxu0 0
        %532 = vmatprep.subr.bf16.mxu0 0
        %533 = vmatpush1.bf16.msra.mxu0 0
        %534 = vmatprep.mubr.bf16.mxu0 0
        %535 = vmatmul.mubr.bf16.gmra.mrb[0].mxu0 %v491
        %v536 = vpop.f32.mrb[0].mxu0
        %v537 = vadd.f32 %v434, %v536
        %v538 = vpop.f32.mrb[0].mxu0
        %v539 = vpop.f32.mrb[0].mxu0
        %v540 = vadd.f32 %v437, %v539
        %v541 = vpop.f32.mrb[0].mxu0
        %542 = vmatprep.mubr.bf16.mxu0 0
        %543 = vmatmul.mubr.bf16.gmra.mrb[0].mxu0 %v494
        %v544 = vpop.f32.mrb[0].mxu0
        %v545 = vadd.f32 %v442, %v544
        %v546 = vpop.f32.mrb[0].mxu0
        %v547 = vpop.f32.mrb[0].mxu0
        %v548 = vadd.f32 %v445, %v547
        %v549 = vpop.f32.mrb[0].mxu0
        %550 = vmatprep.mubr.bf16.mxu0 0
        %551 = vmatmul.mubr.bf16.gmra.mrb[0].mxu0 %v497
        %v552 = vpop.f32.mrb[0].mxu0
        %v553 = vadd.f32 %v450, %v552
        %v554 = vpop.f32.mrb[0].mxu0
        %v555 = vpop.f32.mrb[0].mxu0
        %v556 = vadd.f32 %v453, %v555
        %v557 = vpop.f32.mrb[0].mxu0
        %558 = vmatprep.mubr.bf16.mxu0 0
        %559 = vmatmul.mubr.bf16.gmra.mrb[0].mxu0 %v500
        %v560 = vpop.f32.mrb[0].mxu0
        %v561 = vadd.f32 %v458, %v560
        %v562 = vpop.f32.mrb[0].mxu0
        %v563 = vpop.f32.mrb[0].mxu0
        %v564 = vadd.f32 %v461, %v563
        %v565 = vpop.f32.mrb[0].mxu0
        %566 = vdwg.mxu0
        %v567 = vld [vmem:[%s218] sm:$0xe]
        %v568 = vld [vmem:[%s218 + $0x8] sm:$0xe]
        %v569 = vld [vmem:[%s218 + $0x10] sm:$0xe]
        %v570 = vld [vmem:[%s218 + $0x18] sm:$0xe]
        %v571 = vld [vmem:[%s218 + $0x20] sm:$0xe]
        %v572 = vld [vmem:[%s218 + $0x28] sm:$0xe]
        %v573 = vld [vmem:[%s218 + $0x30] sm:$0xe]
        %v574 = vld [vmem:[%s218 + $0x38] sm:$0xe]
        %vm591 = vcmask 1042432
        %vm592 = vcmask 1046532
        %vm593 = vmor %vm591, %vm592
        %v594 = vrot.slane %v567, 5
        %v595 = vrot.slane %v594, 4
        %v596 = vrot.slane %v242, 5
        %v597 = vsel %vm593, %v595, %v596
        %v598 = vrot.slane %v568, 5
        %v599 = vrot.slane %v598, 4
        %v600 = vrot.slane %v243, 5
        %v601 = vsel %vm593, %v599, %v600
        %v602 = vrot.slane %v569, 5
        %v603 = vrot.slane %v602, 4
        %v604 = vrot.slane %v244, 5
        %v605 = vsel %vm593, %v603, %v604
        %v606 = vrot.slane %v570, 5
        %v607 = vrot.slane %v606, 4
        %v608 = vrot.slane %v245, 5
        %v609 = vsel %vm593, %v607, %v608
        %v610 = vrot.slane %v571, 5
        %v611 = vrot.slane %v610, 4
        %v612 = vrot.slane %v246, 5
        %v613 = vsel %vm593, %v611, %v612
        %v614 = vrot.slane %v572, 5
        %v615 = vrot.slane %v614, 4
        %v616 = vrot.slane %v247, 5
        %v617 = vsel %vm593, %v615, %v616
        %v618 = vrot.slane %v573, 5
        %v619 = vrot.slane %v618, 4
        %v620 = vrot.slane %v248, 5
        %v621 = vsel %vm593, %v619, %v620
        %v622 = vrot.slane %v574, 5
        %v623 = vrot.slane %v622, 4
        %v624 = vrot.slane %v249, 5
        %v625 = vsel %vm593, %v623, %v624
        %s626 = scalar_lea.vmem %s222, 16
        %v627 = vld [vmem:[%s626] sm:$0xf]
        %v628 = vld [vmem:[%s626 + $0x4] sm:$0xf]
        %v629 = vunpack.c.l.b16 %v597
        %v630 = vunpack.c.l.b16 %v601
        %v631 = vunpack.c.l.b16 %v605
        %v632 = vunpack.c.l.b16 %v609
        %v633 = vunpack.c.l.b16 %v613
        %v634 = vunpack.c.l.b16 %v617
        %v635 = vunpack.c.l.b16 %v621
        %v636 = vunpack.c.l.b16 %v625
        %v637 = vpack.c.b16 %v630, %v629
        %v638 = vpack.c.b16 %v632, %v631
        %v639 = vpack.c.b16 %v634, %v633
        %v640 = vpack.c.b16 %v636, %v635
        %v643 = vunpack.c.l.b16 %v627
        %v644 = vunpack.c.l.b16 %v628
        %v645 = vpack.c.b16 %v644, %v643
        %v648 = vsel %vm386, %v637, 0
        %v651 = vsel %vm386, %v638, 0
        %v654 = vsel %vm386, %v639, 0
        %v657 = vsel %vm386, %v640, 0
        %659 = vmatprep.subr.bf16.mxu0 0
        %660 = vmatpush1.bf16.msra.mxu0 %v645
        %661 = vmatprep.subr.bf16.mxu0 0
        %662 = vmatpush1.bf16.msra.mxu0 0
        %663 = vmatprep.subr.bf16.mxu0 0
        %664 = vmatpush1.bf16.msra.mxu0 0
        %665 = vmatprep.subr.bf16.mxu0 0
        %666 = vmatpush1.bf16.msra.mxu0 0
        %667 = vmatprep.subr.bf16.mxu0 0
        %668 = vmatpush1.bf16.msra.mxu0 0
        %669 = vmatprep.subr.bf16.mxu0 0
        %670 = vmatpush1.bf16.msra.mxu0 0
        %671 = vmatprep.subr.bf16.mxu0 0
        %672 = vmatpush1.bf16.msra.mxu0 0
        %673 = vmatprep.subr.bf16.mxu0 0
        %674 = vmatpush1.bf16.msra.mxu0 0
        %675 = vmatprep.subr.bf16.mxu0 0
        %676 = vmatpush1.bf16.msra.mxu0 0
        %677 = vmatprep.subr.bf16.mxu0 0
        %678 = vmatpush1.bf16.msra.mxu0 0
        %679 = vmatprep.subr.bf16.mxu0 0
        %680 = vmatpush1.bf16.msra.mxu0 0
        %681 = vmatprep.subr.bf16.mxu0 0
        %682 = vmatpush1.bf16.msra.mxu0 0
        %683 = vmatprep.subr.bf16.mxu0 0
        %684 = vmatpush1.bf16.msra.mxu0 0
        %685 = vmatprep.subr.bf16.mxu0 0
        %686 = vmatpush1.bf16.msra.mxu0 0
        %687 = vmatprep.subr.bf16.mxu0 0
        %688 = vmatpush1.bf16.msra.mxu0 0
        %689 = vmatprep.subr.bf16.mxu0 0
        %690 = vmatpush1.bf16.msra.mxu0 0
        %691 = vmatprep.mubr.bf16.mxu0 0
        %692 = vmatmul.mubr.bf16.gmra.mrb[0].mxu0 %v648
        %v693 = vpop.f32.mrb[0].mxu0
        %v694 = vadd.f32 0.0, %v693
        %v695 = vpop.f32.mrb[0].mxu0
        %v696 = vpop.f32.mrb[0].mxu0
        %v697 = vadd.f32 0.0, %v696
        %v698 = vpop.f32.mrb[0].mxu0
        %699 = vmatprep.mubr.bf16.mxu0 0
        %700 = vmatmul.mubr.bf16.gmra.mrb[0].mxu0 %v651
        %v701 = vpop.f32.mrb[0].mxu0
        %v702 = vadd.f32 0.0, %v701
        %v703 = vpop.f32.mrb[0].mxu0
        %v704 = vpop.f32.mrb[0].mxu0
        %v705 = vadd.f32 0.0, %v704
        %v706 = vpop.f32.mrb[0].mxu0
        %707 = vmatprep.mubr.bf16.mxu0 0
        %708 = vmatmul.mubr.bf16.gmra.mrb[0].mxu0 %v654
        %v709 = vpop.f32.mrb[0].mxu0
        %v710 = vadd.f32 0.0, %v709
        %v711 = vpop.f32.mrb[0].mxu0
        %v712 = vpop.f32.mrb[0].mxu0
        %v713 = vadd.f32 0.0, %v712
        %v714 = vpop.f32.mrb[0].mxu0
        %715 = vmatprep.mubr.bf16.mxu0 0
        %716 = vmatmul.mubr.bf16.gmra.mrb[0].mxu0 %v657
        %v717 = vpop.f32.mrb[0].mxu0
        %v718 = vadd.f32 0.0, %v717
        %v719 = vpop.f32.mrb[0].mxu0
        %v720 = vpop.f32.mrb[0].mxu0
        %v721 = vadd.f32 0.0, %v720
        %v722 = vpop.f32.mrb[0].mxu0
        %723 = vdwg.mxu0
        %v724 = vadd.f32 %v537, %v694
        %v725 = vadd.f32 %v540, %v697
        %v726 = vadd.f32 %v545, %v702
        %v727 = vadd.f32 %v548, %v705
        %v728 = vadd.f32 %v553, %v710
        %v729 = vadd.f32 %v556, %v713
        %v730 = vadd.f32 %v561, %v718
        %v731 = vadd.f32 %v564, %v721
        %s732 = scalar_lea.vmem %s218, 8
        %v733 = vld [vmem:[%s732] sm:$0xf]
        %v734 = vld [vmem:[%s732 + $0x8] sm:$0xf]
        %v735 = vld [vmem:[%s732 + $0x10] sm:$0xf]
        %v736 = vld [vmem:[%s732 + $0x18] sm:$0xf]
        %v737 = vld [vmem:[%s732 + $0x20] sm:$0xf]
        %v738 = vld [vmem:[%s732 + $0x28] sm:$0xf]
        %v739 = vld [vmem:[%s732 + $0x30] sm:$0xf]
        %v740 = vld [vmem:[%s732 + $0x38] sm:$0xf]
        %s741 = scalar_lea.vmem %s222, 24
        %v742 = vld [vmem:[%s741] sm:$0xf]
        %v743 = vld [vmem:[%s741 + $0x4] sm:$0xf]
        %v752 = vunpack.c.l.b16 %v733
        %v753 = vunpack.c.l.b16 %v734
        %v754 = vunpack.c.l.b16 %v735
        %v755 = vunpack.c.l.b16 %v736
        %v756 = vunpack.c.l.b16 %v737
        %v757 = vunpack.c.l.b16 %v738
        %v758 = vunpack.c.l.b16 %v739
        %v759 = vunpack.c.l.b16 %v740
        %v760 = vpack.c.b16 %v753, %v752
        %v761 = vpack.c.b16 %v755, %v754
        %v762 = vpack.c.b16 %v757, %v756
        %v763 = vpack.c.b16 %v759, %v758
        %v766 = vunpack.c.l.b16 %v742
        %v767 = vunpack.c.l.b16 %v743
        %v768 = vpack.c.b16 %v767, %v766
        %v771 = vsel %vm386, %v760, 0
        %v774 = vsel %vm386, %v761, 0
        %v777 = vsel %vm386, %v762, 0
        %v780 = vsel %vm386, %v763, 0
        %782 = vmatprep.subr.bf16.mxu0 0
        %783 = vmatpush1.bf16.msra.mxu0 %v768
        %784 = vmatprep.subr.bf16.mxu0 0
        %785 = vmatpush1.bf16.msra.mxu0 0
        %786 = vmatprep.subr.bf16.mxu0 0
        %787 = vmatpush1.bf16.msra.mxu0 0
        %788 = vmatprep.subr.bf16.mxu0 0
        %789 = vmatpush1.bf16.msra.mxu0 0
        %790 = vmatprep.subr.bf16.mxu0 0
        %791 = vmatpush1.bf16.msra.mxu0 0
        %792 = vmatprep.subr.bf16.mxu0 0
        %793 = vmatpush1.bf16.msra.mxu0 0
        %794 = vmatprep.subr.bf16.mxu0 0
        %795 = vmatpush1.bf16.msra.mxu0 0
        %796 = vmatprep.subr.bf16.mxu0 0
        %797 = vmatpush1.bf16.msra.mxu0 0
        %798 = vmatprep.subr.bf16.mxu0 0
        %799 = vmatpush1.bf16.msra.mxu0 0
        %800 = vmatprep.subr.bf16.mxu0 0
        %801 = vmatpush1.bf16.msra.mxu0 0
        %802 = vmatprep.subr.bf16.mxu0 0
        %803 = vmatpush1.bf16.msra.mxu0 0
        %804 = vmatprep.subr.bf16.mxu0 0
        %805 = vmatpush1.bf16.msra.mxu0 0
        %806 = vmatprep.subr.bf16.mxu0 0
        %807 = vmatpush1.bf16.msra.mxu0 0
        %808 = vmatprep.subr.bf16.mxu0 0
        %809 = vmatpush1.bf16.msra.mxu0 0
        %810 = vmatprep.subr.bf16.mxu0 0
        %811 = vmatpush1.bf16.msra.mxu0 0
        %812 = vmatprep.subr.bf16.mxu0 0
        %813 = vmatpush1.bf16.msra.mxu0 0
        %814 = vmatprep.mubr.bf16.mxu0 0
        %815 = vmatmul.mubr.bf16.gmra.mrb[0].mxu0 %v771
        %v816 = vpop.f32.mrb[0].mxu0
        %v817 = vadd.f32 0.0, %v816
        %v818 = vpop.f32.mrb[0].mxu0
        %v819 = vpop.f32.mrb[0].mxu0
        %v820 = vadd.f32 0.0, %v819
        %v821 = vpop.f32.mrb[0].mxu0
        %822 = vmatprep.mubr.bf16.mxu0 0
        %823 = vmatmul.mubr.bf16.gmra.mrb[0].mxu0 %v774
        %v824 = vpop.f32.mrb[0].mxu0
        %v825 = vadd.f32 0.0, %v824
        %v826 = vpop.f32.mrb[0].mxu0
        %v827 = vpop.f32.mrb[0].mxu0
        %v828 = vadd.f32 0.0, %v827
        %v829 = vpop.f32.mrb[0].mxu0
        %830 = vmatprep.mubr.bf16.mxu0 0
        %831 = vmatmul.mubr.bf16.gmra.mrb[0].mxu0 %v777
        %v832 = vpop.f32.mrb[0].mxu0
        %v833 = vadd.f32 0.0, %v832
        %v834 = vpop.f32.mrb[0].mxu0
        %v835 = vpop.f32.mrb[0].mxu0
        %v836 = vadd.f32 0.0, %v835
        %v837 = vpop.f32.mrb[0].mxu0
        %838 = vmatprep.mubr.bf16.mxu0 0
        %839 = vmatmul.mubr.bf16.gmra.mrb[0].mxu0 %v780
        %v840 = vpop.f32.mrb[0].mxu0
        %v841 = vadd.f32 0.0, %v840
        %v842 = vpop.f32.mrb[0].mxu0
        %v843 = vpop.f32.mrb[0].mxu0
        %v844 = vadd.f32 0.0, %v843
        %v845 = vpop.f32.mrb[0].mxu0
        %846 = vdwg.mxu0
        %v847 = vadd.f32 %v724, %v817
        %v848 = vadd.f32 %v725, %v820
        %v849 = vadd.f32 %v726, %v825
        %v850 = vadd.f32 %v727, %v828
        %v851 = vadd.f32 %v728, %v833
        %v852 = vadd.f32 %v729, %v836
        %v853 = vadd.f32 %v730, %v841
        %v854 = vadd.f32 %v731, %v844
        %v855 = vld [vmem:[%s732] sm:$0xf]
        %v856 = vld [vmem:[%s732 + $0x4] sm:$0x1]
        %v857 = vld [vmem:[%s732 + $0x8] sm:$0xf]
        %v858 = vld [vmem:[%s732 + $0xc] sm:$0x1]
        %v859 = vld [vmem:[%s732 + $0x10] sm:$0xf]
        %v860 = vld [vmem:[%s732 + $0x14] sm:$0x1]
        %v861 = vld [vmem:[%s732 + $0x18] sm:$0xf]
        %v862 = vld [vmem:[%s732 + $0x1c] sm:$0x1]
        %v863 = vld [vmem:[%s732 + $0x20] sm:$0xf]
        %v864 = vld [vmem:[%s732 + $0x24] sm:$0x1]
        %v865 = vld [vmem:[%s732 + $0x28] sm:$0xf]
        %v866 = vld [vmem:[%s732 + $0x2c] sm:$0x1]
        %v867 = vld [vmem:[%s732 + $0x30] sm:$0xf]
        %v868 = vld [vmem:[%s732 + $0x34] sm:$0x1]
        %v869 = vld [vmem:[%s732 + $0x38] sm:$0xf]
        %v870 = vld [vmem:[%s732 + $0x3c] sm:$0x1]
        %v872 = vshrl.u32 %v855, 16
        %v874 = vrot.slane %v872, 4
        %v875 = vshll.u32 %v855, 16
        %v877 = vrot.slane %v875, 5
        %v878 = vor.u32 %v874, %v877
        %v879 = vrot.slane %v878, 4
        %v881 = vshll.u32 %v856, 16
        %v883 = vrot.slane %v881, 5
        %v884 = vsel %vm252, %v879, %v883
        %v886 = vshrl.u32 %v857, 16
        %v888 = vrot.slane %v886, 4
        %v889 = vshll.u32 %v857, 16
        %v891 = vrot.slane %v889, 5
        %v892 = vor.u32 %v888, %v891
        %v893 = vrot.slane %v892, 4
        %v895 = vshll.u32 %v858, 16
        %v897 = vrot.slane %v895, 5
        %v898 = vsel %vm252, %v893, %v897
        %v900 = vshrl.u32 %v859, 16
        %v902 = vrot.slane %v900, 4
        %v903 = vshll.u32 %v859, 16
        %v905 = vrot.slane %v903, 5
        %v906 = vor.u32 %v902, %v905
        %v907 = vrot.slane %v906, 4
        %v909 = vshll.u32 %v860, 16
        %v911 = vrot.slane %v909, 5
        %v912 = vsel %vm252, %v907, %v911
        %v914 = vshrl.u32 %v861, 16
        %v916 = vrot.slane %v914, 4
        %v917 = vshll.u32 %v861, 16
        %v919 = vrot.slane %v917, 5
        %v920 = vor.u32 %v916, %v919
        %v921 = vrot.slane %v920, 4
        %v923 = vshll.u32 %v862, 16
        %v925 = vrot.slane %v923, 5
        %v926 = vsel %vm252, %v921, %v925
        %v928 = vshrl.u32 %v863, 16
        %v930 = vrot.slane %v928, 4
        %v931 = vshll.u32 %v863, 16
        %v933 = vrot.slane %v931, 5
        %v934 = vor.u32 %v930, %v933
        %v935 = vrot.slane %v934, 4
        %v937 = vshll.u32 %v864, 16
        %v939 = vrot.slane %v937, 5
        %v940 = vsel %vm252, %v935, %v939
        %v942 = vshrl.u32 %v865, 16
        %v944 = vrot.slane %v942, 4
        %v945 = vshll.u32 %v865, 16
        %v947 = vrot.slane %v945, 5
        %v948 = vor.u32 %v944, %v947
        %v949 = vrot.slane %v948, 4
        %v951 = vshll.u32 %v866, 16
        %v953 = vrot.slane %v951, 5
        %v954 = vsel %vm252, %v949, %v953
        %v956 = vshrl.u32 %v867, 16
        %v958 = vrot.slane %v956, 4
        %v959 = vshll.u32 %v867, 16
        %v961 = vrot.slane %v959, 5
        %v962 = vor.u32 %v958, %v961
        %v963 = vrot.slane %v962, 4
        %v965 = vshll.u32 %v868, 16
        %v967 = vrot.slane %v965, 5
        %v968 = vsel %vm252, %v963, %v967
        %v970 = vshrl.u32 %v869, 16
        %v972 = vrot.slane %v970, 4
        %v973 = vshll.u32 %v869, 16
        %v975 = vrot.slane %v973, 5
        %v976 = vor.u32 %v972, %v975
        %v977 = vrot.slane %v976, 4
        %v979 = vshll.u32 %v870, 16
        %v981 = vrot.slane %v979, 5
        %v982 = vsel %vm252, %v977, %v981
        %s983 = scalar_lea.vmem %s222, 32
        %v984 = vld [vmem:[%s983] sm:$0xf]
        %v985 = vld [vmem:[%s983 + $0x4] sm:$0xf]
        %v986 = vunpack.c.l.b16 %v884
        %v987 = vunpack.c.l.b16 %v898
        %v988 = vunpack.c.l.b16 %v912
        %v989 = vunpack.c.l.b16 %v926
        %v990 = vunpack.c.l.b16 %v940
        %v991 = vunpack.c.l.b16 %v954
        %v992 = vunpack.c.l.b16 %v968
        %v993 = vunpack.c.l.b16 %v982
        %v994 = vpack.c.b16 %v987, %v986
        %v995 = vpack.c.b16 %v989, %v988
        %v996 = vpack.c.b16 %v991, %v990
        %v997 = vpack.c.b16 %v993, %v992
        %v1000 = vunpack.c.l.b16 %v984
        %v1001 = vunpack.c.l.b16 %v985
        %v1002 = vpack.c.b16 %v1001, %v1000
        %v1005 = vsel %vm386, %v994, 0
        %v1008 = vsel %vm386, %v995, 0
        %v1011 = vsel %vm386, %v996, 0
        %v1014 = vsel %vm386, %v997, 0
        %1016 = vmatprep.subr.bf16.mxu0 0
        %1017 = vmatpush1.bf16.msra.mxu0 %v1002
        %1018 = vmatprep.subr.bf16.mxu0 0
        %1019 = vmatpush1.bf16.msra.mxu0 0
        %1020 = vmatprep.subr.bf16.mxu0 0
        %1021 = vmatpush1.bf16.msra.mxu0 0
        %1022 = vmatprep.subr.bf16.mxu0 0
        %1023 = vmatpush1.bf16.msra.mxu0 0
        %1024 = vmatprep.subr.bf16.mxu0 0
        %1025 = vmatpush1.bf16.msra.mxu0 0
        %1026 = vmatprep.subr.bf16.mxu0 0
        %1027 = vmatpush1.bf16.msra.mxu0 0
        %1028 = vmatprep.subr.bf16.mxu0 0
        %1029 = vmatpush1.bf16.msra.mxu0 0
        %1030 = vmatprep.subr.bf16.mxu0 0
        %1031 = vmatpush1.bf16.msra.mxu0 0
        %1032 = vmatprep.subr.bf16.mxu0 0
        %1033 = vmatpush1.bf16.msra.mxu0 0
        %1034 = vmatprep.subr.bf16.mxu0 0
        %1035 = vmatpush1.bf16.msra.mxu0 0
        %1036 = vmatprep.subr.bf16.mxu0 0
        %1037 = vmatpush1.bf16.msra.mxu0 0
        %1038 = vmatprep.subr.bf16.mxu0 0
        %1039 = vmatpush1.bf16.msra.mxu0 0
        %1040 = vmatprep.subr.bf16.mxu0 0
        %1041 = vmatpush1.bf16.msra.mxu0 0
        %1042 = vmatprep.subr.bf16.mxu0 0
        %1043 = vmatpush1.bf16.msra.mxu0 0
        %1044 = vmatprep.subr.bf16.mxu0 0
        %1045 = vmatpush1.bf16.msra.mxu0 0
        %1046 = vmatprep.subr.bf16.mxu0 0
        %1047 = vmatpush1.bf16.msra.mxu0 0
        %1048 = vmatprep.mubr.bf16.mxu0 0
        %1049 = vmatmul.mubr.bf16.gmra.mrb[0].mxu0 %v1005
        %v1050 = vpop.f32.mrb[0].mxu0
        %v1051 = vadd.f32 0.0, %v1050
        %v1052 = vpop.f32.mrb[0].mxu0
        %v1053 = vpop.f32.mrb[0].mxu0
        %v1054 = vadd.f32 0.0, %v1053
        %v1055 = vpop.f32.mrb[0].mxu0
        %1056 = vmatprep.mubr.bf16.mxu0 0
        %1057 = vmatmul.mubr.bf16.gmra.mrb[0].mxu0 %v1008
        %v1058 = vpop.f32.mrb[0].mxu0
        %v1059 = vadd.f32 0.0, %v1058
        %v1060 = vpop.f32.mrb[0].mxu0
        %v1061 = vpop.f32.mrb[0].mxu0
        %v1062 = vadd.f32 0.0, %v1061
        %v1063 = vpop.f32.mrb[0].mxu0
        %1064 = vmatprep.mubr.bf16.mxu0 0
        %1065 = vmatmul.mubr.bf16.gmra.mrb[0].mxu0 %v1011
        %v1066 = vpop.f32.mrb[0].mxu0
        %v1067 = vadd.f32 0.0, %v1066
        %v1068 = vpop.f32.mrb[0].mxu0
        %v1069 = vpop.f32.mrb[0].mxu0
        %v1070 = vadd.f32 0.0, %v1069
        %v1071 = vpop.f32.mrb[0].mxu0
        %1072 = vmatprep.mubr.bf16.mxu0 0
        %1073 = vmatmul.mubr.bf16.gmra.mrb[0].mxu0 %v1014
        %v1074 = vpop.f32.mrb[0].mxu0
        %v1075 = vadd.f32 0.0, %v1074
        %v1076 = vpop.f32.mrb[0].mxu0
        %v1077 = vpop.f32.mrb[0].mxu0
        %v1078 = vadd.f32 0.0, %v1077
        %v1079 = vpop.f32.mrb[0].mxu0
        %1080 = vdwg.mxu0
        %v1081 = vadd.f32 %v847, %v1051
        %v1082 = vadd.f32 %v848, %v1054
        %v1083 = vadd.f32 %v849, %v1059
        %v1084 = vadd.f32 %v850, %v1062
        %v1085 = vadd.f32 %v851, %v1067
        %v1086 = vadd.f32 %v852, %v1070
        %v1087 = vadd.f32 %v853, %v1075
        %v1088 = vadd.f32 %v854, %v1078
        %v1089 = vld [vmem:[%s732] sm:$0xe]
        %v1090 = vld [vmem:[%s732 + $0x8] sm:$0xe]
        %v1091 = vld [vmem:[%s732 + $0x10] sm:$0xe]
        %v1092 = vld [vmem:[%s732 + $0x18] sm:$0xe]
        %v1093 = vld [vmem:[%s732 + $0x20] sm:$0xe]
        %v1094 = vld [vmem:[%s732 + $0x28] sm:$0xe]
        %v1095 = vld [vmem:[%s732 + $0x30] sm:$0xe]
        %v1096 = vld [vmem:[%s732 + $0x38] sm:$0xe]
        %v1113 = vrot.slane %v1089, 5
        %v1114 = vrot.slane %v1113, 4
        %v1115 = vrot.slane %v856, 5
        %v1116 = vsel %vm593, %v1114, %v1115
        %v1117 = vrot.slane %v1090, 5
        %v1118 = vrot.slane %v1117, 4
        %v1119 = vrot.slane %v858, 5
        %v1120 = vsel %vm593, %v1118, %v1119
        %v1121 = vrot.slane %v1091, 5
        %v1122 = vrot.slane %v1121, 4
        %v1123 = vrot.slane %v860, 5
        %v1124 = vsel %vm593, %v1122, %v1123
        %v1125 = vrot.slane %v1092, 5
        %v1126 = vrot.slane %v1125, 4
        %v1127 = vrot.slane %v862, 5
        %v1128 = vsel %vm593, %v1126, %v1127
        %v1129 = vrot.slane %v1093, 5
        %v1130 = vrot.slane %v1129, 4
        %v1131 = vrot.slane %v864, 5
        %v1132 = vsel %vm593, %v1130, %v1131
        %v1133 = vrot.slane %v1094, 5
        %v1134 = vrot.slane %v1133, 4
        %v1135 = vrot.slane %v866, 5
        %v1136 = vsel %vm593, %v1134, %v1135
        %v1137 = vrot.slane %v1095, 5
        %v1138 = vrot.slane %v1137, 4
        %v1139 = vrot.slane %v868, 5
        %v1140 = vsel %vm593, %v1138, %v1139
        %v1141 = vrot.slane %v1096, 5
        %v1142 = vrot.slane %v1141, 4
        %v1143 = vrot.slane %v870, 5
        %v1144 = vsel %vm593, %v1142, %v1143
        %s1145 = scalar_lea.vmem %s222, 40
        %v1146 = vld [vmem:[%s1145] sm:$0xf]
        %v1147 = vld [vmem:[%s1145 + $0x4] sm:$0xf]
        %v1148 = vunpack.c.l.b16 %v1116
        %v1149 = vunpack.c.l.b16 %v1120
        %v1150 = vunpack.c.l.b16 %v1124
        %v1151 = vunpack.c.l.b16 %v1128
        %v1152 = vunpack.c.l.b16 %v1132
        %v1153 = vunpack.c.l.b16 %v1136
        %v1154 = vunpack.c.l.b16 %v1140
        %v1155 = vunpack.c.l.b16 %v1144
        %v1156 = vpack.c.b16 %v1149, %v1148
        %v1157 = vpack.c.b16 %v1151, %v1150
        %v1158 = vpack.c.b16 %v1153, %v1152
        %v1159 = vpack.c.b16 %v1155, %v1154
        %v1162 = vunpack.c.l.b16 %v1146
        %v1163 = vunpack.c.l.b16 %v1147
        %v1164 = vpack.c.b16 %v1163, %v1162
        %v1167 = vsel %vm386, %v1156, 0
        %v1170 = vsel %vm386, %v1157, 0
        %v1173 = vsel %vm386, %v1158, 0
        %v1176 = vsel %vm386, %v1159, 0
        %1178 = vmatprep.subr.bf16.mxu0 0
        %1179 = vmatpush1.bf16.msra.mxu0 %v1164
        %1180 = vmatprep.subr.bf16.mxu0 0
        %1181 = vmatpush1.bf16.msra.mxu0 0
        %1182 = vmatprep.subr.bf16.mxu0 0
        %1183 = vmatpush1.bf16.msra.mxu0 0
        %1184 = vmatprep.subr.bf16.mxu0 0
        %1185 = vmatpush1.bf16.msra.mxu0 0
        %1186 = vmatprep.subr.bf16.mxu0 0
        %1187 = vmatpush1.bf16.msra.mxu0 0
        %1188 = vmatprep.subr.bf16.mxu0 0
        %1189 = vmatpush1.bf16.msra.mxu0 0
        %1190 = vmatprep.subr.bf16.mxu0 0
        %1191 = vmatpush1.bf16.msra.mxu0 0
        %1192 = vmatprep.subr.bf16.mxu0 0
        %1193 = vmatpush1.bf16.msra.mxu0 0
        %1194 = vmatprep.subr.bf16.mxu0 0
        %1195 = vmatpush1.bf16.msra.mxu0 0
        %1196 = vmatprep.subr.bf16.mxu0 0
        %1197 = vmatpush1.bf16.msra.mxu0 0
        %1198 = vmatprep.subr.bf16.mxu0 0
        %1199 = vmatpush1.bf16.msra.mxu0 0
        %1200 = vmatprep.subr.bf16.mxu0 0
        %1201 = vmatpush1.bf16.msra.mxu0 0
        %1202 = vmatprep.subr.bf16.mxu0 0
        %1203 = vmatpush1.bf16.msra.mxu0 0
        %1204 = vmatprep.subr.bf16.mxu0 0
        %1205 = vmatpush1.bf16.msra.mxu0 0
        %1206 = vmatprep.subr.bf16.mxu0 0
        %1207 = vmatpush1.bf16.msra.mxu0 0
        %1208 = vmatprep.subr.bf16.mxu0 0
        %1209 = vmatpush1.bf16.msra.mxu0 0
        %1210 = vmatprep.mubr.bf16.mxu0 0
        %1211 = vmatmul.mubr.bf16.gmra.mrb[0].mxu0 %v1167
        %v1212 = vpop.f32.mrb[0].mxu0
        %v1213 = vadd.f32 0.0, %v1212
        %v1214 = vpop.f32.mrb[0].mxu0
        %v1215 = vpop.f32.mrb[0].mxu0
        %v1216 = vadd.f32 0.0, %v1215
        %v1217 = vpop.f32.mrb[0].mxu0
        %1218 = vmatprep.mubr.bf16.mxu0 0
        %1219 = vmatmul.mubr.bf16.gmra.mrb[0].mxu0 %v1170
        %v1220 = vpop.f32.mrb[0].mxu0
        %v1221 = vadd.f32 0.0, %v1220
        %v1222 = vpop.f32.mrb[0].mxu0
        %v1223 = vpop.f32.mrb[0].mxu0
        %v1224 = vadd.f32 0.0, %v1223
        %v1225 = vpop.f32.mrb[0].mxu0
        %1226 = vmatprep.mubr.bf16.mxu0 0
        %1227 = vmatmul.mubr.bf16.gmra.mrb[0].mxu0 %v1173
        %v1228 = vpop.f32.mrb[0].mxu0
        %v1229 = vadd.f32 0.0, %v1228
        %v1230 = vpop.f32.mrb[0].mxu0
        %v1231 = vpop.f32.mrb[0].mxu0
        %v1232 = vadd.f32 0.0, %v1231
        %v1233 = vpop.f32.mrb[0].mxu0
        %1234 = vmatprep.mubr.bf16.mxu0 0
        %1235 = vmatmul.mubr.bf16.gmra.mrb[0].mxu0 %v1176
        %v1236 = vpop.f32.mrb[0].mxu0
        %v1237 = vadd.f32 0.0, %v1236
        %v1238 = vpop.f32.mrb[0].mxu0
        %v1239 = vpop.f32.mrb[0].mxu0
        %v1240 = vadd.f32 0.0, %v1239
        %v1241 = vpop.f32.mrb[0].mxu0
        %1242 = vdwg.mxu0
        %v1243 = vadd.f32 %v1081, %v1213
        %v1244 = vadd.f32 %v1082, %v1216
        %v1245 = vadd.f32 %v1083, %v1221
        %v1246 = vadd.f32 %v1084, %v1224
        %v1247 = vadd.f32 %v1085, %v1229
        %v1248 = vadd.f32 %v1086, %v1232
        %v1249 = vadd.f32 %v1087, %v1237
        %v1250 = vadd.f32 %v1088, %v1240
        %s1251 = scalar_lea.vmem %s218, 16
        %v1252 = vld [vmem:[%s1251] sm:$0xf]
        %v1253 = vld [vmem:[%s1251 + $0x8] sm:$0xf]
        %v1254 = vld [vmem:[%s1251 + $0x10] sm:$0xf]
        %v1255 = vld [vmem:[%s1251 + $0x18] sm:$0xf]
        %v1256 = vld [vmem:[%s1251 + $0x20] sm:$0xf]
        %v1257 = vld [vmem:[%s1251 + $0x28] sm:$0xf]
        %v1258 = vld [vmem:[%s1251 + $0x30] sm:$0xf]
        %v1259 = vld [vmem:[%s1251 + $0x38] sm:$0xf]
        %s1260 = scalar_lea.vmem %s222, 48
        %v1261 = vld [vmem:[%s1260] sm:$0xf]
        %v1262 = vld [vmem:[%s1260 + $0x4] sm:$0xf]
        %v1271 = vunpack.c.l.b16 %v1252
        %v1272 = vunpack.c.l.b16 %v1253
        %v1273 = vunpack.c.l.b16 %v1254
        %v1274 = vunpack.c.l.b16 %v1255
        %v1275 = vunpack.c.l.b16 %v1256
        %v1276 = vunpack.c.l.b16 %v1257
        %v1277 = vunpack.c.l.b16 %v1258
        %v1278 = vunpack.c.l.b16 %v1259
        %v1279 = vpack.c.b16 %v1272, %v1271
        %v1280 = vpack.c.b16 %v1274, %v1273
        %v1281 = vpack.c.b16 %v1276, %v1275
        %v1282 = vpack.c.b16 %v1278, %v1277
        %v1285 = vunpack.c.l.b16 %v1261
        %v1286 = vunpack.c.l.b16 %v1262
        %v1287 = vpack.c.b16 %v1286, %v1285
        %v1290 = vsel %vm386, %v1279, 0
        %v1293 = vsel %vm386, %v1280, 0
        %v1296 = vsel %vm386, %v1281, 0
        %v1299 = vsel %vm386, %v1282, 0
        %1301 = vmatprep.subr.bf16.mxu0 0
        %1302 = vmatpush1.bf16.msra.mxu0 %v1287
        %1303 = vmatprep.subr.bf16.mxu0 0
        %1304 = vmatpush1.bf16.msra.mxu0 0
        %1305 = vmatprep.subr.bf16.mxu0 0
        %1306 = vmatpush1.bf16.msra.mxu0 0
        %1307 = vmatprep.subr.bf16.mxu0 0
        %1308 = vmatpush1.bf16.msra.mxu0 0
        %1309 = vmatprep.subr.bf16.mxu0 0
        %1310 = vmatpush1.bf16.msra.mxu0 0
        %1311 = vmatprep.subr.bf16.mxu0 0
        %1312 = vmatpush1.bf16.msra.mxu0 0
        %1313 = vmatprep.subr.bf16.mxu0 0
        %1314 = vmatpush1.bf16.msra.mxu0 0
        %1315 = vmatprep.subr.bf16.mxu0 0
        %1316 = vmatpush1.bf16.msra.mxu0 0
        %1317 = vmatprep.subr.bf16.mxu0 0
        %1318 = vmatpush1.bf16.msra.mxu0 0
        %1319 = vmatprep.subr.bf16.mxu0 0
        %1320 = vmatpush1.bf16.msra.mxu0 0
        %1321 = vmatprep.subr.bf16.mxu0 0
        %1322 = vmatpush1.bf16.msra.mxu0 0
        %1323 = vmatprep.subr.bf16.mxu0 0
        %1324 = vmatpush1.bf16.msra.mxu0 0
        %1325 = vmatprep.subr.bf16.mxu0 0
        %1326 = vmatpush1.bf16.msra.mxu0 0
        %1327 = vmatprep.subr.bf16.mxu0 0
        %1328 = vmatpush1.bf16.msra.mxu0 0
        %1329 = vmatprep.subr.bf16.mxu0 0
        %1330 = vmatpush1.bf16.msra.mxu0 0
        %1331 = vmatprep.subr.bf16.mxu0 0
        %1332 = vmatpush1.bf16.msra.mxu0 0
        %1333 = vmatprep.mubr.bf16.mxu0 0
        %1334 = vmatmul.mubr.bf16.gmra.mrb[0].mxu0 %v1290
        %v1335 = vpop.f32.mrb[0].mxu0
        %v1336 = vadd.f32 0.0, %v1335
        %v1337 = vpop.f32.mrb[0].mxu0
        %v1338 = vpop.f32.mrb[0].mxu0
        %v1339 = vadd.f32 0.0, %v1338
        %v1340 = vpop.f32.mrb[0].mxu0
        %1341 = vmatprep.mubr.bf16.mxu0 0
        %1342 = vmatmul.mubr.bf16.gmra.mrb[0].mxu0 %v1293
        %v1343 = vpop.f32.mrb[0].mxu0
        %v1344 = vadd.f32 0.0, %v1343
        %v1345 = vpop.f32.mrb[0].mxu0
        %v1346 = vpop.f32.mrb[0].mxu0
        %v1347 = vadd.f32 0.0, %v1346
        %v1348 = vpop.f32.mrb[0].mxu0
        %1349 = vmatprep.mubr.bf16.mxu0 0
        %1350 = vmatmul.mubr.bf16.gmra.mrb[0].mxu0 %v1296
        %v1351 = vpop.f32.mrb[0].mxu0
        %v1352 = vadd.f32 0.0, %v1351
        %v1353 = vpop.f32.mrb[0].mxu0
        %v1354 = vpop.f32.mrb[0].mxu0
        %v1355 = vadd.f32 0.0, %v1354
        %v1356 = vpop.f32.mrb[0].mxu0
        %1357 = vmatprep.mubr.bf16.mxu0 0
        %1358 = vmatmul.mubr.bf16.gmra.mrb[0].mxu0 %v1299
        %v1359 = vpop.f32.mrb[0].mxu0
        %v1360 = vadd.f32 0.0, %v1359
        %v1361 = vpop.f32.mrb[0].mxu0
        %v1362 = vpop.f32.mrb[0].mxu0
        %v1363 = vadd.f32 0.0, %v1362
        %v1364 = vpop.f32.mrb[0].mxu0
        %1365 = vdwg.mxu0
        %v1366 = vadd.f32 %v1243, %v1336
        %v1367 = vadd.f32 %v1244, %v1339
        %v1368 = vadd.f32 %v1245, %v1344
        %v1369 = vadd.f32 %v1246, %v1347
        %v1370 = vadd.f32 %v1247, %v1352
        %v1371 = vadd.f32 %v1248, %v1355
        %v1372 = vadd.f32 %v1249, %v1360
        %v1373 = vadd.f32 %v1250, %v1363
        %v1374 = vld [vmem:[%s1251] sm:$0xf]
        %v1375 = vld [vmem:[%s1251 + $0x4] sm:$0x1]
        %v1376 = vld [vmem:[%s1251 + $0x8] sm:$0xf]
        %v1377 = vld [vmem:[%s1251 + $0xc] sm:$0x1]
        %v1378 = vld [vmem:[%s1251 + $0x10] sm:$0xf]
        %v1379 = vld [vmem:[%s1251 + $0x14] sm:$0x1]
        %v1380 = vld [vmem:[%s1251 + $0x18] sm:$0xf]
        %v1381 = vld [vmem:[%s1251 + $0x1c] sm:$0x1]
        %v1382 = vld [vmem:[%s1251 + $0x20] sm:$0xf]
        %v1383 = vld [vmem:[%s1251 + $0x24] sm:$0x1]
        %v1384 = vld [vmem:[%s1251 + $0x28] sm:$0xf]
        %v1385 = vld [vmem:[%s1251 + $0x2c] sm:$0x1]
        %v1386 = vld [vmem:[%s1251 + $0x30] sm:$0xf]
        %v1387 = vld [vmem:[%s1251 + $0x34] sm:$0x1]
        %v1388 = vld [vmem:[%s1251 + $0x38] sm:$0xf]
        %v1389 = vld [vmem:[%s1251 + $0x3c] sm:$0x1]
        %v1391 = vshrl.u32 %v1374, 16
        %v1393 = vrot.slane %v1391, 4
        %v1394 = vshll.u32 %v1374, 16
        %v1396 = vrot.slane %v1394, 5
        %v1397 = vor.u32 %v1393, %v1396
        %v1398 = vrot.slane %v1397, 4
        %v1400 = vshll.u32 %v1375, 16
        %v1402 = vrot.slane %v1400, 5
        %v1403 = vsel %vm252, %v1398, %v1402
        %v1405 = vshrl.u32 %v1376, 16
        %v1407 = vrot.slane %v1405, 4
        %v1408 = vshll.u32 %v1376, 16
        %v1410 = vrot.slane %v1408, 5
        %v1411 = vor.u32 %v1407, %v1410
        %v1412 = vrot.slane %v1411, 4
        %v1414 = vshll.u32 %v1377, 16
        %v1416 = vrot.slane %v1414, 5
        %v1417 = vsel %vm252, %v1412, %v1416
        %v1419 = vshrl.u32 %v1378, 16
        %v1421 = vrot.slane %v1419, 4
        %v1422 = vshll.u32 %v1378, 16
        %v1424 = vrot.slane %v1422, 5
        %v1425 = vor.u32 %v1421, %v1424
        %v1426 = vrot.slane %v1425, 4
        %v1428 = vshll.u32 %v1379, 16
        %v1430 = vrot.slane %v1428, 5
        %v1431 = vsel %vm252, %v1426, %v1430
        %v1433 = vshrl.u32 %v1380, 16
        %v1435 = vrot.slane %v1433, 4
        %v1436 = vshll.u32 %v1380, 16
        %v1438 = vrot.slane %v1436, 5
        %v1439 = vor.u32 %v1435, %v1438
        %v1440 = vrot.slane %v1439, 4
        %v1442 = vshll.u32 %v1381, 16
        %v1444 = vrot.slane %v1442, 5
        %v1445 = vsel %vm252, %v1440, %v1444
        %v1447 = vshrl.u32 %v1382, 16
        %v1449 = vrot.slane %v1447, 4
        %v1450 = vshll.u32 %v1382, 16
        %v1452 = vrot.slane %v1450, 5
        %v1453 = vor.u32 %v1449, %v1452
        %v1454 = vrot.slane %v1453, 4
        %v1456 = vshll.u32 %v1383, 16
        %v1458 = vrot.slane %v1456, 5
        %v1459 = vsel %vm252, %v1454, %v1458
        %v1461 = vshrl.u32 %v1384, 16
        %v1463 = vrot.slane %v1461, 4
        %v1464 = vshll.u32 %v1384, 16
        %v1466 = vrot.slane %v1464, 5
        %v1467 = vor.u32 %v1463, %v1466
        %v1468 = vrot.slane %v1467, 4
        %v1470 = vshll.u32 %v1385, 16
        %v1472 = vrot.slane %v1470, 5
        %v1473 = vsel %vm252, %v1468, %v1472
        %v1475 = vshrl.u32 %v1386, 16
        %v1477 = vrot.slane %v1475, 4
        %v1478 = vshll.u32 %v1386, 16
        %v1480 = vrot.slane %v1478, 5
        %v1481 = vor.u32 %v1477, %v1480
        %v1482 = vrot.slane %v1481, 4
        %v1484 = vshll.u32 %v1387, 16
        %v1486 = vrot.slane %v1484, 5
        %v1487 = vsel %vm252, %v1482, %v1486
        %v1489 = vshrl.u32 %v1388, 16
        %v1491 = vrot.slane %v1489, 4
        %v1492 = vshll.u32 %v1388, 16
        %v1494 = vrot.slane %v1492, 5
        %v1495 = vor.u32 %v1491, %v1494
        %v1496 = vrot.slane %v1495, 4
        %v1498 = vshll.u32 %v1389, 16
        %v1500 = vrot.slane %v1498, 5
        %v1501 = vsel %vm252, %v1496, %v1500
        %s1502 = scalar_lea.vmem %s222, 56
        %v1503 = vld [vmem:[%s1502] sm:$0xf]
        %v1504 = vld [vmem:[%s1502 + $0x4] sm:$0xf]
        %v1505 = vunpack.c.l.b16 %v1403
        %v1506 = vunpack.c.l.b16 %v1417
        %v1507 = vunpack.c.l.b16 %v1431
        %v1508 = vunpack.c.l.b16 %v1445
        %v1509 = vunpack.c.l.b16 %v1459
        %v1510 = vunpack.c.l.b16 %v1473
        %v1511 = vunpack.c.l.b16 %v1487
        %v1512 = vunpack.c.l.b16 %v1501
        %v1513 = vpack.c.b16 %v1506, %v1505
        %v1514 = vpack.c.b16 %v1508, %v1507
        %v1515 = vpack.c.b16 %v1510, %v1509
        %v1516 = vpack.c.b16 %v1512, %v1511
        %v1519 = vunpack.c.l.b16 %v1503
        %v1520 = vunpack.c.l.b16 %v1504
        %v1521 = vpack.c.b16 %v1520, %v1519
        %v1524 = vsel %vm386, %v1513, 0
        %v1527 = vsel %vm386, %v1514, 0
        %v1530 = vsel %vm386, %v1515, 0
        %v1533 = vsel %vm386, %v1516, 0
        %1535 = vmatprep.subr.bf16.mxu0 0
        %1536 = vmatpush1.bf16.msra.mxu0 %v1521
        %1537 = vmatprep.subr.bf16.mxu0 0
        %1538 = vmatpush1.bf16.msra.mxu0 0
        %1539 = vmatprep.subr.bf16.mxu0 0
        %1540 = vmatpush1.bf16.msra.mxu0 0
        %1541 = vmatprep.subr.bf16.mxu0 0
        %1542 = vmatpush1.bf16.msra.mxu0 0
        %1543 = vmatprep.subr.bf16.mxu0 0
        %1544 = vmatpush1.bf16.msra.mxu0 0
        %1545 = vmatprep.subr.bf16.mxu0 0
        %1546 = vmatpush1.bf16.msra.mxu0 0
        %1547 = vmatprep.subr.bf16.mxu0 0
        %1548 = vmatpush1.bf16.msra.mxu0 0
        %1549 = vmatprep.subr.bf16.mxu0 0
        %1550 = vmatpush1.bf16.msra.mxu0 0
        %1551 = vmatprep.subr.bf16.mxu0 0
        %1552 = vmatpush1.bf16.msra.mxu0 0
        %1553 = vmatprep.subr.bf16.mxu0 0
        %1554 = vmatpush1.bf16.msra.mxu0 0
        %1555 = vmatprep.subr.bf16.mxu0 0
        %1556 = vmatpush1.bf16.msra.mxu0 0
        %1557 = vmatprep.subr.bf16.mxu0 0
        %1558 = vmatpush1.bf16.msra.mxu0 0
        %1559 = vmatprep.subr.bf16.mxu0 0
        %1560 = vmatpush1.bf16.msra.mxu0 0
        %1561 = vmatprep.subr.bf16.mxu0 0
        %1562 = vmatpush1.bf16.msra.mxu0 0
        %1563 = vmatprep.subr.bf16.mxu0 0
        %1564 = vmatpush1.bf16.msra.mxu0 0
        %1565 = vmatprep.subr.bf16.mxu0 0
        %1566 = vmatpush1.bf16.msra.mxu0 0
        %1567 = vmatprep.mubr.bf16.mxu0 0
        %1568 = vmatmul.mubr.bf16.gmra.mrb[0].mxu0 %v1524
        %v1569 = vpop.f32.mrb[0].mxu0
        %v1570 = vadd.f32 0.0, %v1569
        %v1571 = vpop.f32.mrb[0].mxu0
        %v1572 = vpop.f32.mrb[0].mxu0
        %v1573 = vadd.f32 0.0, %v1572
        %v1574 = vpop.f32.mrb[0].mxu0
        %1575 = vmatprep.mubr.bf16.mxu0 0
        %1576 = vmatmul.mubr.bf16.gmra.mrb[0].mxu0 %v1527
        %v1577 = vpop.f32.mrb[0].mxu0
        %v1578 = vadd.f32 0.0, %v1577
        %v1579 = vpop.f32.mrb[0].mxu0
        %v1580 = vpop.f32.mrb[0].mxu0
        %v1581 = vadd.f32 0.0, %v1580
        %v1582 = vpop.f32.mrb[0].mxu0
        %1583 = vmatprep.mubr.bf16.mxu0 0
        %1584 = vmatmul.mubr.bf16.gmra.mrb[0].mxu0 %v1530
        %v1585 = vpop.f32.mrb[0].mxu0
        %v1586 = vadd.f32 0.0, %v1585
        %v1587 = vpop.f32.mrb[0].mxu0
        %v1588 = vpop.f32.mrb[0].mxu0
        %v1589 = vadd.f32 0.0, %v1588
        %v1590 = vpop.f32.mrb[0].mxu0
        %1591 = vmatprep.mubr.bf16.mxu0 0
        %1592 = vmatmul.mubr.bf16.gmra.mrb[0].mxu0 %v1533
        %v1593 = vpop.f32.mrb[0].mxu0
        %v1594 = vadd.f32 0.0, %v1593
        %v1595 = vpop.f32.mrb[0].mxu0
        %v1596 = vpop.f32.mrb[0].mxu0
        %v1597 = vadd.f32 0.0, %v1596
        %v1598 = vpop.f32.mrb[0].mxu0
        %1599 = vdwg.mxu0
        %v1600 = vadd.f32 %v1366, %v1570
        %v1601 = vadd.f32 %v1367, %v1573
        %v1602 = vadd.f32 %v1368, %v1578
        %v1603 = vadd.f32 %v1369, %v1581
        %v1604 = vadd.f32 %v1370, %v1586
        %v1605 = vadd.f32 %v1371, %v1589
        %v1606 = vadd.f32 %v1372, %v1594
        %v1607 = vadd.f32 %v1373, %v1597
        %v1608 = vld [vmem:[%s1251] sm:$0xe]
        %v1609 = vld [vmem:[%s1251 + $0x8] sm:$0xe]
        %v1610 = vld [vmem:[%s1251 + $0x10] sm:$0xe]
        %v1611 = vld [vmem:[%s1251 + $0x18] sm:$0xe]
        %v1612 = vld [vmem:[%s1251 + $0x20] sm:$0xe]
        %v1613 = vld [vmem:[%s1251 + $0x28] sm:$0xe]
        %v1614 = vld [vmem:[%s1251 + $0x30] sm:$0xe]
        %v1615 = vld [vmem:[%s1251 + $0x38] sm:$0xe]
        %v1632 = vrot.slane %v1608, 5
        %v1633 = vrot.slane %v1632, 4
        %v1634 = vrot.slane %v1375, 5
        %v1635 = vsel %vm593, %v1633, %v1634
        %v1636 = vrot.slane %v1609, 5
        %v1637 = vrot.slane %v1636, 4
        %v1638 = vrot.slane %v1377, 5
        %v1639 = vsel %vm593, %v1637, %v1638
        %v1640 = vrot.slane %v1610, 5
        %v1641 = vrot.slane %v1640, 4
        %v1642 = vrot.slane %v1379, 5
        %v1643 = vsel %vm593, %v1641, %v1642
        %v1644 = vrot.slane %v1611, 5
        %v1645 = vrot.slane %v1644, 4
        %v1646 = vrot.slane %v1381, 5
        %v1647 = vsel %vm593, %v1645, %v1646
        %v1648 = vrot.slane %v1612, 5
        %v1649 = vrot.slane %v1648, 4
        %v1650 = vrot.slane %v1383, 5
        %v1651 = vsel %vm593, %v1649, %v1650
        %v1652 = vrot.slane %v1613, 5
        %v1653 = vrot.slane %v1652, 4
        %v1654 = vrot.slane %v1385, 5
        %v1655 = vsel %vm593, %v1653, %v1654
        %v1656 = vrot.slane %v1614, 5
        %v1657 = vrot.slane %v1656, 4
        %v1658 = vrot.slane %v1387, 5
        %v1659 = vsel %vm593, %v1657, %v1658
        %v1660 = vrot.slane %v1615, 5
        %v1661 = vrot.slane %v1660, 4
        %v1662 = vrot.slane %v1389, 5
        %v1663 = vsel %vm593, %v1661, %v1662
        %s1664 = scalar_lea.vmem %s222, 64
        %v1665 = vld [vmem:[%s1664] sm:$0xf]
        %v1666 = vld [vmem:[%s1664 + $0x4] sm:$0xf]
        %v1667 = vunpack.c.l.b16 %v1635
        %v1668 = vunpack.c.l.b16 %v1639
        %v1669 = vunpack.c.l.b16 %v1643
        %v1670 = vunpack.c.l.b16 %v1647
        %v1671 = vunpack.c.l.b16 %v1651
        %v1672 = vunpack.c.l.b16 %v1655
        %v1673 = vunpack.c.l.b16 %v1659
        %v1674 = vunpack.c.l.b16 %v1663
        %v1675 = vpack.c.b16 %v1668, %v1667
        %v1676 = vpack.c.b16 %v1670, %v1669
        %v1677 = vpack.c.b16 %v1672, %v1671
        %v1678 = vpack.c.b16 %v1674, %v1673
        %v1681 = vunpack.c.l.b16 %v1665
        %v1682 = vunpack.c.l.b16 %v1666
        %v1683 = vpack.c.b16 %v1682, %v1681
        %v1686 = vsel %vm386, %v1675, 0
        %v1689 = vsel %vm386, %v1676, 0
        %v1692 = vsel %vm386, %v1677, 0
        %v1695 = vsel %vm386, %v1678, 0
        %1697 = vmatprep.subr.bf16.mxu0 0
        %1698 = vmatpush1.bf16.msra.mxu0 %v1683
        %1699 = vmatprep.subr.bf16.mxu0 0
        %1700 = vmatpush1.bf16.msra.mxu0 0
        %1701 = vmatprep.subr.bf16.mxu0 0
        %1702 = vmatpush1.bf16.msra.mxu0 0
        %1703 = vmatprep.subr.bf16.mxu0 0
        %1704 = vmatpush1.bf16.msra.mxu0 0
        %1705 = vmatprep.subr.bf16.mxu0 0
        %1706 = vmatpush1.bf16.msra.mxu0 0
        %1707 = vmatprep.subr.bf16.mxu0 0
        %1708 = vmatpush1.bf16.msra.mxu0 0
        %1709 = vmatprep.subr.bf16.mxu0 0
        %1710 = vmatpush1.bf16.msra.mxu0 0
        %1711 = vmatprep.subr.bf16.mxu0 0
        %1712 = vmatpush1.bf16.msra.mxu0 0
        %1713 = vmatprep.subr.bf16.mxu0 0
        %1714 = vmatpush1.bf16.msra.mxu0 0
        %1715 = vmatprep.subr.bf16.mxu0 0
        %1716 = vmatpush1.bf16.msra.mxu0 0
        %1717 = vmatprep.subr.bf16.mxu0 0
        %1718 = vmatpush1.bf16.msra.mxu0 0
        %1719 = vmatprep.subr.bf16.mxu0 0
        %1720 = vmatpush1.bf16.msra.mxu0 0
        %1721 = vmatprep.subr.bf16.mxu0 0
        %1722 = vmatpush1.bf16.msra.mxu0 0
        %1723 = vmatprep.subr.bf16.mxu0 0
        %1724 = vmatpush1.bf16.msra.mxu0 0
        %1725 = vmatprep.subr.bf16.mxu0 0
        %1726 = vmatpush1.bf16.msra.mxu0 0
        %1727 = vmatprep.subr.bf16.mxu0 0
        %1728 = vmatpush1.bf16.msra.mxu0 0
        %1729 = vmatprep.mubr.bf16.mxu0 0
        %1730 = vmatmul.mubr.bf16.gmra.mrb[0].mxu0 %v1686
        %v1731 = vpop.f32.mrb[0].mxu0
        %v1732 = vadd.f32 0.0, %v1731
        %v1733 = vpop.f32.mrb[0].mxu0
        %v1734 = vpop.f32.mrb[0].mxu0
        %v1735 = vadd.f32 0.0, %v1734
        %v1736 = vpop.f32.mrb[0].mxu0
        %1737 = vmatprep.mubr.bf16.mxu0 0
        %1738 = vmatmul.mubr.bf16.gmra.mrb[0].mxu0 %v1689
        %v1739 = vpop.f32.mrb[0].mxu0
        %v1740 = vadd.f32 0.0, %v1739
        %v1741 = vpop.f32.mrb[0].mxu0
        %v1742 = vpop.f32.mrb[0].mxu0
        %v1743 = vadd.f32 0.0, %v1742
        %v1744 = vpop.f32.mrb[0].mxu0
        %1745 = vmatprep.mubr.bf16.mxu0 0
        %1746 = vmatmul.mubr.bf16.gmra.mrb[0].mxu0 %v1692
        %v1747 = vpop.f32.mrb[0].mxu0
        %v1748 = vadd.f32 0.0, %v1747
        %v1749 = vpop.f32.mrb[0].mxu0
        %v1750 = vpop.f32.mrb[0].mxu0
        %v1751 = vadd.f32 0.0, %v1750
        %v1752 = vpop.f32.mrb[0].mxu0
        %1753 = vmatprep.mubr.bf16.mxu0 0
        %1754 = vmatmul.mubr.bf16.gmra.mrb[0].mxu0 %v1695
        %v1755 = vpop.f32.mrb[0].mxu0
        %v1756 = vadd.f32 0.0, %v1755
        %v1757 = vpop.f32.mrb[0].mxu0
        %v1758 = vpop.f32.mrb[0].mxu0
        %v1759 = vadd.f32 0.0, %v1758
        %v1760 = vpop.f32.mrb[0].mxu0
        %1761 = vdwg.mxu0
        %v1762 = vadd.f32 %v1600, %v1732
        %v1763 = vadd.f32 %v1601, %v1735
        %v1764 = vadd.f32 %v1602, %v1740
        %v1765 = vadd.f32 %v1603, %v1743
        %v1766 = vadd.f32 %v1604, %v1748
        %v1767 = vadd.f32 %v1605, %v1751
        %v1768 = vadd.f32 %v1606, %v1756
        %v1769 = vadd.f32 %v1607, %v1759
        %v1770 = vld [vmem:[%s230] sm:$0xf]
        %v1771 = vld [vmem:[%s230 + $0x4] sm:$0xf]
        %v1772 = vld [vmem:[%s230 + $0x8] sm:$0xf]
        %v1773 = vld [vmem:[%s230 + $0xc] sm:$0xf]
        %v1774 = vld [vmem:[%s230 + $0x10] sm:$0xf]
        %v1775 = vld [vmem:[%s230 + $0x14] sm:$0xf]
        %v1776 = vld [vmem:[%s230 + $0x18] sm:$0xf]
        %v1777 = vld [vmem:[%s230 + $0x1c] sm:$0xf]
        %v1778 = vunpack.c.l.bf16 %v1770
        %v1779 = vunpack.c.l.bf16 %v1771
        %v1780 = vunpack.c.l.bf16 %v1772
        %v1781 = vunpack.c.l.bf16 %v1773
        %v1782 = vunpack.c.l.bf16 %v1774
        %v1783 = vunpack.c.l.bf16 %v1775
        %v1784 = vunpack.c.l.bf16 %v1776
        %v1785 = vunpack.c.l.bf16 %v1777
        %v1786 = vadd.f32 %v1762, %v1778
        %v1787 = vadd.f32 %v1763, %v1779
        %v1788 = vadd.f32 %v1764, %v1780
        %v1789 = vadd.f32 %v1765, %v1781
        %v1790 = vadd.f32 %v1766, %v1782
        %v1791 = vadd.f32 %v1767, %v1783
        %v1792 = vadd.f32 %v1768, %v1784
        %v1793 = vadd.f32 %v1769, %v1785
        %1794 = vst.msk [vmem:[%s213] sm:$0xff] %vm386, %v1786
        %1795 = vst.msk [vmem:[%s213 + $0x8] sm:$0xff] %vm386, %v1787
        %1796 = vst.msk [vmem:[%s213 + $0x10] sm:$0xff] %vm386, %v1788
        %1797 = vst.msk [vmem:[%s213 + $0x18] sm:$0xff] %vm386, %v1789
        %1798 = vst.msk [vmem:[%s213 + $0x20] sm:$0xff] %vm386, %v1790
        %1799 = vst.msk [vmem:[%s213 + $0x28] sm:$0xff] %vm386, %v1791
        %1800 = vst.msk [vmem:[%s213 + $0x30] sm:$0xff] %vm386, %v1792
        %1801 = vst.msk [vmem:[%s213 + $0x38] sm:$0xff] %vm386, %v1793
        %s1802 = sand.u32 %s119, 1
        %s1803 = scalar_lea.sflag [#allocation3], %s1802
        %s1804 = sand.u32 %s119, 1
        %s1805 = smul.addr %s1804, 64
        %s1806 = scalar_lea.vmem [#allocation2], %s1805
        // Predicated region
        $region33: #{fwd.7} parent=31 // pred_check
          %p1807 = pneg %p129
        $region34: #{fwd.7} parent=31 // pred_check_branch
          %1809 = sbr.rel (%p1807) target = $region36
        $region35: #{fwd.7} parent=31 // pred_region
          %s1811 = ssub.s32 1024, 1024
          %1812 = vsyncadd %s1803, %s1811
          %s1813 = smul.addr %s21, 8
          %s1814 = sadd.s32 %s22, %s1813
          %s1815 = smul.addr %s1814, 128
          %s1816 = scalar_lea.hbm %s3, %s1815
          %s1817 = sshll.u32 %s1806, 4
          %s1818 = int_to_ptr.vmem [resolvable:$true] %s1817
          %1823 = dma.vmem_to_hbm [thread:$0]  %s1818, 1024, %s1816, %s1803, 128, 128, 8
        $region36: #{fwd.7} parent=31 // pred_fallthru
          _
      $region32: #{fwd.7} parent=5 // pred_fallthru
        _
      %p1824 = scmp.le.s32.totalorder 2, %s12
      // Predicated region
      $region37: #{fwd.7} parent=5 // pred_check
        %p1825 = pneg %p1824
      $region38: #{fwd.7} parent=5 // pred_check_branch
        %1827 = sbr.rel (%p1825) target = $region40
      $region39: #{fwd.7} parent=5 // pred_region
        %s1828 = ssub.s32 %s12, 2
        // Predicated region
        $region41: #{fwd.7} parent=39 // pred_check
          %p1829 = pneg %p135
        $region42: #{fwd.7} parent=39 // pred_check_branch
          %1831 = sbr.rel (%p1829) target = $region44
        $region43: #{fwd.7} parent=39 // pred_region
          %s1832 = sand.u32 %s120, 1
          %s1833 = scalar_lea.sflag [#allocation3], %s1832
          %s1834 = sand.u32 %s120, 1
          %s1835 = smul.addr %s1834, 64
          %s1836 = scalar_lea.vmem [#allocation2], %s1835
          %1837 = dma.done %s1833, 1024
        $region44: #{fwd.7} parent=39 // pred_fallthru
          _
      $region40: #{fwd.7} parent=5 // pred_fallthru
        _
    $region6: #{fwd.7} parent=1 // loop_footer
      %s16 = sadd.s32 1, %s12
    $region7: #{fwd.7} parent=1 // loop_footer_branch
      %11 = sbr.rel target = $region3
    $region8: #{fwd.7} parent=1 // loop_exit
      _
    %1838 = vsyncpa [#allocation3], 1
    %s1839 = scalar_lea.sflag [#allocation3], 1
    %1840 = vsyncpa %s1839, 1

// kernel: fwd.6
$region0: #{fwd.6}
  #allocation0 [shape = 'u32[]', space=smem, size = 0x4, offset = 0x4, fixed_abs, tag = 'smem constant byte address 0x4 - core index']
  #allocation1 [shape = 'u32[144,128]{1,0:T(1,128)}', space=vmem, size = 0x12000, scoped, tag = 'internal scratch']
  %s0 = inlined_call_operand.vmem [shape: bf16[2,18,18,16], index: 0, kind: input, shape index: {}]
  %s1 = inlined_call_operand.vmem [shape: bf16[9,16,16], index: 1, kind: input, shape index: {}]
  %s2 = inlined_call_operand.vmem [shape: bf16[2,256,16], index: 2, kind: input, shape index: {}]
  %s3 = inlined_call_operand.vmem [shape: f32[2,256,16], index: 3, kind: output, shape index: {}]
  %s4 = sld [smem:[#allocation0]]
  $region45: #{fwd.6} parent=0
    _
  %s6 = ssub.s32 1, %s4
  %s7 = scalar_select 0, %s6, %s4
  loop: start=0, step=1, limit=4
  $region2: #{fwd.6} parent=0 // loop_pre_header
    _
  $region3: #{fwd.6} parent=0 // loop_header
    %s9 = sphi 0, %s13
    %p10 = scmp.ge.s32.totalorder %s9, 4
    %s16 = sphi 0, %s28
    %s17 = sphi 0, %s24
    %s18 = sphi 0, %s16
    %s19 = sphi 0, %s17
    %s20 = sphi 0, %s18
    %s21 = sphi 0, %s19
    %s31 = sphi 0, %s33
    %s34 = sphi 0, %s31
    %s35 = sphi 0, %s34
    %s51 = sphi 0, %s35
    %s57 = sphi 0, %s59
    %s60 = sphi 0, %s57
    %s61 = sphi 0, %s60
    %s77 = sphi 0, %s61
    %s85 = sphi 0, %s87
    %s88 = sphi 0, %s85
    %s89 = sphi 0, %s88
    %s105 = sphi 0, %s89
    %s113 = sphi 0, %s115
    %s116 = sphi 0, %s113
    %s117 = sphi 0, %s116
    %s133 = sphi 0, %s117
  $region4: #{fwd.6} parent=0 // loop_header_branch
    %12 = sbr.rel (%p10) target = $region8
  $region5: #{fwd.6} parent=0 // loop_body
    %s14 = ssub.s32 %s9, 1
    %s15 = ssub.s32 %s9, 2
    %s22 = sadd.s32 1, %s17
    %p23 = scmp.ge.s32.totalorder %s22, 1
    %s24 = scalar_select %p23, 0, %s22
    %s25 = sadd.s32 1, %s16
    %s26 = scalar_select %p23, %s25, %s16
    %p27 = scmp.ge.s32.totalorder %s26, 2
    %s28 = scalar_select %p27, 0, %s26
    %s29 = ssub.s32 %s16, %s28
    %p30 = scmp.eq.s32.totalorder %s29, 0
    %s32 = sadd.s32 %s31, 1
    %s33 = scalar_select %p30, %s31, %s32
    %p36 = pneg %p30
    %p37 = scmp.eq.s32.totalorder %s9, 1
    %p38 = por %p36, %p37
    %p39 = scmp.ne.s32.totalorder %s31, %s34
    %p40 = scmp.eq.s32.totalorder %s9, 0
    %p41 = por %p39, %p40
    %p42 = scmp.ne.s32.totalorder %s31, %s34
    %p43 = scmp.eq.s32.totalorder %s14, 1
    %p44 = por %p42, %p43
    %p45 = scmp.ne.s32.totalorder %s34, %s35
    %p46 = scmp.eq.s32.totalorder %s14, 0
    %p47 = por %p45, %p46
    %p48 = scmp.ne.s32.totalorder %s34, %s35
    %p49 = scmp.eq.s32.totalorder %s15, 1
    %p50 = por %p48, %p49
    %p52 = scmp.ne.s32.totalorder %s35, %s51
    %p53 = scmp.eq.s32.totalorder %s15, 0
    %p54 = por %p52, %p53
    %s55 = ssub.s32 %s17, %s24
    %p56 = scmp.eq.s32.totalorder %s55, 0
    %s58 = sadd.s32 %s57, 1
    %s59 = scalar_select %p56, %s57, %s58
    %p62 = pneg %p56
    %p63 = scmp.eq.s32.totalorder %s9, 1
    %p64 = por %p62, %p63
    %p65 = scmp.ne.s32.totalorder %s57, %s60
    %p66 = scmp.eq.s32.totalorder %s9, 0
    %p67 = por %p65, %p66
    %p68 = scmp.ne.s32.totalorder %s57, %s60
    %p69 = scmp.eq.s32.totalorder %s14, 1
    %p70 = por %p68, %p69
    %p71 = scmp.ne.s32.totalorder %s60, %s61
    %p72 = scmp.eq.s32.totalorder %s14, 0
    %p73 = por %p71, %p72
    %p74 = scmp.ne.s32.totalorder %s60, %s61
    %p75 = scmp.eq.s32.totalorder %s15, 1
    %p76 = por %p74, %p75
    %p78 = scmp.ne.s32.totalorder %s61, %s77
    %p79 = scmp.eq.s32.totalorder %s15, 0
    %p80 = por %p78, %p79
    %s81 = ssub.s32 %s16, %s28
    %s82 = ssub.s32 %s17, %s24
    %s83 = sor.u32 %s81, %s82
    %p84 = scmp.eq.s32.totalorder %s83, 0
    %s86 = sadd.s32 %s85, 1
    %s87 = scalar_select %p84, %s85, %s86
    %p90 = pneg %p84
    %p91 = scmp.eq.s32.totalorder %s9, 1
    %p92 = por %p90, %p91
    %p93 = scmp.ne.s32.totalorder %s85, %s88
    %p94 = scmp.eq.s32.totalorder %s9, 0
    %p95 = por %p93, %p94
    %p96 = scmp.ne.s32.totalorder %s85, %s88
    %p97 = scmp.eq.s32.totalorder %s14, 1
    %p98 = por %p96, %p97
    %p99 = scmp.ne.s32.totalorder %s88, %s89
    %p100 = scmp.eq.s32.totalorder %s14, 0
    %p101 = por %p99, %p100
    %p102 = scmp.ne.s32.totalorder %s88, %s89
    %p103 = scmp.eq.s32.totalorder %s15, 1
    %p104 = por %p102, %p103
    %p106 = scmp.ne.s32.totalorder %s89, %s105
    %p107 = scmp.eq.s32.totalorder %s15, 0
    %p108 = por %p106, %p107
    %s109 = ssub.s32 %s16, %s28
    %s110 = ssub.s32 %s17, %s24
    %s111 = sor.u32 %s109, %s110
    %p112 = scmp.eq.s32.totalorder %s111, 0
    %s114 = sadd.s32 %s113, 1
    %s115 = scalar_select %p112, %s113, %s114
    %p118 = pneg %p112
    %p119 = scmp.eq.s32.totalorder %s9, 1
    %p120 = por %p118, %p119
    %p121 = scmp.ne.s32.totalorder %s113, %s116
    %p122 = scmp.eq.s32.totalorder %s9, 0
    %p123 = por %p121, %p122
    %p124 = scmp.ne.s32.totalorder %s113, %s116
    %p125 = scmp.eq.s32.totalorder %s14, 1
    %p126 = por %p124, %p125
    %p127 = scmp.ne.s32.totalorder %s116, %s117
    %p128 = scmp.eq.s32.totalorder %s14, 0
    %p129 = por %p127, %p128
    %p130 = scmp.ne.s32.totalorder %s116, %s117
    %p131 = scmp.eq.s32.totalorder %s15, 1
    %p132 = por %p130, %p131
    %p134 = scmp.ne.s32.totalorder %s117, %s133
    %p135 = scmp.eq.s32.totalorder %s15, 0
    %p136 = por %p134, %p135
    %p137 = scmp.le.s32.totalorder 1, %s9
    %p138 = scmp.lt.s32.totalorder %s9, 3
    %p139 = pnand %p137, %p138
    %p140 = pneg %p139
    // Predicated region
    $region9: #{fwd.6} parent=5 // pred_check
      _
    $region10: #{fwd.6} parent=5 // pred_check_branch
      %142 = sbr.rel (%p139) target = $region12
    $region11: #{fwd.6} parent=5 // pred_region
      %s143 = ssub.s32 %s9, 1
      // Predicated region
      $region13: #{fwd.6} parent=11 // pred_check
        %p144 = pneg %p73
      $region14: #{fwd.6} parent=11 // pred_check_branch
        %146 = sbr.rel (%p144) target = $region16
      $region15: #{fwd.6} parent=11 // pred_region
        %p147 = scmp.lt.s32.totalorder %s19, 0
        %s148 = scalar_select %p147, %s19, 0
        %s149 = smul.addr %s148, 4
        %s150 = scalar_lea.vmem %s1, %s149
      $region16: #{fwd.6} parent=11 // pred_fallthru
        _
    $region12: #{fwd.6} parent=5 // pred_fallthru
      _
    %p151 = scmp.lt.s32.totalorder %s9, 2
    // Predicated region
    $region17: #{fwd.6} parent=5 // pred_check
      %p152 = pneg %p151
    $region18: #{fwd.6} parent=5 // pred_check_branch
      %154 = sbr.rel (%p152) target = $region20
    $region19: #{fwd.6} parent=5 // pred_region
      // Predicated region
      $region21: #{fwd.6} parent=19 // pred_check
        %p155 = pneg %p41
      $region22: #{fwd.6} parent=19 // pred_check_branch
        %157 = sbr.rel (%p155) target = $region24
      $region23: #{fwd.6} parent=19 // pred_region
        %p158 = scmp.lt.s32.totalorder %s16, 1
        %s159 = scalar_select %p158, %s16, 1
        %s160 = smul.addr %s159, 54
        %s161 = smul.addr %s160, 4
        %s162 = scalar_lea.vmem %s0, %s161
      $region24: #{fwd.6} parent=19 // pred_fallthru
        _
      // Predicated region
      $region25: #{fwd.6} parent=19 // pred_check
        %p163 = pneg %p95
      $region26: #{fwd.6} parent=19 // pred_check_branch
        %165 = sbr.rel (%p163) target = $region28
      $region27: #{fwd.6} parent=19 // pred_region
        %p166 = scmp.lt.s32.totalorder %s16, 1
        %s167 = scalar_select %p166, %s16, 1
        %p168 = scmp.lt.s32.totalorder %s17, 0
        %s169 = scalar_select %p168, %s17, 0
        %s170 = smul.addr %s167, 32
        %s171 = sadd.s32 %s169, %s170
        %s172 = smul.addr %s171, 4
        %s173 = scalar_lea.vmem %s2, %s172
      $region28: #{fwd.6} parent=19 // pred_fallthru
        _
    $region20: #{fwd.6} parent=5 // pred_fallthru
      _
    %p174 = scmp.le.s32.totalorder 1, %s9
    %p175 = scmp.lt.s32.totalorder %s9, 3
    %p176 = pnand %p174, %p175
    %p177 = pneg %p176
    // Predicated region
    $region29: #{fwd.6} parent=5 // pred_check
      _
    $region30: #{fwd.6} parent=5 // pred_check_branch
      %179 = sbr.rel (%p176) target = $region32
    $region31: #{fwd.6} parent=5 // pred_region
      %s180 = ssub.s32 %s9, 1
      %p181 = scmp.lt.s32.totalorder %s18, 1
      %s182 = scalar_select %p181, %s18, 1
      %s183 = smul.addr %s182, 54
      %s184 = smul.addr %s183, 4
      %s185 = scalar_lea.vmem %s0, %s184
      %p186 = pneg %p47
      %p187 = pneg %p44
      %p188 = scmp.lt.s32.totalorder %s19, 0
      %s189 = scalar_select %p188, %s19, 0
      %s190 = smul.addr %s189, 4
      %s191 = scalar_lea.vmem %s1, %s190
      %p192 = pneg %p73
      %p193 = pneg %p70
      %p194 = scmp.lt.s32.totalorder %s18, 1
      %s195 = scalar_select %p194, %s18, 1
      %p196 = scmp.lt.s32.totalorder %s19, 0
      %s197 = scalar_select %p196, %s19, 0
      %s198 = smul.addr %s195, 32
      %s199 = sadd.s32 %s197, %s198
      %s200 = smul.addr %s199, 4
      %s201 = scalar_lea.vmem %s2, %s200
      %p202 = pneg %p101
      %p203 = pneg %p98
      %p204 = pneg %p129
      %p205 = pneg %p126
      %p206 = scmp.lt.s32.totalorder %s18, 1
      %s207 = scalar_select %p206, %s18, 1
      %p208 = scmp.lt.s32.totalorder %s19, 0
      %s209 = scalar_select %p208, %s19, 0
      %s210 = smul.addr %s207, 32
      %s211 = sadd.s32 %s209, %s210
      %s212 = smul.addr %s211, 8
      %s213 = scalar_lea.vmem %s3, %s212
      %p214 = scmp.lt.s32.totalorder %s18, 1
      %s215 = scalar_select %p214, %s18, 1
      %s216 = smul.addr %s215, 54
      %s217 = smul.addr %s216, 4
      %s218 = scalar_lea.vmem %s0, %s217
      %p219 = scmp.lt.s32.totalorder %s19, 0
      %s220 = scalar_select %p219, %s19, 0
      %s221 = smul.addr %s220, 4
      %s222 = scalar_lea.vmem %s1, %s221
      %p223 = scmp.lt.s32.totalorder %s18, 1
      %s224 = scalar_select %p223, %s18, 1
      %p225 = scmp.lt.s32.totalorder %s19, 0
      %s226 = scalar_select %p225, %s19, 0
      %s227 = smul.addr %s224, 32
      %s228 = sadd.s32 %s226, %s227
      %s229 = smul.addr %s228, 4
      %s230 = scalar_lea.vmem %s2, %s229
      %p231 = scmp.lt.s32.totalorder %s18, 1
      %s232 = scalar_select %p231, %s18, 1
      %p233 = scmp.lt.s32.totalorder %s19, 0
      %s234 = scalar_select %p233, %s19, 0
      %s235 = smul.addr %s232, 32
      %s236 = sadd.s32 %s234, %s235
      %s237 = smul.addr %s236, 8
      %s238 = scalar_lea.vmem %s3, %s237
      %v240 = vld [vmem:[%s218] sm:$0xf]
      %v241 = vld [vmem:[%s218 + $0x4] sm:$0xf]
      %v242 = vld [vmem:[%s218 + $0xc] sm:$0xf]
      %v243 = vld [vmem:[%s218 + $0x10] sm:$0xf]
      %v244 = vld [vmem:[%s218 + $0x18] sm:$0xf]
      %v245 = vld [vmem:[%s218 + $0x1c] sm:$0xf]
      %v246 = vld [vmem:[%s218 + $0x24] sm:$0xf]
      %v247 = vld [vmem:[%s218 + $0x28] sm:$0xf]
      %v248 = vld [vmem:[%s218 + $0x30] sm:$0xf]
      %v249 = vld [vmem:[%s218 + $0x34] sm:$0xf]
      %v250 = vld [vmem:[%s218 + $0x3c] sm:$0xf]
      %v251 = vld [vmem:[%s218 + $0x40] sm:$0xf]
      %v252 = vld [vmem:[%s218 + $0x48] sm:$0xf]
      %v253 = vld [vmem:[%s218 + $0x4c] sm:$0xf]
      %v254 = vld [vmem:[%s218 + $0x54] sm:$0xf]
      %v255 = vld [vmem:[%s218 + $0x58] sm:$0xf]
      %v256 = vld [vmem:[%s218 + $0x60] sm:$0xf]
      %v257 = vld [vmem:[%s218 + $0x64] sm:$0xf]
      %v258 = vld [vmem:[%s218 + $0x6c] sm:$0xf]
      %v259 = vld [vmem:[%s218 + $0x70] sm:$0xf]
      %v260 = vld [vmem:[%s218 + $0x78] sm:$0xf]
      %v261 = vld [vmem:[%s218 + $0x7c] sm:$0xf]
      %v262 = vld [vmem:[%s218 + $0x84] sm:$0xf]
      %v263 = vld [vmem:[%s218 + $0x88] sm:$0xf]
      %v264 = vld [vmem:[%s218 + $0x90] sm:$0xf]
      %v265 = vld [vmem:[%s218 + $0x94] sm:$0xf]
      %v266 = vld [vmem:[%s218 + $0x9c] sm:$0xf]
      %v267 = vld [vmem:[%s218 + $0xa0] sm:$0xf]
      %v268 = vld [vmem:[%s218 + $0xa8] sm:$0xf]
      %v269 = vld [vmem:[%s218 + $0xac] sm:$0xf]
      %v270 = vld [vmem:[%s218 + $0xb4] sm:$0xf]
      %v271 = vld [vmem:[%s218 + $0xb8] sm:$0xf]
      %v272 = vld [vmem:[%s222] sm:$0xf]
      %v273 = vld [vmem:[%s222 + $0x4] sm:$0xf]
      %v274 = vld [vmem:[%s218 + $0x8] sm:$0x1]
      %v275 = vld [vmem:[%s218 + $0x14] sm:$0x1]
      %v276 = vld [vmem:[%s218 + $0x20] sm:$0x1]
      %v277 = vld [vmem:[%s218 + $0x2c] sm:$0x1]
      %v278 = vld [vmem:[%s218 + $0x38] sm:$0x1]
      %v279 = vld [vmem:[%s218 + $0x44] sm:$0x1]
      %v280 = vld [vmem:[%s218 + $0x50] sm:$0x1]
      %v281 = vld [vmem:[%s218 + $0x5c] sm:$0x1]
      %v282 = vld [vmem:[%s218 + $0x68] sm:$0x1]
      %v283 = vld [vmem:[%s218 + $0x74] sm:$0x1]
      %v284 = vld [vmem:[%s218 + $0x80] sm:$0x1]
      %v285 = vld [vmem:[%s218 + $0x8c] sm:$0x1]
      %v286 = vld [vmem:[%s218 + $0x98] sm:$0x1]
      %v287 = vld [vmem:[%s218 + $0xa4] sm:$0x1]
      %v288 = vld [vmem:[%s218 + $0xb0] sm:$0x1]
      %v289 = vld [vmem:[%s218 + $0xbc] sm:$0x1]
      %vm290 = vsmask.f32 3328
      %vm291 = vsmask.f32 7440
      %vm292 = vmor %vm290, %vm291
      %v294 = vshrl.u32 %v240, 16
      %v296 = vrot.slane %v294, 4
      %v297 = vshll.u32 %v240, 16
      %v299 = vrot.slane %v297, 5
      %v300 = vor.u32 %v296, %v299
      %v301 = vrot.slane %v300, 4
      %v303 = vshll.u32 %v241, 16
      %v305 = vrot.slane %v303, 5
      %v306 = vsel %vm292, %v301, %v305
      %v307 = vshrl.u32 %v241, 16
      %v309 = vrot.slane %v307, 4
      %v310 = vor.u32 %v309, %v305
      %v311 = vrot.slane %v310, 4
      %v313 = vshll.u32 %v274, 16
      %v315 = vrot.slane %v313, 5
      %v316 = vsel %vm292, %v311, %v315
      %v318 = vshrl.u32 %v242, 16
      %v320 = vrot.slane %v318, 4
      %v321 = vshll.u32 %v242, 16
      %v323 = vrot.slane %v321, 5
      %v324 = vor.u32 %v320, %v323
      %v325 = vrot.slane %v324, 4
      %v327 = vshll.u32 %v243, 16
      %v329 = vrot.slane %v327, 5
      %v330 = vsel %vm292, %v325, %v329
      %v331 = vshrl.u32 %v243, 16
      %v333 = vrot.slane %v331, 4
      %v334 = vor.u32 %v333, %v329
      %v335 = vrot.slane %v334, 4
      %v337 = vshll.u32 %v275, 16
      %v339 = vrot.slane %v337, 5
      %v340 = vsel %vm292, %v335, %v339
      %v342 = vshrl.u32 %v244, 16
      %v344 = vrot.slane %v342, 4
      %v345 = vshll.u32 %v244, 16
      %v347 = vrot.slane %v345, 5
      %v348 = vor.u32 %v344, %v347
      %v349 = vrot.slane %v348, 4
      %v351 = vshll.u32 %v245, 16
      %v353 = vrot.slane %v351, 5
      %v354 = vsel %vm292, %v349, %v353
      %v355 = vshrl.u32 %v245, 16
      %v357 = vrot.slane %v355, 4
      %v358 = vor.u32 %v357, %v353
      %v359 = vrot.slane %v358, 4
      %v361 = vshll.u32 %v276, 16
      %v363 = vrot.slane %v361, 5
      %v364 = vsel %vm292, %v359, %v363
      %v366 = vshrl.u32 %v246, 16
      %v368 = vrot.slane %v366, 4
      %v369 = vshll.u32 %v246, 16
      %v371 = vrot.slane %v369, 5
      %v372 = vor.u32 %v368, %v371
      %v373 = vrot.slane %v372, 4
      %v375 = vshll.u32 %v247, 16
      %v377 = vrot.slane %v375, 5
      %v378 = vsel %vm292, %v373, %v377
      %v379 = vshrl.u32 %v247, 16
      %v381 = vrot.slane %v379, 4
      %v382 = vor.u32 %v381, %v377
      %v383 = vrot.slane %v382, 4
      %v385 = vshll.u32 %v277, 16
      %v387 = vrot.slane %v385, 5
      %v388 = vsel %vm292, %v383, %v387
      %v390 = vshrl.u32 %v248, 16
      %v392 = vrot.slane %v390, 4
      %v393 = vshll.u32 %v248, 16
      %v395 = vrot.slane %v393, 5
      %v396 = vor.u32 %v392, %v395
      %v397 = vrot.slane %v396, 4
      %v399 = vshll.u32 %v249, 16
      %v401 = vrot.slane %v399, 5
      %v402 = vsel %vm292, %v397, %v401
      %v403 = vshrl.u32 %v249, 16
      %v405 = vrot.slane %v403, 4
      %v406 = vor.u32 %v405, %v401
      %v407 = vrot.slane %v406, 4
      %v409 = vshll.u32 %v278, 16
      %v411 = vrot.slane %v409, 5
      %v412 = vsel %vm292, %v407, %v411
      %v414 = vshrl.u32 %v250, 16
      %v416 = vrot.slane %v414, 4
      %v417 = vshll.u32 %v250, 16
      %v419 = vrot.slane %v417, 5
      %v420 = vor.u32 %v416, %v419
      %v421 = vrot.slane %v420, 4
      %v423 = vshll.u32 %v251, 16
      %v425 = vrot.slane %v423, 5
      %v426 = vsel %vm292, %v421, %v425
      %v427 = vshrl.u32 %v251, 16
      %v429 = vrot.slane %v427, 4
      %v430 = vor.u32 %v429, %v425
      %v431 = vrot.slane %v430, 4
      %v433 = vshll.u32 %v279, 16
      %v435 = vrot.slane %v433, 5
      %v436 = vsel %vm292, %v431, %v435
      %v438 = vshrl.u32 %v252, 16
      %v440 = vrot.slane %v438, 4
      %v441 = vshll.u32 %v252, 16
      %v443 = vrot.slane %v441, 5
      %v444 = vor.u32 %v440, %v443
      %v445 = vrot.slane %v444, 4
      %v447 = vshll.u32 %v253, 16
      %v449 = vrot.slane %v447, 5
      %v450 = vsel %vm292, %v445, %v449
      %v451 = vshrl.u32 %v253, 16
      %v453 = vrot.slane %v451, 4
      %v454 = vor.u32 %v453, %v449
      %v455 = vrot.slane %v454, 4
      %v457 = vshll.u32 %v280, 16
      %v459 = vrot.slane %v457, 5
      %v460 = vsel %vm292, %v455, %v459
      %v462 = vshrl.u32 %v254, 16
      %v464 = vrot.slane %v462, 4
      %v465 = vshll.u32 %v254, 16
      %v467 = vrot.slane %v465, 5
      %v468 = vor.u32 %v464, %v467
      %v469 = vrot.slane %v468, 4
      %v471 = vshll.u32 %v255, 16
      %v473 = vrot.slane %v471, 5
      %v474 = vsel %vm292, %v469, %v473
      %v475 = vshrl.u32 %v255, 16
      %v477 = vrot.slane %v475, 4
      %v478 = vor.u32 %v477, %v473
      %v479 = vrot.slane %v478, 4
      %v481 = vshll.u32 %v281, 16
      %v483 = vrot.slane %v481, 5
      %v484 = vsel %vm292, %v479, %v483
      %v486 = vshrl.u32 %v256, 16
      %v488 = vrot.slane %v486, 4
      %v489 = vshll.u32 %v256, 16
      %v491 = vrot.slane %v489, 5
      %v492 = vor.u32 %v488, %v491
      %v493 = vrot.slane %v492, 4
      %v495 = vshll.u32 %v257, 16
      %v497 = vrot.slane %v495, 5
      %v498 = vsel %vm292, %v493, %v497
      %v499 = vshrl.u32 %v257, 16
      %v501 = vrot.slane %v499, 4
      %v502 = vor.u32 %v501, %v497
      %v503 = vrot.slane %v502, 4
      %v505 = vshll.u32 %v282, 16
      %v507 = vrot.slane %v505, 5
      %v508 = vsel %vm292, %v503, %v507
      %v510 = vshrl.u32 %v258, 16
      %v512 = vrot.slane %v510, 4
      %v513 = vshll.u32 %v258, 16
      %v515 = vrot.slane %v513, 5
      %v516 = vor.u32 %v512, %v515
      %v517 = vrot.slane %v516, 4
      %v519 = vshll.u32 %v259, 16
      %v521 = vrot.slane %v519, 5
      %v522 = vsel %vm292, %v517, %v521
      %v523 = vshrl.u32 %v259, 16
      %v525 = vrot.slane %v523, 4
      %v526 = vor.u32 %v525, %v521
      %v527 = vrot.slane %v526, 4
      %v529 = vshll.u32 %v283, 16
      %v531 = vrot.slane %v529, 5
      %v532 = vsel %vm292, %v527, %v531
      %v534 = vshrl.u32 %v260, 16
      %v536 = vrot.slane %v534, 4
      %v537 = vshll.u32 %v260, 16
      %v539 = vrot.slane %v537, 5
      %v540 = vor.u32 %v536, %v539
      %v541 = vrot.slane %v540, 4
      %v543 = vshll.u32 %v261, 16
      %v545 = vrot.slane %v543, 5
      %v546 = vsel %vm292, %v541, %v545
      %v547 = vshrl.u32 %v261, 16
      %v549 = vrot.slane %v547, 4
      %v550 = vor.u32 %v549, %v545
      %v551 = vrot.slane %v550, 4
      %v553 = vshll.u32 %v284, 16
      %v555 = vrot.slane %v553, 5
      %v556 = vsel %vm292, %v551, %v555
      %v558 = vshrl.u32 %v262, 16
      %v560 = vrot.slane %v558, 4
      %v561 = vshll.u32 %v262, 16
      %v563 = vrot.slane %v561, 5
      %v564 = vor.u32 %v560, %v563
      %v565 = vrot.slane %v564, 4
      %v567 = vshll.u32 %v263, 16
      %v569 = vrot.slane %v567, 5
      %v570 = vsel %vm292, %v565, %v569
      %v571 = vshrl.u32 %v263, 16
      %v573 = vrot.slane %v571, 4
      %v574 = vor.u32 %v573, %v569
      %v575 = vrot.slane %v574, 4
      %v577 = vshll.u32 %v285, 16
      %v579 = vrot.slane %v577, 5
      %v580 = vsel %vm292, %v575, %v579
      %v582 = vshrl.u32 %v264, 16
      %v584 = vrot.slane %v582, 4
      %v585 = vshll.u32 %v264, 16
      %v587 = vrot.slane %v585, 5
      %v588 = vor.u32 %v584, %v587
      %v589 = vrot.slane %v588, 4
      %v591 = vshll.u32 %v265, 16
      %v593 = vrot.slane %v591, 5
      %v594 = vsel %vm292, %v589, %v593
      %v595 = vshrl.u32 %v265, 16
      %v597 = vrot.slane %v595, 4
      %v598 = vor.u32 %v597, %v593
      %v599 = vrot.slane %v598, 4
      %v601 = vshll.u32 %v286, 16
      %v603 = vrot.slane %v601, 5
      %v604 = vsel %vm292, %v599, %v603
      %v606 = vshrl.u32 %v266, 16
      %v608 = vrot.slane %v606, 4
      %v609 = vshll.u32 %v266, 16
      %v611 = vrot.slane %v609, 5
      %v612 = vor.u32 %v608, %v611
      %v613 = vrot.slane %v612, 4
      %v615 = vshll.u32 %v267, 16
      %v617 = vrot.slane %v615, 5
      %v618 = vsel %vm292, %v613, %v617
      %v619 = vshrl.u32 %v267, 16
      %v621 = vrot.slane %v619, 4
      %v622 = vor.u32 %v621, %v617
      %v623 = vrot.slane %v622, 4
      %v625 = vshll.u32 %v287, 16
      %v627 = vrot.slane %v625, 5
      %v628 = vsel %vm292, %v623, %v627
      %v630 = vshrl.u32 %v268, 16
      %v632 = vrot.slane %v630, 4
      %v633 = vshll.u32 %v268, 16
      %v635 = vrot.slane %v633, 5
      %v636 = vor.u32 %v632, %v635
      %v637 = vrot.slane %v636, 4
      %v639 = vshll.u32 %v269, 16
      %v641 = vrot.slane %v639, 5
      %v642 = vsel %vm292, %v637, %v641
      %v643 = vshrl.u32 %v269, 16
      %v645 = vrot.slane %v643, 4
      %v646 = vor.u32 %v645, %v641
      %v647 = vrot.slane %v646, 4
      %v649 = vshll.u32 %v288, 16
      %v651 = vrot.slane %v649, 5
      %v652 = vsel %vm292, %v647, %v651
      %v654 = vshrl.u32 %v270, 16
      %v656 = vrot.slane %v654, 4
      %v657 = vshll.u32 %v270, 16
      %v659 = vrot.slane %v657, 5
      %v660 = vor.u32 %v656, %v659
      %v661 = vrot.slane %v660, 4
      %v663 = vshll.u32 %v271, 16
      %v665 = vrot.slane %v663, 5
      %v666 = vsel %vm292, %v661, %v665
      %v667 = vshrl.u32 %v271, 16
      %v669 = vrot.slane %v667, 4
      %v670 = vor.u32 %v669, %v665
      %v671 = vrot.slane %v670, 4
      %v673 = vshll.u32 %v289, 16
      %v675 = vrot.slane %v673, 5
      %v676 = vsel %vm292, %v671, %v675
      %s677 = scalar_lea.vmem %s222, 8
      %v678 = vld [vmem:[%s677] sm:$0xf]
      %v679 = vld [vmem:[%s677 + $0x4] sm:$0xf]
      %v680 = vunpack.c.l.b16 %v306
      %v681 = vunpack.c.l.b16 %v316
      %v682 = vunpack.c.l.b16 %v330
      %v683 = vunpack.c.l.b16 %v340
      %v684 = vunpack.c.l.b16 %v354
      %v685 = vunpack.c.l.b16 %v364
      %v686 = vunpack.c.l.b16 %v378
      %v687 = vunpack.c.l.b16 %v388
      %v688 = vunpack.c.l.b16 %v402
      %v689 = vunpack.c.l.b16 %v412
      %v690 = vunpack.c.l.b16 %v426
      %v691 = vunpack.c.l.b16 %v436
      %v692 = vunpack.c.l.b16 %v450
      %v693 = vunpack.c.l.b16 %v460
      %v694 = vunpack.c.l.b16 %v474
      %v695 = vunpack.c.l.b16 %v484
      %v696 = vunpack.c.l.b16 %v498
      %v697 = vunpack.c.l.b16 %v508
      %v698 = vunpack.c.l.b16 %v522
      %v699 = vunpack.c.l.b16 %v532
      %v700 = vunpack.c.l.b16 %v546
      %v701 = vunpack.c.l.b16 %v556
      %v702 = vunpack.c.l.b16 %v570
      %v703 = vunpack.c.l.b16 %v580
      %v704 = vunpack.c.l.b16 %v594
      %v705 = vunpack.c.l.b16 %v604
      %v706 = vunpack.c.l.b16 %v618
      %v707 = vunpack.c.l.b16 %v628
      %v708 = vunpack.c.l.b16 %v642
      %v709 = vunpack.c.l.b16 %v652
      %v710 = vunpack.c.l.b16 %v666
      %v711 = vunpack.c.l.b16 %v676
      %v712 = vpack.c.b16 %v681, %v680
      %v713 = vpack.c.b16 %v683, %v682
      %v714 = vpack.c.b16 %v685, %v684
      %v715 = vpack.c.b16 %v687, %v686
      %v716 = vpack.c.b16 %v689, %v688
      %v717 = vpack.c.b16 %v691, %v690
      %v718 = vpack.c.b16 %v693, %v692
      %v719 = vpack.c.b16 %v695, %v694
      %v720 = vpack.c.b16 %v697, %v696
      %v721 = vpack.c.b16 %v699, %v698
      %v722 = vpack.c.b16 %v701, %v700
      %v723 = vpack.c.b16 %v703, %v702
      %v724 = vpack.c.b16 %v705, %v704
      %v725 = vpack.c.b16 %v707, %v706
      %v726 = vpack.c.b16 %v709, %v708
      %v727 = vpack.c.b16 %v711, %v710
      %v730 = vunpack.c.l.b16 %v678
      %v731 = vunpack.c.l.b16 %v679
      %v732 = vpack.c.b16 %v731, %v730
      %vm734 = vcmask 130048
      %v736 = vsel %vm734, %v712, 0
      %v739 = vsel %vm734, %v713, 0
      %v742 = vsel %vm734, %v714, 0
      %v745 = vsel %vm734, %v715, 0
      %v748 = vsel %vm734, %v716, 0
      %v751 = vsel %vm734, %v717, 0
      %v754 = vsel %vm734, %v718, 0
      %v757 = vsel %vm734, %v719, 0
      %v760 = vsel %vm734, %v720, 0
      %v763 = vsel %vm734, %v721, 0
      %v766 = vsel %vm734, %v722, 0
      %v769 = vsel %vm734, %v723, 0
      %v772 = vsel %vm734, %v724, 0
      %v775 = vsel %vm734, %v725, 0
      %v778 = vsel %vm734, %v726, 0
      %v781 = vsel %vm734, %v727, 0
      %783 = vmatprep.subr.bf16.mxu0 0
      %784 = vmatpush1.bf16.msra.mxu0 %v732
      %785 = vmatprep.subr.bf16.mxu0 0
      %786 = vmatpush1.bf16.msra.mxu0 0
      %787 = vmatprep.subr.bf16.mxu0 0
      %788 = vmatpush1.bf16.msra.mxu0 0
      %789 = vmatprep.subr.bf16.mxu0 0
      %790 = vmatpush1.bf16.msra.mxu0 0
      %791 = vmatprep.subr.bf16.mxu0 0
      %792 = vmatpush1.bf16.msra.mxu0 0
      %793 = vmatprep.subr.bf16.mxu0 0
      %794 = vmatpush1.bf16.msra.mxu0 0
      %795 = vmatprep.subr.bf16.mxu0 0
      %796 = vmatpush1.bf16.msra.mxu0 0
      %797 = vmatprep.subr.bf16.mxu0 0
      %798 = vmatpush1.bf16.msra.mxu0 0
      %799 = vmatprep.subr.bf16.mxu0 0
      %800 = vmatpush1.bf16.msra.mxu0 0
      %801 = vmatprep.subr.bf16.mxu0 0
      %802 = vmatpush1.bf16.msra.mxu0 0
      %803 = vmatprep.subr.bf16.mxu0 0
      %804 = vmatpush1.bf16.msra.mxu0 0
      %805 = vmatprep.subr.bf16.mxu0 0
      %806 = vmatpush1.bf16.msra.mxu0 0
      %807 = vmatprep.subr.bf16.mxu0 0
      %808 = vmatpush1.bf16.msra.mxu0 0
      %809 = vmatprep.subr.bf16.mxu0 0
      %810 = vmatpush1.bf16.msra.mxu0 0
      %811 = vmatprep.subr.bf16.mxu0 0
      %812 = vmatpush1.bf16.msra.mxu0 0
      %813 = vmatprep.subr.bf16.mxu0 0
      %814 = vmatpush1.bf16.msra.mxu0 0
      %815 = vmatprep.mubr.bf16.mxu0 0
      %816 = vmatmul.mubr.bf16.gmra.mrb[0].mxu0 %v736
      %v817 = vpop.f32.mrb[0].mxu0
      %v818 = vadd.f32 0.0, %v817
      %v819 = vpop.f32.mrb[0].mxu0
      %v820 = vpop.f32.mrb[0].mxu0
      %v821 = vadd.f32 0.0, %v820
      %v822 = vpop.f32.mrb[0].mxu0
      %823 = vmatprep.mubr.bf16.mxu0 0
      %824 = vmatmul.mubr.bf16.gmra.mrb[0].mxu0 %v739
      %v825 = vpop.f32.mrb[0].mxu0
      %v826 = vadd.f32 0.0, %v825
      %v827 = vpop.f32.mrb[0].mxu0
      %v828 = vpop.f32.mrb[0].mxu0
      %v829 = vadd.f32 0.0, %v828
      %v830 = vpop.f32.mrb[0].mxu0
      %831 = vmatprep.mubr.bf16.mxu0 0
      %832 = vmatmul.mubr.bf16.gmra.mrb[0].mxu0 %v742
      %v833 = vpop.f32.mrb[0].mxu0
      %v834 = vadd.f32 0.0, %v833
      %v835 = vpop.f32.mrb[0].mxu0
      %v836 = vpop.f32.mrb[0].mxu0
      %v837 = vadd.f32 0.0, %v836
      %v838 = vpop.f32.mrb[0].mxu0
      %839 = vmatprep.mubr.bf16.mxu0 0
      %840 = vmatmul.mubr.bf16.gmra.mrb[0].mxu0 %v745
      %v841 = vpop.f32.mrb[0].mxu0
      %v842 = vadd.f32 0.0, %v841
      %v843 = vpop.f32.mrb[0].mxu0
      %v844 = vpop.f32.mrb[0].mxu0
      %v845 = vadd.f32 0.0, %v844
      %v846 = vpop.f32.mrb[0].mxu0
      %847 = vmatprep.mubr.bf16.mxu0 0
      %848 = vmatmul.mubr.bf16.gmra.mrb[0].mxu0 %v748
      %v849 = vpop.f32.mrb[0].mxu0
      %v850 = vadd.f32 0.0, %v849
      %v851 = vpop.f32.mrb[0].mxu0
      %v852 = vpop.f32.mrb[0].mxu0
      %v853 = vadd.f32 0.0, %v852
      %v854 = vpop.f32.mrb[0].mxu0
      %855 = vmatprep.mubr.bf16.mxu0 0
      %856 = vmatmul.mubr.bf16.gmra.mrb[0].mxu0 %v751
      %v857 = vpop.f32.mrb[0].mxu0
      %v858 = vadd.f32 0.0, %v857
      %v859 = vpop.f32.mrb[0].mxu0
      %v860 = vpop.f32.mrb[0].mxu0
      %v861 = vadd.f32 0.0, %v860
      %v862 = vpop.f32.mrb[0].mxu0
      %863 = vmatprep.mubr.bf16.mxu0 0
      %864 = vmatmul.mubr.bf16.gmra.mrb[0].mxu0 %v754
      %v865 = vpop.f32.mrb[0].mxu0
      %v866 = vadd.f32 0.0, %v865
      %v867 = vpop.f32.mrb[0].mxu0
      %v868 = vpop.f32.mrb[0].mxu0
      %v869 = vadd.f32 0.0, %v868
      %v870 = vpop.f32.mrb[0].mxu0
      %871 = vmatprep.mubr.bf16.mxu0 0
      %872 = vmatmul.mubr.bf16.gmra.mrb[0].mxu0 %v757
      %v873 = vpop.f32.mrb[0].mxu0
      %v874 = vadd.f32 0.0, %v873
      %v875 = vpop.f32.mrb[0].mxu0
      %v876 = vpop.f32.mrb[0].mxu0
      %v877 = vadd.f32 0.0, %v876
      %v878 = vpop.f32.mrb[0].mxu0
      %879 = vmatprep.mubr.bf16.mxu0 0
      %880 = vmatmul.mubr.bf16.gmra.mrb[0].mxu0 %v760
      %v881 = vpop.f32.mrb[0].mxu0
      %v882 = vadd.f32 0.0, %v881
      %v883 = vpop.f32.mrb[0].mxu0
      %v884 = vpop.f32.mrb[0].mxu0
      %v885 = vadd.f32 0.0, %v884
      %v886 = vpop.f32.mrb[0].mxu0
      %887 = vmatprep.mubr.bf16.mxu0 0
      %888 = vmatmul.mubr.bf16.gmra.mrb[0].mxu0 %v763
      %v889 = vpop.f32.mrb[0].mxu0
      %v890 = vadd.f32 0.0, %v889
      %v891 = vpop.f32.mrb[0].mxu0
      %v892 = vpop.f32.mrb[0].mxu0
      %v893 = vadd.f32 0.0, %v892
      %v894 = vpop.f32.mrb[0].mxu0
      %895 = vmatprep.mubr.bf16.mxu0 0
      %896 = vmatmul.mubr.bf16.gmra.mrb[0].mxu0 %v766
      %v897 = vpop.f32.mrb[0].mxu0
      %v898 = vadd.f32 0.0, %v897
      %v899 = vpop.f32.mrb[0].mxu0
      %v900 = vpop.f32.mrb[0].mxu0
      %v901 = vadd.f32 0.0, %v900
      %v902 = vpop.f32.mrb[0].mxu0
      %903 = vmatprep.mubr.bf16.mxu0 0
      %904 = vmatmul.mubr.bf16.gmra.mrb[0].mxu0 %v769
      %v905 = vpop.f32.mrb[0].mxu0
      %v906 = vadd.f32 0.0, %v905
      %v907 = vpop.f32.mrb[0].mxu0
      %v908 = vpop.f32.mrb[0].mxu0
      %v909 = vadd.f32 0.0, %v908
      %v910 = vpop.f32.mrb[0].mxu0
      %911 = vmatprep.mubr.bf16.mxu0 0
      %912 = vmatmul.mubr.bf16.gmra.mrb[0].mxu0 %v772
      %v913 = vpop.f32.mrb[0].mxu0
      %v914 = vadd.f32 0.0, %v913
      %v915 = vpop.f32.mrb[0].mxu0
      %v916 = vpop.f32.mrb[0].mxu0
      %v917 = vadd.f32 0.0, %v916
      %v918 = vpop.f32.mrb[0].mxu0
      %919 = vmatprep.mubr.bf16.mxu0 0
      %920 = vmatmul.mubr.bf16.gmra.mrb[0].mxu0 %v775
      %v921 = vpop.f32.mrb[0].mxu0
      %v922 = vadd.f32 0.0, %v921
      %v923 = vpop.f32.mrb[0].mxu0
      %v924 = vpop.f32.mrb[0].mxu0
      %v925 = vadd.f32 0.0, %v924
      %v926 = vpop.f32.mrb[0].mxu0
      %927 = vmatprep.mubr.bf16.mxu0 0
      %928 = vmatmul.mubr.bf16.gmra.mrb[0].mxu0 %v778
      %v929 = vpop.f32.mrb[0].mxu0
      %v930 = vadd.f32 0.0, %v929
      %v931 = vpop.f32.mrb[0].mxu0
      %v932 = vpop.f32.mrb[0].mxu0
      %v933 = vadd.f32 0.0, %v932
      %v934 = vpop.f32.mrb[0].mxu0
      %935 = vmatprep.mubr.bf16.mxu0 0
      %936 = vmatmul.mubr.bf16.gmra.mrb[0].mxu0 %v781
      %v937 = vpop.f32.mrb[0].mxu0
      %v938 = vadd.f32 0.0, %v937
      %v939 = vpop.f32.mrb[0].mxu0
      %v940 = vpop.f32.mrb[0].mxu0
      %v941 = vadd.f32 0.0, %v940
      %v942 = vpop.f32.mrb[0].mxu0
      %943 = vdwg.mxu0
      %v976 = vunpack.c.l.b16 %v240
      %v977 = vunpack.c.l.b16 %v241
      %v978 = vunpack.c.l.b16 %v242
      %v979 = vunpack.c.l.b16 %v243
      %v980 = vunpack.c.l.b16 %v244
      %v981 = vunpack.c.l.b16 %v245
      %v982 = vunpack.c.l.b16 %v246
      %v983 = vunpack.c.l.b16 %v247
      %v984 = vunpack.c.l.b16 %v248
      %v985 = vunpack.c.l.b16 %v249
      %v986 = vunpack.c.l.b16 %v250
      %v987 = vunpack.c.l.b16 %v251
      %v988 = vunpack.c.l.b16 %v252
      %v989 = vunpack.c.l.b16 %v253
      %v990 = vunpack.c.l.b16 %v254
      %v991 = vunpack.c.l.b16 %v255
      %v992 = vunpack.c.l.b16 %v256
      %v993 = vunpack.c.l.b16 %v257
      %v994 = vunpack.c.l.b16 %v258
      %v995 = vunpack.c.l.b16 %v259
      %v996 = vunpack.c.l.b16 %v260
      %v997 = vunpack.c.l.b16 %v261
      %v998 = vunpack.c.l.b16 %v262
      %v999 = vunpack.c.l.b16 %v263
      %v1000 = vunpack.c.l.b16 %v264
      %v1001 = vunpack.c.l.b16 %v265
      %v1002 = vunpack.c.l.b16 %v266
      %v1003 = vunpack.c.l.b16 %v267
      %v1004 = vunpack.c.l.b16 %v268
      %v1005 = vunpack.c.l.b16 %v269
      %v1006 = vunpack.c.l.b16 %v270
      %v1007 = vunpack.c.l.b16 %v271
      %v1008 = vpack.c.b16 %v977, %v976
      %v1009 = vpack.c.b16 %v979, %v978
      %v1010 = vpack.c.b16 %v981, %v980
      %v1011 = vpack.c.b16 %v983, %v982
      %v1012 = vpack.c.b16 %v985, %v984
      %v1013 = vpack.c.b16 %v987, %v986
      %v1014 = vpack.c.b16 %v989, %v988
      %v1015 = vpack.c.b16 %v991, %v990
      %v1016 = vpack.c.b16 %v993, %v992
      %v1017 = vpack.c.b16 %v995, %v994
      %v1018 = vpack.c.b16 %v997, %v996
      %v1019 = vpack.c.b16 %v999, %v998
      %v1020 = vpack.c.b16 %v1001, %v1000
      %v1021 = vpack.c.b16 %v1003, %v1002
      %v1022 = vpack.c.b16 %v1005, %v1004
      %v1023 = vpack.c.b16 %v1007, %v1006
      %v1026 = vunpack.c.l.b16 %v272
      %v1027 = vunpack.c.l.b16 %v273
      %v1028 = vpack.c.b16 %v1027, %v1026
      %v1031 = vsel %vm734, %v1008, 0
      %v1034 = vsel %vm734, %v1009, 0
      %v1037 = vsel %vm734, %v1010, 0
      %v1040 = vsel %vm734, %v1011, 0
      %v1043 = vsel %vm734, %v1012, 0
      %v1046 = vsel %vm734, %v1013, 0
      %v1049 = vsel %vm734, %v1014, 0
      %v1052 = vsel %vm734, %v1015, 0
      %v1055 = vsel %vm734, %v1016, 0
      %v1058 = vsel %vm734, %v1017, 0
      %v1061 = vsel %vm734, %v1018, 0
      %v1064 = vsel %vm734, %v1019, 0
      %v1067 = vsel %vm734, %v1020, 0
      %v1070 = vsel %vm734, %v1021, 0
      %v1073 = vsel %vm734, %v1022, 0
      %v1076 = vsel %vm734, %v1023, 0
      %1078 = vmatprep.subr.bf16.mxu0 0
      %1079 = vmatpush1.bf16.msra.mxu0 %v1028
      %1080 = vmatprep.subr.bf16.mxu0 0
      %1081 = vmatpush1.bf16.msra.mxu0 0
      %1082 = vmatprep.subr.bf16.mxu0 0
      %1083 = vmatpush1.bf16.msra.mxu0 0
      %1084 = vmatprep.subr.bf16.mxu0 0
      %1085 = vmatpush1.bf16.msra.mxu0 0
      %1086 = vmatprep.subr.bf16.mxu0 0
      %1087 = vmatpush1.bf16.msra.mxu0 0
      %1088 = vmatprep.subr.bf16.mxu0 0
      %1089 = vmatpush1.bf16.msra.mxu0 0
      %1090 = vmatprep.subr.bf16.mxu0 0
      %1091 = vmatpush1.bf16.msra.mxu0 0
      %1092 = vmatprep.subr.bf16.mxu0 0
      %1093 = vmatpush1.bf16.msra.mxu0 0
      %1094 = vmatprep.subr.bf16.mxu0 0
      %1095 = vmatpush1.bf16.msra.mxu0 0
      %1096 = vmatprep.subr.bf16.mxu0 0
      %1097 = vmatpush1.bf16.msra.mxu0 0
      %1098 = vmatprep.subr.bf16.mxu0 0
      %1099 = vmatpush1.bf16.msra.mxu0 0
      %1100 = vmatprep.subr.bf16.mxu0 0
      %1101 = vmatpush1.bf16.msra.mxu0 0
      %1102 = vmatprep.subr.bf16.mxu0 0
      %1103 = vmatpush1.bf16.msra.mxu0 0
      %1104 = vmatprep.subr.bf16.mxu0 0
      %1105 = vmatpush1.bf16.msra.mxu0 0
      %1106 = vmatprep.subr.bf16.mxu0 0
      %1107 = vmatpush1.bf16.msra.mxu0 0
      %1108 = vmatprep.subr.bf16.mxu0 0
      %1109 = vmatpush1.bf16.msra.mxu0 0
      %1110 = vmatprep.mubr.bf16.mxu0 0
      %1111 = vmatmul.mubr.bf16.gmra.mrb[0].mxu0 %v1031
      %v1112 = vpop.f32.mrb[0].mxu0
      %v1113 = vadd.f32 %v818, %v1112
      %v1114 = vpop.f32.mrb[0].mxu0
      %v1115 = vpop.f32.mrb[0].mxu0
      %v1116 = vadd.f32 %v821, %v1115
      %v1117 = vpop.f32.mrb[0].mxu0
      %1118 = vmatprep.mubr.bf16.mxu0 0
      %1119 = vmatmul.mubr.bf16.gmra.mrb[0].mxu0 %v1034
      %v1120 = vpop.f32.mrb[0].mxu0
      %v1121 = vadd.f32 %v826, %v1120
      %v1122 = vpop.f32.mrb[0].mxu0
      %v1123 = vpop.f32.mrb[0].mxu0
      %v1124 = vadd.f32 %v829, %v1123
      %v1125 = vpop.f32.mrb[0].mxu0
      %1126 = vmatprep.mubr.bf16.mxu0 0
      %1127 = vmatmul.mubr.bf16.gmra.mrb[0].mxu0 %v1037
      %v1128 = vpop.f32.mrb[0].mxu0
      %v1129 = vadd.f32 %v834, %v1128
      %v1130 = vpop.f32.mrb[0].mxu0
      %v1131 = vpop.f32.mrb[0].mxu0
      %v1132 = vadd.f32 %v837, %v1131
      %v1133 = vpop.f32.mrb[0].mxu0
      %1134 = vmatprep.mubr.bf16.mxu0 0
      %1135 = vmatmul.mubr.bf16.gmra.mrb[0].mxu0 %v1040
      %v1136 = vpop.f32.mrb[0].mxu0
      %v1137 = vadd.f32 %v842, %v1136
      %v1138 = vpop.f32.mrb[0].mxu0
      %v1139 = vpop.f32.mrb[0].mxu0
      %v1140 = vadd.f32 %v845, %v1139
      %v1141 = vpop.f32.mrb[0].mxu0
      %1142 = vmatprep.mubr.bf16.mxu0 0
      %1143 = vmatmul.mubr.bf16.gmra.mrb[0].mxu0 %v1043
      %v1144 = vpop.f32.mrb[0].mxu0
      %v1145 = vadd.f32 %v850, %v1144
      %v1146 = vpop.f32.mrb[0].mxu0
      %v1147 = vpop.f32.mrb[0].mxu0
      %v1148 = vadd.f32 %v853, %v1147
      %v1149 = vpop.f32.mrb[0].mxu0
      %1150 = vmatprep.mubr.bf16.mxu0 0
      %1151 = vmatmul.mubr.bf16.gmra.mrb[0].mxu0 %v1046
      %v1152 = vpop.f32.mrb[0].mxu0
      %v1153 = vadd.f32 %v858, %v1152
      %v1154 = vpop.f32.mrb[0].mxu0
      %v1155 = vpop.f32.mrb[0].mxu0
      %v1156 = vadd.f32 %v861, %v1155
      %v1157 = vpop.f32.mrb[0].mxu0
      %1158 = vmatprep.mubr.bf16.mxu0 0
      %1159 = vmatmul.mubr.bf16.gmra.mrb[0].mxu0 %v1049
      %v1160 = vpop.f32.mrb[0].mxu0
      %v1161 = vadd.f32 %v866, %v1160
      %v1162 = vpop.f32.mrb[0].mxu0
      %v1163 = vpop.f32.mrb[0].mxu0
      %v1164 = vadd.f32 %v869, %v1163
      %v1165 = vpop.f32.mrb[0].mxu0
      %1166 = vmatprep.mubr.bf16.mxu0 0
      %1167 = vmatmul.mubr.bf16.gmra.mrb[0].mxu0 %v1052
      %v1168 = vpop.f32.mrb[0].mxu0
      %v1169 = vadd.f32 %v874, %v1168
      %v1170 = vpop.f32.mrb[0].mxu0
      %v1171 = vpop.f32.mrb[0].mxu0
      %v1172 = vadd.f32 %v877, %v1171
      %v1173 = vpop.f32.mrb[0].mxu0
      %1174 = vmatprep.mubr.bf16.mxu0 0
      %1175 = vmatmul.mubr.bf16.gmra.mrb[0].mxu0 %v1055
      %v1176 = vpop.f32.mrb[0].mxu0
      %v1177 = vadd.f32 %v882, %v1176
      %v1178 = vpop.f32.mrb[0].mxu0
      %v1179 = vpop.f32.mrb[0].mxu0
      %v1180 = vadd.f32 %v885, %v1179
      %v1181 = vpop.f32.mrb[0].mxu0
      %1182 = vmatprep.mubr.bf16.mxu0 0
      %1183 = vmatmul.mubr.bf16.gmra.mrb[0].mxu0 %v1058
      %v1184 = vpop.f32.mrb[0].mxu0
      %v1185 = vadd.f32 %v890, %v1184
      %v1186 = vpop.f32.mrb[0].mxu0
      %v1187 = vpop.f32.mrb[0].mxu0
      %v1188 = vadd.f32 %v893, %v1187
      %v1189 = vpop.f32.mrb[0].mxu0
      %1190 = vmatprep.mubr.bf16.mxu0 0
      %1191 = vmatmul.mubr.bf16.gmra.mrb[0].mxu0 %v1061
      %v1192 = vpop.f32.mrb[0].mxu0
      %v1193 = vadd.f32 %v898, %v1192
      %v1194 = vpop.f32.mrb[0].mxu0
      %v1195 = vpop.f32.mrb[0].mxu0
      %v1196 = vadd.f32 %v901, %v1195
      %v1197 = vpop.f32.mrb[0].mxu0
      %1198 = vmatprep.mubr.bf16.mxu0 0
      %1199 = vmatmul.mubr.bf16.gmra.mrb[0].mxu0 %v1064
      %v1200 = vpop.f32.mrb[0].mxu0
      %v1201 = vadd.f32 %v906, %v1200
      %v1202 = vpop.f32.mrb[0].mxu0
      %v1203 = vpop.f32.mrb[0].mxu0
      %v1204 = vadd.f32 %v909, %v1203
      %v1205 = vpop.f32.mrb[0].mxu0
      %1206 = vmatprep.mubr.bf16.mxu0 0
      %1207 = vmatmul.mubr.bf16.gmra.mrb[0].mxu0 %v1067
      %v1208 = vpop.f32.mrb[0].mxu0
      %v1209 = vadd.f32 %v914, %v1208
      %v1210 = vpop.f32.mrb[0].mxu0
      %v1211 = vpop.f32.mrb[0].mxu0
      %v1212 = vadd.f32 %v917, %v1211
      %v1213 = vpop.f32.mrb[0].mxu0
      %1214 = vmatprep.mubr.bf16.mxu0 0
      %1215 = vmatmul.mubr.bf16.gmra.mrb[0].mxu0 %v1070
      %v1216 = vpop.f32.mrb[0].mxu0
      %v1217 = vadd.f32 %v922, %v1216
      %v1218 = vpop.f32.mrb[0].mxu0
      %v1219 = vpop.f32.mrb[0].mxu0
      %v1220 = vadd.f32 %v925, %v1219
      %v1221 = vpop.f32.mrb[0].mxu0
      %1222 = vmatprep.mubr.bf16.mxu0 0
      %1223 = vmatmul.mubr.bf16.gmra.mrb[0].mxu0 %v1073
      %v1224 = vpop.f32.mrb[0].mxu0
      %v1225 = vadd.f32 %v930, %v1224
      %v1226 = vpop.f32.mrb[0].mxu0
      %v1227 = vpop.f32.mrb[0].mxu0
      %v1228 = vadd.f32 %v933, %v1227
      %v1229 = vpop.f32.mrb[0].mxu0
      %1230 = vmatprep.mubr.bf16.mxu0 0
      %1231 = vmatmul.mubr.bf16.gmra.mrb[0].mxu0 %v1076
      %v1232 = vpop.f32.mrb[0].mxu0
      %v1233 = vadd.f32 %v938, %v1232
      %v1234 = vpop.f32.mrb[0].mxu0
      %v1235 = vpop.f32.mrb[0].mxu0
      %v1236 = vadd.f32 %v941, %v1235
      %v1237 = vpop.f32.mrb[0].mxu0
      %1238 = vdwg.mxu0
      %v1239 = vld [vmem:[%s218] sm:$0xe]
      %v1240 = vld [vmem:[%s218 + $0xc] sm:$0xe]
      %v1241 = vld [vmem:[%s218 + $0x18] sm:$0xe]
      %v1242 = vld [vmem:[%s218 + $0x24] sm:$0xe]
      %v1243 = vld [vmem:[%s218 + $0x30] sm:$0xe]
      %v1244 = vld [vmem:[%s218 + $0x3c] sm:$0xe]
      %v1245 = vld [vmem:[%s218 + $0x48] sm:$0xe]
      %v1246 = vld [vmem:[%s218 + $0x54] sm:$0xe]
      %v1247 = vld [vmem:[%s218 + $0x60] sm:$0xe]
      %v1248 = vld [vmem:[%s218 + $0x6c] sm:$0xe]
      %v1249 = vld [vmem:[%s218 + $0x78] sm:$0xe]
      %v1250 = vld [vmem:[%s218 + $0x84] sm:$0xe]
      %v1251 = vld [vmem:[%s218 + $0x90] sm:$0xe]
      %v1252 = vld [vmem:[%s218 + $0x9c] sm:$0xe]
      %v1253 = vld [vmem:[%s218 + $0xa8] sm:$0xe]
      %v1254 = vld [vmem:[%s218 + $0xb4] sm:$0xe]
      %vm1287 = vcmask 1042432
      %vm1288 = vcmask 1046532
      %vm1289 = vmor %vm1287, %vm1288
      %v1290 = vrot.slane %v1239, 5
      %v1291 = vrot.slane %v1290, 4
      %v1292 = vrot.slane %v241, 5
      %v1293 = vsel %vm1289, %v1291, %v1292
      %v1294 = vrot.slane %v1292, 4
      %v1295 = vrot.slane %v274, 5
      %v1296 = vsel %vm1289, %v1294, %v1295
      %v1297 = vrot.slane %v1240, 5
      %v1298 = vrot.slane %v1297, 4
      %v1299 = vrot.slane %v243, 5
      %v1300 = vsel %vm1289, %v1298, %v1299
      %v1301 = vrot.slane %v1299, 4
      %v1302 = vrot.slane %v275, 5
      %v1303 = vsel %vm1289, %v1301, %v1302
      %v1304 = vrot.slane %v1241, 5
      %v1305 = vrot.slane %v1304, 4
      %v1306 = vrot.slane %v245, 5
      %v1307 = vsel %vm1289, %v1305, %v1306
      %v1308 = vrot.slane %v1306, 4
      %v1309 = vrot.slane %v276, 5
      %v1310 = vsel %vm1289, %v1308, %v1309
      %v1311 = vrot.slane %v1242, 5
      %v1312 = vrot.slane %v1311, 4
      %v1313 = vrot.slane %v247, 5
      %v1314 = vsel %vm1289, %v1312, %v1313
      %v1315 = vrot.slane %v1313, 4
      %v1316 = vrot.slane %v277, 5
      %v1317 = vsel %vm1289, %v1315, %v1316
      %v1318 = vrot.slane %v1243, 5
      %v1319 = vrot.slane %v1318, 4
      %v1320 = vrot.slane %v249, 5
      %v1321 = vsel %vm1289, %v1319, %v1320
      %v1322 = vrot.slane %v1320, 4
      %v1323 = vrot.slane %v278, 5
      %v1324 = vsel %vm1289, %v1322, %v1323
      %v1325 = vrot.slane %v1244, 5
      %v1326 = vrot.slane %v1325, 4
      %v1327 = vrot.slane %v251, 5
      %v1328 = vsel %vm1289, %v1326, %v1327
      %v1329 = vrot.slane %v1327, 4
      %v1330 = vrot.slane %v279, 5
      %v1331 = vsel %vm1289, %v1329, %v1330
      %v1332 = vrot.slane %v1245, 5
      %v1333 = vrot.slane %v1332, 4
      %v1334 = vrot.slane %v253, 5
      %v1335 = vsel %vm1289, %v1333, %v1334
      %v1336 = vrot.slane %v1334, 4
      %v1337 = vrot.slane %v280, 5
      %v1338 = vsel %vm1289, %v1336, %v1337
      %v1339 = vrot.slane %v1246, 5
      %v1340 = vrot.slane %v1339, 4
      %v1341 = vrot.slane %v255, 5
      %v1342 = vsel %vm1289, %v1340, %v1341
      %v1343 = vrot.slane %v1341, 4
      %v1344 = vrot.slane %v281, 5
      %v1345 = vsel %vm1289, %v1343, %v1344
      %v1346 = vrot.slane %v1247, 5
      %v1347 = vrot.slane %v1346, 4
      %v1348 = vrot.slane %v257, 5
      %v1349 = vsel %vm1289, %v1347, %v1348
      %v1350 = vrot.slane %v1348, 4
      %v1351 = vrot.slane %v282, 5
      %v1352 = vsel %vm1289, %v1350, %v1351
      %v1353 = vrot.slane %v1248, 5
      %v1354 = vrot.slane %v1353, 4
      %v1355 = vrot.slane %v259, 5
      %v1356 = vsel %vm1289, %v1354, %v1355
      %v1357 = vrot.slane %v1355, 4
      %v1358 = vrot.slane %v283, 5
      %v1359 = vsel %vm1289, %v1357, %v1358
      %v1360 = vrot.slane %v1249, 5
      %v1361 = vrot.slane %v1360, 4
      %v1362 = vrot.slane %v261, 5
      %v1363 = vsel %vm1289, %v1361, %v1362
      %v1364 = vrot.slane %v1362, 4
      %v1365 = vrot.slane %v284, 5
      %v1366 = vsel %vm1289, %v1364, %v1365
      %v1367 = vrot.slane %v1250, 5
      %v1368 = vrot.slane %v1367, 4
      %v1369 = vrot.slane %v263, 5
      %v1370 = vsel %vm1289, %v1368, %v1369
      %v1371 = vrot.slane %v1369, 4
      %v1372 = vrot.slane %v285, 5
      %v1373 = vsel %vm1289, %v1371, %v1372
      %v1374 = vrot.slane %v1251, 5
      %v1375 = vrot.slane %v1374, 4
      %v1376 = vrot.slane %v265, 5
      %v1377 = vsel %vm1289, %v1375, %v1376
      %v1378 = vrot.slane %v1376, 4
      %v1379 = vrot.slane %v286, 5
      %v1380 = vsel %vm1289, %v1378, %v1379
      %v1381 = vrot.slane %v1252, 5
      %v1382 = vrot.slane %v1381, 4
      %v1383 = vrot.slane %v267, 5
      %v1384 = vsel %vm1289, %v1382, %v1383
      %v1385 = vrot.slane %v1383, 4
      %v1386 = vrot.slane %v287, 5
      %v1387 = vsel %vm1289, %v1385, %v1386
      %v1388 = vrot.slane %v1253, 5
      %v1389 = vrot.slane %v1388, 4
      %v1390 = vrot.slane %v269, 5
      %v1391 = vsel %vm1289, %v1389, %v1390
      %v1392 = vrot.slane %v1390, 4
      %v1393 = vrot.slane %v288, 5
      %v1394 = vsel %vm1289, %v1392, %v1393
      %v1395 = vrot.slane %v1254, 5
      %v1396 = vrot.slane %v1395, 4
      %v1397 = vrot.slane %v271, 5
      %v1398 = vsel %vm1289, %v1396, %v1397
      %v1399 = vrot.slane %v1397, 4
      %v1400 = vrot.slane %v289, 5
      %v1401 = vsel %vm1289, %v1399, %v1400
      %s1402 = scalar_lea.vmem %s222, 16
      %v1403 = vld [vmem:[%s1402] sm:$0xf]
      %v1404 = vld [vmem:[%s1402 + $0x4] sm:$0xf]
      %v1405 = vunpack.c.l.b16 %v1293
      %v1406 = vunpack.c.l.b16 %v1296
      %v1407 = vunpack.c.l.b16 %v1300
      %v1408 = vunpack.c.l.b16 %v1303
      %v1409 = vunpack.c.l.b16 %v1307
      %v1410 = vunpack.c.l.b16 %v1310
      %v1411 = vunpack.c.l.b16 %v1314
      %v1412 = vunpack.c.l.b16 %v1317
      %v1413 = vunpack.c.l.b16 %v1321
      %v1414 = vunpack.c.l.b16 %v1324
      %v1415 = vunpack.c.l.b16 %v1328
      %v1416 = vunpack.c.l.b16 %v1331
      %v1417 = vunpack.c.l.b16 %v1335
      %v1418 = vunpack.c.l.b16 %v1338
      %v1419 = vunpack.c.l.b16 %v1342
      %v1420 = vunpack.c.l.b16 %v1345
      %v1421 = vunpack.c.l.b16 %v1349
      %v1422 = vunpack.c.l.b16 %v1352
      %v1423 = vunpack.c.l.b16 %v1356
      %v1424 = vunpack.c.l.b16 %v1359
      %v1425 = vunpack.c.l.b16 %v1363
      %v1426 = vunpack.c.l.b16 %v1366
      %v1427 = vunpack.c.l.b16 %v1370
      %v1428 = vunpack.c.l.b16 %v1373
      %v1429 = vunpack.c.l.b16 %v1377
      %v1430 = vunpack.c.l.b16 %v1380
      %v1431 = vunpack.c.l.b16 %v1384
      %v1432 = vunpack.c.l.b16 %v1387
      %v1433 = vunpack.c.l.b16 %v1391
      %v1434 = vunpack.c.l.b16 %v1394
      %v1435 = vunpack.c.l.b16 %v1398
      %v1436 = vunpack.c.l.b16 %v1401
      %v1437 = vpack.c.b16 %v1406, %v1405
      %v1438 = vpack.c.b16 %v1408, %v1407
      %v1439 = vpack.c.b16 %v1410, %v1409
      %v1440 = vpack.c.b16 %v1412, %v1411
      %v1441 = vpack.c.b16 %v1414, %v1413
      %v1442 = vpack.c.b16 %v1416, %v1415
      %v1443 = vpack.c.b16 %v1418, %v1417
      %v1444 = vpack.c.b16 %v1420, %v1419
      %v1445 = vpack.c.b16 %v1422, %v1421
      %v1446 = vpack.c.b16 %v1424, %v1423
      %v1447 = vpack.c.b16 %v1426, %v1425
      %v1448 = vpack.c.b16 %v1428, %v1427
      %v1449 = vpack.c.b16 %v1430, %v1429
      %v1450 = vpack.c.b16 %v1432, %v1431
      %v1451 = vpack.c.b16 %v1434, %v1433
      %v1452 = vpack.c.b16 %v1436, %v1435
      %v1455 = vunpack.c.l.b16 %v1403
      %v1456 = vunpack.c.l.b16 %v1404
      %v1457 = vpack.c.b16 %v1456, %v1455
      %v1460 = vsel %vm734, %v1437, 0
      %v1463 = vsel %vm734, %v1438, 0
      %v1466 = vsel %vm734, %v1439, 0
      %v1469 = vsel %vm734, %v1440, 0
      %v1472 = vsel %vm734, %v1441, 0
      %v1475 = vsel %vm734, %v1442, 0
      %v1478 = vsel %vm734, %v1443, 0
      %v1481 = vsel %vm734, %v1444, 0
      %v1484 = vsel %vm734, %v1445, 0
      %v1487 = vsel %vm734, %v1446, 0
      %v1490 = vsel %vm734, %v1447, 0
      %v1493 = vsel %vm734, %v1448, 0
      %v1496 = vsel %vm734, %v1449, 0
      %v1499 = vsel %vm734, %v1450, 0
      %v1502 = vsel %vm734, %v1451, 0
      %v1505 = vsel %vm734, %v1452, 0
      %1507 = vmatprep.subr.bf16.mxu0 0
      %1508 = vmatpush1.bf16.msra.mxu0 %v1457
      %1509 = vmatprep.subr.bf16.mxu0 0
      %1510 = vmatpush1.bf16.msra.mxu0 0
      %1511 = vmatprep.subr.bf16.mxu0 0
      %1512 = vmatpush1.bf16.msra.mxu0 0
      %1513 = vmatprep.subr.bf16.mxu0 0
      %1514 = vmatpush1.bf16.msra.mxu0 0
      %1515 = vmatprep.subr.bf16.mxu0 0
      %1516 = vmatpush1.bf16.msra.mxu0 0
      %1517 = vmatprep.subr.bf16.mxu0 0
      %1518 = vmatpush1.bf16.msra.mxu0 0
      %1519 = vmatprep.subr.bf16.mxu0 0
      %1520 = vmatpush1.bf16.msra.mxu0 0
      %1521 = vmatprep.subr.bf16.mxu0 0
      %1522 = vmatpush1.bf16.msra.mxu0 0
      %1523 = vmatprep.subr.bf16.mxu0 0
      %1524 = vmatpush1.bf16.msra.mxu0 0
      %1525 = vmatprep.subr.bf16.mxu0 0
      %1526 = vmatpush1.bf16.msra.mxu0 0
      %1527 = vmatprep.subr.bf16.mxu0 0
      %1528 = vmatpush1.bf16.msra.mxu0 0
      %1529 = vmatprep.subr.bf16.mxu0 0
      %1530 = vmatpush1.bf16.msra.mxu0 0
      %1531 = vmatprep.subr.bf16.mxu0 0
      %1532 = vmatpush1.bf16.msra.mxu0 0
      %1533 = vmatprep.subr.bf16.mxu0 0
      %1534 = vmatpush1.bf16.msra.mxu0 0
      %1535 = vmatprep.subr.bf16.mxu0 0
      %1536 = vmatpush1.bf16.msra.mxu0 0
      %1537 = vmatprep.subr.bf16.mxu0 0
      %1538 = vmatpush1.bf16.msra.mxu0 0
      %1539 = vmatprep.mubr.bf16.mxu0 0
      %1540 = vmatmul.mubr.bf16.gmra.mrb[0].mxu0 %v1460
      %v1541 = vpop.f32.mrb[0].mxu0
      %v1542 = vadd.f32 0.0, %v1541
      %v1543 = vpop.f32.mrb[0].mxu0
      %v1544 = vpop.f32.mrb[0].mxu0
      %v1545 = vadd.f32 0.0, %v1544
      %v1546 = vpop.f32.mrb[0].mxu0
      %1547 = vmatprep.mubr.bf16.mxu0 0
      %1548 = vmatmul.mubr.bf16.gmra.mrb[0].mxu0 %v1463
      %v1549 = vpop.f32.mrb[0].mxu0
      %v1550 = vadd.f32 0.0, %v1549
      %v1551 = vpop.f32.mrb[0].mxu0
      %v1552 = vpop.f32.mrb[0].mxu0
      %v1553 = vadd.f32 0.0, %v1552
      %v1554 = vpop.f32.mrb[0].mxu0
      %1555 = vmatprep.mubr.bf16.mxu0 0
      %1556 = vmatmul.mubr.bf16.gmra.mrb[0].mxu0 %v1466
      %v1557 = vpop.f32.mrb[0].mxu0
      %v1558 = vadd.f32 0.0, %v1557
      %v1559 = vpop.f32.mrb[0].mxu0
      %v1560 = vpop.f32.mrb[0].mxu0
      %v1561 = vadd.f32 0.0, %v1560
      %v1562 = vpop.f32.mrb[0].mxu0
      %1563 = vmatprep.mubr.bf16.mxu0 0
      %1564 = vmatmul.mubr.bf16.gmra.mrb[0].mxu0 %v1469
      %v1565 = vpop.f32.mrb[0].mxu0
      %v1566 = vadd.f32 0.0, %v1565
      %v1567 = vpop.f32.mrb[0].mxu0
      %v1568 = vpop.f32.mrb[0].mxu0
      %v1569 = vadd.f32 0.0, %v1568
      %v1570 = vpop.f32.mrb[0].mxu0
      %1571 = vmatprep.mubr.bf16.mxu0 0
      %1572 = vmatmul.mubr.bf16.gmra.mrb[0].mxu0 %v1472
      %v1573 = vpop.f32.mrb[0].mxu0
      %v1574 = vadd.f32 0.0, %v1573
      %v1575 = vpop.f32.mrb[0].mxu0
      %v1576 = vpop.f32.mrb[0].mxu0
      %v1577 = vadd.f32 0.0, %v1576
      %v1578 = vpop.f32.mrb[0].mxu0
      %1579 = vmatprep.mubr.bf16.mxu0 0
      %1580 = vmatmul.mubr.bf16.gmra.mrb[0].mxu0 %v1475
      %v1581 = vpop.f32.mrb[0].mxu0
      %v1582 = vadd.f32 0.0, %v1581
      %v1583 = vpop.f32.mrb[0].mxu0
      %v1584 = vpop.f32.mrb[0].mxu0
      %v1585 = vadd.f32 0.0, %v1584
      %v1586 = vpop.f32.mrb[0].mxu0
      %1587 = vmatprep.mubr.bf16.mxu0 0
      %1588 = vmatmul.mubr.bf16.gmra.mrb[0].mxu0 %v1478
      %v1589 = vpop.f32.mrb[0].mxu0
      %v1590 = vadd.f32 0.0, %v1589
      %v1591 = vpop.f32.mrb[0].mxu0
      %v1592 = vpop.f32.mrb[0].mxu0
      %v1593 = vadd.f32 0.0, %v1592
      %v1594 = vpop.f32.mrb[0].mxu0
      %1595 = vmatprep.mubr.bf16.mxu0 0
      %1596 = vmatmul.mubr.bf16.gmra.mrb[0].mxu0 %v1481
      %v1597 = vpop.f32.mrb[0].mxu0
      %v1598 = vadd.f32 0.0, %v1597
      %v1599 = vpop.f32.mrb[0].mxu0
      %v1600 = vpop.f32.mrb[0].mxu0
      %v1601 = vadd.f32 0.0, %v1600
      %v1602 = vpop.f32.mrb[0].mxu0
      %1603 = vmatprep.mubr.bf16.mxu0 0
      %1604 = vmatmul.mubr.bf16.gmra.mrb[0].mxu0 %v1484
      %v1605 = vpop.f32.mrb[0].mxu0
      %v1606 = vadd.f32 0.0, %v1605
      %v1607 = vpop.f32.mrb[0].mxu0
      %v1608 = vpop.f32.mrb[0].mxu0
      %v1609 = vadd.f32 0.0, %v1608
      %v1610 = vpop.f32.mrb[0].mxu0
      %1611 = vmatprep.mubr.bf16.mxu0 0
      %1612 = vmatmul.mubr.bf16.gmra.mrb[0].mxu0 %v1487
      %v1613 = vpop.f32.mrb[0].mxu0
      %v1614 = vadd.f32 0.0, %v1613
      %v1615 = vpop.f32.mrb[0].mxu0
      %v1616 = vpop.f32.mrb[0].mxu0
      %v1617 = vadd.f32 0.0, %v1616
      %v1618 = vpop.f32.mrb[0].mxu0
      %1619 = vmatprep.mubr.bf16.mxu0 0
      %1620 = vmatmul.mubr.bf16.gmra.mrb[0].mxu0 %v1490
      %v1621 = vpop.f32.mrb[0].mxu0
      %v1622 = vadd.f32 0.0, %v1621
      %v1623 = vpop.f32.mrb[0].mxu0
      %v1624 = vpop.f32.mrb[0].mxu0
      %v1625 = vadd.f32 0.0, %v1624
      %v1626 = vpop.f32.mrb[0].mxu0
      %1627 = vmatprep.mubr.bf16.mxu0 0
      %1628 = vmatmul.mubr.bf16.gmra.mrb[0].mxu0 %v1493
      %v1629 = vpop.f32.mrb[0].mxu0
      %v1630 = vadd.f32 0.0, %v1629
      %v1631 = vpop.f32.mrb[0].mxu0
      %v1632 = vpop.f32.mrb[0].mxu0
      %v1633 = vadd.f32 0.0, %v1632
      %v1634 = vpop.f32.mrb[0].mxu0
      %1635 = vmatprep.mubr.bf16.mxu0 0
      %1636 = vmatmul.mubr.bf16.gmra.mrb[0].mxu0 %v1496
      %v1637 = vpop.f32.mrb[0].mxu0
      %v1638 = vadd.f32 0.0, %v1637
      %v1639 = vpop.f32.mrb[0].mxu0
      %v1640 = vpop.f32.mrb[0].mxu0
      %v1641 = vadd.f32 0.0, %v1640
      %v1642 = vpop.f32.mrb[0].mxu0
      %1643 = vmatprep.mubr.bf16.mxu0 0
      %1644 = vmatmul.mubr.bf16.gmra.mrb[0].mxu0 %v1499
      %v1645 = vpop.f32.mrb[0].mxu0
      %v1646 = vadd.f32 0.0, %v1645
      %v1647 = vpop.f32.mrb[0].mxu0
      %v1648 = vpop.f32.mrb[0].mxu0
      %v1649 = vadd.f32 0.0, %v1648
      %v1650 = vpop.f32.mrb[0].mxu0
      %1651 = vmatprep.mubr.bf16.mxu0 0
      %1652 = vmatmul.mubr.bf16.gmra.mrb[0].mxu0 %v1502
      %v1653 = vpop.f32.mrb[0].mxu0
      %v1654 = vadd.f32 0.0, %v1653
      %v1655 = vpop.f32.mrb[0].mxu0
      %v1656 = vpop.f32.mrb[0].mxu0
      %v1657 = vadd.f32 0.0, %v1656
      %v1658 = vpop.f32.mrb[0].mxu0
      %1659 = vmatprep.mubr.bf16.mxu0 0
      %1660 = vmatmul.mubr.bf16.gmra.mrb[0].mxu0 %v1505
      %v1661 = vpop.f32.mrb[0].mxu0
      %v1662 = vadd.f32 0.0, %v1661
      %v1663 = vpop.f32.mrb[0].mxu0
      %v1664 = vpop.f32.mrb[0].mxu0
      %v1665 = vadd.f32 0.0, %v1664
      %v1666 = vpop.f32.mrb[0].mxu0
      %1667 = vdwg.mxu0
      %v1668 = vadd.f32 %v1113, %v1542
      %v1669 = vadd.f32 %v1116, %v1545
      %v1670 = vadd.f32 %v1121, %v1550
      %v1671 = vadd.f32 %v1124, %v1553
      %v1672 = vadd.f32 %v1129, %v1558
      %v1673 = vadd.f32 %v1132, %v1561
      %v1674 = vadd.f32 %v1137, %v1566
      %v1675 = vadd.f32 %v1140, %v1569
      %v1676 = vadd.f32 %v1145, %v1574
      %v1677 = vadd.f32 %v1148, %v1577
      %v1678 = vadd.f32 %v1153, %v1582
      %v1679 = vadd.f32 %v1156, %v1585
      %v1680 = vadd.f32 %v1161, %v1590
      %v1681 = vadd.f32 %v1164, %v1593
      %v1682 = vadd.f32 %v1169, %v1598
      %v1683 = vadd.f32 %v1172, %v1601
      %v1684 = vadd.f32 %v1177, %v1606
      %v1685 = vadd.f32 %v1180, %v1609
      %v1686 = vadd.f32 %v1185, %v1614
      %v1687 = vadd.f32 %v1188, %v1617
      %v1688 = vadd.f32 %v1193, %v1622
      %v1689 = vadd.f32 %v1196, %v1625
      %v1690 = vadd.f32 %v1201, %v1630
      %v1691 = vadd.f32 %v1204, %v1633
      %v1692 = vadd.f32 %v1209, %v1638
      %v1693 = vadd.f32 %v1212, %v1641
      %v1694 = vadd.f32 %v1217, %v1646
      %v1695 = vadd.f32 %v1220, %v1649
      %v1696 = vadd.f32 %v1225, %v1654
      %v1697 = vadd.f32 %v1228, %v1657
      %v1698 = vadd.f32 %v1233, %v1662
      %v1699 = vadd.f32 %v1236, %v1665
      %s1700 = scalar_lea.vmem %s218, 12
      %v1701 = vld [vmem:[%s1700] sm:$0xf]
      %v1702 = vld [vmem:[%s1700 + $0x4] sm:$0xf]
      %v1703 = vld [vmem:[%s1700 + $0xc] sm:$0xf]
      %v1704 = vld [vmem:[%s1700 + $0x10] sm:$0xf]
      %v1705 = vld [vmem:[%s1700 + $0x18] sm:$0xf]
      %v1706 = vld [vmem:[%s1700 + $0x1c] sm:$0xf]
      %v1707 = vld [vmem:[%s1700 + $0x24] sm:$0xf]
      %v1708 = vld [vmem:[%s1700 + $0x28] sm:$0xf]
      %v1709 = vld [vmem:[%s1700 + $0x30] sm:$0xf]
      %v1710 = vld [vmem:[%s1700 + $0x34] sm:$0xf]
      %v1711 = vld [vmem:[%s1700 + $0x3c] sm:$0xf]
      %v1712 = vld [vmem:[%s1700 + $0x40] sm:$0xf]
      %v1713 = vld [vmem:[%s1700 + $0x48] sm:$0xf]
      %v1714 = vld [vmem:[%s1700 + $0x4c] sm:$0xf]
      %v1715 = vld [vmem:[%s1700 + $0x54] sm:$0xf]
      %v1716 = vld [vmem:[%s1700 + $0x58] sm:$0xf]
      %v1717 = vld [vmem:[%s1700 + $0x60] sm:$0xf]
      %v1718 = vld [vmem:[%s1700 + $0x64] sm:$0xf]
      %v1719 = vld [vmem:[%s1700 + $0x6c] sm:$0xf]
      %v1720 = vld [vmem:[%s1700 + $0x70] sm:$0xf]
      %v1721 = vld [vmem:[%s1700 + $0x78] sm:$0xf]
      %v1722 = vld [vmem:[%s1700 + $0x7c] sm:$0xf]
      %v1723 = vld [vmem:[%s1700 + $0x84] sm:$0xf]
      %v1724 = vld [vmem:[%s1700 + $0x88] sm:$0xf]
      %v1725 = vld [vmem:[%s1700 + $0x90] sm:$0xf]
      %v1726 = vld [vmem:[%s1700 + $0x94] sm:$0xf]
      %v1727 = vld [vmem:[%s1700 + $0x9c] sm:$0xf]
      %v1728 = vld [vmem:[%s1700 + $0xa0] sm:$0xf]
      %v1729 = vld [vmem:[%s1700 + $0xa8] sm:$0xf]
      %v1730 = vld [vmem:[%s1700 + $0xac] sm:$0xf]
      %v1731 = vld [vmem:[%s1700 + $0xb4] sm:$0xf]
      %v1732 = vld [vmem:[%s1700 + $0xb8] sm:$0xf]
      %s1733 = scalar_lea.vmem %s222, 24
      %v1734 = vld [vmem:[%s1733] sm:$0xf]
      %v1735 = vld [vmem:[%s1733 + $0x4] sm:$0xf]
      %v1768 = vunpack.c.l.b16 %v1701
      %v1769 = vunpack.c.l.b16 %v1702
      %v1770 = vunpack.c.l.b16 %v1703
      %v1771 = vunpack.c.l.b16 %v1704
      %v1772 = vunpack.c.l.b16 %v1705
      %v1773 = vunpack.c.l.b16 %v1706
      %v1774 = vunpack.c.l.b16 %v1707
      %v1775 = vunpack.c.l.b16 %v1708
      %v1776 = vunpack.c.l.b16 %v1709
      %v1777 = vunpack.c.l.b16 %v1710
      %v1778 = vunpack.c.l.b16 %v1711
      %v1779 = vunpack.c.l.b16 %v1712
      %v1780 = vunpack.c.l.b16 %v1713
      %v1781 = vunpack.c.l.b16 %v1714
      %v1782 = vunpack.c.l.b16 %v1715
      %v1783 = vunpack.c.l.b16 %v1716
      %v1784 = vunpack.c.l.b16 %v1717
      %v1785 = vunpack.c.l.b16 %v1718
      %v1786 = vunpack.c.l.b16 %v1719
      %v1787 = vunpack.c.l.b16 %v1720
      %v1788 = vunpack.c.l.b16 %v1721
      %v1789 = vunpack.c.l.b16 %v1722
      %v1790 = vunpack.c.l.b16 %v1723
      %v1791 = vunpack.c.l.b16 %v1724
      %v1792 = vunpack.c.l.b16 %v1725
      %v1793 = vunpack.c.l.b16 %v1726
      %v1794 = vunpack.c.l.b16 %v1727
      %v1795 = vunpack.c.l.b16 %v1728
      %v1796 = vunpack.c.l.b16 %v1729
      %v1797 = vunpack.c.l.b16 %v1730
      %v1798 = vunpack.c.l.b16 %v1731
      %v1799 = vunpack.c.l.b16 %v1732
      %v1800 = vpack.c.b16 %v1769, %v1768
      %v1801 = vpack.c.b16 %v1771, %v1770
      %v1802 = vpack.c.b16 %v1773, %v1772
      %v1803 = vpack.c.b16 %v1775, %v1774
      %v1804 = vpack.c.b16 %v1777, %v1776
      %v1805 = vpack.c.b16 %v1779, %v1778
      %v1806 = vpack.c.b16 %v1781, %v1780
      %v1807 = vpack.c.b16 %v1783, %v1782
      %v1808 = vpack.c.b16 %v1785, %v1784
      %v1809 = vpack.c.b16 %v1787, %v1786
      %v1810 = vpack.c.b16 %v1789, %v1788
      %v1811 = vpack.c.b16 %v1791, %v1790
      %v1812 = vpack.c.b16 %v1793, %v1792
      %v1813 = vpack.c.b16 %v1795, %v1794
      %v1814 = vpack.c.b16 %v1797, %v1796
      %v1815 = vpack.c.b16 %v1799, %v1798
      %v1818 = vunpack.c.l.b16 %v1734
      %v1819 = vunpack.c.l.b16 %v1735
      %v1820 = vpack.c.b16 %v1819, %v1818
      %v1823 = vsel %vm734, %v1800, 0
      %v1826 = vsel %vm734, %v1801, 0
      %v1829 = vsel %vm734, %v1802, 0
      %v1832 = vsel %vm734, %v1803, 0
      %v1835 = vsel %vm734, %v1804, 0
      %v1838 = vsel %vm734, %v1805, 0
      %v1841 = vsel %vm734, %v1806, 0
      %v1844 = vsel %vm734, %v1807, 0
      %v1847 = vsel %vm734, %v1808, 0
      %v1850 = vsel %vm734, %v1809, 0
      %v1853 = vsel %vm734, %v1810, 0
      %v1856 = vsel %vm734, %v1811, 0
      %v1859 = vsel %vm734, %v1812, 0
      %v1862 = vsel %vm734, %v1813, 0
      %v1865 = vsel %vm734, %v1814, 0
      %v1868 = vsel %vm734, %v1815, 0
      %1870 = vmatprep.subr.bf16.mxu0 0
      %1871 = vmatpush1.bf16.msra.mxu0 %v1820
      %1872 = vmatprep.subr.bf16.mxu0 0
      %1873 = vmatpush1.bf16.msra.mxu0 0
      %1874 = vmatprep.subr.bf16.mxu0 0
      %1875 = vmatpush1.bf16.msra.mxu0 0
      %1876 = vmatprep.subr.bf16.mxu0 0
      %1877 = vmatpush1.bf16.msra.mxu0 0
      %1878 = vmatprep.subr.bf16.mxu0 0
      %1879 = vmatpush1.bf16.msra.mxu0 0
      %1880 = vmatprep.subr.bf16.mxu0 0
      %1881 = vmatpush1.bf16.msra.mxu0 0
      %1882 = vmatprep.subr.bf16.mxu0 0
      %1883 = vmatpush1.bf16.msra.mxu0 0
      %1884 = vmatprep.subr.bf16.mxu0 0
      %1885 = vmatpush1.bf16.msra.mxu0 0
      %1886 = vmatprep.subr.bf16.mxu0 0
      %1887 = vmatpush1.bf16.msra.mxu0 0
      %1888 = vmatprep.subr.bf16.mxu0 0
      %1889 = vmatpush1.bf16.msra.mxu0 0
      %1890 = vmatprep.subr.bf16.mxu0 0
      %1891 = vmatpush1.bf16.msra.mxu0 0
      %1892 = vmatprep.subr.bf16.mxu0 0
      %1893 = vmatpush1.bf16.msra.mxu0 0
      %1894 = vmatprep.subr.bf16.mxu0 0
      %1895 = vmatpush1.bf16.msra.mxu0 0
      %1896 = vmatprep.subr.bf16.mxu0 0
      %1897 = vmatpush1.bf16.msra.mxu0 0
      %1898 = vmatprep.subr.bf16.mxu0 0
      %1899 = vmatpush1.bf16.msra.mxu0 0
      %1900 = vmatprep.subr.bf16.mxu0 0
      %1901 = vmatpush1.bf16.msra.mxu0 0
      %1902 = vmatprep.mubr.bf16.mxu0 0
      %1903 = vmatmul.mubr.bf16.gmra.mrb[0].mxu0 %v1823
      %v1904 = vpop.f32.mrb[0].mxu0
      %v1905 = vadd.f32 0.0, %v1904
      %v1906 = vpop.f32.mrb[0].mxu0
      %v1907 = vpop.f32.mrb[0].mxu0
      %v1908 = vadd.f32 0.0, %v1907
      %v1909 = vpop.f32.mrb[0].mxu0
      %1910 = vmatprep.mubr.bf16.mxu0 0
      %1911 = vmatmul.mubr.bf16.gmra.mrb[0].mxu0 %v1826
      %v1912 = vpop.f32.mrb[0].mxu0
      %v1913 = vadd.f32 0.0, %v1912
      %v1914 = vpop.f32.mrb[0].mxu0
      %v1915 = vpop.f32.mrb[0].mxu0
      %v1916 = vadd.f32 0.0, %v1915
      %v1917 = vpop.f32.mrb[0].mxu0
      %1918 = vmatprep.mubr.bf16.mxu0 0
      %1919 = vmatmul.mubr.bf16.gmra.mrb[0].mxu0 %v1829
      %v1920 = vpop.f32.mrb[0].mxu0
      %v1921 = vadd.f32 0.0, %v1920
      %v1922 = vpop.f32.mrb[0].mxu0
      %v1923 = vpop.f32.mrb[0].mxu0
      %v1924 = vadd.f32 0.0, %v1923
      %v1925 = vpop.f32.mrb[0].mxu0
      %1926 = vmatprep.mubr.bf16.mxu0 0
      %1927 = vmatmul.mubr.bf16.gmra.mrb[0].mxu0 %v1832
      %v1928 = vpop.f32.mrb[0].mxu0
      %v1929 = vadd.f32 0.0, %v1928
      %v1930 = vpop.f32.mrb[0].mxu0
      %v1931 = vpop.f32.mrb[0].mxu0
      %v1932 = vadd.f32 0.0, %v1931
      %v1933 = vpop.f32.mrb[0].mxu0
      %1934 = vmatprep.mubr.bf16.mxu0 0
      %1935 = vmatmul.mubr.bf16.gmra.mrb[0].mxu0 %v1835
      %v1936 = vpop.f32.mrb[0].mxu0
      %v1937 = vadd.f32 0.0, %v1936
      %v1938 = vpop.f32.mrb[0].mxu0
      %v1939 = vpop.f32.mrb[0].mxu0
      %v1940 = vadd.f32 0.0, %v1939
      %v1941 = vpop.f32.mrb[0].mxu0
      %1942 = vmatprep.mubr.bf16.mxu0 0
      %1943 = vmatmul.mubr.bf16.gmra.mrb[0].mxu0 %v1838
      %v1944 = vpop.f32.mrb[0].mxu0
      %v1945 = vadd.f32 0.0, %v1944
      %v1946 = vpop.f32.mrb[0].mxu0
      %v1947 = vpop.f32.mrb[0].mxu0
      %v1948 = vadd.f32 0.0, %v1947
      %v1949 = vpop.f32.mrb[0].mxu0
      %1950 = vmatprep.mubr.bf16.mxu0 0
      %1951 = vmatmul.mubr.bf16.gmra.mrb[0].mxu0 %v1841
      %v1952 = vpop.f32.mrb[0].mxu0
      %v1953 = vadd.f32 0.0, %v1952
      %v1954 = vpop.f32.mrb[0].mxu0
      %v1955 = vpop.f32.mrb[0].mxu0
      %v1956 = vadd.f32 0.0, %v1955
      %v1957 = vpop.f32.mrb[0].mxu0
      %1958 = vmatprep.mubr.bf16.mxu0 0
      %1959 = vmatmul.mubr.bf16.gmra.mrb[0].mxu0 %v1844
      %v1960 = vpop.f32.mrb[0].mxu0
      %v1961 = vadd.f32 0.0, %v1960
      %v1962 = vpop.f32.mrb[0].mxu0
      %v1963 = vpop.f32.mrb[0].mxu0
      %v1964 = vadd.f32 0.0, %v1963
      %v1965 = vpop.f32.mrb[0].mxu0
      %1966 = vmatprep.mubr.bf16.mxu0 0
      %1967 = vmatmul.mubr.bf16.gmra.mrb[0].mxu0 %v1847
      %v1968 = vpop.f32.mrb[0].mxu0
      %v1969 = vadd.f32 0.0, %v1968
      %v1970 = vpop.f32.mrb[0].mxu0
      %v1971 = vpop.f32.mrb[0].mxu0
      %v1972 = vadd.f32 0.0, %v1971
      %v1973 = vpop.f32.mrb[0].mxu0
      %1974 = vmatprep.mubr.bf16.mxu0 0
      %1975 = vmatmul.mubr.bf16.gmra.mrb[0].mxu0 %v1850
      %v1976 = vpop.f32.mrb[0].mxu0
      %v1977 = vadd.f32 0.0, %v1976
      %v1978 = vpop.f32.mrb[0].mxu0
      %v1979 = vpop.f32.mrb[0].mxu0
      %v1980 = vadd.f32 0.0, %v1979
      %v1981 = vpop.f32.mrb[0].mxu0
      %1982 = vmatprep.mubr.bf16.mxu0 0
      %1983 = vmatmul.mubr.bf16.gmra.mrb[0].mxu0 %v1853
      %v1984 = vpop.f32.mrb[0].mxu0
      %v1985 = vadd.f32 0.0, %v1984
      %v1986 = vpop.f32.mrb[0].mxu0
      %v1987 = vpop.f32.mrb[0].mxu0
      %v1988 = vadd.f32 0.0, %v1987
      %v1989 = vpop.f32.mrb[0].mxu0
      %1990 = vmatprep.mubr.bf16.mxu0 0
      %1991 = vmatmul.mubr.bf16.gmra.mrb[0].mxu0 %v1856
      %v1992 = vpop.f32.mrb[0].mxu0
      %v1993 = vadd.f32 0.0, %v1992
      %v1994 = vpop.f32.mrb[0].mxu0
      %v1995 = vpop.f32.mrb[0].mxu0
      %v1996 = vadd.f32 0.0, %v1995
      %v1997 = vpop.f32.mrb[0].mxu0
      %1998 = vmatprep.mubr.bf16.mxu0 0
      %1999 = vmatmul.mubr.bf16.gmra.mrb[0].mxu0 %v1859
      %v2000 = vpop.f32.mrb[0].mxu0
      %v2001 = vadd.f32 0.0, %v2000
      %v2002 = vpop.f32.mrb[0].mxu0
      %v2003 = vpop.f32.mrb[0].mxu0
      %v2004 = vadd.f32 0.0, %v2003
      %v2005 = vpop.f32.mrb[0].mxu0
      %2006 = vmatprep.mubr.bf16.mxu0 0
      %2007 = vmatmul.mubr.bf16.gmra.mrb[0].mxu0 %v1862
      %v2008 = vpop.f32.mrb[0].mxu0
      %v2009 = vadd.f32 0.0, %v2008
      %v2010 = vpop.f32.mrb[0].mxu0
      %v2011 = vpop.f32.mrb[0].mxu0
      %v2012 = vadd.f32 0.0, %v2011
      %v2013 = vpop.f32.mrb[0].mxu0
      %2014 = vmatprep.mubr.bf16.mxu0 0
      %2015 = vmatmul.mubr.bf16.gmra.mrb[0].mxu0 %v1865
      %v2016 = vpop.f32.mrb[0].mxu0
      %v2017 = vadd.f32 0.0, %v2016
      %v2018 = vpop.f32.mrb[0].mxu0
      %v2019 = vpop.f32.mrb[0].mxu0
      %v2020 = vadd.f32 0.0, %v2019
      %v2021 = vpop.f32.mrb[0].mxu0
      %2022 = vmatprep.mubr.bf16.mxu0 0
      %2023 = vmatmul.mubr.bf16.gmra.mrb[0].mxu0 %v1868
      %v2024 = vpop.f32.mrb[0].mxu0
      %v2025 = vadd.f32 0.0, %v2024
      %v2026 = vpop.f32.mrb[0].mxu0
      %v2027 = vpop.f32.mrb[0].mxu0
      %v2028 = vadd.f32 0.0, %v2027
      %v2029 = vpop.f32.mrb[0].mxu0
      %2030 = vdwg.mxu0
      %v2031 = vadd.f32 %v1668, %v1905
      %v2032 = vadd.f32 %v1669, %v1908
      %v2033 = vadd.f32 %v1670, %v1913
      %v2034 = vadd.f32 %v1671, %v1916
      %v2035 = vadd.f32 %v1672, %v1921
      %v2036 = vadd.f32 %v1673, %v1924
      %v2037 = vadd.f32 %v1674, %v1929
      %v2038 = vadd.f32 %v1675, %v1932
      %v2039 = vadd.f32 %v1676, %v1937
      %v2040 = vadd.f32 %v1677, %v1940
      %v2041 = vadd.f32 %v1678, %v1945
      %v2042 = vadd.f32 %v1679, %v1948
      %v2043 = vadd.f32 %v1680, %v1953
      %v2044 = vadd.f32 %v1681, %v1956
      %v2045 = vadd.f32 %v1682, %v1961
      %v2046 = vadd.f32 %v1683, %v1964
      %v2047 = vadd.f32 %v1684, %v1969
      %v2048 = vadd.f32 %v1685, %v1972
      %v2049 = vadd.f32 %v1686, %v1977
      %v2050 = vadd.f32 %v1687, %v1980
      %v2051 = vadd.f32 %v1688, %v1985
      %v2052 = vadd.f32 %v1689, %v1988
      %v2053 = vadd.f32 %v1690, %v1993
      %v2054 = vadd.f32 %v1691, %v1996
      %v2055 = vadd.f32 %v1692, %v2001
      %v2056 = vadd.f32 %v1693, %v2004
      %v2057 = vadd.f32 %v1694, %v2009
      %v2058 = vadd.f32 %v1695, %v2012
      %v2059 = vadd.f32 %v1696, %v2017
      %v2060 = vadd.f32 %v1697, %v2020
      %v2061 = vadd.f32 %v1698, %v2025
      %v2062 = vadd.f32 %v1699, %v2028
      %v2063 = vld [vmem:[%s1700] sm:$0xf]
      %v2064 = vld [vmem:[%s1700 + $0x4] sm:$0xf]
      %v2065 = vld [vmem:[%s1700 + $0x8] sm:$0x1]
      %v2066 = vld [vmem:[%s1700 + $0xc] sm:$0xf]
      %v2067 = vld [vmem:[%s1700 + $0x10] sm:$0xf]
      %v2068 = vld [vmem:[%s1700 + $0x14] sm:$0x1]
      %v2069 = vld [vmem:[%s1700 + $0x18] sm:$0xf]
      %v2070 = vld [vmem:[%s1700 + $0x1c] sm:$0xf]
      %v2071 = vld [vmem:[%s1700 + $0x20] sm:$0x1]
      %v2072 = vld [vmem:[%s1700 + $0x24] sm:$0xf]
      %v2073 = vld [vmem:[%s1700 + $0x28] sm:$0xf]
      %v2074 = vld [vmem:[%s1700 + $0x2c] sm:$0x1]
      %v2075 = vld [vmem:[%s1700 + $0x30] sm:$0xf]
      %v2076 = vld [vmem:[%s1700 + $0x34] sm:$0xf]
      %v2077 = vld [vmem:[%s1700 + $0x38] sm:$0x1]
      %v2078 = vld [vmem:[%s1700 + $0x3c] sm:$0xf]
      %v2079 = vld [vmem:[%s1700 + $0x40] sm:$0xf]
      %v2080 = vld [vmem:[%s1700 + $0x44] sm:$0x1]
      %v2081 = vld [vmem:[%s1700 + $0x48] sm:$0xf]
      %v2082 = vld [vmem:[%s1700 + $0x4c] sm:$0xf]
      %v2083 = vld [vmem:[%s1700 + $0x50] sm:$0x1]
      %v2084 = vld [vmem:[%s1700 + $0x54] sm:$0xf]
      %v2085 = vld [vmem:[%s1700 + $0x58] sm:$0xf]
      %v2086 = vld [vmem:[%s1700 + $0x5c] sm:$0x1]
      %v2087 = vld [vmem:[%s1700 + $0x60] sm:$0xf]
      %v2088 = vld [vmem:[%s1700 + $0x64] sm:$0xf]
      %v2089 = vld [vmem:[%s1700 + $0x68] sm:$0x1]
      %v2090 = vld [vmem:[%s1700 + $0x6c] sm:$0xf]
      %v2091 = vld [vmem:[%s1700 + $0x70] sm:$0xf]
      %v2092 = vld [vmem:[%s1700 + $0x74] sm:$0x1]
      %v2093 = vld [vmem:[%s1700 + $0x78] sm:$0xf]
      %v2094 = vld [vmem:[%s1700 + $0x7c] sm:$0xf]
      %v2095 = vld [vmem:[%s1700 + $0x80] sm:$0x1]
      %v2096 = vld [vmem:[%s1700 + $0x84] sm:$0xf]
      %v2097 = vld [vmem:[%s1700 + $0x88] sm:$0xf]
      %v2098 = vld [vmem:[%s1700 + $0x8c] sm:$0x1]
      %v2099 = vld [vmem:[%s1700 + $0x90] sm:$0xf]
      %v2100 = vld [vmem:[%s1700 + $0x94] sm:$0xf]
      %v2101 = vld [vmem:[%s1700 + $0x98] sm:$0x1]
      %v2102 = vld [vmem:[%s1700 + $0x9c] sm:$0xf]
      %v2103 = vld [vmem:[%s1700 + $0xa0] sm:$0xf]
      %v2104 = vld [vmem:[%s1700 + $0xa4] sm:$0x1]
      %v2105 = vld [vmem:[%s1700 + $0xa8] sm:$0xf]
      %v2106 = vld [vmem:[%s1700 + $0xac] sm:$0xf]
      %v2107 = vld [vmem:[%s1700 + $0xb0] sm:$0x1]
      %v2108 = vld [vmem:[%s1700 + $0xb4] sm:$0xf]
      %v2109 = vld [vmem:[%s1700 + $0xb8] sm:$0xf]
      %v2110 = vld [vmem:[%s1700 + $0xbc] sm:$0x1]
      %v2112 = vshrl.u32 %v2063, 16
      %v2114 = vrot.slane %v2112, 4
      %v2115 = vshll.u32 %v2063, 16
      %v2117 = vrot.slane %v2115, 5
      %v2118 = vor.u32 %v2114, %v2117
      %v2119 = vrot.slane %v2118, 4
      %v2121 = vshll.u32 %v2064, 16
      %v2123 = vrot.slane %v2121, 5
      %v2124 = vsel %vm292, %v2119, %v2123
      %v2125 = vshrl.u32 %v2064, 16
      %v2127 = vrot.slane %v2125, 4
      %v2128 = vor.u32 %v2127, %v2123
      %v2129 = vrot.slane %v2128, 4
      %v2131 = vshll.u32 %v2065, 16
      %v2133 = vrot.slane %v2131, 5
      %v2134 = vsel %vm292, %v2129, %v2133
      %v2136 = vshrl.u32 %v2066, 16
      %v2138 = vrot.slane %v2136, 4
      %v2139 = vshll.u32 %v2066, 16
      %v2141 = vrot.slane %v2139, 5
      %v2142 = vor.u32 %v2138, %v2141
      %v2143 = vrot.slane %v2142, 4
      %v2145 = vshll.u32 %v2067, 16
      %v2147 = vrot.slane %v2145, 5
      %v2148 = vsel %vm292, %v2143, %v2147
      %v2149 = vshrl.u32 %v2067, 16
      %v2151 = vrot.slane %v2149, 4
      %v2152 = vor.u32 %v2151, %v2147
      %v2153 = vrot.slane %v2152, 4
      %v2155 = vshll.u32 %v2068, 16
      %v2157 = vrot.slane %v2155, 5
      %v2158 = vsel %vm292, %v2153, %v2157
      %v2160 = vshrl.u32 %v2069, 16
      %v2162 = vrot.slane %v2160, 4
      %v2163 = vshll.u32 %v2069, 16
      %v2165 = vrot.slane %v2163, 5
      %v2166 = vor.u32 %v2162, %v2165
      %v2167 = vrot.slane %v2166, 4
      %v2169 = vshll.u32 %v2070, 16
      %v2171 = vrot.slane %v2169, 5
      %v2172 = vsel %vm292, %v2167, %v2171
      %v2173 = vshrl.u32 %v2070, 16
      %v2175 = vrot.slane %v2173, 4
      %v2176 = vor.u32 %v2175, %v2171
      %v2177 = vrot.slane %v2176, 4
      %v2179 = vshll.u32 %v2071, 16
      %v2181 = vrot.slane %v2179, 5
      %v2182 = vsel %vm292, %v2177, %v2181
      %v2184 = vshrl.u32 %v2072, 16
      %v2186 = vrot.slane %v2184, 4
      %v2187 = vshll.u32 %v2072, 16
      %v2189 = vrot.slane %v2187, 5
      %v2190 = vor.u32 %v2186, %v2189
      %v2191 = vrot.slane %v2190, 4
      %v2193 = vshll.u32 %v2073, 16
      %v2195 = vrot.slane %v2193, 5
      %v2196 = vsel %vm292, %v2191, %v2195
      %v2197 = vshrl.u32 %v2073, 16
      %v2199 = vrot.slane %v2197, 4
      %v2200 = vor.u32 %v2199, %v2195
      %v2201 = vrot.slane %v2200, 4
      %v2203 = vshll.u32 %v2074, 16
      %v2205 = vrot.slane %v2203, 5
      %v2206 = vsel %vm292, %v2201, %v2205
      %v2208 = vshrl.u32 %v2075, 16
      %v2210 = vrot.slane %v2208, 4
      %v2211 = vshll.u32 %v2075, 16
      %v2213 = vrot.slane %v2211, 5
      %v2214 = vor.u32 %v2210, %v2213
      %v2215 = vrot.slane %v2214, 4
      %v2217 = vshll.u32 %v2076, 16
      %v2219 = vrot.slane %v2217, 5
      %v2220 = vsel %vm292, %v2215, %v2219
      %v2221 = vshrl.u32 %v2076, 16
      %v2223 = vrot.slane %v2221, 4
      %v2224 = vor.u32 %v2223, %v2219
      %v2225 = vrot.slane %v2224, 4
      %v2227 = vshll.u32 %v2077, 16
      %v2229 = vrot.slane %v2227, 5
      %v2230 = vsel %vm292, %v2225, %v2229
      %v2232 = vshrl.u32 %v2078, 16
      %v2234 = vrot.slane %v2232, 4
      %v2235 = vshll.u32 %v2078, 16
      %v2237 = vrot.slane %v2235, 5
      %v2238 = vor.u32 %v2234, %v2237
      %v2239 = vrot.slane %v2238, 4
      %v2241 = vshll.u32 %v2079, 16
      %v2243 = vrot.slane %v2241, 5
      %v2244 = vsel %vm292, %v2239, %v2243
      %v2245 = vshrl.u32 %v2079, 16
      %v2247 = vrot.slane %v2245, 4
      %v2248 = vor.u32 %v2247, %v2243
      %v2249 = vrot.slane %v2248, 4
      %v2251 = vshll.u32 %v2080, 16
      %v2253 = vrot.slane %v2251, 5
      %v2254 = vsel %vm292, %v2249, %v2253
      %v2256 = vshrl.u32 %v2081, 16
      %v2258 = vrot.slane %v2256, 4
      %v2259 = vshll.u32 %v2081, 16
      %v2261 = vrot.slane %v2259, 5
      %v2262 = vor.u32 %v2258, %v2261
      %v2263 = vrot.slane %v2262, 4
      %v2265 = vshll.u32 %v2082, 16
      %v2267 = vrot.slane %v2265, 5
      %v2268 = vsel %vm292, %v2263, %v2267
      %v2269 = vshrl.u32 %v2082, 16
      %v2271 = vrot.slane %v2269, 4
      %v2272 = vor.u32 %v2271, %v2267
      %v2273 = vrot.slane %v2272, 4
      %v2275 = vshll.u32 %v2083, 16
      %v2277 = vrot.slane %v2275, 5
      %v2278 = vsel %vm292, %v2273, %v2277
      %v2280 = vshrl.u32 %v2084, 16
      %v2282 = vrot.slane %v2280, 4
      %v2283 = vshll.u32 %v2084, 16
      %v2285 = vrot.slane %v2283, 5
      %v2286 = vor.u32 %v2282, %v2285
      %v2287 = vrot.slane %v2286, 4
      %v2289 = vshll.u32 %v2085, 16
      %v2291 = vrot.slane %v2289, 5
      %v2292 = vsel %vm292, %v2287, %v2291
      %v2293 = vshrl.u32 %v2085, 16
      %v2295 = vrot.slane %v2293, 4
      %v2296 = vor.u32 %v2295, %v2291
      %v2297 = vrot.slane %v2296, 4
      %v2299 = vshll.u32 %v2086, 16
      %v2301 = vrot.slane %v2299, 5
      %v2302 = vsel %vm292, %v2297, %v2301
      %v2304 = vshrl.u32 %v2087, 16
      %v2306 = vrot.slane %v2304, 4
      %v2307 = vshll.u32 %v2087, 16
      %v2309 = vrot.slane %v2307, 5
      %v2310 = vor.u32 %v2306, %v2309
      %v2311 = vrot.slane %v2310, 4
      %v2313 = vshll.u32 %v2088, 16
      %v2315 = vrot.slane %v2313, 5
      %v2316 = vsel %vm292, %v2311, %v2315
      %v2317 = vshrl.u32 %v2088, 16
      %v2319 = vrot.slane %v2317, 4
      %v2320 = vor.u32 %v2319, %v2315
      %v2321 = vrot.slane %v2320, 4
      %v2323 = vshll.u32 %v2089, 16
      %v2325 = vrot.slane %v2323, 5
      %v2326 = vsel %vm292, %v2321, %v2325
      %v2328 = vshrl.u32 %v2090, 16
      %v2330 = vrot.slane %v2328, 4
      %v2331 = vshll.u32 %v2090, 16
      %v2333 = vrot.slane %v2331, 5
      %v2334 = vor.u32 %v2330, %v2333
      %v2335 = vrot.slane %v2334, 4
      %v2337 = vshll.u32 %v2091, 16
      %v2339 = vrot.slane %v2337, 5
      %v2340 = vsel %vm292, %v2335, %v2339
      %v2341 = vshrl.u32 %v2091, 16
      %v2343 = vrot.slane %v2341, 4
      %v2344 = vor.u32 %v2343, %v2339
      %v2345 = vrot.slane %v2344, 4
      %v2347 = vshll.u32 %v2092, 16
      %v2349 = vrot.slane %v2347, 5
      %v2350 = vsel %vm292, %v2345, %v2349
      %v2352 = vshrl.u32 %v2093, 16
      %v2354 = vrot.slane %v2352, 4
      %v2355 = vshll.u32 %v2093, 16
      %v2357 = vrot.slane %v2355, 5
      %v2358 = vor.u32 %v2354, %v2357
      %v2359 = vrot.slane %v2358, 4
      %v2361 = vshll.u32 %v2094, 16
      %v2363 = vrot.slane %v2361, 5
      %v2364 = vsel %vm292, %v2359, %v2363
      %v2365 = vshrl.u32 %v2094, 16
      %v2367 = vrot.slane %v2365, 4
      %v2368 = vor.u32 %v2367, %v2363
      %v2369 = vrot.slane %v2368, 4
      %v2371 = vshll.u32 %v2095, 16
      %v2373 = vrot.slane %v2371, 5
      %v2374 = vsel %vm292, %v2369, %v2373
      %v2376 = vshrl.u32 %v2096, 16
      %v2378 = vrot.slane %v2376, 4
      %v2379 = vshll.u32 %v2096, 16
      %v2381 = vrot.slane %v2379, 5
      %v2382 = vor.u32 %v2378, %v2381
      %v2383 = vrot.slane %v2382, 4
      %v2385 = vshll.u32 %v2097, 16
      %v2387 = vrot.slane %v2385, 5
      %v2388 = vsel %vm292, %v2383, %v2387
      %v2389 = vshrl.u32 %v2097, 16
      %v2391 = vrot.slane %v2389, 4
      %v2392 = vor.u32 %v2391, %v2387
      %v2393 = vrot.slane %v2392, 4
      %v2395 = vshll.u32 %v2098, 16
      %v2397 = vrot.slane %v2395, 5
      %v2398 = vsel %vm292, %v2393, %v2397
      %v2400 = vshrl.u32 %v2099, 16
      %v2402 = vrot.slane %v2400, 4
      %v2403 = vshll.u32 %v2099, 16
      %v2405 = vrot.slane %v2403, 5
      %v2406 = vor.u32 %v2402, %v2405
      %v2407 = vrot.slane %v2406, 4
      %v2409 = vshll.u32 %v2100, 16
      %v2411 = vrot.slane %v2409, 5
      %v2412 = vsel %vm292, %v2407, %v2411
      %v2413 = vshrl.u32 %v2100, 16
      %v2415 = vrot.slane %v2413, 4
      %v2416 = vor.u32 %v2415, %v2411
      %v2417 = vrot.slane %v2416, 4
      %v2419 = vshll.u32 %v2101, 16
      %v2421 = vrot.slane %v2419, 5
      %v2422 = vsel %vm292, %v2417, %v2421
      %v2424 = vshrl.u32 %v2102, 16
      %v2426 = vrot.slane %v2424, 4
      %v2427 = vshll.u32 %v2102, 16
      %v2429 = vrot.slane %v2427, 5
      %v2430 = vor.u32 %v2426, %v2429
      %v2431 = vrot.slane %v2430, 4
      %v2433 = vshll.u32 %v2103, 16
      %v2435 = vrot.slane %v2433, 5
      %v2436 = vsel %vm292, %v2431, %v2435
      %v2437 = vshrl.u32 %v2103, 16
      %v2439 = vrot.slane %v2437, 4
      %v2440 = vor.u32 %v2439, %v2435
      %v2441 = vrot.slane %v2440, 4
      %v2443 = vshll.u32 %v2104, 16
      %v2445 = vrot.slane %v2443, 5
      %v2446 = vsel %vm292, %v2441, %v2445
      %v2448 = vshrl.u32 %v2105, 16
      %v2450 = vrot.slane %v2448, 4
      %v2451 = vshll.u32 %v2105, 16
      %v2453 = vrot.slane %v2451, 5
      %v2454 = vor.u32 %v2450, %v2453
      %v2455 = vrot.slane %v2454, 4
      %v2457 = vshll.u32 %v2106, 16
      %v2459 = vrot.slane %v2457, 5
      %v2460 = vsel %vm292, %v2455, %v2459
      %v2461 = vshrl.u32 %v2106, 16
      %v2463 = vrot.slane %v2461, 4
      %v2464 = vor.u32 %v2463, %v2459
      %v2465 = vrot.slane %v2464, 4
      %v2467 = vshll.u32 %v2107, 16
      %v2469 = vrot.slane %v2467, 5
      %v2470 = vsel %vm292, %v2465, %v2469
      %v2472 = vshrl.u32 %v2108, 16
      %v2474 = vrot.slane %v2472, 4
      %v2475 = vshll.u32 %v2108, 16
      %v2477 = vrot.slane %v2475, 5
      %v2478 = vor.u32 %v2474, %v2477
      %v2479 = vrot.slane %v2478, 4
      %v2481 = vshll.u32 %v2109, 16
      %v2483 = vrot.slane %v2481, 5
      %v2484 = vsel %vm292, %v2479, %v2483
      %v2485 = vshrl.u32 %v2109, 16
      %v2487 = vrot.slane %v2485, 4
      %v2488 = vor.u32 %v2487, %v2483
      %v2489 = vrot.slane %v2488, 4
      %v2491 = vshll.u32 %v2110, 16
      %v2493 = vrot.slane %v2491, 5
      %v2494 = vsel %vm292, %v2489, %v2493
      %s2495 = scalar_lea.vmem %s222, 32
      %v2496 = vld [vmem:[%s2495] sm:$0xf]
      %v2497 = vld [vmem:[%s2495 + $0x4] sm:$0xf]
      %v2498 = vunpack.c.l.b16 %v2124
      %v2499 = vunpack.c.l.b16 %v2134
      %v2500 = vunpack.c.l.b16 %v2148
      %v2501 = vunpack.c.l.b16 %v2158
      %v2502 = vunpack.c.l.b16 %v2172
      %v2503 = vunpack.c.l.b16 %v2182
      %v2504 = vunpack.c.l.b16 %v2196
      %v2505 = vunpack.c.l.b16 %v2206
      %v2506 = vunpack.c.l.b16 %v2220
      %v2507 = vunpack.c.l.b16 %v2230
      %v2508 = vunpack.c.l.b16 %v2244
      %v2509 = vunpack.c.l.b16 %v2254
      %v2510 = vunpack.c.l.b16 %v2268
      %v2511 = vunpack.c.l.b16 %v2278
      %v2512 = vunpack.c.l.b16 %v2292
      %v2513 = vunpack.c.l.b16 %v2302
      %v2514 = vunpack.c.l.b16 %v2316
      %v2515 = vunpack.c.l.b16 %v2326
      %v2516 = vunpack.c.l.b16 %v2340
      %v2517 = vunpack.c.l.b16 %v2350
      %v2518 = vunpack.c.l.b16 %v2364
      %v2519 = vunpack.c.l.b16 %v2374
      %v2520 = vunpack.c.l.b16 %v2388
      %v2521 = vunpack.c.l.b16 %v2398
      %v2522 = vunpack.c.l.b16 %v2412
      %v2523 = vunpack.c.l.b16 %v2422
      %v2524 = vunpack.c.l.b16 %v2436
      %v2525 = vunpack.c.l.b16 %v2446
      %v2526 = vunpack.c.l.b16 %v2460
      %v2527 = vunpack.c.l.b16 %v2470
      %v2528 = vunpack.c.l.b16 %v2484
      %v2529 = vunpack.c.l.b16 %v2494
      %v2530 = vpack.c.b16 %v2499, %v2498
      %v2531 = vpack.c.b16 %v2501, %v2500
      %v2532 = vpack.c.b16 %v2503, %v2502
      %v2533 = vpack.c.b16 %v2505, %v2504
      %v2534 = vpack.c.b16 %v2507, %v2506
      %v2535 = vpack.c.b16 %v2509, %v2508
      %v2536 = vpack.c.b16 %v2511, %v2510
      %v2537 = vpack.c.b16 %v2513, %v2512
      %v2538 = vpack.c.b16 %v2515, %v2514
      %v2539 = vpack.c.b16 %v2517, %v2516
      %v2540 = vpack.c.b16 %v2519, %v2518
      %v2541 = vpack.c.b16 %v2521, %v2520
      %v2542 = vpack.c.b16 %v2523, %v2522
      %v2543 = vpack.c.b16 %v2525, %v2524
      %v2544 = vpack.c.b16 %v2527, %v2526
      %v2545 = vpack.c.b16 %v2529, %v2528
      %v2548 = vunpack.c.l.b16 %v2496
      %v2549 = vunpack.c.l.b16 %v2497
      %v2550 = vpack.c.b16 %v2549, %v2548
      %v2553 = vsel %vm734, %v2530, 0
      %v2556 = vsel %vm734, %v2531, 0
      %v2559 = vsel %vm734, %v2532, 0
      %v2562 = vsel %vm734, %v2533, 0
      %v2565 = vsel %vm734, %v2534, 0
      %v2568 = vsel %vm734, %v2535, 0
      %v2571 = vsel %vm734, %v2536, 0
      %v2574 = vsel %vm734, %v2537, 0
      %v2577 = vsel %vm734, %v2538, 0
      %v2580 = vsel %vm734, %v2539, 0
      %v2583 = vsel %vm734, %v2540, 0
      %v2586 = vsel %vm734, %v2541, 0
      %v2589 = vsel %vm734, %v2542, 0
      %v2592 = vsel %vm734, %v2543, 0
      %v2595 = vsel %vm734, %v2544, 0
      %v2598 = vsel %vm734, %v2545, 0
      %2600 = vmatprep.subr.bf16.mxu0 0
      %2601 = vmatpush1.bf16.msra.mxu0 %v2550
      %2602 = vmatprep.subr.bf16.mxu0 0
      %2603 = vmatpush1.bf16.msra.mxu0 0
      %2604 = vmatprep.subr.bf16.mxu0 0
      %2605 = vmatpush1.bf16.msra.mxu0 0
      %2606 = vmatprep.subr.bf16.mxu0 0
      %2607 = vmatpush1.bf16.msra.mxu0 0
      %2608 = vmatprep.subr.bf16.mxu0 0
      %2609 = vmatpush1.bf16.msra.mxu0 0
      %2610 = vmatprep.subr.bf16.mxu0 0
      %2611 = vmatpush1.bf16.msra.mxu0 0
      %2612 = vmatprep.subr.bf16.mxu0 0
      %2613 = vmatpush1.bf16.msra.mxu0 0
      %2614 = vmatprep.subr.bf16.mxu0 0
      %2615 = vmatpush1.bf16.msra.mxu0 0
      %2616 = vmatprep.subr.bf16.mxu0 0
      %2617 = vmatpush1.bf16.msra.mxu0 0
      %2618 = vmatprep.subr.bf16.mxu0 0
      %2619 = vmatpush1.bf16.msra.mxu0 0
      %2620 = vmatprep.subr.bf16.mxu0 0
      %2621 = vmatpush1.bf16.msra.mxu0 0
      %2622 = vmatprep.subr.bf16.mxu0 0
      %2623 = vmatpush1.bf16.msra.mxu0 0
      %2624 = vmatprep.subr.bf16.mxu0 0
      %2625 = vmatpush1.bf16.msra.mxu0 0
      %2626 = vmatprep.subr.bf16.mxu0 0
      %2627 = vmatpush1.bf16.msra.mxu0 0
      %2628 = vmatprep.subr.bf16.mxu0 0
      %2629 = vmatpush1.bf16.msra.mxu0 0
      %2630 = vmatprep.subr.bf16.mxu0 0
      %2631 = vmatpush1.bf16.msra.mxu0 0
      %2632 = vmatprep.mubr.bf16.mxu0 0
      %2633 = vmatmul.mubr.bf16.gmra.mrb[0].mxu0 %v2553
      %v2634 = vpop.f32.mrb[0].mxu0
      %v2635 = vadd.f32 0.0, %v2634
      %v2636 = vpop.f32.mrb[0].mxu0
      %v2637 = vpop.f32.mrb[0].mxu0
      %v2638 = vadd.f32 0.0, %v2637
      %v2639 = vpop.f32.mrb[0].mxu0
      %2640 = vmatprep.mubr.bf16.mxu0 0
      %2641 = vmatmul.mubr.bf16.gmra.mrb[0].mxu0 %v2556
      %v2642 = vpop.f32.mrb[0].mxu0
      %v2643 = vadd.f32 0.0, %v2642
      %v2644 = vpop.f32.mrb[0].mxu0
      %v2645 = vpop.f32.mrb[0].mxu0
      %v2646 = vadd.f32 0.0, %v2645
      %v2647 = vpop.f32.mrb[0].mxu0
      %2648 = vmatprep.mubr.bf16.mxu0 0
      %2649 = vmatmul.mubr.bf16.gmra.mrb[0].mxu0 %v2559
      %v2650 = vpop.f32.mrb[0].mxu0
      %v2651 = vadd.f32 0.0, %v2650
      %v2652 = vpop.f32.mrb[0].mxu0
      %v2653 = vpop.f32.mrb[0].mxu0
      %v2654 = vadd.f32 0.0, %v2653
      %v2655 = vpop.f32.mrb[0].mxu0
      %2656 = vmatprep.mubr.bf16.mxu0 0
      %2657 = vmatmul.mubr.bf16.gmra.mrb[0].mxu0 %v2562
      %v2658 = vpop.f32.mrb[0].mxu0
      %v2659 = vadd.f32 0.0, %v2658
      %v2660 = vpop.f32.mrb[0].mxu0
      %v2661 = vpop.f32.mrb[0].mxu0
      %v2662 = vadd.f32 0.0, %v2661
      %v2663 = vpop.f32.mrb[0].mxu0
      %2664 = vmatprep.mubr.bf16.mxu0 0
      %2665 = vmatmul.mubr.bf16.gmra.mrb[0].mxu0 %v2565
      %v2666 = vpop.f32.mrb[0].mxu0
      %v2667 = vadd.f32 0.0, %v2666
      %v2668 = vpop.f32.mrb[0].mxu0
      %v2669 = vpop.f32.mrb[0].mxu0
      %v2670 = vadd.f32 0.0, %v2669
      %v2671 = vpop.f32.mrb[0].mxu0
      %2672 = vmatprep.mubr.bf16.mxu0 0
      %2673 = vmatmul.mubr.bf16.gmra.mrb[0].mxu0 %v2568
      %v2674 = vpop.f32.mrb[0].mxu0
      %v2675 = vadd.f32 0.0, %v2674
      %v2676 = vpop.f32.mrb[0].mxu0
      %v2677 = vpop.f32.mrb[0].mxu0
      %v2678 = vadd.f32 0.0, %v2677
      %v2679 = vpop.f32.mrb[0].mxu0
      %2680 = vmatprep.mubr.bf16.mxu0 0
      %2681 = vmatmul.mubr.bf16.gmra.mrb[0].mxu0 %v2571
      %v2682 = vpop.f32.mrb[0].mxu0
      %v2683 = vadd.f32 0.0, %v2682
      %v2684 = vpop.f32.mrb[0].mxu0
      %v2685 = vpop.f32.mrb[0].mxu0
      %v2686 = vadd.f32 0.0, %v2685
      %v2687 = vpop.f32.mrb[0].mxu0
      %2688 = vmatprep.mubr.bf16.mxu0 0
      %2689 = vmatmul.mubr.bf16.gmra.mrb[0].mxu0 %v2574
      %v2690 = vpop.f32.mrb[0].mxu0
      %v2691 = vadd.f32 0.0, %v2690
      %v2692 = vpop.f32.mrb[0].mxu0
      %v2693 = vpop.f32.mrb[0].mxu0
      %v2694 = vadd.f32 0.0, %v2693
      %v2695 = vpop.f32.mrb[0].mxu0
      %2696 = vmatprep.mubr.bf16.mxu0 0
      %2697 = vmatmul.mubr.bf16.gmra.mrb[0].mxu0 %v2577
      %v2698 = vpop.f32.mrb[0].mxu0
      %v2699 = vadd.f32 0.0, %v2698
      %v2700 = vpop.f32.mrb[0].mxu0
      %v2701 = vpop.f32.mrb[0].mxu0
      %v2702 = vadd.f32 0.0, %v2701
      %v2703 = vpop.f32.mrb[0].mxu0
      %2704 = vmatprep.mubr.bf16.mxu0 0
      %2705 = vmatmul.mubr.bf16.gmra.mrb[0].mxu0 %v2580
      %v2706 = vpop.f32.mrb[0].mxu0
      %v2707 = vadd.f32 0.0, %v2706
      %v2708 = vpop.f32.mrb[0].mxu0
      %v2709 = vpop.f32.mrb[0].mxu0
      %v2710 = vadd.f32 0.0, %v2709
      %v2711 = vpop.f32.mrb[0].mxu0
      %2712 = vmatprep.mubr.bf16.mxu0 0
      %2713 = vmatmul.mubr.bf16.gmra.mrb[0].mxu0 %v2583
      %v2714 = vpop.f32.mrb[0].mxu0
      %v2715 = vadd.f32 0.0, %v2714
      %v2716 = vpop.f32.mrb[0].mxu0
      %v2717 = vpop.f32.mrb[0].mxu0
      %v2718 = vadd.f32 0.0, %v2717
      %v2719 = vpop.f32.mrb[0].mxu0
      %2720 = vmatprep.mubr.bf16.mxu0 0
      %2721 = vmatmul.mubr.bf16.gmra.mrb[0].mxu0 %v2586
      %v2722 = vpop.f32.mrb[0].mxu0
      %v2723 = vadd.f32 0.0, %v2722
      %v2724 = vpop.f32.mrb[0].mxu0
      %v2725 = vpop.f32.mrb[0].mxu0
      %v2726 = vadd.f32 0.0, %v2725
      %v2727 = vpop.f32.mrb[0].mxu0
      %2728 = vmatprep.mubr.bf16.mxu0 0
      %2729 = vmatmul.mubr.bf16.gmra.mrb[0].mxu0 %v2589
      %v2730 = vpop.f32.mrb[0].mxu0
      %v2731 = vadd.f32 0.0, %v2730
      %v2732 = vpop.f32.mrb[0].mxu0
      %v2733 = vpop.f32.mrb[0].mxu0
      %v2734 = vadd.f32 0.0, %v2733
      %v2735 = vpop.f32.mrb[0].mxu0
      %2736 = vmatprep.mubr.bf16.mxu0 0
      %2737 = vmatmul.mubr.bf16.gmra.mrb[0].mxu0 %v2592
      %v2738 = vpop.f32.mrb[0].mxu0
      %v2739 = vadd.f32 0.0, %v2738
      %v2740 = vpop.f32.mrb[0].mxu0
      %v2741 = vpop.f32.mrb[0].mxu0
      %v2742 = vadd.f32 0.0, %v2741
      %v2743 = vpop.f32.mrb[0].mxu0
      %2744 = vmatprep.mubr.bf16.mxu0 0
      %2745 = vmatmul.mubr.bf16.gmra.mrb[0].mxu0 %v2595
      %v2746 = vpop.f32.mrb[0].mxu0
      %v2747 = vadd.f32 0.0, %v2746
      %v2748 = vpop.f32.mrb[0].mxu0
      %v2749 = vpop.f32.mrb[0].mxu0
      %v2750 = vadd.f32 0.0, %v2749
      %v2751 = vpop.f32.mrb[0].mxu0
      %2752 = vmatprep.mubr.bf16.mxu0 0
      %2753 = vmatmul.mubr.bf16.gmra.mrb[0].mxu0 %v2598
      %v2754 = vpop.f32.mrb[0].mxu0
      %v2755 = vadd.f32 0.0, %v2754
      %v2756 = vpop.f32.mrb[0].mxu0
      %v2757 = vpop.f32.mrb[0].mxu0
      %v2758 = vadd.f32 0.0, %v2757
      %v2759 = vpop.f32.mrb[0].mxu0
      %2760 = vdwg.mxu0
      %v2761 = vadd.f32 %v2031, %v2635
      %v2762 = vadd.f32 %v2032, %v2638
      %v2763 = vadd.f32 %v2033, %v2643
      %v2764 = vadd.f32 %v2034, %v2646
      %v2765 = vadd.f32 %v2035, %v2651
      %v2766 = vadd.f32 %v2036, %v2654
      %v2767 = vadd.f32 %v2037, %v2659
      %v2768 = vadd.f32 %v2038, %v2662
      %v2769 = vadd.f32 %v2039, %v2667
      %v2770 = vadd.f32 %v2040, %v2670
      %v2771 = vadd.f32 %v2041, %v2675
      %v2772 = vadd.f32 %v2042, %v2678
      %v2773 = vadd.f32 %v2043, %v2683
      %v2774 = vadd.f32 %v2044, %v2686
      %v2775 = vadd.f32 %v2045, %v2691
      %v2776 = vadd.f32 %v2046, %v2694
      %v2777 = vadd.f32 %v2047, %v2699
      %v2778 = vadd.f32 %v2048, %v2702
      %v2779 = vadd.f32 %v2049, %v2707
      %v2780 = vadd.f32 %v2050, %v2710
      %v2781 = vadd.f32 %v2051, %v2715
      %v2782 = vadd.f32 %v2052, %v2718
      %v2783 = vadd.f32 %v2053, %v2723
      %v2784 = vadd.f32 %v2054, %v2726
      %v2785 = vadd.f32 %v2055, %v2731
      %v2786 = vadd.f32 %v2056, %v2734
      %v2787 = vadd.f32 %v2057, %v2739
      %v2788 = vadd.f32 %v2058, %v2742
      %v2789 = vadd.f32 %v2059, %v2747
      %v2790 = vadd.f32 %v2060, %v2750
      %v2791 = vadd.f32 %v2061, %v2755
      %v2792 = vadd.f32 %v2062, %v2758
      %v2793 = vld [vmem:[%s1700] sm:$0xe]
      %v2794 = vld [vmem:[%s1700 + $0xc] sm:$0xe]
      %v2795 = vld [vmem:[%s1700 + $0x18] sm:$0xe]
      %v2796 = vld [vmem:[%s1700 + $0x24] sm:$0xe]
      %v2797 = vld [vmem:[%s1700 + $0x30] sm:$0xe]
      %v2798 = vld [vmem:[%s1700 + $0x3c] sm:$0xe]
      %v2799 = vld [vmem:[%s1700 + $0x48] sm:$0xe]
      %v2800 = vld [vmem:[%s1700 + $0x54] sm:$0xe]
      %v2801 = vld [vmem:[%s1700 + $0x60] sm:$0xe]
      %v2802 = vld [vmem:[%s1700 + $0x6c] sm:$0xe]
      %v2803 = vld [vmem:[%s1700 + $0x78] sm:$0xe]
      %v2804 = vld [vmem:[%s1700 + $0x84] sm:$0xe]
      %v2805 = vld [vmem:[%s1700 + $0x90] sm:$0xe]
      %v2806 = vld [vmem:[%s1700 + $0x9c] sm:$0xe]
      %v2807 = vld [vmem:[%s1700 + $0xa8] sm:$0xe]
      %v2808 = vld [vmem:[%s1700 + $0xb4] sm:$0xe]
      %v2857 = vrot.slane %v2793, 5
      %v2858 = vrot.slane %v2857, 4
      %v2859 = vrot.slane %v2064, 5
      %v2860 = vsel %vm1289, %v2858, %v2859
      %v2861 = vrot.slane %v2859, 4
      %v2862 = vrot.slane %v2065, 5
      %v2863 = vsel %vm1289, %v2861, %v2862
      %v2864 = vrot.slane %v2794, 5
      %v2865 = vrot.slane %v2864, 4
      %v2866 = vrot.slane %v2067, 5
      %v2867 = vsel %vm1289, %v2865, %v2866
      %v2868 = vrot.slane %v2866, 4
      %v2869 = vrot.slane %v2068, 5
      %v2870 = vsel %vm1289, %v2868, %v2869
      %v2871 = vrot.slane %v2795, 5
      %v2872 = vrot.slane %v2871, 4
      %v2873 = vrot.slane %v2070, 5
      %v2874 = vsel %vm1289, %v2872, %v2873
      %v2875 = vrot.slane %v2873, 4
      %v2876 = vrot.slane %v2071, 5
      %v2877 = vsel %vm1289, %v2875, %v2876
      %v2878 = vrot.slane %v2796, 5
      %v2879 = vrot.slane %v2878, 4
      %v2880 = vrot.slane %v2073, 5
      %v2881 = vsel %vm1289, %v2879, %v2880
      %v2882 = vrot.slane %v2880, 4
      %v2883 = vrot.slane %v2074, 5
      %v2884 = vsel %vm1289, %v2882, %v2883
      %v2885 = vrot.slane %v2797, 5
      %v2886 = vrot.slane %v2885, 4
      %v2887 = vrot.slane %v2076, 5
      %v2888 = vsel %vm1289, %v2886, %v2887
      %v2889 = vrot.slane %v2887, 4
      %v2890 = vrot.slane %v2077, 5
      %v2891 = vsel %vm1289, %v2889, %v2890
      %v2892 = vrot.slane %v2798, 5
      %v2893 = vrot.slane %v2892, 4
      %v2894 = vrot.slane %v2079, 5
      %v2895 = vsel %vm1289, %v2893, %v2894
      %v2896 = vrot.slane %v2894, 4
      %v2897 = vrot.slane %v2080, 5
      %v2898 = vsel %vm1289, %v2896, %v2897
      %v2899 = vrot.slane %v2799, 5
      %v2900 = vrot.slane %v2899, 4
      %v2901 = vrot.slane %v2082, 5
      %v2902 = vsel %vm1289, %v2900, %v2901
      %v2903 = vrot.slane %v2901, 4
      %v2904 = vrot.slane %v2083, 5
      %v2905 = vsel %vm1289, %v2903, %v2904
      %v2906 = vrot.slane %v2800, 5
      %v2907 = vrot.slane %v2906, 4
      %v2908 = vrot.slane %v2085, 5
      %v2909 = vsel %vm1289, %v2907, %v2908
      %v2910 = vrot.slane %v2908, 4
      %v2911 = vrot.slane %v2086, 5
      %v2912 = vsel %vm1289, %v2910, %v2911
      %v2913 = vrot.slane %v2801, 5
      %v2914 = vrot.slane %v2913, 4
      %v2915 = vrot.slane %v2088, 5
      %v2916 = vsel %vm1289, %v2914, %v2915
      %v2917 = vrot.slane %v2915, 4
      %v2918 = vrot.slane %v2089, 5
      %v2919 = vsel %vm1289, %v2917, %v2918
      %v2920 = vrot.slane %v2802, 5
      %v2921 = vrot.slane %v2920, 4
      %v2922 = vrot.slane %v2091, 5
      %v2923 = vsel %vm1289, %v2921, %v2922
      %v2924 = vrot.slane %v2922, 4
      %v2925 = vrot.slane %v2092, 5
      %v2926 = vsel %vm1289, %v2924, %v2925
      %v2927 = vrot.slane %v2803, 5
      %v2928 = vrot.slane %v2927, 4
      %v2929 = vrot.slane %v2094, 5
      %v2930 = vsel %vm1289, %v2928, %v2929
      %v2931 = vrot.slane %v2929, 4
      %v2932 = vrot.slane %v2095, 5
      %v2933 = vsel %vm1289, %v2931, %v2932
      %v2934 = vrot.slane %v2804, 5
      %v2935 = vrot.slane %v2934, 4
      %v2936 = vrot.slane %v2097, 5
      %v2937 = vsel %vm1289, %v2935, %v2936
      %v2938 = vrot.slane %v2936, 4
      %v2939 = vrot.slane %v2098, 5
      %v2940 = vsel %vm1289, %v2938, %v2939
      %v2941 = vrot.slane %v2805, 5
      %v2942 = vrot.slane %v2941, 4
      %v2943 = vrot.slane %v2100, 5
      %v2944 = vsel %vm1289, %v2942, %v2943
      %v2945 = vrot.slane %v2943, 4
      %v2946 = vrot.slane %v2101, 5
      %v2947 = vsel %vm1289, %v2945, %v2946
      %v2948 = vrot.slane %v2806, 5
      %v2949 = vrot.slane %v2948, 4
      %v2950 = vrot.slane %v2103, 5
      %v2951 = vsel %vm1289, %v2949, %v2950
      %v2952 = vrot.slane %v2950, 4
      %v2953 = vrot.slane %v2104, 5
      %v2954 = vsel %vm1289, %v2952, %v2953
      %v2955 = vrot.slane %v2807, 5
      %v2956 = vrot.slane %v2955, 4
      %v2957 = vrot.slane %v2106, 5
      %v2958 = vsel %vm1289, %v2956, %v2957
      %v2959 = vrot.slane %v2957, 4
      %v2960 = vrot.slane %v2107, 5
      %v2961 = vsel %vm1289, %v2959, %v2960
      %v2962 = vrot.slane %v2808, 5
      %v2963 = vrot.slane %v2962, 4
      %v2964 = vrot.slane %v2109, 5
      %v2965 = vsel %vm1289, %v2963, %v2964
      %v2966 = vrot.slane %v2964, 4
      %v2967 = vrot.slane %v2110, 5
      %v2968 = vsel %vm1289, %v2966, %v2967
      %s2969 = scalar_lea.vmem %s222, 40
      %v2970 = vld [vmem:[%s2969] sm:$0xf]
      %v2971 = vld [vmem:[%s2969 + $0x4] sm:$0xf]
      %v2972 = vunpack.c.l.b16 %v2860
      %v2973 = vunpack.c.l.b16 %v2863
      %v2974 = vunpack.c.l.b16 %v2867
      %v2975 = vunpack.c.l.b16 %v2870
      %v2976 = vunpack.c.l.b16 %v2874
      %v2977 = vunpack.c.l.b16 %v2877
      %v2978 = vunpack.c.l.b16 %v2881
      %v2979 = vunpack.c.l.b16 %v2884
      %v2980 = vunpack.c.l.b16 %v2888
      %v2981 = vunpack.c.l.b16 %v2891
      %v2982 = vunpack.c.l.b16 %v2895
      %v2983 = vunpack.c.l.b16 %v2898
      %v2984 = vunpack.c.l.b16 %v2902
      %v2985 = vunpack.c.l.b16 %v2905
      %v2986 = vunpack.c.l.b16 %v2909
      %v2987 = vunpack.c.l.b16 %v2912
      %v2988 = vunpack.c.l.b16 %v2916
      %v2989 = vunpack.c.l.b16 %v2919
      %v2990 = vunpack.c.l.b16 %v2923
      %v2991 = vunpack.c.l.b16 %v2926
      %v2992 = vunpack.c.l.b16 %v2930
      %v2993 = vunpack.c.l.b16 %v2933
      %v2994 = vunpack.c.l.b16 %v2937
      %v2995 = vunpack.c.l.b16 %v2940
      %v2996 = vunpack.c.l.b16 %v2944
      %v2997 = vunpack.c.l.b16 %v2947
      %v2998 = vunpack.c.l.b16 %v2951
      %v2999 = vunpack.c.l.b16 %v2954
      %v3000 = vunpack.c.l.b16 %v2958
      %v3001 = vunpack.c.l.b16 %v2961
      %v3002 = vunpack.c.l.b16 %v2965
      %v3003 = vunpack.c.l.b16 %v2968
      %v3004 = vpack.c.b16 %v2973, %v2972
      %v3005 = vpack.c.b16 %v2975, %v2974
      %v3006 = vpack.c.b16 %v2977, %v2976
      %v3007 = vpack.c.b16 %v2979, %v2978
      %v3008 = vpack.c.b16 %v2981, %v2980
      %v3009 = vpack.c.b16 %v2983, %v2982
      %v3010 = vpack.c.b16 %v2985, %v2984
      %v3011 = vpack.c.b16 %v2987, %v2986
      %v3012 = vpack.c.b16 %v2989, %v2988
      %v3013 = vpack.c.b16 %v2991, %v2990
      %v3014 = vpack.c.b16 %v2993, %v2992
      %v3015 = vpack.c.b16 %v2995, %v2994
      %v3016 = vpack.c.b16 %v2997, %v2996
      %v3017 = vpack.c.b16 %v2999, %v2998
      %v3018 = vpack.c.b16 %v3001, %v3000
      %v3019 = vpack.c.b16 %v3003, %v3002
      %v3022 = vunpack.c.l.b16 %v2970
      %v3023 = vunpack.c.l.b16 %v2971
      %v3024 = vpack.c.b16 %v3023, %v3022
      %v3027 = vsel %vm734, %v3004, 0
      %v3030 = vsel %vm734, %v3005, 0
      %v3033 = vsel %vm734, %v3006, 0
      %v3036 = vsel %vm734, %v3007, 0
      %v3039 = vsel %vm734, %v3008, 0
      %v3042 = vsel %vm734, %v3009, 0
      %v3045 = vsel %vm734, %v3010, 0
      %v3048 = vsel %vm734, %v3011, 0
      %v3051 = vsel %vm734, %v3012, 0
      %v3054 = vsel %vm734, %v3013, 0
      %v3057 = vsel %vm734, %v3014, 0
      %v3060 = vsel %vm734, %v3015, 0
      %v3063 = vsel %vm734, %v3016, 0
      %v3066 = vsel %vm734, %v3017, 0
      %v3069 = vsel %vm734, %v3018, 0
      %v3072 = vsel %vm734, %v3019, 0
      %3074 = vmatprep.subr.bf16.mxu0 0
      %3075 = vmatpush1.bf16.msra.mxu0 %v3024
      %3076 = vmatprep.subr.bf16.mxu0 0
      %3077 = vmatpush1.bf16.msra.mxu0 0
      %3078 = vmatprep.subr.bf16.mxu0 0
      %3079 = vmatpush1.bf16.msra.mxu0 0
      %3080 = vmatprep.subr.bf16.mxu0 0
      %3081 = vmatpush1.bf16.msra.mxu0 0
      %3082 = vmatprep.subr.bf16.mxu0 0
      %3083 = vmatpush1.bf16.msra.mxu0 0
      %3084 = vmatprep.subr.bf16.mxu0 0
      %3085 = vmatpush1.bf16.msra.mxu0 0
      %3086 = vmatprep.subr.bf16.mxu0 0
      %3087 = vmatpush1.bf16.msra.mxu0 0
      %3088 = vmatprep.subr.bf16.mxu0 0
      %3089 = vmatpush1.bf16.msra.mxu0 0
      %3090 = vmatprep.subr.bf16.mxu0 0
      %3091 = vmatpush1.bf16.msra.mxu0 0
      %3092 = vmatprep.subr.bf16.mxu0 0
      %3093 = vmatpush1.bf16.msra.mxu0 0
      %3094 = vmatprep.subr.bf16.mxu0 0
      %3095 = vmatpush1.bf16.msra.mxu0 0
      %3096 = vmatprep.subr.bf16.mxu0 0
      %3097 = vmatpush1.bf16.msra.mxu0 0
      %3098 = vmatprep.subr.bf16.mxu0 0
      %3099 = vmatpush1.bf16.msra.mxu0 0
      %3100 = vmatprep.subr.bf16.mxu0 0
      %3101 = vmatpush1.bf16.msra.mxu0 0
      %3102 = vmatprep.subr.bf16.mxu0 0
      %3103 = vmatpush1.bf16.msra.mxu0 0
      %3104 = vmatprep.subr.bf16.mxu0 0
      %3105 = vmatpush1.bf16.msra.mxu0 0
      %3106 = vmatprep.mubr.bf16.mxu0 0
      %3107 = vmatmul.mubr.bf16.gmra.mrb[0].mxu0 %v3027
      %v3108 = vpop.f32.mrb[0].mxu0
      %v3109 = vadd.f32 0.0, %v3108
      %v3110 = vpop.f32.mrb[0].mxu0
      %v3111 = vpop.f32.mrb[0].mxu0
      %v3112 = vadd.f32 0.0, %v3111
      %v3113 = vpop.f32.mrb[0].mxu0
      %3114 = vmatprep.mubr.bf16.mxu0 0
      %3115 = vmatmul.mubr.bf16.gmra.mrb[0].mxu0 %v3030
      %v3116 = vpop.f32.mrb[0].mxu0
      %v3117 = vadd.f32 0.0, %v3116
      %v3118 = vpop.f32.mrb[0].mxu0
      %v3119 = vpop.f32.mrb[0].mxu0
      %v3120 = vadd.f32 0.0, %v3119
      %v3121 = vpop.f32.mrb[0].mxu0
      %3122 = vmatprep.mubr.bf16.mxu0 0
      %3123 = vmatmul.mubr.bf16.gmra.mrb[0].mxu0 %v3033
      %v3124 = vpop.f32.mrb[0].mxu0
      %v3125 = vadd.f32 0.0, %v3124
      %v3126 = vpop.f32.mrb[0].mxu0
      %v3127 = vpop.f32.mrb[0].mxu0
      %v3128 = vadd.f32 0.0, %v3127
      %v3129 = vpop.f32.mrb[0].mxu0
      %3130 = vmatprep.mubr.bf16.mxu0 0
      %3131 = vmatmul.mubr.bf16.gmra.mrb[0].mxu0 %v3036
      %v3132 = vpop.f32.mrb[0].mxu0
      %v3133 = vadd.f32 0.0, %v3132
      %v3134 = vpop.f32.mrb[0].mxu0
      %v3135 = vpop.f32.mrb[0].mxu0
      %v3136 = vadd.f32 0.0, %v3135
      %v3137 = vpop.f32.mrb[0].mxu0
      %3138 = vmatprep.mubr.bf16.mxu0 0
      %3139 = vmatmul.mubr.bf16.gmra.mrb[0].mxu0 %v3039
      %v3140 = vpop.f32.mrb[0].mxu0
      %v3141 = vadd.f32 0.0, %v3140
      %v3142 = vpop.f32.mrb[0].mxu0
      %v3143 = vpop.f32.mrb[0].mxu0
      %v3144 = vadd.f32 0.0, %v3143
      %v3145 = vpop.f32.mrb[0].mxu0
      %3146 = vmatprep.mubr.bf16.mxu0 0
      %3147 = vmatmul.mubr.bf16.gmra.mrb[0].mxu0 %v3042
      %v3148 = vpop.f32.mrb[0].mxu0
      %v3149 = vadd.f32 0.0, %v3148
      %v3150 = vpop.f32.mrb[0].mxu0
      %v3151 = vpop.f32.mrb[0].mxu0
      %v3152 = vadd.f32 0.0, %v3151
      %v3153 = vpop.f32.mrb[0].mxu0
      %3154 = vmatprep.mubr.bf16.mxu0 0
      %3155 = vmatmul.mubr.bf16.gmra.mrb[0].mxu0 %v3045
      %v3156 = vpop.f32.mrb[0].mxu0
      %v3157 = vadd.f32 0.0, %v3156
      %v3158 = vpop.f32.mrb[0].mxu0
      %v3159 = vpop.f32.mrb[0].mxu0
      %v3160 = vadd.f32 0.0, %v3159
      %v3161 = vpop.f32.mrb[0].mxu0
      %3162 = vmatprep.mubr.bf16.mxu0 0
      %3163 = vmatmul.mubr.bf16.gmra.mrb[0].mxu0 %v3048
      %v3164 = vpop.f32.mrb[0].mxu0
      %v3165 = vadd.f32 0.0, %v3164
      %v3166 = vpop.f32.mrb[0].mxu0
      %v3167 = vpop.f32.mrb[0].mxu0
      %v3168 = vadd.f32 0.0, %v3167
      %v3169 = vpop.f32.mrb[0].mxu0
      %3170 = vmatprep.mubr.bf16.mxu0 0
      %3171 = vmatmul.mubr.bf16.gmra.mrb[0].mxu0 %v3051
      %v3172 = vpop.f32.mrb[0].mxu0
      %v3173 = vadd.f32 0.0, %v3172
      %v3174 = vpop.f32.mrb[0].mxu0
      %v3175 = vpop.f32.mrb[0].mxu0
      %v3176 = vadd.f32 0.0, %v3175
      %v3177 = vpop.f32.mrb[0].mxu0
      %3178 = vmatprep.mubr.bf16.mxu0 0
      %3179 = vmatmul.mubr.bf16.gmra.mrb[0].mxu0 %v3054
      %v3180 = vpop.f32.mrb[0].mxu0
      %v3181 = vadd.f32 0.0, %v3180
      %v3182 = vpop.f32.mrb[0].mxu0
      %v3183 = vpop.f32.mrb[0].mxu0
      %v3184 = vadd.f32 0.0, %v3183
      %v3185 = vpop.f32.mrb[0].mxu0
      %3186 = vmatprep.mubr.bf16.mxu0 0
      %3187 = vmatmul.mubr.bf16.gmra.mrb[0].mxu0 %v3057
      %v3188 = vpop.f32.mrb[0].mxu0
      %v3189 = vadd.f32 0.0, %v3188
      %v3190 = vpop.f32.mrb[0].mxu0
      %v3191 = vpop.f32.mrb[0].mxu0
      %v3192 = vadd.f32 0.0, %v3191
      %v3193 = vpop.f32.mrb[0].mxu0
      %3194 = vmatprep.mubr.bf16.mxu0 0
      %3195 = vmatmul.mubr.bf16.gmra.mrb[0].mxu0 %v3060
      %v3196 = vpop.f32.mrb[0].mxu0
      %v3197 = vadd.f32 0.0, %v3196
      %v3198 = vpop.f32.mrb[0].mxu0
      %v3199 = vpop.f32.mrb[0].mxu0
      %v3200 = vadd.f32 0.0, %v3199
      %v3201 = vpop.f32.mrb[0].mxu0
      %3202 = vmatprep.mubr.bf16.mxu0 0
      %3203 = vmatmul.mubr.bf16.gmra.mrb[0].mxu0 %v3063
      %v3204 = vpop.f32.mrb[0].mxu0
      %v3205 = vadd.f32 0.0, %v3204
      %v3206 = vpop.f32.mrb[0].mxu0
      %v3207 = vpop.f32.mrb[0].mxu0
      %v3208 = vadd.f32 0.0, %v3207
      %v3209 = vpop.f32.mrb[0].mxu0
      %3210 = vmatprep.mubr.bf16.mxu0 0
      %3211 = vmatmul.mubr.bf16.gmra.mrb[0].mxu0 %v3066
      %v3212 = vpop.f32.mrb[0].mxu0
      %v3213 = vadd.f32 0.0, %v3212
      %v3214 = vpop.f32.mrb[0].mxu0
      %v3215 = vpop.f32.mrb[0].mxu0
      %v3216 = vadd.f32 0.0, %v3215
      %v3217 = vpop.f32.mrb[0].mxu0
      %3218 = vmatprep.mubr.bf16.mxu0 0
      %3219 = vmatmul.mubr.bf16.gmra.mrb[0].mxu0 %v3069
      %v3220 = vpop.f32.mrb[0].mxu0
      %v3221 = vadd.f32 0.0, %v3220
      %v3222 = vpop.f32.mrb[0].mxu0
      %v3223 = vpop.f32.mrb[0].mxu0
      %v3224 = vadd.f32 0.0, %v3223
      %v3225 = vpop.f32.mrb[0].mxu0
      %3226 = vmatprep.mubr.bf16.mxu0 0
      %3227 = vmatmul.mubr.bf16.gmra.mrb[0].mxu0 %v3072
      %v3228 = vpop.f32.mrb[0].mxu0
      %v3229 = vadd.f32 0.0, %v3228
      %v3230 = vpop.f32.mrb[0].mxu0
      %v3231 = vpop.f32.mrb[0].mxu0
      %v3232 = vadd.f32 0.0, %v3231
      %v3233 = vpop.f32.mrb[0].mxu0
      %3234 = vdwg.mxu0
      %v3235 = vadd.f32 %v2761, %v3109
      %v3236 = vadd.f32 %v2762, %v3112
      %v3237 = vadd.f32 %v2763, %v3117
      %v3238 = vadd.f32 %v2764, %v3120
      %v3239 = vadd.f32 %v2765, %v3125
      %v3240 = vadd.f32 %v2766, %v3128
      %v3241 = vadd.f32 %v2767, %v3133
      %v3242 = vadd.f32 %v2768, %v3136
      %v3243 = vadd.f32 %v2769, %v3141
      %v3244 = vadd.f32 %v2770, %v3144
      %v3245 = vadd.f32 %v2771, %v3149
      %v3246 = vadd.f32 %v2772, %v3152
      %v3247 = vadd.f32 %v2773, %v3157
      %v3248 = vadd.f32 %v2774, %v3160
      %v3249 = vadd.f32 %v2775, %v3165
      %v3250 = vadd.f32 %v2776, %v3168
      %v3251 = vadd.f32 %v2777, %v3173
      %v3252 = vadd.f32 %v2778, %v3176
      %v3253 = vadd.f32 %v2779, %v3181
      %v3254 = vadd.f32 %v2780, %v3184
      %v3255 = vadd.f32 %v2781, %v3189
      %v3256 = vadd.f32 %v2782, %v3192
      %v3257 = vadd.f32 %v2783, %v3197
      %v3258 = vadd.f32 %v2784, %v3200
      %v3259 = vadd.f32 %v2785, %v3205
      %v3260 = vadd.f32 %v2786, %v3208
      %v3261 = vadd.f32 %v2787, %v3213
      %v3262 = vadd.f32 %v2788, %v3216
      %v3263 = vadd.f32 %v2789, %v3221
      %v3264 = vadd.f32 %v2790, %v3224
      %v3265 = vadd.f32 %v2791, %v3229
      %v3266 = vadd.f32 %v2792, %v3232
      %s3267 = scalar_lea.vmem %s218, 24
      %v3268 = vld [vmem:[%s3267] sm:$0xf]
      %v3269 = vld [vmem:[%s3267 + $0x4] sm:$0xf]
      %v3270 = vld [vmem:[%s3267 + $0xc] sm:$0xf]
      %v3271 = vld [vmem:[%s3267 + $0x10] sm:$0xf]
      %v3272 = vld [vmem:[%s3267 + $0x18] sm:$0xf]
      %v3273 = vld [vmem:[%s3267 + $0x1c] sm:$0xf]
      %v3274 = vld [vmem:[%s3267 + $0x24] sm:$0xf]
      %v3275 = vld [vmem:[%s3267 + $0x28] sm:$0xf]
      %v3276 = vld [vmem:[%s3267 + $0x30] sm:$0xf]
      %v3277 = vld [vmem:[%s3267 + $0x34] sm:$0xf]
      %v3278 = vld [vmem:[%s3267 + $0x3c] sm:$0xf]
      %v3279 = vld [vmem:[%s3267 + $0x40] sm:$0xf]
      %v3280 = vld [vmem:[%s3267 + $0x48] sm:$0xf]
      %v3281 = vld [vmem:[%s3267 + $0x4c] sm:$0xf]
      %v3282 = vld [vmem:[%s3267 + $0x54] sm:$0xf]
      %v3283 = vld [vmem:[%s3267 + $0x58] sm:$0xf]
      %v3284 = vld [vmem:[%s3267 + $0x60] sm:$0xf]
      %v3285 = vld [vmem:[%s3267 + $0x64] sm:$0xf]
      %v3286 = vld [vmem:[%s3267 + $0x6c] sm:$0xf]
      %v3287 = vld [vmem:[%s3267 + $0x70] sm:$0xf]
      %v3288 = vld [vmem:[%s3267 + $0x78] sm:$0xf]
      %v3289 = vld [vmem:[%s3267 + $0x7c] sm:$0xf]
      %v3290 = vld [vmem:[%s3267 + $0x84] sm:$0xf]
      %v3291 = vld [vmem:[%s3267 + $0x88] sm:$0xf]
      %v3292 = vld [vmem:[%s3267 + $0x90] sm:$0xf]
      %v3293 = vld [vmem:[%s3267 + $0x94] sm:$0xf]
      %v3294 = vld [vmem:[%s3267 + $0x9c] sm:$0xf]
      %v3295 = vld [vmem:[%s3267 + $0xa0] sm:$0xf]
      %v3296 = vld [vmem:[%s3267 + $0xa8] sm:$0xf]
      %v3297 = vld [vmem:[%s3267 + $0xac] sm:$0xf]
      %v3298 = vld [vmem:[%s3267 + $0xb4] sm:$0xf]
      %v3299 = vld [vmem:[%s3267 + $0xb8] sm:$0xf]
      %s3300 = scalar_lea.vmem %s222, 48
      %v3301 = vld [vmem:[%s3300] sm:$0xf]
      %v3302 = vld [vmem:[%s3300 + $0x4] sm:$0xf]
      %v3335 = vunpack.c.l.b16 %v3268
      %v3336 = vunpack.c.l.b16 %v3269
      %v3337 = vunpack.c.l.b16 %v3270
      %v3338 = vunpack.c.l.b16 %v3271
      %v3339 = vunpack.c.l.b16 %v3272
      %v3340 = vunpack.c.l.b16 %v3273
      %v3341 = vunpack.c.l.b16 %v3274
      %v3342 = vunpack.c.l.b16 %v3275
      %v3343 = vunpack.c.l.b16 %v3276
      %v3344 = vunpack.c.l.b16 %v3277
      %v3345 = vunpack.c.l.b16 %v3278
      %v3346 = vunpack.c.l.b16 %v3279
      %v3347 = vunpack.c.l.b16 %v3280
      %v3348 = vunpack.c.l.b16 %v3281
      %v3349 = vunpack.c.l.b16 %v3282
      %v3350 = vunpack.c.l.b16 %v3283
      %v3351 = vunpack.c.l.b16 %v3284
      %v3352 = vunpack.c.l.b16 %v3285
      %v3353 = vunpack.c.l.b16 %v3286
      %v3354 = vunpack.c.l.b16 %v3287
      %v3355 = vunpack.c.l.b16 %v3288
      %v3356 = vunpack.c.l.b16 %v3289
      %v3357 = vunpack.c.l.b16 %v3290
      %v3358 = vunpack.c.l.b16 %v3291
      %v3359 = vunpack.c.l.b16 %v3292
      %v3360 = vunpack.c.l.b16 %v3293
      %v3361 = vunpack.c.l.b16 %v3294
      %v3362 = vunpack.c.l.b16 %v3295
      %v3363 = vunpack.c.l.b16 %v3296
      %v3364 = vunpack.c.l.b16 %v3297
      %v3365 = vunpack.c.l.b16 %v3298
      %v3366 = vunpack.c.l.b16 %v3299
      %v3367 = vpack.c.b16 %v3336, %v3335
      %v3368 = vpack.c.b16 %v3338, %v3337
      %v3369 = vpack.c.b16 %v3340, %v3339
      %v3370 = vpack.c.b16 %v3342, %v3341
      %v3371 = vpack.c.b16 %v3344, %v3343
      %v3372 = vpack.c.b16 %v3346, %v3345
      %v3373 = vpack.c.b16 %v3348, %v3347
      %v3374 = vpack.c.b16 %v3350, %v3349
      %v3375 = vpack.c.b16 %v3352, %v3351
      %v3376 = vpack.c.b16 %v3354, %v3353
      %v3377 = vpack.c.b16 %v3356, %v3355
      %v3378 = vpack.c.b16 %v3358, %v3357
      %v3379 = vpack.c.b16 %v3360, %v3359
      %v3380 = vpack.c.b16 %v3362, %v3361
      %v3381 = vpack.c.b16 %v3364, %v3363
      %v3382 = vpack.c.b16 %v3366, %v3365
      %v3385 = vunpack.c.l.b16 %v3301
      %v3386 = vunpack.c.l.b16 %v3302
      %v3387 = vpack.c.b16 %v3386, %v3385
      %v3390 = vsel %vm734, %v3367, 0
      %v3393 = vsel %vm734, %v3368, 0
      %v3396 = vsel %vm734, %v3369, 0
      %v3399 = vsel %vm734, %v3370, 0
      %v3402 = vsel %vm734, %v3371, 0
      %v3405 = vsel %vm734, %v3372, 0
      %v3408 = vsel %vm734, %v3373, 0
      %v3411 = vsel %vm734, %v3374, 0
      %v3414 = vsel %vm734, %v3375, 0
      %v3417 = vsel %vm734, %v3376, 0
      %v3420 = vsel %vm734, %v3377, 0
      %v3423 = vsel %vm734, %v3378, 0
      %v3426 = vsel %vm734, %v3379, 0
      %v3429 = vsel %vm734, %v3380, 0
      %v3432 = vsel %vm734, %v3381, 0
      %v3435 = vsel %vm734, %v3382, 0
      %3437 = vmatprep.subr.bf16.mxu0 0
      %3438 = vmatpush1.bf16.msra.mxu0 %v3387
      %3439 = vmatprep.subr.bf16.mxu0 0
      %3440 = vmatpush1.bf16.msra.mxu0 0
      %3441 = vmatprep.subr.bf16.mxu0 0
      %3442 = vmatpush1.bf16.msra.mxu0 0
      %3443 = vmatprep.subr.bf16.mxu0 0
      %3444 = vmatpush1.bf16.msra.mxu0 0
      %3445 = vmatprep.subr.bf16.mxu0 0
      %3446 = vmatpush1.bf16.msra.mxu0 0
      %3447 = vmatprep.subr.bf16.mxu0 0
      %3448 = vmatpush1.bf16.msra.mxu0 0
      %3449 = vmatprep.subr.bf16.mxu0 0
      %3450 = vmatpush1.bf16.msra.mxu0 0
      %3451 = vmatprep.subr.bf16.mxu0 0
      %3452 = vmatpush1.bf16.msra.mxu0 0
      %3453 = vmatprep.subr.bf16.mxu0 0
      %3454 = vmatpush1.bf16.msra.mxu0 0
      %3455 = vmatprep.subr.bf16.mxu0 0
      %3456 = vmatpush1.bf16.msra.mxu0 0
      %3457 = vmatprep.subr.bf16.mxu0 0
      %3458 = vmatpush1.bf16.msra.mxu0 0
      %3459 = vmatprep.subr.bf16.mxu0 0
      %3460 = vmatpush1.bf16.msra.mxu0 0
      %3461 = vmatprep.subr.bf16.mxu0 0
      %3462 = vmatpush1.bf16.msra.mxu0 0
      %3463 = vmatprep.subr.bf16.mxu0 0
      %3464 = vmatpush1.bf16.msra.mxu0 0
      %3465 = vmatprep.subr.bf16.mxu0 0
      %3466 = vmatpush1.bf16.msra.mxu0 0
      %3467 = vmatprep.subr.bf16.mxu0 0
      %3468 = vmatpush1.bf16.msra.mxu0 0
      %3469 = vmatprep.mubr.bf16.mxu0 0
      %3470 = vmatmul.mubr.bf16.gmra.mrb[0].mxu0 %v3390
      %v3471 = vpop.f32.mrb[0].mxu0
      %v3472 = vadd.f32 0.0, %v3471
      %v3473 = vpop.f32.mrb[0].mxu0
      %v3474 = vpop.f32.mrb[0].mxu0
      %v3475 = vadd.f32 0.0, %v3474
      %v3476 = vpop.f32.mrb[0].mxu0
      %3477 = vmatprep.mubr.bf16.mxu0 0
      %3478 = vmatmul.mubr.bf16.gmra.mrb[0].mxu0 %v3393
      %v3479 = vpop.f32.mrb[0].mxu0
      %v3480 = vadd.f32 0.0, %v3479
      %v3481 = vpop.f32.mrb[0].mxu0
      %v3482 = vpop.f32.mrb[0].mxu0
      %v3483 = vadd.f32 0.0, %v3482
      %v3484 = vpop.f32.mrb[0].mxu0
      %3485 = vmatprep.mubr.bf16.mxu0 0
      %3486 = vmatmul.mubr.bf16.gmra.mrb[0].mxu0 %v3396
      %v3487 = vpop.f32.mrb[0].mxu0
      %v3488 = vadd.f32 0.0, %v3487
      %v3489 = vpop.f32.mrb[0].mxu0
      %v3490 = vpop.f32.mrb[0].mxu0
      %v3491 = vadd.f32 0.0, %v3490
      %v3492 = vpop.f32.mrb[0].mxu0
      %3493 = vmatprep.mubr.bf16.mxu0 0
      %3494 = vmatmul.mubr.bf16.gmra.mrb[0].mxu0 %v3399
      %v3495 = vpop.f32.mrb[0].mxu0
      %v3496 = vadd.f32 0.0, %v3495
      %v3497 = vpop.f32.mrb[0].mxu0
      %v3498 = vpop.f32.mrb[0].mxu0
      %v3499 = vadd.f32 0.0, %v3498
      %v3500 = vpop.f32.mrb[0].mxu0
      %3501 = vmatprep.mubr.bf16.mxu0 0
      %3502 = vmatmul.mubr.bf16.gmra.mrb[0].mxu0 %v3402
      %v3503 = vpop.f32.mrb[0].mxu0
      %v3504 = vadd.f32 0.0, %v3503
      %v3505 = vpop.f32.mrb[0].mxu0
      %v3506 = vpop.f32.mrb[0].mxu0
      %v3507 = vadd.f32 0.0, %v3506
      %v3508 = vpop.f32.mrb[0].mxu0
      %3509 = vmatprep.mubr.bf16.mxu0 0
      %3510 = vmatmul.mubr.bf16.gmra.mrb[0].mxu0 %v3405
      %v3511 = vpop.f32.mrb[0].mxu0
      %v3512 = vadd.f32 0.0, %v3511
      %v3513 = vpop.f32.mrb[0].mxu0
      %v3514 = vpop.f32.mrb[0].mxu0
      %v3515 = vadd.f32 0.0, %v3514
      %v3516 = vpop.f32.mrb[0].mxu0
      %3517 = vmatprep.mubr.bf16.mxu0 0
      %3518 = vmatmul.mubr.bf16.gmra.mrb[0].mxu0 %v3408
      %v3519 = vpop.f32.mrb[0].mxu0
      %v3520 = vadd.f32 0.0, %v3519
      %v3521 = vpop.f32.mrb[0].mxu0
      %v3522 = vpop.f32.mrb[0].mxu0
      %v3523 = vadd.f32 0.0, %v3522
      %v3524 = vpop.f32.mrb[0].mxu0
      %3525 = vmatprep.mubr.bf16.mxu0 0
      %3526 = vmatmul.mubr.bf16.gmra.mrb[0].mxu0 %v3411
      %v3527 = vpop.f32.mrb[0].mxu0
      %v3528 = vadd.f32 0.0, %v3527
      %v3529 = vpop.f32.mrb[0].mxu0
      %v3530 = vpop.f32.mrb[0].mxu0
      %v3531 = vadd.f32 0.0, %v3530
      %v3532 = vpop.f32.mrb[0].mxu0
      %3533 = vmatprep.mubr.bf16.mxu0 0
      %3534 = vmatmul.mubr.bf16.gmra.mrb[0].mxu0 %v3414
      %v3535 = vpop.f32.mrb[0].mxu0
      %v3536 = vadd.f32 0.0, %v3535
      %v3537 = vpop.f32.mrb[0].mxu0
      %v3538 = vpop.f32.mrb[0].mxu0
      %v3539 = vadd.f32 0.0, %v3538
      %v3540 = vpop.f32.mrb[0].mxu0
      %3541 = vmatprep.mubr.bf16.mxu0 0
      %3542 = vmatmul.mubr.bf16.gmra.mrb[0].mxu0 %v3417
      %v3543 = vpop.f32.mrb[0].mxu0
      %v3544 = vadd.f32 0.0, %v3543
      %v3545 = vpop.f32.mrb[0].mxu0
      %v3546 = vpop.f32.mrb[0].mxu0
      %v3547 = vadd.f32 0.0, %v3546
      %v3548 = vpop.f32.mrb[0].mxu0
      %3549 = vmatprep.mubr.bf16.mxu0 0
      %3550 = vmatmul.mubr.bf16.gmra.mrb[0].mxu0 %v3420
      %v3551 = vpop.f32.mrb[0].mxu0
      %v3552 = vadd.f32 0.0, %v3551
      %v3553 = vpop.f32.mrb[0].mxu0
      %v3554 = vpop.f32.mrb[0].mxu0
      %v3555 = vadd.f32 0.0, %v3554
      %v3556 = vpop.f32.mrb[0].mxu0
      %3557 = vmatprep.mubr.bf16.mxu0 0
      %3558 = vmatmul.mubr.bf16.gmra.mrb[0].mxu0 %v3423
      %v3559 = vpop.f32.mrb[0].mxu0
      %v3560 = vadd.f32 0.0, %v3559
      %v3561 = vpop.f32.mrb[0].mxu0
      %v3562 = vpop.f32.mrb[0].mxu0
      %v3563 = vadd.f32 0.0, %v3562
      %v3564 = vpop.f32.mrb[0].mxu0
      %3565 = vmatprep.mubr.bf16.mxu0 0
      %3566 = vmatmul.mubr.bf16.gmra.mrb[0].mxu0 %v3426
      %v3567 = vpop.f32.mrb[0].mxu0
      %v3568 = vadd.f32 0.0, %v3567
      %v3569 = vpop.f32.mrb[0].mxu0
      %v3570 = vpop.f32.mrb[0].mxu0
      %v3571 = vadd.f32 0.0, %v3570
      %v3572 = vpop.f32.mrb[0].mxu0
      %3573 = vmatprep.mubr.bf16.mxu0 0
      %3574 = vmatmul.mubr.bf16.gmra.mrb[0].mxu0 %v3429
      %v3575 = vpop.f32.mrb[0].mxu0
      %v3576 = vadd.f32 0.0, %v3575
      %v3577 = vpop.f32.mrb[0].mxu0
      %v3578 = vpop.f32.mrb[0].mxu0
      %v3579 = vadd.f32 0.0, %v3578
      %v3580 = vpop.f32.mrb[0].mxu0
      %3581 = vmatprep.mubr.bf16.mxu0 0
      %3582 = vmatmul.mubr.bf16.gmra.mrb[0].mxu0 %v3432
      %v3583 = vpop.f32.mrb[0].mxu0
      %v3584 = vadd.f32 0.0, %v3583
      %v3585 = vpop.f32.mrb[0].mxu0
      %v3586 = vpop.f32.mrb[0].mxu0
      %v3587 = vadd.f32 0.0, %v3586
      %v3588 = vpop.f32.mrb[0].mxu0
      %3589 = vmatprep.mubr.bf16.mxu0 0
      %3590 = vmatmul.mubr.bf16.gmra.mrb[0].mxu0 %v3435
      %v3591 = vpop.f32.mrb[0].mxu0
      %v3592 = vadd.f32 0.0, %v3591
      %v3593 = vpop.f32.mrb[0].mxu0
      %v3594 = vpop.f32.mrb[0].mxu0
      %v3595 = vadd.f32 0.0, %v3594
      %v3596 = vpop.f32.mrb[0].mxu0
      %3597 = vdwg.mxu0
      %v3598 = vadd.f32 %v3235, %v3472
      %v3599 = vadd.f32 %v3236, %v3475
      %v3600 = vadd.f32 %v3237, %v3480
      %v3601 = vadd.f32 %v3238, %v3483
      %v3602 = vadd.f32 %v3239, %v3488
      %v3603 = vadd.f32 %v3240, %v3491
      %v3604 = vadd.f32 %v3241, %v3496
      %v3605 = vadd.f32 %v3242, %v3499
      %v3606 = vadd.f32 %v3243, %v3504
      %v3607 = vadd.f32 %v3244, %v3507
      %v3608 = vadd.f32 %v3245, %v3512
      %v3609 = vadd.f32 %v3246, %v3515
      %v3610 = vadd.f32 %v3247, %v3520
      %v3611 = vadd.f32 %v3248, %v3523
      %v3612 = vadd.f32 %v3249, %v3528
      %v3613 = vadd.f32 %v3250, %v3531
      %v3614 = vadd.f32 %v3251, %v3536
      %v3615 = vadd.f32 %v3252, %v3539
      %v3616 = vadd.f32 %v3253, %v3544
      %v3617 = vadd.f32 %v3254, %v3547
      %v3618 = vadd.f32 %v3255, %v3552
      %v3619 = vadd.f32 %v3256, %v3555
      %v3620 = vadd.f32 %v3257, %v3560
      %v3621 = vadd.f32 %v3258, %v3563
      %v3622 = vadd.f32 %v3259, %v3568
      %v3623 = vadd.f32 %v3260, %v3571
      %v3624 = vadd.f32 %v3261, %v3576
      %v3625 = vadd.f32 %v3262, %v3579
      %v3626 = vadd.f32 %v3263, %v3584
      %v3627 = vadd.f32 %v3264, %v3587
      %v3628 = vadd.f32 %v3265, %v3592
      %v3629 = vadd.f32 %v3266, %v3595
      %v3630 = vld [vmem:[%s3267] sm:$0xf]
      %v3631 = vld [vmem:[%s3267 + $0x4] sm:$0xf]
      %v3632 = vld [vmem:[%s3267 + $0x8] sm:$0x1]
      %v3633 = vld [vmem:[%s3267 + $0xc] sm:$0xf]
      %v3634 = vld [vmem:[%s3267 + $0x10] sm:$0xf]
      %v3635 = vld [vmem:[%s3267 + $0x14] sm:$0x1]
      %v3636 = vld [vmem:[%s3267 + $0x18] sm:$0xf]
      %v3637 = vld [vmem:[%s3267 + $0x1c] sm:$0xf]
      %v3638 = vld [vmem:[%s3267 + $0x20] sm:$0x1]
      %v3639 = vld [vmem:[%s3267 + $0x24] sm:$0xf]
      %v3640 = vld [vmem:[%s3267 + $0x28] sm:$0xf]
      %v3641 = vld [vmem:[%s3267 + $0x2c] sm:$0x1]
      %v3642 = vld [vmem:[%s3267 + $0x30] sm:$0xf]
      %v3643 = vld [vmem:[%s3267 + $0x34] sm:$0xf]
      %v3644 = vld [vmem:[%s3267 + $0x38] sm:$0x1]
      %v3645 = vld [vmem:[%s3267 + $0x3c] sm:$0xf]
      %v3646 = vld [vmem:[%s3267 + $0x40] sm:$0xf]
      %v3647 = vld [vmem:[%s3267 + $0x44] sm:$0x1]
      %v3648 = vld [vmem:[%s3267 + $0x48] sm:$0xf]
      %v3649 = vld [vmem:[%s3267 + $0x4c] sm:$0xf]
      %v3650 = vld [vmem:[%s3267 + $0x50] sm:$0x1]
      %v3651 = vld [vmem:[%s3267 + $0x54] sm:$0xf]
      %v3652 = vld [vmem:[%s3267 + $0x58] sm:$0xf]
      %v3653 = vld [vmem:[%s3267 + $0x5c] sm:$0x1]
      %v3654 = vld [vmem:[%s3267 + $0x60] sm:$0xf]
      %v3655 = vld [vmem:[%s3267 + $0x64] sm:$0xf]
      %v3656 = vld [vmem:[%s3267 + $0x68] sm:$0x1]
      %v3657 = vld [vmem:[%s3267 + $0x6c] sm:$0xf]
      %v3658 = vld [vmem:[%s3267 + $0x70] sm:$0xf]
      %v3659 = vld [vmem:[%s3267 + $0x74] sm:$0x1]
      %v3660 = vld [vmem:[%s3267 + $0x78] sm:$0xf]
      %v3661 = vld [vmem:[%s3267 + $0x7c] sm:$0xf]
      %v3662 = vld [vmem:[%s3267 + $0x80] sm:$0x1]
      %v3663 = vld [vmem:[%s3267 + $0x84] sm:$0xf]
      %v3664 = vld [vmem:[%s3267 + $0x88] sm:$0xf]
      %v3665 = vld [vmem:[%s3267 + $0x8c] sm:$0x1]
      %v3666 = vld [vmem:[%s3267 + $0x90] sm:$0xf]
      %v3667 = vld [vmem:[%s3267 + $0x94] sm:$0xf]
      %v3668 = vld [vmem:[%s3267 + $0x98] sm:$0x1]
      %v3669 = vld [vmem:[%s3267 + $0x9c] sm:$0xf]
      %v3670 = vld [vmem:[%s3267 + $0xa0] sm:$0xf]
      %v3671 = vld [vmem:[%s3267 + $0xa4] sm:$0x1]
      %v3672 = vld [vmem:[%s3267 + $0xa8] sm:$0xf]
      %v3673 = vld [vmem:[%s3267 + $0xac] sm:$0xf]
      %v3674 = vld [vmem:[%s3267 + $0xb0] sm:$0x1]
      %v3675 = vld [vmem:[%s3267 + $0xb4] sm:$0xf]
      %v3676 = vld [vmem:[%s3267 + $0xb8] sm:$0xf]
      %v3677 = vld [vmem:[%s3267 + $0xbc] sm:$0x1]
      %v3679 = vshrl.u32 %v3630, 16
      %v3681 = vrot.slane %v3679, 4
      %v3682 = vshll.u32 %v3630, 16
      %v3684 = vrot.slane %v3682, 5
      %v3685 = vor.u32 %v3681, %v3684
      %v3686 = vrot.slane %v3685, 4
      %v3688 = vshll.u32 %v3631, 16
      %v3690 = vrot.slane %v3688, 5
      %v3691 = vsel %vm292, %v3686, %v3690
      %v3692 = vshrl.u32 %v3631, 16
      %v3694 = vrot.slane %v3692, 4
      %v3695 = vor.u32 %v3694, %v3690
      %v3696 = vrot.slane %v3695, 4
      %v3698 = vshll.u32 %v3632, 16
      %v3700 = vrot.slane %v3698, 5
      %v3701 = vsel %vm292, %v3696, %v3700
      %v3703 = vshrl.u32 %v3633, 16
      %v3705 = vrot.slane %v3703, 4
      %v3706 = vshll.u32 %v3633, 16
      %v3708 = vrot.slane %v3706, 5
      %v3709 = vor.u32 %v3705, %v3708
      %v3710 = vrot.slane %v3709, 4
      %v3712 = vshll.u32 %v3634, 16
      %v3714 = vrot.slane %v3712, 5
      %v3715 = vsel %vm292, %v3710, %v3714
      %v3716 = vshrl.u32 %v3634, 16
      %v3718 = vrot.slane %v3716, 4
      %v3719 = vor.u32 %v3718, %v3714
      %v3720 = vrot.slane %v3719, 4
      %v3722 = vshll.u32 %v3635, 16
      %v3724 = vrot.slane %v3722, 5
      %v3725 = vsel %vm292, %v3720, %v3724
      %v3727 = vshrl.u32 %v3636, 16
      %v3729 = vrot.slane %v3727, 4
      %v3730 = vshll.u32 %v3636, 16
      %v3732 = vrot.slane %v3730, 5
      %v3733 = vor.u32 %v3729, %v3732
      %v3734 = vrot.slane %v3733, 4
      %v3736 = vshll.u32 %v3637, 16
      %v3738 = vrot.slane %v3736, 5
      %v3739 = vsel %vm292, %v3734, %v3738
      %v3740 = vshrl.u32 %v3637, 16
      %v3742 = vrot.slane %v3740, 4
      %v3743 = vor.u32 %v3742, %v3738
      %v3744 = vrot.slane %v3743, 4
      %v3746 = vshll.u32 %v3638, 16
      %v3748 = vrot.slane %v3746, 5
      %v3749 = vsel %vm292, %v3744, %v3748
      %v3751 = vshrl.u32 %v3639, 16
      %v3753 = vrot.slane %v3751, 4
      %v3754 = vshll.u32 %v3639, 16
      %v3756 = vrot.slane %v3754, 5
      %v3757 = vor.u32 %v3753, %v3756
      %v3758 = vrot.slane %v3757, 4
      %v3760 = vshll.u32 %v3640, 16
      %v3762 = vrot.slane %v3760, 5
      %v3763 = vsel %vm292, %v3758, %v3762
      %v3764 = vshrl.u32 %v3640, 16
      %v3766 = vrot.slane %v3764, 4
      %v3767 = vor.u32 %v3766, %v3762
      %v3768 = vrot.slane %v3767, 4
      %v3770 = vshll.u32 %v3641, 16
      %v3772 = vrot.slane %v3770, 5
      %v3773 = vsel %vm292, %v3768, %v3772
      %v3775 = vshrl.u32 %v3642, 16
      %v3777 = vrot.slane %v3775, 4
      %v3778 = vshll.u32 %v3642, 16
      %v3780 = vrot.slane %v3778, 5
      %v3781 = vor.u32 %v3777, %v3780
      %v3782 = vrot.slane %v3781, 4
      %v3784 = vshll.u32 %v3643, 16
      %v3786 = vrot.slane %v3784, 5
      %v3787 = vsel %vm292, %v3782, %v3786
      %v3788 = vshrl.u32 %v3643, 16
      %v3790 = vrot.slane %v3788, 4
      %v3791 = vor.u32 %v3790, %v3786
      %v3792 = vrot.slane %v3791, 4
      %v3794 = vshll.u32 %v3644, 16
      %v3796 = vrot.slane %v3794, 5
      %v3797 = vsel %vm292, %v3792, %v3796
      %v3799 = vshrl.u32 %v3645, 16
      %v3801 = vrot.slane %v3799, 4
      %v3802 = vshll.u32 %v3645, 16
      %v3804 = vrot.slane %v3802, 5
      %v3805 = vor.u32 %v3801, %v3804
      %v3806 = vrot.slane %v3805, 4
      %v3808 = vshll.u32 %v3646, 16
      %v3810 = vrot.slane %v3808, 5
      %v3811 = vsel %vm292, %v3806, %v3810
      %v3812 = vshrl.u32 %v3646, 16
      %v3814 = vrot.slane %v3812, 4
      %v3815 = vor.u32 %v3814, %v3810
      %v3816 = vrot.slane %v3815, 4
      %v3818 = vshll.u32 %v3647, 16
      %v3820 = vrot.slane %v3818, 5
      %v3821 = vsel %vm292, %v3816, %v3820
      %v3823 = vshrl.u32 %v3648, 16
      %v3825 = vrot.slane %v3823, 4
      %v3826 = vshll.u32 %v3648, 16
      %v3828 = vrot.slane %v3826, 5
      %v3829 = vor.u32 %v3825, %v3828
      %v3830 = vrot.slane %v3829, 4
      %v3832 = vshll.u32 %v3649, 16
      %v3834 = vrot.slane %v3832, 5
      %v3835 = vsel %vm292, %v3830, %v3834
      %v3836 = vshrl.u32 %v3649, 16
      %v3838 = vrot.slane %v3836, 4
      %v3839 = vor.u32 %v3838, %v3834
      %v3840 = vrot.slane %v3839, 4
      %v3842 = vshll.u32 %v3650, 16
      %v3844 = vrot.slane %v3842, 5
      %v3845 = vsel %vm292, %v3840, %v3844
      %v3847 = vshrl.u32 %v3651, 16
      %v3849 = vrot.slane %v3847, 4
      %v3850 = vshll.u32 %v3651, 16
      %v3852 = vrot.slane %v3850, 5
      %v3853 = vor.u32 %v3849, %v3852
      %v3854 = vrot.slane %v3853, 4
      %v3856 = vshll.u32 %v3652, 16
      %v3858 = vrot.slane %v3856, 5
      %v3859 = vsel %vm292, %v3854, %v3858
      %v3860 = vshrl.u32 %v3652, 16
      %v3862 = vrot.slane %v3860, 4
      %v3863 = vor.u32 %v3862, %v3858
      %v3864 = vrot.slane %v3863, 4
      %v3866 = vshll.u32 %v3653, 16
      %v3868 = vrot.slane %v3866, 5
      %v3869 = vsel %vm292, %v3864, %v3868
      %v3871 = vshrl.u32 %v3654, 16
      %v3873 = vrot.slane %v3871, 4
      %v3874 = vshll.u32 %v3654, 16
      %v3876 = vrot.slane %v3874, 5
      %v3877 = vor.u32 %v3873, %v3876
      %v3878 = vrot.slane %v3877, 4
      %v3880 = vshll.u32 %v3655, 16
      %v3882 = vrot.slane %v3880, 5
      %v3883 = vsel %vm292, %v3878, %v3882
      %v3884 = vshrl.u32 %v3655, 16
      %v3886 = vrot.slane %v3884, 4
      %v3887 = vor.u32 %v3886, %v3882
      %v3888 = vrot.slane %v3887, 4
      %v3890 = vshll.u32 %v3656, 16
      %v3892 = vrot.slane %v3890, 5
      %v3893 = vsel %vm292, %v3888, %v3892
      %v3895 = vshrl.u32 %v3657, 16
      %v3897 = vrot.slane %v3895, 4
      %v3898 = vshll.u32 %v3657, 16
      %v3900 = vrot.slane %v3898, 5
      %v3901 = vor.u32 %v3897, %v3900
      %v3902 = vrot.slane %v3901, 4
      %v3904 = vshll.u32 %v3658, 16
      %v3906 = vrot.slane %v3904, 5
      %v3907 = vsel %vm292, %v3902, %v3906
      %v3908 = vshrl.u32 %v3658, 16
      %v3910 = vrot.slane %v3908, 4
      %v3911 = vor.u32 %v3910, %v3906
      %v3912 = vrot.slane %v3911, 4
      %v3914 = vshll.u32 %v3659, 16
      %v3916 = vrot.slane %v3914, 5
      %v3917 = vsel %vm292, %v3912, %v3916
      %v3919 = vshrl.u32 %v3660, 16
      %v3921 = vrot.slane %v3919, 4
      %v3922 = vshll.u32 %v3660, 16
      %v3924 = vrot.slane %v3922, 5
      %v3925 = vor.u32 %v3921, %v3924
      %v3926 = vrot.slane %v3925, 4
      %v3928 = vshll.u32 %v3661, 16
      %v3930 = vrot.slane %v3928, 5
      %v3931 = vsel %vm292, %v3926, %v3930
      %v3932 = vshrl.u32 %v3661, 16
      %v3934 = vrot.slane %v3932, 4
      %v3935 = vor.u32 %v3934, %v3930
      %v3936 = vrot.slane %v3935, 4
      %v3938 = vshll.u32 %v3662, 16
      %v3940 = vrot.slane %v3938, 5
      %v3941 = vsel %vm292, %v3936, %v3940
      %v3943 = vshrl.u32 %v3663, 16
      %v3945 = vrot.slane %v3943, 4
      %v3946 = vshll.u32 %v3663, 16
      %v3948 = vrot.slane %v3946, 5
      %v3949 = vor.u32 %v3945, %v3948
      %v3950 = vrot.slane %v3949, 4
      %v3952 = vshll.u32 %v3664, 16
      %v3954 = vrot.slane %v3952, 5
      %v3955 = vsel %vm292, %v3950, %v3954
      %v3956 = vshrl.u32 %v3664, 16
      %v3958 = vrot.slane %v3956, 4
      %v3959 = vor.u32 %v3958, %v3954
      %v3960 = vrot.slane %v3959, 4
      %v3962 = vshll.u32 %v3665, 16
      %v3964 = vrot.slane %v3962, 5
      %v3965 = vsel %vm292, %v3960, %v3964
      %v3967 = vshrl.u32 %v3666, 16
      %v3969 = vrot.slane %v3967, 4
      %v3970 = vshll.u32 %v3666, 16
      %v3972 = vrot.slane %v3970, 5
      %v3973 = vor.u32 %v3969, %v3972
      %v3974 = vrot.slane %v3973, 4
      %v3976 = vshll.u32 %v3667, 16
      %v3978 = vrot.slane %v3976, 5
      %v3979 = vsel %vm292, %v3974, %v3978
      %v3980 = vshrl.u32 %v3667, 16
      %v3982 = vrot.slane %v3980, 4
      %v3983 = vor.u32 %v3982, %v3978
      %v3984 = vrot.slane %v3983, 4
      %v3986 = vshll.u32 %v3668, 16
      %v3988 = vrot.slane %v3986, 5
      %v3989 = vsel %vm292, %v3984, %v3988
      %v3991 = vshrl.u32 %v3669, 16
      %v3993 = vrot.slane %v3991, 4
      %v3994 = vshll.u32 %v3669, 16
      %v3996 = vrot.slane %v3994, 5
      %v3997 = vor.u32 %v3993, %v3996
      %v3998 = vrot.slane %v3997, 4
      %v4000 = vshll.u32 %v3670, 16
      %v4002 = vrot.slane %v4000, 5
      %v4003 = vsel %vm292, %v3998, %v4002
      %v4004 = vshrl.u32 %v3670, 16
      %v4006 = vrot.slane %v4004, 4
      %v4007 = vor.u32 %v4006, %v4002
      %v4008 = vrot.slane %v4007, 4
      %v4010 = vshll.u32 %v3671, 16
      %v4012 = vrot.slane %v4010, 5
      %v4013 = vsel %vm292, %v4008, %v4012
      %v4015 = vshrl.u32 %v3672, 16
      %v4017 = vrot.slane %v4015, 4
      %v4018 = vshll.u32 %v3672, 16
      %v4020 = vrot.slane %v4018, 5
      %v4021 = vor.u32 %v4017, %v4020
      %v4022 = vrot.slane %v4021, 4
      %v4024 = vshll.u32 %v3673, 16
      %v4026 = vrot.slane %v4024, 5
      %v4027 = vsel %vm292, %v4022, %v4026
      %v4028 = vshrl.u32 %v3673, 16
      %v4030 = vrot.slane %v4028, 4
      %v4031 = vor.u32 %v4030, %v4026
      %v4032 = vrot.slane %v4031, 4
      %v4034 = vshll.u32 %v3674, 16
      %v4036 = vrot.slane %v4034, 5
      %v4037 = vsel %vm292, %v4032, %v4036
      %v4039 = vshrl.u32 %v3675, 16
      %v4041 = vrot.slane %v4039, 4
      %v4042 = vshll.u32 %v3675, 16
      %v4044 = vrot.slane %v4042, 5
      %v4045 = vor.u32 %v4041, %v4044
      %v4046 = vrot.slane %v4045, 4
      %v4048 = vshll.u32 %v3676, 16
      %v4050 = vrot.slane %v4048, 5
      %v4051 = vsel %vm292, %v4046, %v4050
      %v4052 = vshrl.u32 %v3676, 16
      %v4054 = vrot.slane %v4052, 4
      %v4055 = vor.u32 %v4054, %v4050
      %v4056 = vrot.slane %v4055, 4
      %v4058 = vshll.u32 %v3677, 16
      %v4060 = vrot.slane %v4058, 5
      %v4061 = vsel %vm292, %v4056, %v4060
      %s4062 = scalar_lea.vmem %s222, 56
      %v4063 = vld [vmem:[%s4062] sm:$0xf]
      %v4064 = vld [vmem:[%s4062 + $0x4] sm:$0xf]
      %v4065 = vunpack.c.l.b16 %v3691
      %v4066 = vunpack.c.l.b16 %v3701
      %v4067 = vunpack.c.l.b16 %v3715
      %v4068 = vunpack.c.l.b16 %v3725
      %v4069 = vunpack.c.l.b16 %v3739
      %v4070 = vunpack.c.l.b16 %v3749
      %v4071 = vunpack.c.l.b16 %v3763
      %v4072 = vunpack.c.l.b16 %v3773
      %v4073 = vunpack.c.l.b16 %v3787
      %v4074 = vunpack.c.l.b16 %v3797
      %v4075 = vunpack.c.l.b16 %v3811
      %v4076 = vunpack.c.l.b16 %v3821
      %v4077 = vunpack.c.l.b16 %v3835
      %v4078 = vunpack.c.l.b16 %v3845
      %v4079 = vunpack.c.l.b16 %v3859
      %v4080 = vunpack.c.l.b16 %v3869
      %v4081 = vunpack.c.l.b16 %v3883
      %v4082 = vunpack.c.l.b16 %v3893
      %v4083 = vunpack.c.l.b16 %v3907
      %v4084 = vunpack.c.l.b16 %v3917
      %v4085 = vunpack.c.l.b16 %v3931
      %v4086 = vunpack.c.l.b16 %v3941
      %v4087 = vunpack.c.l.b16 %v3955
      %v4088 = vunpack.c.l.b16 %v3965
      %v4089 = vunpack.c.l.b16 %v3979
      %v4090 = vunpack.c.l.b16 %v3989
      %v4091 = vunpack.c.l.b16 %v4003
      %v4092 = vunpack.c.l.b16 %v4013
      %v4093 = vunpack.c.l.b16 %v4027
      %v4094 = vunpack.c.l.b16 %v4037
      %v4095 = vunpack.c.l.b16 %v4051
      %v4096 = vunpack.c.l.b16 %v4061
      %v4097 = vpack.c.b16 %v4066, %v4065
      %v4098 = vpack.c.b16 %v4068, %v4067
      %v4099 = vpack.c.b16 %v4070, %v4069
      %v4100 = vpack.c.b16 %v4072, %v4071
      %v4101 = vpack.c.b16 %v4074, %v4073
      %v4102 = vpack.c.b16 %v4076, %v4075
      %v4103 = vpack.c.b16 %v4078, %v4077
      %v4104 = vpack.c.b16 %v4080, %v4079
      %v4105 = vpack.c.b16 %v4082, %v4081
      %v4106 = vpack.c.b16 %v4084, %v4083
      %v4107 = vpack.c.b16 %v4086, %v4085
      %v4108 = vpack.c.b16 %v4088, %v4087
      %v4109 = vpack.c.b16 %v4090, %v4089
      %v4110 = vpack.c.b16 %v4092, %v4091
      %v4111 = vpack.c.b16 %v4094, %v4093
      %v4112 = vpack.c.b16 %v4096, %v4095
      %v4115 = vunpack.c.l.b16 %v4063
      %v4116 = vunpack.c.l.b16 %v4064
      %v4117 = vpack.c.b16 %v4116, %v4115
      %v4120 = vsel %vm734, %v4097, 0
      %v4123 = vsel %vm734, %v4098, 0
      %v4126 = vsel %vm734, %v4099, 0
      %v4129 = vsel %vm734, %v4100, 0
      %v4132 = vsel %vm734, %v4101, 0
      %v4135 = vsel %vm734, %v4102, 0
      %v4138 = vsel %vm734, %v4103, 0
      %v4141 = vsel %vm734, %v4104, 0
      %v4144 = vsel %vm734, %v4105, 0
      %v4147 = vsel %vm734, %v4106, 0
      %v4150 = vsel %vm734, %v4107, 0
      %v4153 = vsel %vm734, %v4108, 0
      %v4156 = vsel %vm734, %v4109, 0
      %v4159 = vsel %vm734, %v4110, 0
      %v4162 = vsel %vm734, %v4111, 0
      %v4165 = vsel %vm734, %v4112, 0
      %4167 = vmatprep.subr.bf16.mxu0 0
      %4168 = vmatpush1.bf16.msra.mxu0 %v4117
      %4169 = vmatprep.subr.bf16.mxu0 0
      %4170 = vmatpush1.bf16.msra.mxu0 0
      %4171 = vmatprep.subr.bf16.mxu0 0
      %4172 = vmatpush1.bf16.msra.mxu0 0
      %4173 = vmatprep.subr.bf16.mxu0 0
      %4174 = vmatpush1.bf16.msra.mxu0 0
      %4175 = vmatprep.subr.bf16.mxu0 0
      %4176 = vmatpush1.bf16.msra.mxu0 0
      %4177 = vmatprep.subr.bf16.mxu0 0
      %4178 = vmatpush1.bf16.msra.mxu0 0
      %4179 = vmatprep.subr.bf16.mxu0 0
      %4180 = vmatpush1.bf16.msra.mxu0 0
      %4181 = vmatprep.subr.bf16.mxu0 0
      %4182 = vmatpush1.bf16.msra.mxu0 0
      %4183 = vmatprep.subr.bf16.mxu0 0
      %4184 = vmatpush1.bf16.msra.mxu0 0
      %4185 = vmatprep.subr.bf16.mxu0 0
      %4186 = vmatpush1.bf16.msra.mxu0 0
      %4187 = vmatprep.subr.bf16.mxu0 0
      %4188 = vmatpush1.bf16.msra.mxu0 0
      %4189 = vmatprep.subr.bf16.mxu0 0
      %4190 = vmatpush1.bf16.msra.mxu0 0
      %4191 = vmatprep.subr.bf16.mxu0 0
      %4192 = vmatpush1.bf16.msra.mxu0 0
      %4193 = vmatprep.subr.bf16.mxu0 0
      %4194 = vmatpush1.bf16.msra.mxu0 0
      %4195 = vmatprep.subr.bf16.mxu0 0
      %4196 = vmatpush1.bf16.msra.mxu0 0
      %4197 = vmatprep.subr.bf16.mxu0 0
      %4198 = vmatpush1.bf16.msra.mxu0 0
      %4199 = vmatprep.mubr.bf16.mxu0 0
      %4200 = vmatmul.mubr.bf16.gmra.mrb[0].mxu0 %v4120
      %v4201 = vpop.f32.mrb[0].mxu0
      %v4202 = vadd.f32 0.0, %v4201
      %v4203 = vpop.f32.mrb[0].mxu0
      %v4204 = vpop.f32.mrb[0].mxu0
      %v4205 = vadd.f32 0.0, %v4204
      %v4206 = vpop.f32.mrb[0].mxu0
      %4207 = vmatprep.mubr.bf16.mxu0 0
      %4208 = vmatmul.mubr.bf16.gmra.mrb[0].mxu0 %v4123
      %v4209 = vpop.f32.mrb[0].mxu0
      %v4210 = vadd.f32 0.0, %v4209
      %v4211 = vpop.f32.mrb[0].mxu0
      %v4212 = vpop.f32.mrb[0].mxu0
      %v4213 = vadd.f32 0.0, %v4212
      %v4214 = vpop.f32.mrb[0].mxu0
      %4215 = vmatprep.mubr.bf16.mxu0 0
      %4216 = vmatmul.mubr.bf16.gmra.mrb[0].mxu0 %v4126
      %v4217 = vpop.f32.mrb[0].mxu0
      %v4218 = vadd.f32 0.0, %v4217
      %v4219 = vpop.f32.mrb[0].mxu0
      %v4220 = vpop.f32.mrb[0].mxu0
      %v4221 = vadd.f32 0.0, %v4220
      %v4222 = vpop.f32.mrb[0].mxu0
      %4223 = vmatprep.mubr.bf16.mxu0 0
      %4224 = vmatmul.mubr.bf16.gmra.mrb[0].mxu0 %v4129
      %v4225 = vpop.f32.mrb[0].mxu0
      %v4226 = vadd.f32 0.0, %v4225
      %v4227 = vpop.f32.mrb[0].mxu0
      %v4228 = vpop.f32.mrb[0].mxu0
      %v4229 = vadd.f32 0.0, %v4228
      %v4230 = vpop.f32.mrb[0].mxu0
      %4231 = vmatprep.mubr.bf16.mxu0 0
      %4232 = vmatmul.mubr.bf16.gmra.mrb[0].mxu0 %v4132
      %v4233 = vpop.f32.mrb[0].mxu0
      %v4234 = vadd.f32 0.0, %v4233
      %v4235 = vpop.f32.mrb[0].mxu0
      %v4236 = vpop.f32.mrb[0].mxu0
      %v4237 = vadd.f32 0.0, %v4236
      %v4238 = vpop.f32.mrb[0].mxu0
      %4239 = vmatprep.mubr.bf16.mxu0 0
      %4240 = vmatmul.mubr.bf16.gmra.mrb[0].mxu0 %v4135
      %v4241 = vpop.f32.mrb[0].mxu0
      %v4242 = vadd.f32 0.0, %v4241
      %v4243 = vpop.f32.mrb[0].mxu0
      %v4244 = vpop.f32.mrb[0].mxu0
      %v4245 = vadd.f32 0.0, %v4244
      %v4246 = vpop.f32.mrb[0].mxu0
      %4247 = vmatprep.mubr.bf16.mxu0 0
      %4248 = vmatmul.mubr.bf16.gmra.mrb[0].mxu0 %v4138
      %v4249 = vpop.f32.mrb[0].mxu0
      %v4250 = vadd.f32 0.0, %v4249
      %v4251 = vpop.f32.mrb[0].mxu0
      %v4252 = vpop.f32.mrb[0].mxu0
      %v4253 = vadd.f32 0.0, %v4252
      %v4254 = vpop.f32.mrb[0].mxu0
      %4255 = vmatprep.mubr.bf16.mxu0 0
      %4256 = vmatmul.mubr.bf16.gmra.mrb[0].mxu0 %v4141
      %v4257 = vpop.f32.mrb[0].mxu0
      %v4258 = vadd.f32 0.0, %v4257
      %v4259 = vpop.f32.mrb[0].mxu0
      %v4260 = vpop.f32.mrb[0].mxu0
      %v4261 = vadd.f32 0.0, %v4260
      %v4262 = vpop.f32.mrb[0].mxu0
      %4263 = vmatprep.mubr.bf16.mxu0 0
      %4264 = vmatmul.mubr.bf16.gmra.mrb[0].mxu0 %v4144
      %v4265 = vpop.f32.mrb[0].mxu0
      %v4266 = vadd.f32 0.0, %v4265
      %v4267 = vpop.f32.mrb[0].mxu0
      %v4268 = vpop.f32.mrb[0].mxu0
      %v4269 = vadd.f32 0.0, %v4268
      %v4270 = vpop.f32.mrb[0].mxu0
      %4271 = vmatprep.mubr.bf16.mxu0 0
      %4272 = vmatmul.mubr.bf16.gmra.mrb[0].mxu0 %v4147
      %v4273 = vpop.f32.mrb[0].mxu0
      %v4274 = vadd.f32 0.0, %v4273
      %v4275 = vpop.f32.mrb[0].mxu0
      %v4276 = vpop.f32.mrb[0].mxu0
      %v4277 = vadd.f32 0.0, %v4276
      %v4278 = vpop.f32.mrb[0].mxu0
      %4279 = vmatprep.mubr.bf16.mxu0 0
      %4280 = vmatmul.mubr.bf16.gmra.mrb[0].mxu0 %v4150
      %v4281 = vpop.f32.mrb[0].mxu0
      %v4282 = vadd.f32 0.0, %v4281
      %v4283 = vpop.f32.mrb[0].mxu0
      %v4284 = vpop.f32.mrb[0].mxu0
      %v4285 = vadd.f32 0.0, %v4284
      %v4286 = vpop.f32.mrb[0].mxu0
      %4287 = vmatprep.mubr.bf16.mxu0 0
      %4288 = vmatmul.mubr.bf16.gmra.mrb[0].mxu0 %v4153
      %v4289 = vpop.f32.mrb[0].mxu0
      %v4290 = vadd.f32 0.0, %v4289
      %v4291 = vpop.f32.mrb[0].mxu0
      %v4292 = vpop.f32.mrb[0].mxu0
      %v4293 = vadd.f32 0.0, %v4292
      %v4294 = vpop.f32.mrb[0].mxu0
      %4295 = vmatprep.mubr.bf16.mxu0 0
      %4296 = vmatmul.mubr.bf16.gmra.mrb[0].mxu0 %v4156
      %v4297 = vpop.f32.mrb[0].mxu0
      %v4298 = vadd.f32 0.0, %v4297
      %v4299 = vpop.f32.mrb[0].mxu0
      %v4300 = vpop.f32.mrb[0].mxu0
      %v4301 = vadd.f32 0.0, %v4300
      %v4302 = vpop.f32.mrb[0].mxu0
      %4303 = vmatprep.mubr.bf16.mxu0 0
      %4304 = vmatmul.mubr.bf16.gmra.mrb[0].mxu0 %v4159
      %v4305 = vpop.f32.mrb[0].mxu0
      %v4306 = vadd.f32 0.0, %v4305
      %v4307 = vpop.f32.mrb[0].mxu0
      %v4308 = vpop.f32.mrb[0].mxu0
      %v4309 = vadd.f32 0.0, %v4308
      %v4310 = vpop.f32.mrb[0].mxu0
      %4311 = vmatprep.mubr.bf16.mxu0 0
      %4312 = vmatmul.mubr.bf16.gmra.mrb[0].mxu0 %v4162
      %v4313 = vpop.f32.mrb[0].mxu0
      %v4314 = vadd.f32 0.0, %v4313
      %v4315 = vpop.f32.mrb[0].mxu0
      %v4316 = vpop.f32.mrb[0].mxu0
      %v4317 = vadd.f32 0.0, %v4316
      %v4318 = vpop.f32.mrb[0].mxu0
      %4319 = vmatprep.mubr.bf16.mxu0 0
      %4320 = vmatmul.mubr.bf16.gmra.mrb[0].mxu0 %v4165
      %v4321 = vpop.f32.mrb[0].mxu0
      %v4322 = vadd.f32 0.0, %v4321
      %v4323 = vpop.f32.mrb[0].mxu0
      %v4324 = vpop.f32.mrb[0].mxu0
      %v4325 = vadd.f32 0.0, %v4324
      %v4326 = vpop.f32.mrb[0].mxu0
      %4327 = vdwg.mxu0
      %v4328 = vadd.f32 %v3598, %v4202
      %v4329 = vadd.f32 %v3599, %v4205
      %v4330 = vadd.f32 %v3600, %v4210
      %v4331 = vadd.f32 %v3601, %v4213
      %v4332 = vadd.f32 %v3602, %v4218
      %v4333 = vadd.f32 %v3603, %v4221
      %v4334 = vadd.f32 %v3604, %v4226
      %v4335 = vadd.f32 %v3605, %v4229
      %v4336 = vadd.f32 %v3606, %v4234
      %v4337 = vadd.f32 %v3607, %v4237
      %v4338 = vadd.f32 %v3608, %v4242
      %v4339 = vadd.f32 %v3609, %v4245
      %v4340 = vadd.f32 %v3610, %v4250
      %v4341 = vadd.f32 %v3611, %v4253
      %v4342 = vadd.f32 %v3612, %v4258
      %v4343 = vadd.f32 %v3613, %v4261
      %v4344 = vadd.f32 %v3614, %v4266
      %v4345 = vadd.f32 %v3615, %v4269
      %v4346 = vadd.f32 %v3616, %v4274
      %v4347 = vadd.f32 %v3617, %v4277
      %v4348 = vadd.f32 %v3618, %v4282
      %v4349 = vadd.f32 %v3619, %v4285
      %v4350 = vadd.f32 %v3620, %v4290
      %v4351 = vadd.f32 %v3621, %v4293
      %v4352 = vadd.f32 %v3622, %v4298
      %v4353 = vadd.f32 %v3623, %v4301
      %v4354 = vadd.f32 %v3624, %v4306
      %v4355 = vadd.f32 %v3625, %v4309
      %v4356 = vadd.f32 %v3626, %v4314
      %v4357 = vadd.f32 %v3627, %v4317
      %v4358 = vadd.f32 %v3628, %v4322
      %v4359 = vadd.f32 %v3629, %v4325
      %v4360 = vld [vmem:[%s3267] sm:$0xe]
      %v4361 = vld [vmem:[%s3267 + $0xc] sm:$0xe]
      %v4362 = vld [vmem:[%s3267 + $0x18] sm:$0xe]
      %v4363 = vld [vmem:[%s3267 + $0x24] sm:$0xe]
      %v4364 = vld [vmem:[%s3267 + $0x30] sm:$0xe]
      %v4365 = vld [vmem:[%s3267 + $0x3c] sm:$0xe]
      %v4366 = vld [vmem:[%s3267 + $0x48] sm:$0xe]
      %v4367 = vld [vmem:[%s3267 + $0x54] sm:$0xe]
      %v4368 = vld [vmem:[%s3267 + $0x60] sm:$0xe]
      %v4369 = vld [vmem:[%s3267 + $0x6c] sm:$0xe]
      %v4370 = vld [vmem:[%s3267 + $0x78] sm:$0xe]
      %v4371 = vld [vmem:[%s3267 + $0x84] sm:$0xe]
      %v4372 = vld [vmem:[%s3267 + $0x90] sm:$0xe]
      %v4373 = vld [vmem:[%s3267 + $0x9c] sm:$0xe]
      %v4374 = vld [vmem:[%s3267 + $0xa8] sm:$0xe]
      %v4375 = vld [vmem:[%s3267 + $0xb4] sm:$0xe]
      %v4424 = vrot.slane %v4360, 5
      %v4425 = vrot.slane %v4424, 4
      %v4426 = vrot.slane %v3631, 5
      %v4427 = vsel %vm1289, %v4425, %v4426
      %v4428 = vrot.slane %v4426, 4
      %v4429 = vrot.slane %v3632, 5
      %v4430 = vsel %vm1289, %v4428, %v4429
      %v4431 = vrot.slane %v4361, 5
      %v4432 = vrot.slane %v4431, 4
      %v4433 = vrot.slane %v3634, 5
      %v4434 = vsel %vm1289, %v4432, %v4433
      %v4435 = vrot.slane %v4433, 4
      %v4436 = vrot.slane %v3635, 5
      %v4437 = vsel %vm1289, %v4435, %v4436
      %v4438 = vrot.slane %v4362, 5
      %v4439 = vrot.slane %v4438, 4
      %v4440 = vrot.slane %v3637, 5
      %v4441 = vsel %vm1289, %v4439, %v4440
      %v4442 = vrot.slane %v4440, 4
      %v4443 = vrot.slane %v3638, 5
      %v4444 = vsel %vm1289, %v4442, %v4443
      %v4445 = vrot.slane %v4363, 5
      %v4446 = vrot.slane %v4445, 4
      %v4447 = vrot.slane %v3640, 5
      %v4448 = vsel %vm1289, %v4446, %v4447
      %v4449 = vrot.slane %v4447, 4
      %v4450 = vrot.slane %v3641, 5
      %v4451 = vsel %vm1289, %v4449, %v4450
      %v4452 = vrot.slane %v4364, 5
      %v4453 = vrot.slane %v4452, 4
      %v4454 = vrot.slane %v3643, 5
      %v4455 = vsel %vm1289, %v4453, %v4454
      %v4456 = vrot.slane %v4454, 4
      %v4457 = vrot.slane %v3644, 5
      %v4458 = vsel %vm1289, %v4456, %v4457
      %v4459 = vrot.slane %v4365, 5
      %v4460 = vrot.slane %v4459, 4
      %v4461 = vrot.slane %v3646, 5
      %v4462 = vsel %vm1289, %v4460, %v4461
      %v4463 = vrot.slane %v4461, 4
      %v4464 = vrot.slane %v3647, 5
      %v4465 = vsel %vm1289, %v4463, %v4464
      %v4466 = vrot.slane %v4366, 5
      %v4467 = vrot.slane %v4466, 4
      %v4468 = vrot.slane %v3649, 5
      %v4469 = vsel %vm1289, %v4467, %v4468
      %v4470 = vrot.slane %v4468, 4
      %v4471 = vrot.slane %v3650, 5
      %v4472 = vsel %vm1289, %v4470, %v4471
      %v4473 = vrot.slane %v4367, 5
      %v4474 = vrot.slane %v4473, 4
      %v4475 = vrot.slane %v3652, 5
      %v4476 = vsel %vm1289, %v4474, %v4475
      %v4477 = vrot.slane %v4475, 4
      %v4478 = vrot.slane %v3653, 5
      %v4479 = vsel %vm1289, %v4477, %v4478
      %v4480 = vrot.slane %v4368, 5
      %v4481 = vrot.slane %v4480, 4
      %v4482 = vrot.slane %v3655, 5
      %v4483 = vsel %vm1289, %v4481, %v4482
      %v4484 = vrot.slane %v4482, 4
      %v4485 = vrot.slane %v3656, 5
      %v4486 = vsel %vm1289, %v4484, %v4485
      %v4487 = vrot.slane %v4369, 5
      %v4488 = vrot.slane %v4487, 4
      %v4489 = vrot.slane %v3658, 5
      %v4490 = vsel %vm1289, %v4488, %v4489
      %v4491 = vrot.slane %v4489, 4
      %v4492 = vrot.slane %v3659, 5
      %v4493 = vsel %vm1289, %v4491, %v4492
      %v4494 = vrot.slane %v4370, 5
      %v4495 = vrot.slane %v4494, 4
      %v4496 = vrot.slane %v3661, 5
      %v4497 = vsel %vm1289, %v4495, %v4496
      %v4498 = vrot.slane %v4496, 4
      %v4499 = vrot.slane %v3662, 5
      %v4500 = vsel %vm1289, %v4498, %v4499
      %v4501 = vrot.slane %v4371, 5
      %v4502 = vrot.slane %v4501, 4
      %v4503 = vrot.slane %v3664, 5
      %v4504 = vsel %vm1289, %v4502, %v4503
      %v4505 = vrot.slane %v4503, 4
      %v4506 = vrot.slane %v3665, 5
      %v4507 = vsel %vm1289, %v4505, %v4506
      %v4508 = vrot.slane %v4372, 5
      %v4509 = vrot.slane %v4508, 4
      %v4510 = vrot.slane %v3667, 5
      %v4511 = vsel %vm1289, %v4509, %v4510
      %v4512 = vrot.slane %v4510, 4
      %v4513 = vrot.slane %v3668, 5
      %v4514 = vsel %vm1289, %v4512, %v4513
      %v4515 = vrot.slane %v4373, 5
      %v4516 = vrot.slane %v4515, 4
      %v4517 = vrot.slane %v3670, 5
      %v4518 = vsel %vm1289, %v4516, %v4517
      %v4519 = vrot.slane %v4517, 4
      %v4520 = vrot.slane %v3671, 5
      %v4521 = vsel %vm1289, %v4519, %v4520
      %v4522 = vrot.slane %v4374, 5
      %v4523 = vrot.slane %v4522, 4
      %v4524 = vrot.slane %v3673, 5
      %v4525 = vsel %vm1289, %v4523, %v4524
      %v4526 = vrot.slane %v4524, 4
      %v4527 = vrot.slane %v3674, 5
      %v4528 = vsel %vm1289, %v4526, %v4527
      %v4529 = vrot.slane %v4375, 5
      %v4530 = vrot.slane %v4529, 4
      %v4531 = vrot.slane %v3676, 5
      %v4532 = vsel %vm1289, %v4530, %v4531
      %v4533 = vrot.slane %v4531, 4
      %v4534 = vrot.slane %v3677, 5
      %v4535 = vsel %vm1289, %v4533, %v4534
      %s4536 = scalar_lea.vmem %s222, 64
      %v4537 = vld [vmem:[%s4536] sm:$0xf]
      %v4538 = vld [vmem:[%s4536 + $0x4] sm:$0xf]
      %v4539 = vunpack.c.l.b16 %v4427
      %v4540 = vunpack.c.l.b16 %v4430
      %v4541 = vunpack.c.l.b16 %v4434
      %v4542 = vunpack.c.l.b16 %v4437
      %v4543 = vunpack.c.l.b16 %v4441
      %v4544 = vunpack.c.l.b16 %v4444
      %v4545 = vunpack.c.l.b16 %v4448
      %v4546 = vunpack.c.l.b16 %v4451
      %v4547 = vunpack.c.l.b16 %v4455
      %v4548 = vunpack.c.l.b16 %v4458
      %v4549 = vunpack.c.l.b16 %v4462
      %v4550 = vunpack.c.l.b16 %v4465
      %v4551 = vunpack.c.l.b16 %v4469
      %v4552 = vunpack.c.l.b16 %v4472
      %v4553 = vunpack.c.l.b16 %v4476
      %v4554 = vunpack.c.l.b16 %v4479
      %v4555 = vunpack.c.l.b16 %v4483
      %v4556 = vunpack.c.l.b16 %v4486
      %v4557 = vunpack.c.l.b16 %v4490
      %v4558 = vunpack.c.l.b16 %v4493
      %v4559 = vunpack.c.l.b16 %v4497
      %v4560 = vunpack.c.l.b16 %v4500
      %v4561 = vunpack.c.l.b16 %v4504
      %v4562 = vunpack.c.l.b16 %v4507
      %v4563 = vunpack.c.l.b16 %v4511
      %v4564 = vunpack.c.l.b16 %v4514
      %v4565 = vunpack.c.l.b16 %v4518
      %v4566 = vunpack.c.l.b16 %v4521
      %v4567 = vunpack.c.l.b16 %v4525
      %v4568 = vunpack.c.l.b16 %v4528
      %v4569 = vunpack.c.l.b16 %v4532
      %v4570 = vunpack.c.l.b16 %v4535
      %v4571 = vpack.c.b16 %v4540, %v4539
      %v4572 = vpack.c.b16 %v4542, %v4541
      %v4573 = vpack.c.b16 %v4544, %v4543
      %v4574 = vpack.c.b16 %v4546, %v4545
      %v4575 = vpack.c.b16 %v4548, %v4547
      %v4576 = vpack.c.b16 %v4550, %v4549
      %v4577 = vpack.c.b16 %v4552, %v4551
      %v4578 = vpack.c.b16 %v4554, %v4553
      %v4579 = vpack.c.b16 %v4556, %v4555
      %v4580 = vpack.c.b16 %v4558, %v4557
      %v4581 = vpack.c.b16 %v4560, %v4559
      %v4582 = vpack.c.b16 %v4562, %v4561
      %v4583 = vpack.c.b16 %v4564, %v4563
      %v4584 = vpack.c.b16 %v4566, %v4565
      %v4585 = vpack.c.b16 %v4568, %v4567
      %v4586 = vpack.c.b16 %v4570, %v4569
      %v4589 = vunpack.c.l.b16 %v4537
      %v4590 = vunpack.c.l.b16 %v4538
      %v4591 = vpack.c.b16 %v4590, %v4589
      %v4594 = vsel %vm734, %v4571, 0
      %v4597 = vsel %vm734, %v4572, 0
      %v4600 = vsel %vm734, %v4573, 0
      %v4603 = vsel %vm734, %v4574, 0
      %v4606 = vsel %vm734, %v4575, 0
      %v4609 = vsel %vm734, %v4576, 0
      %v4612 = vsel %vm734, %v4577, 0
      %v4615 = vsel %vm734, %v4578, 0
      %v4618 = vsel %vm734, %v4579, 0
      %v4621 = vsel %vm734, %v4580, 0
      %v4624 = vsel %vm734, %v4581, 0
      %v4627 = vsel %vm734, %v4582, 0
      %v4630 = vsel %vm734, %v4583, 0
      %v4633 = vsel %vm734, %v4584, 0
      %v4636 = vsel %vm734, %v4585, 0
      %v4639 = vsel %vm734, %v4586, 0
      %4641 = vmatprep.subr.bf16.mxu0 0
      %4642 = vmatpush1.bf16.msra.mxu0 %v4591
      %4643 = vmatprep.subr.bf16.mxu0 0
      %4644 = vmatpush1.bf16.msra.mxu0 0
      %4645 = vmatprep.subr.bf16.mxu0 0
      %4646 = vmatpush1.bf16.msra.mxu0 0
      %4647 = vmatprep.subr.bf16.mxu0 0
      %4648 = vmatpush1.bf16.msra.mxu0 0
      %4649 = vmatprep.subr.bf16.mxu0 0
      %4650 = vmatpush1.bf16.msra.mxu0 0
      %4651 = vmatprep.subr.bf16.mxu0 0
      %4652 = vmatpush1.bf16.msra.mxu0 0
      %4653 = vmatprep.subr.bf16.mxu0 0
      %4654 = vmatpush1.bf16.msra.mxu0 0
      %4655 = vmatprep.subr.bf16.mxu0 0
      %4656 = vmatpush1.bf16.msra.mxu0 0
      %4657 = vmatprep.subr.bf16.mxu0 0
      %4658 = vmatpush1.bf16.msra.mxu0 0
      %4659 = vmatprep.subr.bf16.mxu0 0
      %4660 = vmatpush1.bf16.msra.mxu0 0
      %4661 = vmatprep.subr.bf16.mxu0 0
      %4662 = vmatpush1.bf16.msra.mxu0 0
      %4663 = vmatprep.subr.bf16.mxu0 0
      %4664 = vmatpush1.bf16.msra.mxu0 0
      %4665 = vmatprep.subr.bf16.mxu0 0
      %4666 = vmatpush1.bf16.msra.mxu0 0
      %4667 = vmatprep.subr.bf16.mxu0 0
      %4668 = vmatpush1.bf16.msra.mxu0 0
      %4669 = vmatprep.subr.bf16.mxu0 0
      %4670 = vmatpush1.bf16.msra.mxu0 0
      %4671 = vmatprep.subr.bf16.mxu0 0
      %4672 = vmatpush1.bf16.msra.mxu0 0
      %4673 = vmatprep.mubr.bf16.mxu0 0
      %4674 = vmatmul.mubr.bf16.gmra.mrb[0].mxu0 %v4594
      %v4675 = vpop.f32.mrb[0].mxu0
      %v4676 = vadd.f32 0.0, %v4675
      %v4677 = vpop.f32.mrb[0].mxu0
      %v4678 = vpop.f32.mrb[0].mxu0
      %v4679 = vadd.f32 0.0, %v4678
      %v4680 = vpop.f32.mrb[0].mxu0
      %4681 = vmatprep.mubr.bf16.mxu0 0
      %4682 = vmatmul.mubr.bf16.gmra.mrb[0].mxu0 %v4597
      %v4683 = vpop.f32.mrb[0].mxu0
      %v4684 = vadd.f32 0.0, %v4683
      %v4685 = vpop.f32.mrb[0].mxu0
      %v4686 = vpop.f32.mrb[0].mxu0
      %v4687 = vadd.f32 0.0, %v4686
      %v4688 = vpop.f32.mrb[0].mxu0
      %4689 = vmatprep.mubr.bf16.mxu0 0
      %4690 = vmatmul.mubr.bf16.gmra.mrb[0].mxu0 %v4600
      %v4691 = vpop.f32.mrb[0].mxu0
      %v4692 = vadd.f32 0.0, %v4691
      %v4693 = vpop.f32.mrb[0].mxu0
      %v4694 = vpop.f32.mrb[0].mxu0
      %v4695 = vadd.f32 0.0, %v4694
      %v4696 = vpop.f32.mrb[0].mxu0
      %4697 = vmatprep.mubr.bf16.mxu0 0
      %4698 = vmatmul.mubr.bf16.gmra.mrb[0].mxu0 %v4603
      %v4699 = vpop.f32.mrb[0].mxu0
      %v4700 = vadd.f32 0.0, %v4699
      %v4701 = vpop.f32.mrb[0].mxu0
      %v4702 = vpop.f32.mrb[0].mxu0
      %v4703 = vadd.f32 0.0, %v4702
      %v4704 = vpop.f32.mrb[0].mxu0
      %4705 = vmatprep.mubr.bf16.mxu0 0
      %4706 = vmatmul.mubr.bf16.gmra.mrb[0].mxu0 %v4606
      %v4707 = vpop.f32.mrb[0].mxu0
      %v4708 = vadd.f32 0.0, %v4707
      %v4709 = vpop.f32.mrb[0].mxu0
      %v4710 = vpop.f32.mrb[0].mxu0
      %v4711 = vadd.f32 0.0, %v4710
      %v4712 = vpop.f32.mrb[0].mxu0
      %4713 = vmatprep.mubr.bf16.mxu0 0
      %4714 = vmatmul.mubr.bf16.gmra.mrb[0].mxu0 %v4609
      %v4715 = vpop.f32.mrb[0].mxu0
      %v4716 = vadd.f32 0.0, %v4715
      %v4717 = vpop.f32.mrb[0].mxu0
      %v4718 = vpop.f32.mrb[0].mxu0
      %v4719 = vadd.f32 0.0, %v4718
      %v4720 = vpop.f32.mrb[0].mxu0
      %4721 = vmatprep.mubr.bf16.mxu0 0
      %4722 = vmatmul.mubr.bf16.gmra.mrb[0].mxu0 %v4612
      %v4723 = vpop.f32.mrb[0].mxu0
      %v4724 = vadd.f32 0.0, %v4723
      %v4725 = vpop.f32.mrb[0].mxu0
      %v4726 = vpop.f32.mrb[0].mxu0
      %v4727 = vadd.f32 0.0, %v4726
      %v4728 = vpop.f32.mrb[0].mxu0
      %4729 = vmatprep.mubr.bf16.mxu0 0
      %4730 = vmatmul.mubr.bf16.gmra.mrb[0].mxu0 %v4615
      %v4731 = vpop.f32.mrb[0].mxu0
      %v4732 = vadd.f32 0.0, %v4731
      %v4733 = vpop.f32.mrb[0].mxu0
      %v4734 = vpop.f32.mrb[0].mxu0
      %v4735 = vadd.f32 0.0, %v4734
      %v4736 = vpop.f32.mrb[0].mxu0
      %4737 = vmatprep.mubr.bf16.mxu0 0
      %4738 = vmatmul.mubr.bf16.gmra.mrb[0].mxu0 %v4618
      %v4739 = vpop.f32.mrb[0].mxu0
      %v4740 = vadd.f32 0.0, %v4739
      %v4741 = vpop.f32.mrb[0].mxu0
      %v4742 = vpop.f32.mrb[0].mxu0
      %v4743 = vadd.f32 0.0, %v4742
      %v4744 = vpop.f32.mrb[0].mxu0
      %4745 = vmatprep.mubr.bf16.mxu0 0
      %4746 = vmatmul.mubr.bf16.gmra.mrb[0].mxu0 %v4621
      %v4747 = vpop.f32.mrb[0].mxu0
      %v4748 = vadd.f32 0.0, %v4747
      %v4749 = vpop.f32.mrb[0].mxu0
      %v4750 = vpop.f32.mrb[0].mxu0
      %v4751 = vadd.f32 0.0, %v4750
      %v4752 = vpop.f32.mrb[0].mxu0
      %4753 = vmatprep.mubr.bf16.mxu0 0
      %4754 = vmatmul.mubr.bf16.gmra.mrb[0].mxu0 %v4624
      %v4755 = vpop.f32.mrb[0].mxu0
      %v4756 = vadd.f32 0.0, %v4755
      %v4757 = vpop.f32.mrb[0].mxu0
      %v4758 = vpop.f32.mrb[0].mxu0
      %v4759 = vadd.f32 0.0, %v4758
      %v4760 = vpop.f32.mrb[0].mxu0
      %4761 = vmatprep.mubr.bf16.mxu0 0
      %4762 = vmatmul.mubr.bf16.gmra.mrb[0].mxu0 %v4627
      %v4763 = vpop.f32.mrb[0].mxu0
      %v4764 = vadd.f32 0.0, %v4763
      %v4765 = vpop.f32.mrb[0].mxu0
      %v4766 = vpop.f32.mrb[0].mxu0
      %v4767 = vadd.f32 0.0, %v4766
      %v4768 = vpop.f32.mrb[0].mxu0
      %4769 = vmatprep.mubr.bf16.mxu0 0
      %4770 = vmatmul.mubr.bf16.gmra.mrb[0].mxu0 %v4630
      %v4771 = vpop.f32.mrb[0].mxu0
      %v4772 = vadd.f32 0.0, %v4771
      %v4773 = vpop.f32.mrb[0].mxu0
      %v4774 = vpop.f32.mrb[0].mxu0
      %v4775 = vadd.f32 0.0, %v4774
      %v4776 = vpop.f32.mrb[0].mxu0
      %4777 = vmatprep.mubr.bf16.mxu0 0
      %4778 = vmatmul.mubr.bf16.gmra.mrb[0].mxu0 %v4633
      %v4779 = vpop.f32.mrb[0].mxu0
      %v4780 = vadd.f32 0.0, %v4779
      %v4781 = vpop.f32.mrb[0].mxu0
      %v4782 = vpop.f32.mrb[0].mxu0
      %v4783 = vadd.f32 0.0, %v4782
      %v4784 = vpop.f32.mrb[0].mxu0
      %4785 = vmatprep.mubr.bf16.mxu0 0
      %4786 = vmatmul.mubr.bf16.gmra.mrb[0].mxu0 %v4636
      %v4787 = vpop.f32.mrb[0].mxu0
      %v4788 = vadd.f32 0.0, %v4787
      %v4789 = vpop.f32.mrb[0].mxu0
      %v4790 = vpop.f32.mrb[0].mxu0
      %v4791 = vadd.f32 0.0, %v4790
      %v4792 = vpop.f32.mrb[0].mxu0
      %4793 = vmatprep.mubr.bf16.mxu0 0
      %4794 = vmatmul.mubr.bf16.gmra.mrb[0].mxu0 %v4639
      %v4795 = vpop.f32.mrb[0].mxu0
      %v4796 = vadd.f32 0.0, %v4795
      %v4797 = vpop.f32.mrb[0].mxu0
      %v4798 = vpop.f32.mrb[0].mxu0
      %v4799 = vadd.f32 0.0, %v4798
      %v4800 = vpop.f32.mrb[0].mxu0
      %4801 = vdwg.mxu0
      %v4802 = vadd.f32 %v4328, %v4676
      %v4803 = vadd.f32 %v4329, %v4679
      %v4804 = vadd.f32 %v4330, %v4684
      %v4805 = vadd.f32 %v4331, %v4687
      %v4806 = vadd.f32 %v4332, %v4692
      %v4807 = vadd.f32 %v4333, %v4695
      %v4808 = vadd.f32 %v4334, %v4700
      %v4809 = vadd.f32 %v4335, %v4703
      %v4810 = vadd.f32 %v4336, %v4708
      %v4811 = vadd.f32 %v4337, %v4711
      %v4812 = vadd.f32 %v4338, %v4716
      %v4813 = vadd.f32 %v4339, %v4719
      %v4814 = vadd.f32 %v4340, %v4724
      %v4815 = vadd.f32 %v4341, %v4727
      %v4816 = vadd.f32 %v4342, %v4732
      %v4817 = vadd.f32 %v4343, %v4735
      %v4818 = vadd.f32 %v4344, %v4740
      %v4819 = vadd.f32 %v4345, %v4743
      %v4820 = vadd.f32 %v4346, %v4748
      %v4821 = vadd.f32 %v4347, %v4751
      %v4822 = vadd.f32 %v4348, %v4756
      %v4823 = vadd.f32 %v4349, %v4759
      %v4824 = vadd.f32 %v4350, %v4764
      %v4825 = vadd.f32 %v4351, %v4767
      %v4826 = vadd.f32 %v4352, %v4772
      %v4827 = vadd.f32 %v4353, %v4775
      %v4828 = vadd.f32 %v4354, %v4780
      %v4829 = vadd.f32 %v4355, %v4783
      %v4830 = vadd.f32 %v4356, %v4788
      %v4831 = vadd.f32 %v4357, %v4791
      %v4832 = vadd.f32 %v4358, %v4796
      %v4833 = vadd.f32 %v4359, %v4799
      %v4834 = vld [vmem:[%s230] sm:$0xf]
      %v4835 = vld [vmem:[%s230 + $0x4] sm:$0xf]
      %v4836 = vld [vmem:[%s230 + $0x8] sm:$0xf]
      %v4837 = vld [vmem:[%s230 + $0xc] sm:$0xf]
      %v4838 = vld [vmem:[%s230 + $0x10] sm:$0xf]
      %v4839 = vld [vmem:[%s230 + $0x14] sm:$0xf]
      %v4840 = vld [vmem:[%s230 + $0x18] sm:$0xf]
      %v4841 = vld [vmem:[%s230 + $0x1c] sm:$0xf]
      %v4842 = vld [vmem:[%s230 + $0x20] sm:$0xf]
      %v4843 = vld [vmem:[%s230 + $0x24] sm:$0xf]
      %v4844 = vld [vmem:[%s230 + $0x28] sm:$0xf]
      %v4845 = vld [vmem:[%s230 + $0x2c] sm:$0xf]
      %v4846 = vld [vmem:[%s230 + $0x30] sm:$0xf]
      %v4847 = vld [vmem:[%s230 + $0x34] sm:$0xf]
      %v4848 = vld [vmem:[%s230 + $0x38] sm:$0xf]
      %v4849 = vld [vmem:[%s230 + $0x3c] sm:$0xf]
      %v4850 = vld [vmem:[%s230 + $0x40] sm:$0xf]
      %v4851 = vld [vmem:[%s230 + $0x44] sm:$0xf]
      %v4852 = vld [vmem:[%s230 + $0x48] sm:$0xf]
      %v4853 = vld [vmem:[%s230 + $0x4c] sm:$0xf]
      %v4854 = vld [vmem:[%s230 + $0x50] sm:$0xf]
      %v4855 = vld [vmem:[%s230 + $0x54] sm:$0xf]
      %v4856 = vld [vmem:[%s230 + $0x58] sm:$0xf]
      %v4857 = vld [vmem:[%s230 + $0x5c] sm:$0xf]
      %v4858 = vld [vmem:[%s230 + $0x60] sm:$0xf]
      %v4859 = vld [vmem:[%s230 + $0x64] sm:$0xf]
      %v4860 = vld [vmem:[%s230 + $0x68] sm:$0xf]
      %v4861 = vld [vmem:[%s230 + $0x6c] sm:$0xf]
      %v4862 = vld [vmem:[%s230 + $0x70] sm:$0xf]
      %v4863 = vld [vmem:[%s230 + $0x74] sm:$0xf]
      %v4864 = vld [vmem:[%s230 + $0x78] sm:$0xf]
      %v4865 = vld [vmem:[%s230 + $0x7c] sm:$0xf]
      %v4866 = vunpack.c.l.bf16 %v4834
      %v4867 = vunpack.c.l.bf16 %v4835
      %v4868 = vunpack.c.l.bf16 %v4836
      %v4869 = vunpack.c.l.bf16 %v4837
      %v4870 = vunpack.c.l.bf16 %v4838
      %v4871 = vunpack.c.l.bf16 %v4839
      %v4872 = vunpack.c.l.bf16 %v4840
      %v4873 = vunpack.c.l.bf16 %v4841
      %v4874 = vunpack.c.l.bf16 %v4842
      %v4875 = vunpack.c.l.bf16 %v4843
      %v4876 = vunpack.c.l.bf16 %v4844
      %v4877 = vunpack.c.l.bf16 %v4845
      %v4878 = vunpack.c.l.bf16 %v4846
      %v4879 = vunpack.c.l.bf16 %v4847
      %v4880 = vunpack.c.l.bf16 %v4848
      %v4881 = vunpack.c.l.bf16 %v4849
      %v4882 = vunpack.c.l.bf16 %v4850
      %v4883 = vunpack.c.l.bf16 %v4851
      %v4884 = vunpack.c.l.bf16 %v4852
      %v4885 = vunpack.c.l.bf16 %v4853
      %v4886 = vunpack.c.l.bf16 %v4854
      %v4887 = vunpack.c.l.bf16 %v4855
      %v4888 = vunpack.c.l.bf16 %v4856
      %v4889 = vunpack.c.l.bf16 %v4857
      %v4890 = vunpack.c.l.bf16 %v4858
      %v4891 = vunpack.c.l.bf16 %v4859
      %v4892 = vunpack.c.l.bf16 %v4860
      %v4893 = vunpack.c.l.bf16 %v4861
      %v4894 = vunpack.c.l.bf16 %v4862
      %v4895 = vunpack.c.l.bf16 %v4863
      %v4896 = vunpack.c.l.bf16 %v4864
      %v4897 = vunpack.c.l.bf16 %v4865
      %v4898 = vadd.f32 %v4802, %v4866
      %v4899 = vadd.f32 %v4803, %v4867
      %v4900 = vadd.f32 %v4804, %v4868
      %v4901 = vadd.f32 %v4805, %v4869
      %v4902 = vadd.f32 %v4806, %v4870
      %v4903 = vadd.f32 %v4807, %v4871
      %v4904 = vadd.f32 %v4808, %v4872
      %v4905 = vadd.f32 %v4809, %v4873
      %v4906 = vadd.f32 %v4810, %v4874
      %v4907 = vadd.f32 %v4811, %v4875
      %v4908 = vadd.f32 %v4812, %v4876
      %v4909 = vadd.f32 %v4813, %v4877
      %v4910 = vadd.f32 %v4814, %v4878
      %v4911 = vadd.f32 %v4815, %v4879
      %v4912 = vadd.f32 %v4816, %v4880
      %v4913 = vadd.f32 %v4817, %v4881
      %v4914 = vadd.f32 %v4818, %v4882
      %v4915 = vadd.f32 %v4819, %v4883
      %v4916 = vadd.f32 %v4820, %v4884
      %v4917 = vadd.f32 %v4821, %v4885
      %v4918 = vadd.f32 %v4822, %v4886
      %v4919 = vadd.f32 %v4823, %v4887
      %v4920 = vadd.f32 %v4824, %v4888
      %v4921 = vadd.f32 %v4825, %v4889
      %v4922 = vadd.f32 %v4826, %v4890
      %v4923 = vadd.f32 %v4827, %v4891
      %v4924 = vadd.f32 %v4828, %v4892
      %v4925 = vadd.f32 %v4829, %v4893
      %v4926 = vadd.f32 %v4830, %v4894
      %v4927 = vadd.f32 %v4831, %v4895
      %v4928 = vadd.f32 %v4832, %v4896
      %v4929 = vadd.f32 %v4833, %v4897
      %4930 = vst.msk [vmem:[%s238] sm:$0xff] %vm734, %v4898
      %4931 = vst.msk [vmem:[%s238 + $0x8] sm:$0xff] %vm734, %v4899
      %4932 = vst.msk [vmem:[%s238 + $0x10] sm:$0xff] %vm734, %v4900
      %4933 = vst.msk [vmem:[%s238 + $0x18] sm:$0xff] %vm734, %v4901
      %4934 = vst.msk [vmem:[%s238 + $0x20] sm:$0xff] %vm734, %v4902
      %4935 = vst.msk [vmem:[%s238 + $0x28] sm:$0xff] %vm734, %v4903
      %4936 = vst.msk [vmem:[%s238 + $0x30] sm:$0xff] %vm734, %v4904
      %4937 = vst.msk [vmem:[%s238 + $0x38] sm:$0xff] %vm734, %v4905
      %4938 = vst.msk [vmem:[%s238 + $0x40] sm:$0xff] %vm734, %v4906
      %4939 = vst.msk [vmem:[%s238 + $0x48] sm:$0xff] %vm734, %v4907
      %4940 = vst.msk [vmem:[%s238 + $0x50] sm:$0xff] %vm734, %v4908
      %4941 = vst.msk [vmem:[%s238 + $0x58] sm:$0xff] %vm734, %v4909
      %4942 = vst.msk [vmem:[%s238 + $0x60] sm:$0xff] %vm734, %v4910
      %4943 = vst.msk [vmem:[%s238 + $0x68] sm:$0xff] %vm734, %v4911
      %4944 = vst.msk [vmem:[%s238 + $0x70] sm:$0xff] %vm734, %v4912
      %4945 = vst.msk [vmem:[%s238 + $0x78] sm:$0xff] %vm734, %v4913
      %4946 = vst.msk [vmem:[%s238 + $0x80] sm:$0xff] %vm734, %v4914
      %4947 = vst.msk [vmem:[%s238 + $0x88] sm:$0xff] %vm734, %v4915
      %4948 = vst.msk [vmem:[%s238 + $0x90] sm:$0xff] %vm734, %v4916
      %4949 = vst.msk [vmem:[%s238 + $0x98] sm:$0xff] %vm734, %v4917
      %4950 = vst.msk [vmem:[%s238 + $0xa0] sm:$0xff] %vm734, %v4918
      %4951 = vst.msk [vmem:[%s238 + $0xa8] sm:$0xff] %vm734, %v4919
      %4952 = vst.msk [vmem:[%s238 + $0xb0] sm:$0xff] %vm734, %v4920
      %4953 = vst.msk [vmem:[%s238 + $0xb8] sm:$0xff] %vm734, %v4921
      %4954 = vst.msk [vmem:[%s238 + $0xc0] sm:$0xff] %vm734, %v4922
      %4955 = vst.msk [vmem:[%s238 + $0xc8] sm:$0xff] %vm734, %v4923
      %4956 = vst.msk [vmem:[%s238 + $0xd0] sm:$0xff] %vm734, %v4924
      %4957 = vst.msk [vmem:[%s238 + $0xd8] sm:$0xff] %vm734, %v4925
      %4958 = vst.msk [vmem:[%s238 + $0xe0] sm:$0xff] %vm734, %v4926
      %4959 = vst.msk [vmem:[%s238 + $0xe8] sm:$0xff] %vm734, %v4927
      %4960 = vst.msk [vmem:[%s238 + $0xf0] sm:$0xff] %vm734, %v4928
      %4961 = vst.msk [vmem:[%s238 + $0xf8] sm:$0xff] %vm734, %v4929
      %p4962 = scmp.lt.s32.totalorder %s18, 1
      %s4963 = scalar_select %p4962, %s18, 1
      %p4964 = scmp.lt.s32.totalorder %s19, 0
      %s4965 = scalar_select %p4964, %s19, 0
      %s4966 = smul.addr %s4963, 32
      %s4967 = sadd.s32 %s4965, %s4966
      %s4968 = smul.addr %s4967, 8
      %s4969 = scalar_lea.vmem %s3, %s4968
      // Predicated region
      $region33: #{fwd.6} parent=31 // pred_check
        %p4970 = pneg %p126
      $region34: #{fwd.6} parent=31 // pred_check_branch
        %4972 = sbr.rel (%p4970) target = $region36
      $region35: #{fwd.6} parent=31 // pred_region
        _
      $region36: #{fwd.6} parent=31 // pred_fallthru
        _
    $region32: #{fwd.6} parent=5 // pred_fallthru
      _
    %p4973 = scmp.le.s32.totalorder 2, %s9
    // Predicated region
    $region37: #{fwd.6} parent=5 // pred_check
      %p4974 = pneg %p4973
    $region38: #{fwd.6} parent=5 // pred_check_branch
      %4976 = sbr.rel (%p4974) target = $region40
    $region39: #{fwd.6} parent=5 // pred_region
      %s4977 = ssub.s32 %s9, 2
      // Predicated region
      $region41: #{fwd.6} parent=39 // pred_check
        %p4978 = pneg %p132
      $region42: #{fwd.6} parent=39 // pred_check_branch
        %4980 = sbr.rel (%p4978) target = $region44
      $region43: #{fwd.6} parent=39 // pred_region
        %p4981 = scmp.lt.s32.totalorder %s20, 1
        %s4982 = scalar_select %p4981, %s20, 1
        %p4983 = scmp.lt.s32.totalorder %s21, 0
        %s4984 = scalar_select %p4983, %s21, 0
        %s4985 = smul.addr %s4982, 32
        %s4986 = sadd.s32 %s4984, %s4985
        %s4987 = smul.addr %s4986, 8
        %s4988 = scalar_lea.vmem %s3, %s4987
      $region44: #{fwd.6} parent=39 // pred_fallthru
        _
    $region40: #{fwd.6} parent=5 // pred_fallthru
      _
  $region6: #{fwd.6} parent=0 // loop_footer
    %s13 = sadd.s32 1, %s9
  $region7: #{fwd.6} parent=0 // loop_footer_branch
    %8 = sbr.rel target = $region3
  $region8: #{fwd.6} parent=0 // loop_exit
    _

</llo_original>
